<compile_context>
chip_gen: v7x
topology: tpu7x:2x2x1
jax: 0.10.0
libtpu: 0.0.40
codegen_flags: <defaults>
</compile_context>

<pallas_src>
import functools

import jax
import jax.numpy as jnp
from jax.experimental import pallas as pl
from jax.experimental.pallas import tpu as pltpu

IN_DIMS = 21 * 256          # 5376
START = 5 * 256             # 1280
H1, H2, H3, H4 = 1000, 100, 10, 1
H1PAD = 1024                # lane-dense padding of the 1000-wide layer-1 output
LN_EPS = 1e-5
W1_BUFFERS = 3              # DMA pipeline depth on the dominant W1 stream


def _detect_nsplit():
    """2 on v7x (one contiguous W1 slab per TensorCore), else 1 (v5e/v6e)."""
    try:
        kind = jax.devices()[0].device_kind.lower()
    except Exception:
        return 1
    return 2 if ("v7" in kind or "7x" in kind) else 1


def _bspec(block_shape, index_map, nbuf=None):
    """BlockSpec helper; requests deeper multi-buffering where supported."""
    if nbuf is not None:
        try:
            return pl.BlockSpec(block_shape, index_map,
                                pipeline_mode=pl.Buffered(nbuf))
        except TypeError:            # older BlockSpec without pipeline_mode
            pass
    return pl.BlockSpec(block_shape, index_map)


def _layernorm(h, gamma, beta):
    mu = jnp.mean(h, axis=-1, keepdims=True)
    var = jnp.mean((h - mu) ** 2, axis=-1, keepdims=True)
    return (h - mu) * jax.lax.rsqrt(var + LN_EPS) * gamma + beta


# ---------------------------------------------------------------------------
# Single-TC (v5e/v6e) kernel: layer-1 matmul with the full epilogue fused into
# the final reduction step.  grid = (K-tiles,).
# ---------------------------------------------------------------------------
def fused_kernel(x_ref, w1_ref, b1_ref, g1_ref, be1_ref,
                 w2_ref, b2_ref, g2_ref, be2_ref,
                 w3_ref, b3_ref, g3_ref, be3_ref,
                 w4_ref, b4_ref, out_ref, acc_ref):
    k = pl.program_id(0)

    @pl.when(k == 0)
    def _():
        acc_ref[...] = jnp.zeros_like(acc_ref)

    # bf16 x bf16 -> f32 accumulation on the MXU.
    acc_ref[...] += jnp.dot(x_ref[...], w1_ref[...],
                            preferred_element_type=jnp.float32)

    @pl.when(k == pl.num_programs(0) - 1)
    def _():
        h = acc_ref[...] + b1_ref[...]          # (B, 1024); padded cols exactly 0
        # LayerNorm-1 statistics over exactly the 1000 real columns.
        col = jax.lax.broadcasted_iota(jnp.int32, h.shape, 1)
        valid = (col < H1).astype(jnp.float32)
        mu = jnp.sum(h, axis=-1, keepdims=True) * (1.0 / H1)
        c = (h - mu) * valid
        var = jnp.sum(c * c, axis=-1, keepdims=True) * (1.0 / H1)
        # gamma/beta are zero on padded cols -> padded cols stay 0 after LN+ReLU;
        # W2's padded rows are zero as well.
        h1 = jnp.maximum(c * jax.lax.rsqrt(var + LN_EPS) * g1_ref[...]
                         + be1_ref[...], 0.0)
        h2 = jnp.dot(h1, w2_ref[...], preferred_element_type=jnp.float32) + b2_ref[...]
        h2 = jnp.maximum(_layernorm(h2, g2_ref[...], be2_ref[...]), 0.0)
        h3 = jnp.dot(h2, w3_ref[...], preferred_element_type=jnp.float32) + b3_ref[...]
        h3 = jnp.maximum(_layernorm(h3, g3_ref[...], be3_ref[...]), 0.0)
        h4 = jnp.dot(h3, w4_ref[...], preferred_element_type=jnp.float32) + b4_ref[...]
        out_ref[...] = h4.astype(out_ref.dtype)


# ---------------------------------------------------------------------------
# v7x kernel: layer-1 matmul with W1 split into per-TensorCore contiguous
# slabs.  grid = (N-split [parallel], K-tiles [arbitrary]).  Accumulates
# directly into the resident f32 output block (no scratch).
# ---------------------------------------------------------------------------
def layer1_split_kernel(x_ref, w1_ref, b1_ref, out_ref):
    k = pl.program_id(1)

    @pl.when(k == 0)
    def _():
        out_ref[...] = jnp.zeros_like(out_ref) + b1_ref[...]

    out_ref[...] += jnp.dot(x_ref[...], w1_ref[0],
                            preferred_element_type=jnp.float32)


def _forward_fused(xs, kp, tk, w1_buffers):
    (w1p, b1p, g1p, be1p, w2p, b2, g2, be2, w3, b3, g3, be3, w4, b4) = kp
    B = xs.shape[0]
    nk = IN_DIMS // tk
    cost = pl.CostEstimate(
        flops=2 * B * (IN_DIMS * H1PAD + H1PAD * H2 + H2 * H3 + H3 * H4),
        transcendentals=0,
        bytes_accessed=(w1p.size * w1p.dtype.itemsize + xs.size * 2
                        + w2p.size * 4 + 8 * H1PAD + B * 4),
    )
    full = lambda shape: pl.BlockSpec(shape, lambda k: (0,) * len(shape))
    out = pl.pallas_call(
        fused_kernel,
        out_shape=jax.ShapeDtypeStruct((B, 1), jnp.float32),
        grid_spec=pltpu.PrefetchScalarGridSpec(
            num_scalar_prefetch=0,
            grid=(nk,),
            in_specs=[
                pl.BlockSpec((B, tk), lambda k: (0, k)),                 # x  (K-tiled)
                _bspec((tk, H1PAD), lambda k: (k, 0), nbuf=w1_buffers),  # W1 (bf16)
                full((1, H1PAD)), full((1, H1PAD)), full((1, H1PAD)),    # b1,g1,be1
                full((H1PAD, H2)), full((1, H2)), full((1, H2)), full((1, H2)),
                full((H2, H3)), full((1, H3)), full((1, H3)), full((1, H3)),
                full((H3, H4)), full((1, H4)),
            ],
            out_specs=pl.BlockSpec((B, 1), lambda k: (0, 0)),
            scratch_shapes=[pltpu.VMEM((B, H1PAD), jnp.float32)],
        ),
        compiler_params=pltpu.CompilerParams(
            dimension_semantics=("arbitrary",),
            vmem_limit_bytes=32 * 1024 * 1024,
        ),
        cost_estimate=cost,
    )(xs, w1p, b1p, g1p, be1p, w2p, b2, g2, be2, w3, b3, g3, be3, w4, b4)
    return out.reshape((B,))


def _forward_split(xs, kp, tk, w1_buffers):
    (w1p, b1p, g1, be1, w2, b2, g2, be2, w3, b3, g3, be3, w4, b4) = kp
    B = xs.shape[0]
    nsplit = w1p.shape[0]
    ncol = H1PAD // nsplit
    nk = IN_DIMS // tk
    cost = pl.CostEstimate(
        flops=2 * B * IN_DIMS * H1PAD,
        transcendentals=0,
        bytes_accessed=(w1p.size * w1p.dtype.itemsize + xs.size * 2 * nsplit
                        + B * H1PAD * 4 + H1PAD * 4),
    )
    h1p = pl.pallas_call(
        layer1_split_kernel,
        out_shape=jax.ShapeDtypeStruct((B, H1PAD), jnp.float32),
        grid_spec=pltpu.PrefetchScalarGridSpec(
            num_scalar_prefetch=0,
            grid=(nsplit, nk),
            in_specs=[
                pl.BlockSpec((B, tk), lambda j, k: (0, k)),              # x  (K-tiled)
                _bspec((1, tk, ncol), lambda j, k: (j, k, 0),            # W1 slab (bf16)
                       nbuf=w1_buffers),
                pl.BlockSpec((1, ncol), lambda j, k: (0, j)),            # b1 (N-tiled)
            ],
            out_specs=pl.BlockSpec((B, ncol), lambda j, k: (0, j)),
        ),
        compiler_params=pltpu.CompilerParams(
            dimension_semantics=("parallel", "arbitrary"),
            vmem_limit_bytes=32 * 1024 * 1024,
        ),
        cost_estimate=cost,
    )(xs, w1p, b1p)

    # Tiny epilogue (~8 KB of activations): plain JAX, XLA fuses it; avoids a
    # second kernel launch on the split (v7x) path.
    hi = jax.lax.Precision.HIGHEST
    h = jnp.maximum(_layernorm(h1p[:, :H1], g1, be1), 0.0)
    h = jnp.maximum(_layernorm(jnp.dot(h, w2, precision=hi) + b2, g2, be2), 0.0)
    h = jnp.maximum(_layernorm(jnp.dot(h, w3, precision=hi) + b3, g3, be3), 0.0)
    h = jnp.dot(h, w4, precision=hi) + b4
    return h.reshape((B,))


@functools.partial(jax.jit, static_argnames=("tk", "w1_buffers"))
def mplnet_forward(x, kparams, labels=None, tk=1792, w1_buffers=W1_BUFFERS):
    """x: [B, C, D] with C >= 21, D >= 1536. Returns (pred[B], None) or MSE loss."""
    assert IN_DIMS % tk == 0 and tk % 128 == 0
    # Input glue (slice / reshape / bf16 cast) stays in plain JAX; x is tiny.
    # TODO(synk): fold into the pallas_call via allow_input_fusion to drop one
    # dispatched XLA op once the fusion hint is validated on all generations.
    xs = x[:, :21, START:START + 256].reshape((-1, IN_DIMS)).astype(jnp.bfloat16)
    if kparams[0].ndim == 3:          # v7x layout: W1 as [nsplit, IN_DIMS, ncol]
        pred = _forward_split(xs, kparams, tk, w1_buffers)
    else:                             # single-TC layout: fully fused kernel
        pred = _forward_fused(xs, kparams, tk, w1_buffers)
    if labels is not None:
        return jnp.mean((pred - labels) ** 2)
    return pred, None


def init_params(key):
    """Deterministic 'logical' parameters (f32, weights ~ N(0,1) like _init_parms)."""
    ks = jax.random.split(key, 8)
    # Weights stored [in, out] (transposed vs PyTorch); biases as [1, out] rows.
    w1 = jax.random.normal(ks[0], (IN_DIMS, H1), jnp.float32)
    w2 = jax.random.normal(ks[1], (H1, H2), jnp.float32)
    w3 = jax.random.normal(ks[2], (H2, H3), jnp.float32)
    w4 = jax.random.normal(ks[3], (H3, H4), jnp.float32)
    b1 = 0.01 * jax.random.normal(ks[4], (1, H1), jnp.float32)
    b2 = 0.01 * jax.random.normal(ks[5], (1, H2), jnp.float32)
    b3 = 0.01 * jax.random.normal(ks[6], (1, H3), jnp.float32)
    b4 = 0.01 * jax.random.normal(ks[7], (1, H4), jnp.float32)
    g1, be1 = jnp.ones((1, H1), jnp.float32), jnp.zeros((1, H1), jnp.float32)
    g2, be2 = jnp.ones((1, H2), jnp.float32), jnp.zeros((1, H2), jnp.float32)
    g3, be3 = jnp.ones((1, H3), jnp.float32), jnp.zeros((1, H3), jnp.float32)
    return (w1, b1, g1, be1, w2, b2, g2, be2, w3, b3, g3, be3, w4, b4)


def prepare_params(params, nsplit=None):
    """One-time (outside the forward) conversion to the kernel layout.

    Single-TC chips (v5e/v6e): W1 -> bf16, zero-padded to 1024 cols; layer-1
    LN params and W2 zero-padded so the whole epilogue can be fused into the
    layer-1 kernel.  v7x: W1 -> [2, IN_DIMS, 512] bf16 contiguous per-core
    slabs; the tiny epilogue runs in plain JAX.
    """
    (w1, b1, g1, be1, w2, b2, g2, be2, w3, b3, g3, be3, w4, b4) = params
    if nsplit is None:
        nsplit = _detect_nsplit()
    w1pad = jnp.zeros((IN_DIMS, H1PAD), jnp.bfloat16).at[:, :H1].set(
        w1.astype(jnp.bfloat16))
    b1p = jnp.zeros((1, H1PAD), jnp.float32).at[:, :H1].set(b1)
    # TODO(synk): int8 (v5e/v6e) or fp8 (v7x) W1 would cut HBM traffic another
    # 2x if the numerics budget allows; bf16 chosen here for safety.
    if nsplit > 1:
        ncol = H1PAD // nsplit
        w1p = w1pad.reshape(IN_DIMS, nsplit, ncol).transpose(1, 0, 2)
        return (w1p, b1p, g1, be1, w2, b2, g2, be2, w3, b3, g3, be3, w4, b4)
    g1p = jnp.zeros((1, H1PAD), jnp.float32).at[:, :H1].set(g1)
    be1p = jnp.zeros((1, H1PAD), jnp.float32).at[:, :H1].set(be1)
    w2p = jnp.zeros((H1PAD, H2), jnp.float32).at[:H1, :].set(w2)
    return (w1pad, b1p, g1p, be1p, w2p, b2, g2, be2, w3, b3, g3, be3, w4, b4)


def reference_forward(x, params):
    """Pure-JAX reference with matching (bf16-W1) numerics, for a sanity check."""
    (w1, b1, g1, be1, w2, b2, g2, be2, w3, b3, g3, be3, w4, b4) = params
    xs = x[:, :21, START:START + 256].reshape((-1, IN_DIMS)).astype(jnp.bfloat16)
    hi = jax.lax.Precision.HIGHEST
    h = jnp.dot(xs, w1.astype(jnp.bfloat16),
                preferred_element_type=jnp.float32) + b1
    h = jnp.maximum(_layernorm(h, g1, be1), 0.0)
    h = jnp.maximum(_layernorm(jnp.dot(h, w2, precision=hi) + b2, g2, be2), 0.0)
    h = jnp.maximum(_layernorm(jnp.dot(h, w3, precision=hi) + b3, g3, be3), 0.0)
    h = jnp.dot(h, w4, precision=hi) + b4
    return h.reshape((h.shape[0],))


if __name__ == "__main__":
    key = jax.random.PRNGKey(0)
    kx, kp = jax.random.split(key)

    # Small batch; feature dims fixed by the module (needs C >= 21, D >= 1536).
    B, C, D = 2, 24, 6 * 256
    x = jax.random.normal(kx, (B, C, D), jnp.float32)
    params = init_params(kp)
    kparams = prepare_params(params)

    try:
        pred, _ = mplnet_forward(x, kparams)
    except Exception:
        # Compatibility fallback: jax builds where BlockSpec multi-buffering
        # (pipeline_mode=pl.Buffered) is not lowered; default double-buffering.
        pred, _ = mplnet_forward(x, kparams, w1_buffers=None)
    pred = jax.block_until_ready(pred)

    ref = reference_forward(x, params)
    assert pred.shape == (B,)
    assert jnp.allclose(pred, ref, rtol=2e-2, atol=5e-2), (pred, ref)

    print("KERNEL_OK")
</pallas_src>

<mosaic_0001>
module attributes {stable_mosaic.version = 11 : i64} {
  func.func @fused_kernel(%arg0: i32, %arg1: memref<2x1792xbf16, #tpu.memory_space<vmem>>, %arg2: memref<1792x1024xbf16, #tpu.memory_space<vmem>>, %arg3: memref<1x1024xf32, #tpu.memory_space<vmem>>, %arg4: memref<1x1024xf32, #tpu.memory_space<vmem>>, %arg5: memref<1x1024xf32, #tpu.memory_space<vmem>>, %arg6: memref<1024x100xf32, #tpu.memory_space<vmem>>, %arg7: memref<1x100xf32, #tpu.memory_space<vmem>>, %arg8: memref<1x100xf32, #tpu.memory_space<vmem>>, %arg9: memref<1x100xf32, #tpu.memory_space<vmem>>, %arg10: memref<100x10xf32, #tpu.memory_space<vmem>>, %arg11: memref<1x10xf32, #tpu.memory_space<vmem>>, %arg12: memref<1x10xf32, #tpu.memory_space<vmem>>, %arg13: memref<1x10xf32, #tpu.memory_space<vmem>>, %arg14: memref<10x1xf32, #tpu.memory_space<vmem>>, %arg15: memref<1x1xf32, #tpu.memory_space<vmem>>, %arg16: memref<2x1xf32, #tpu.memory_space<vmem>>, %arg17: memref<2x1024xf32, #tpu.memory_space<vmem>>) attributes {dimension_semantics = [#tpu.dimension_semantics<arbitrary>], iteration_bounds = array<i64: 3>, scalar_prefetch = 0 : i64, scratch_operands = 1 : i64, tpu.core_type = #tpu.core_type<tc>, window_params = [{transform_indices = @transform_0, window_bounds = array<i64: 2, 1792>}, {transform_indices = @transform_1, window_bounds = array<i64: 1792, 1024>}, {pipeline_mode = #tpu.pipeline_mode<synchronous>, transform_indices = @transform_2, window_bounds = array<i64: 1, 1024>}, {pipeline_mode = #tpu.pipeline_mode<synchronous>, transform_indices = @transform_3, window_bounds = array<i64: 1, 1024>}, {pipeline_mode = #tpu.pipeline_mode<synchronous>, transform_indices = @transform_4, window_bounds = array<i64: 1, 1024>}, {pipeline_mode = #tpu.pipeline_mode<synchronous>, transform_indices = @transform_5, window_bounds = array<i64: 1024, 100>}, {pipeline_mode = #tpu.pipeline_mode<synchronous>, transform_indices = @transform_6, window_bounds = array<i64: 1, 100>}, {pipeline_mode = #tpu.pipeline_mode<synchronous>, transform_indices = @transform_7, window_bounds = array<i64: 1, 100>}, {pipeline_mode = #tpu.pipeline_mode<synchronous>, transform_indices = @transform_8, window_bounds = array<i64: 1, 100>}, {pipeline_mode = #tpu.pipeline_mode<synchronous>, transform_indices = @transform_9, window_bounds = array<i64: 100, 10>}, {pipeline_mode = #tpu.pipeline_mode<synchronous>, transform_indices = @transform_10, window_bounds = array<i64: 1, 10>}, {pipeline_mode = #tpu.pipeline_mode<synchronous>, transform_indices = @transform_11, window_bounds = array<i64: 1, 10>}, {pipeline_mode = #tpu.pipeline_mode<synchronous>, transform_indices = @transform_12, window_bounds = array<i64: 1, 10>}, {pipeline_mode = #tpu.pipeline_mode<synchronous>, transform_indices = @transform_13, window_bounds = array<i64: 10, 1>}, {pipeline_mode = #tpu.pipeline_mode<synchronous>, transform_indices = @transform_14, window_bounds = array<i64: 1, 1>}, {pipeline_mode = #tpu.pipeline_mode<synchronous>, transform_indices = @transform_15, window_bounds = array<i64: 2, 1>}]} {
    %c0_i32 = arith.constant 0 : i32
    %0 = arith.cmpi eq, %arg0, %c0_i32 : i32
    %1 = arith.extui %0 : i1 to i32
    %c0_i32_0 = arith.constant 0 : i32
    %2 = arith.cmpi ne, %1, %c0_i32_0 : i32
    scf.if %2 {
      %cst_9 = arith.constant 0.000000e+00 : f32
      %12 = vector.broadcast %cst_9 : f32 to vector<2x1024xf32>
      %c0_10 = arith.constant 0 : index
      %c0_11 = arith.constant 0 : index
      %13 = vector.load %arg17[%c0_10, %c0_11] : memref<2x1024xf32, #tpu.memory_space<vmem>>, vector<2x1024xf32>
      tpu.vector_store %arg17[%c0_10, %c0_11], %12 {strides = array<i32>} : memref<2x1024xf32, #tpu.memory_space<vmem>>, vector<2x1024xf32>,
    } else {
    }
    %c0 = arith.constant 0 : index
    %c0_1 = arith.constant 0 : index
    %3 = vector.load %arg17[%c0, %c0_1] : memref<2x1024xf32, #tpu.memory_space<vmem>>, vector<2x1024xf32>
    %c0_2 = arith.constant 0 : index
    %c0_3 = arith.constant 0 : index
    %4 = vector.load %arg1[%c0_2, %c0_3] : memref<2x1792xbf16, #tpu.memory_space<vmem>>, vector<2x1792xbf16>
    %c0_4 = arith.constant 0 : index
    %c0_5 = arith.constant 0 : index
    %5 = vector.load %arg2[%c0_4, %c0_5] : memref<1792x1024xbf16, #tpu.memory_space<vmem>>, vector<1792x1024xbf16>
    %cst = arith.constant dense<0.000000e+00> : vector<2x1024xf32>
    %6 = tpu.matmul %4, %5, %cst {dimension_numbers = #tpu.dot_dimension_numbers<[1], [0], [0], [1], [0, 0, 1, 1], [], []>} : vector<2x1792xbf16>, vector<1792x1024xbf16>, vector<2x1024xf32> -> vector<2x1024xf32>
    %7 = arith.addf %3, %6 : vector<2x1024xf32>
    %c0_6 = arith.constant 0 : index
    %c0_7 = arith.constant 0 : index
    %8 = vector.load %arg17[%c0_6, %c0_7] : memref<2x1024xf32, #tpu.memory_space<vmem>>, vector<2x1024xf32>
    tpu.vector_store %arg17[%c0_6, %c0_7], %7 {strides = array<i32>} : memref<2x1024xf32, #tpu.memory_space<vmem>>, vector<2x1024xf32>,
    %c2_i32 = arith.constant 2 : i32
    %9 = arith.cmpi eq, %arg0, %c2_i32 : i32
    %10 = arith.extui %9 : i1 to i32
    %c0_i32_8 = arith.constant 0 : i32
    %11 = arith.cmpi ne, %10, %c0_i32_8 : i32
    scf.if %11 {
      %c0_9 = arith.constant 0 : index
      %c0_10 = arith.constant 0 : index
      %12 = vector.load %arg17[%c0_9, %c0_10] : memref<2x1024xf32, #tpu.memory_space<vmem>>, vector<2x1024xf32>
      %c0_11 = arith.constant 0 : index
      %c0_12 = arith.constant 0 : index
      %13 = vector.load %arg3[%c0_11, %c0_12] : memref<1x1024xf32, #tpu.memory_space<vmem>>, vector<1x1024xf32>
      %14 = vector.broadcast %13 : vector<1x1024xf32> to vector<2x1024xf32>
      %15 = arith.addf %12, %14 : vector<2x1024xf32>
      %16 = tpu.iota {dimensions = array<i32: 1>} : vector<2x1024xi32>
      %c1000_i32 = arith.constant 1000 : i32
      %17 = vector.broadcast %c1000_i32 : i32 to vector<2x1024xi32>
      %18 = arith.cmpi slt, %16, %17 : vector<2x1024xi32>
      %19 = arith.extui %18 : vector<2x1024xi1> to vector<2x1024xi32>
      %20 = arith.sitofp %19 : vector<2x1024xi32> to vector<2x1024xf32>
      %cst_13 = arith.constant dense<0.000000e+00> : vector<2xf32>
      %21 = vector.multi_reduction <add>, %15, %cst_13 [1] : vector<2x1024xf32> to vector<2xf32>
      %22 = vector.shape_cast %21 : vector<2xf32> to vector<2x1xf32>
      %cst_14 = arith.constant 1.000000e-03 : f32
      %23 = vector.broadcast %cst_14 : f32 to vector<2x1xf32>
      %24 = arith.mulf %22, %23 : vector<2x1xf32>
      %25 = vector.broadcast %24 : vector<2x1xf32> to vector<2x1024xf32>
      %26 = arith.subf %15, %25 : vector<2x1024xf32>
      %27 = arith.mulf %26, %20 : vector<2x1024xf32>
      %28 = arith.mulf %27, %27 : vector<2x1024xf32>
      %cst_15 = arith.constant dense<0.000000e+00> : vector<2xf32>
      %29 = vector.multi_reduction <add>, %28, %cst_15 [1] : vector<2x1024xf32> to vector<2xf32>
      %30 = vector.shape_cast %29 : vector<2xf32> to vector<2x1xf32>
      %cst_16 = arith.constant 1.000000e-03 : f32
      %31 = vector.broadcast %cst_16 : f32 to vector<2x1xf32>
      %32 = arith.mulf %30, %31 : vector<2x1xf32>
      %cst_17 = arith.constant 9.99999974E-6 : f32
      %33 = vector.broadcast %cst_17 : f32 to vector<2x1xf32>
      %34 = arith.addf %32, %33 : vector<2x1xf32>
      %35 = math.rsqrt %34 : vector<2x1xf32>
      %36 = vector.broadcast %35 : vector<2x1xf32> to vector<2x1024xf32>
      %37 = arith.mulf %27, %36 : vector<2x1024xf32>
      %c0_18 = arith.constant 0 : index
      %c0_19 = arith.constant 0 : index
      %38 = vector.load %arg4[%c0_18, %c0_19] : memref<1x1024xf32, #tpu.memory_space<vmem>>, vector<1x1024xf32>
      %39 = vector.broadcast %38 : vector<1x1024xf32> to vector<2x1024xf32>
      %40 = arith.mulf %37, %39 : vector<2x1024xf32>
      %c0_20 = arith.constant 0 : index
      %c0_21 = arith.constant 0 : index
      %41 = vector.load %arg5[%c0_20, %c0_21] : memref<1x1024xf32, #tpu.memory_space<vmem>>, vector<1x1024xf32>
      %42 = vector.broadcast %41 : vector<1x1024xf32> to vector<2x1024xf32>
      %43 = arith.addf %40, %42 : vector<2x1024xf32>
      %cst_22 = arith.constant 0.000000e+00 : f32
      %44 = vector.broadcast %cst_22 : f32 to vector<2x1024xf32>
      %45 = arith.maximumf %43, %44 : vector<2x1024xf32>
      %c0_23 = arith.constant 0 : index
      %c0_24 = arith.constant 0 : index
      %46 = vector.load %arg6[%c0_23, %c0_24] : memref<1024x100xf32, #tpu.memory_space<vmem>>, vector<1024x100xf32>
      %cst_25 = arith.constant dense<0.000000e+00> : vector<2x100xf32>
      %47 = tpu.matmul %45, %46, %cst_25 {dimension_numbers = #tpu.dot_dimension_numbers<[1], [0], [0], [1], [0, 0, 1, 1], [], []>} : vector<2x1024xf32>, vector<1024x100xf32>, vector<2x100xf32> -> vector<2x100xf32>
      %c0_26 = arith.constant 0 : index
      %c0_27 = arith.constant 0 : index
      %48 = vector.load %arg7[%c0_26, %c0_27] : memref<1x100xf32, #tpu.memory_space<vmem>>, vector<1x100xf32>
      %49 = vector.broadcast %48 : vector<1x100xf32> to vector<2x100xf32>
      %50 = arith.addf %47, %49 : vector<2x100xf32>
      %c0_28 = arith.constant 0 : index
      %c0_29 = arith.constant 0 : index
      %51 = vector.load %arg8[%c0_28, %c0_29] : memref<1x100xf32, #tpu.memory_space<vmem>>, vector<1x100xf32>
      %c0_30 = arith.constant 0 : index
      %c0_31 = arith.constant 0 : index
      %52 = vector.load %arg9[%c0_30, %c0_31] : memref<1x100xf32, #tpu.memory_space<vmem>>, vector<1x100xf32>
      %cst_32 = arith.constant dense<0.000000e+00> : vector<2xf32>
      %53 = vector.multi_reduction <add>, %50, %cst_32 [1] : vector<2x100xf32> to vector<2xf32>
      %54 = vector.shape_cast %53 : vector<2xf32> to vector<2x1xf32>
      %cst_33 = arith.constant 1.000000e+02 : f32
      %55 = vector.broadcast %cst_33 : f32 to vector<2x1xf32>
      %56 = arith.divf %54, %55 : vector<2x1xf32>
      %57 = vector.broadcast %56 : vector<2x1xf32> to vector<2x100xf32>
      %58 = arith.subf %50, %57 : vector<2x100xf32>
      %59 = arith.mulf %58, %58 : vector<2x100xf32>
      %cst_34 = arith.constant dense<0.000000e+00> : vector<2xf32>
      %60 = vector.multi_reduction <add>, %59, %cst_34 [1] : vector<2x100xf32> to vector<2xf32>
      %61 = vector.shape_cast %60 : vector<2xf32> to vector<2x1xf32>
      %cst_35 = arith.constant 1.000000e+02 : f32
      %62 = vector.broadcast %cst_35 : f32 to vector<2x1xf32>
      %63 = arith.divf %61, %62 : vector<2x1xf32>
      %64 = vector.broadcast %56 : vector<2x1xf32> to vector<2x100xf32>
      %65 = arith.subf %50, %64 : vector<2x100xf32>
      %cst_36 = arith.constant 9.99999974E-6 : f32
      %66 = vector.broadcast %cst_36 : f32 to vector<2x1xf32>
      %67 = arith.addf %63, %66 : vector<2x1xf32>
      %68 = math.rsqrt %67 : vector<2x1xf32>
      %69 = vector.broadcast %68 : vector<2x1xf32> to vector<2x100xf32>
      %70 = arith.mulf %65, %69 : vector<2x100xf32>
      %71 = vector.broadcast %51 : vector<1x100xf32> to vector<2x100xf32>
      %72 = arith.mulf %70, %71 : vector<2x100xf32>
      %73 = vector.broadcast %52 : vector<1x100xf32> to vector<2x100xf32>
      %74 = arith.addf %72, %73 : vector<2x100xf32>
      %cst_37 = arith.constant 0.000000e+00 : f32
      %75 = vector.broadcast %cst_37 : f32 to vector<2x100xf32>
      %76 = arith.maximumf %74, %75 : vector<2x100xf32>
      %c0_38 = arith.constant 0 : index
      %c0_39 = arith.constant 0 : index
      %77 = vector.load %arg10[%c0_38, %c0_39] : memref<100x10xf32, #tpu.memory_space<vmem>>, vector<100x10xf32>
      %cst_40 = arith.constant dense<0.000000e+00> : vector<2x10xf32>
      %78 = tpu.matmul %76, %77, %cst_40 {dimension_numbers = #tpu.dot_dimension_numbers<[1], [0], [0], [1], [0, 0, 1, 1], [], []>} : vector<2x100xf32>, vector<100x10xf32>, vector<2x10xf32> -> vector<2x10xf32>
      %c0_41 = arith.constant 0 : index
      %c0_42 = arith.constant 0 : index
      %79 = vector.load %arg11[%c0_41, %c0_42] : memref<1x10xf32, #tpu.memory_space<vmem>>, vector<1x10xf32>
      %80 = vector.broadcast %79 : vector<1x10xf32> to vector<2x10xf32>
      %81 = arith.addf %78, %80 : vector<2x10xf32>
      %c0_43 = arith.constant 0 : index
      %c0_44 = arith.constant 0 : index
      %82 = vector.load %arg12[%c0_43, %c0_44] : memref<1x10xf32, #tpu.memory_space<vmem>>, vector<1x10xf32>
      %c0_45 = arith.constant 0 : index
      %c0_46 = arith.constant 0 : index
      %83 = vector.load %arg13[%c0_45, %c0_46] : memref<1x10xf32, #tpu.memory_space<vmem>>, vector<1x10xf32>
      %cst_47 = arith.constant dense<0.000000e+00> : vector<2xf32>
      %84 = vector.multi_reduction <add>, %81, %cst_47 [1] : vector<2x10xf32> to vector<2xf32>
      %85 = vector.shape_cast %84 : vector<2xf32> to vector<2x1xf32>
      %cst_48 = arith.constant 1.000000e+01 : f32
      %86 = vector.broadcast %cst_48 : f32 to vector<2x1xf32>
      %87 = arith.divf %85, %86 : vector<2x1xf32>
      %88 = vector.broadcast %87 : vector<2x1xf32> to vector<2x10xf32>
      %89 = arith.subf %81, %88 : vector<2x10xf32>
      %90 = arith.mulf %89, %89 : vector<2x10xf32>
      %cst_49 = arith.constant dense<0.000000e+00> : vector<2xf32>
      %91 = vector.multi_reduction <add>, %90, %cst_49 [1] : vector<2x10xf32> to vector<2xf32>
      %92 = vector.shape_cast %91 : vector<2xf32> to vector<2x1xf32>
      %cst_50 = arith.constant 1.000000e+01 : f32
      %93 = vector.broadcast %cst_50 : f32 to vector<2x1xf32>
      %94 = arith.divf %92, %93 : vector<2x1xf32>
      %95 = vector.broadcast %87 : vector<2x1xf32> to vector<2x10xf32>
      %96 = arith.subf %81, %95 : vector<2x10xf32>
      %cst_51 = arith.constant 9.99999974E-6 : f32
      %97 = vector.broadcast %cst_51 : f32 to vector<2x1xf32>
      %98 = arith.addf %94, %97 : vector<2x1xf32>
      %99 = math.rsqrt %98 : vector<2x1xf32>
      %100 = vector.broadcast %99 : vector<2x1xf32> to vector<2x10xf32>
      %101 = arith.mulf %96, %100 : vector<2x10xf32>
      %102 = vector.broadcast %82 : vector<1x10xf32> to vector<2x10xf32>
      %103 = arith.mulf %101, %102 : vector<2x10xf32>
      %104 = vector.broadcast %83 : vector<1x10xf32> to vector<2x10xf32>
      %105 = arith.addf %103, %104 : vector<2x10xf32>
      %cst_52 = arith.constant 0.000000e+00 : f32
      %106 = vector.broadcast %cst_52 : f32 to vector<2x10xf32>
      %107 = arith.maximumf %105, %106 : vector<2x10xf32>
      %c0_53 = arith.constant 0 : index
      %c0_54 = arith.constant 0 : index
      %108 = vector.load %arg14[%c0_53, %c0_54] : memref<10x1xf32, #tpu.memory_space<vmem>>, vector<10x1xf32>
      %cst_55 = arith.constant dense<0.000000e+00> : vector<2x1xf32>
      %109 = tpu.matmul %107, %108, %cst_55 {dimension_numbers = #tpu.dot_dimension_numbers<[1], [0], [0], [1], [0, 0, 1, 1], [], []>} : vector<2x10xf32>, vector<10x1xf32>, vector<2x1xf32> -> vector<2x1xf32>
      %c0_56 = arith.constant 0 : index
      %c0_57 = arith.constant 0 : index
      %110 = vector.load %arg15[%c0_56, %c0_57] : memref<1x1xf32, #tpu.memory_space<vmem>>, vector<1x1xf32>
      %111 = vector.broadcast %110 : vector<1x1xf32> to vector<2x1xf32>
      %112 = arith.addf %109, %111 : vector<2x1xf32>
      %c0_58 = arith.constant 0 : index
      %c0_59 = arith.constant 0 : index
      %113 = vector.load %arg16[%c0_58, %c0_59] : memref<2x1xf32, #tpu.memory_space<vmem>>, vector<2x1xf32>
      tpu.vector_store %arg16[%c0_58, %c0_59], %112 {strides = array<i32>} : memref<2x1xf32, #tpu.memory_space<vmem>>, vector<2x1xf32>,
    } else {
    }
    return
  }
  func.func @transform_0(%arg0: i32) -> (i32, i32) {
    %c0_i32 = arith.constant 0 : i32
    %c0_i32_0 = arith.constant 0 : i32
    return %c0_i32, %arg0 : i32, i32
  }
  func.func @transform_1(%arg0: i32) -> (i32, i32) {
    %c0_i32 = arith.constant 0 : i32
    %c0_i32_0 = arith.constant 0 : i32
    return %arg0, %c0_i32 : i32, i32
  }
  func.func @transform_2(%arg0: i32) -> (i32, i32) {
    %c0_i32 = arith.constant 0 : i32
    %c0_i32_0 = arith.constant 0 : i32
    %c0_i32_1 = arith.constant 0 : i32
    return %c0_i32, %c0_i32_0 : i32, i32
  }
  func.func @transform_3(%arg0: i32) -> (i32, i32) {
    %c0_i32 = arith.constant 0 : i32
    %c0_i32_0 = arith.constant 0 : i32
    %c0_i32_1 = arith.constant 0 : i32
    return %c0_i32, %c0_i32_0 : i32, i32
  }
  func.func @transform_4(%arg0: i32) -> (i32, i32) {
    %c0_i32 = arith.constant 0 : i32
    %c0_i32_0 = arith.constant 0 : i32
    %c0_i32_1 = arith.constant 0 : i32
    return %c0_i32, %c0_i32_0 : i32, i32
  }
  func.func @transform_5(%arg0: i32) -> (i32, i32) {
    %c0_i32 = arith.constant 0 : i32
    %c0_i32_0 = arith.constant 0 : i32
    %c0_i32_1 = arith.constant 0 : i32
    return %c0_i32, %c0_i32_0 : i32, i32
  }
  func.func @transform_6(%arg0: i32) -> (i32, i32) {
    %c0_i32 = arith.constant 0 : i32
    %c0_i32_0 = arith.constant 0 : i32
    %c0_i32_1 = arith.constant 0 : i32
    return %c0_i32, %c0_i32_0 : i32, i32
  }
  func.func @transform_7(%arg0: i32) -> (i32, i32) {
    %c0_i32 = arith.constant 0 : i32
    %c0_i32_0 = arith.constant 0 : i32
    %c0_i32_1 = arith.constant 0 : i32
    return %c0_i32, %c0_i32_0 : i32, i32
  }
  func.func @transform_8(%arg0: i32) -> (i32, i32) {
    %c0_i32 = arith.constant 0 : i32
    %c0_i32_0 = arith.constant 0 : i32
    %c0_i32_1 = arith.constant 0 : i32
    return %c0_i32, %c0_i32_0 : i32, i32
  }
  func.func @transform_9(%arg0: i32) -> (i32, i32) {
    %c0_i32 = arith.constant 0 : i32
    %c0_i32_0 = arith.constant 0 : i32
    %c0_i32_1 = arith.constant 0 : i32
    return %c0_i32, %c0_i32_0 : i32, i32
  }
  func.func @transform_10(%arg0: i32) -> (i32, i32) {
    %c0_i32 = arith.constant 0 : i32
    %c0_i32_0 = arith.constant 0 : i32
    %c0_i32_1 = arith.constant 0 : i32
    return %c0_i32, %c0_i32_0 : i32, i32
  }
  func.func @transform_11(%arg0: i32) -> (i32, i32) {
    %c0_i32 = arith.constant 0 : i32
    %c0_i32_0 = arith.constant 0 : i32
    %c0_i32_1 = arith.constant 0 : i32
    return %c0_i32, %c0_i32_0 : i32, i32
  }
  func.func @transform_12(%arg0: i32) -> (i32, i32) {
    %c0_i32 = arith.constant 0 : i32
    %c0_i32_0 = arith.constant 0 : i32
    %c0_i32_1 = arith.constant 0 : i32
    return %c0_i32, %c0_i32_0 : i32, i32
  }
  func.func @transform_13(%arg0: i32) -> (i32, i32) {
    %c0_i32 = arith.constant 0 : i32
    %c0_i32_0 = arith.constant 0 : i32
    %c0_i32_1 = arith.constant 0 : i32
    return %c0_i32, %c0_i32_0 : i32, i32
  }
  func.func @transform_14(%arg0: i32) -> (i32, i32) {
    %c0_i32 = arith.constant 0 : i32
    %c0_i32_0 = arith.constant 0 : i32
    %c0_i32_1 = arith.constant 0 : i32
    return %c0_i32, %c0_i32_0 : i32, i32
  }
  func.func @transform_15(%arg0: i32) -> (i32, i32) {
    %c0_i32 = arith.constant 0 : i32
    %c0_i32_0 = arith.constant 0 : i32
    %c0_i32_1 = arith.constant 0 : i32
    return %c0_i32, %c0_i32_0 : i32, i32
  }
}

</mosaic_0001>

<llo_original>
// kernel: mplnet_forward.1
$region0: #{mplnet_forward.1}
  #allocation0 [shape = 'u32[]', space=smem, size = 0x4, offset = 0x4, fixed_abs, tag = 'smem constant byte address 0x4 - core index']
  #allocation1 [shape = 'u32[144,128]{1,0:T(1,128)}', space=vmem, size = 0x12000, scoped, tag = 'internal scratch']
  #allocation2 [shape = 'f32[2,1024]{1,0:T(2,128)}', space=vmem, size = 0x2000, scoped, tag = 'scratch operand']
  #allocation3 [shape = 'f32[1,1]{1,0:T(1,128)S(1)}', space=vmem, size = 0x200, scoped, tag = 'scoped memory for mplnet_forward.1']
  %s0 = inlined_call_operand.vmem [shape: bf16[2,5376], index: 0, kind: input, shape index: {}]
  %s1 = inlined_call_operand.hbm [shape: bf16[5376,1024], index: 1, kind: input, shape index: {}]
  %s2 = inlined_call_operand.hbm [shape: f32[1,1024], index: 2, kind: input, shape index: {}]
  %s3 = inlined_call_operand.hbm [shape: f32[1,1024], index: 3, kind: input, shape index: {}]
  %s4 = inlined_call_operand.hbm [shape: f32[1,1024], index: 4, kind: input, shape index: {}]
  %s5 = inlined_call_operand.vmem [shape: f32[1024,100], index: 5, kind: input, shape index: {}]
  %s6 = inlined_call_operand.hbm [shape: f32[1,100], index: 6, kind: input, shape index: {}]
  %s7 = inlined_call_operand.hbm [shape: f32[1,100], index: 7, kind: input, shape index: {}]
  %s8 = inlined_call_operand.hbm [shape: f32[1,100], index: 8, kind: input, shape index: {}]
  %s9 = inlined_call_operand.vmem [shape: f32[100,10], index: 9, kind: input, shape index: {}]
  %s10 = inlined_call_operand.hbm [shape: f32[1,10], index: 10, kind: input, shape index: {}]
  %s11 = inlined_call_operand.hbm [shape: f32[1,10], index: 11, kind: input, shape index: {}]
  %s12 = inlined_call_operand.hbm [shape: f32[1,10], index: 12, kind: input, shape index: {}]
  %s13 = inlined_call_operand.vmem [shape: f32[10,1], index: 13, kind: input, shape index: {}]
  %s14 = inlined_call_operand.<no memory space> [shape: f32[1,1], index: 14, kind: input, shape index: {}]
  %s15 = inlined_call_operand.vmem [shape: f32[2,1], index: 15, kind: output, shape index: {}]
  %s16 = sld [smem:[#allocation0]]
  $region141: #{mplnet_forward.1} parent=0
    _
  %s18 = ssub.s32 1, %s16
  %s19 = scalar_select 0, %s18, %s16
  %v20 = vstv %s14
  %21 = vst [vmem:[#allocation3] sm:$0x1] %v20
  $region1: #{mplnet_forward.1} parent=0
    #allocation4 [shape = 'u8[7340032]{0}', space=vmem, size = 0x700000, scoped, tag = 'input window, operand 1']
    #allocation5 [shape = 's32[2]{0}', space=sflag, size = 0x8, scoped, tag = 'scoped memory for mplnet_forward.1']
    #allocation6 [shape = 'u8[4096]{0}', space=vmem, size = 0x1000, scoped, tag = 'input window, operand 2, single buffered']
    #allocation7 [shape = 's32[1]{0}', space=sflag, size = 0x4, scoped, tag = 'scoped memory for mplnet_forward.1']
    #allocation8 [shape = 'u8[4096]{0}', space=vmem, size = 0x1000, scoped, tag = 'input window, operand 3, single buffered']
    #allocation9 [shape = 'u8[4096]{0}', space=vmem, size = 0x1000, scoped, tag = 'input window, operand 4, single buffered']
    #allocation10 [shape = 's32[1]{0}', space=sflag, size = 0x4, scoped, tag = 'scoped memory for mplnet_forward.1']
    #allocation11 [shape = 'u8[512]{0}', space=vmem, size = 0x400, scoped, tag = 'input window, operand 6, single buffered']
    #allocation12 [shape = 'u8[512]{0}', space=vmem, size = 0x400, scoped, tag = 'input window, operand 7, single buffered']
    #allocation13 [shape = 's32[1]{0}', space=sflag, size = 0x4, scoped, tag = 'scoped memory for mplnet_forward.1']
    #allocation14 [shape = 'u8[512]{0}', space=vmem, size = 0x400, scoped, tag = 'input window, operand 8, single buffered']
    #allocation15 [shape = 'u8[512]{0}', space=vmem, size = 0x400, scoped, tag = 'input window, operand 10, single buffered']
    #allocation16 [shape = 's32[1]{0}', space=sflag, size = 0x4, scoped, tag = 'scoped memory for mplnet_forward.1']
    #allocation17 [shape = 'u8[512]{0}', space=vmem, size = 0x400, scoped, tag = 'input window, operand 11, single buffered']
    #allocation18 [shape = 'u8[512]{0}', space=vmem, size = 0x400, scoped, tag = 'input window, operand 12, single buffered']
    #allocation19 [shape = 's32[1]{0}', space=sflag, size = 0x4, scoped, tag = 'scoped memory for mplnet_forward.1']
    %22 = vsyncpa [#allocation5], 0
    %s23 = scalar_lea.sflag [#allocation5], 1
    %24 = vsyncpa %s23, 0
    %25 = vsyncpa [#allocation7], 0
    %26 = vsyncpa [#allocation10], 0
    %27 = vsyncpa [#allocation13], 0
    %28 = vsyncpa [#allocation16], 0
    %29 = vsyncpa [#allocation19], 0
    loop: start=0, step=1, limit=5
    $region2: #{mplnet_forward.1} parent=1 // loop_pre_header
      _
    $region3: #{mplnet_forward.1} parent=1 // loop_header
      %s31 = sphi 0, %s35
      %p32 = scmp.ge.s32.totalorder %s31, 5
      %s41 = sphi 0, %s43
      %s44 = sphi 0, %s41
      %s45 = sphi 0, %s44
      %s61 = sphi 0, %s45
      %s67 = sphi 0, %s69
      %s70 = sphi 0, %s67
      %s71 = sphi 0, %s70
      %s87 = sphi 0, %s71
      %s91 = sphi 0, %s91
      %s93 = sphi 0, %s91
      %s94 = sphi 0, %s93
      %s108 = sphi 0, %s94
      %s112 = sphi 0, %s112
      %s114 = sphi 0, %s112
      %s115 = sphi 0, %s114
      %s129 = sphi 0, %s115
      %s133 = sphi 0, %s133
      %s135 = sphi 0, %s133
      %s136 = sphi 0, %s135
      %s150 = sphi 0, %s136
      %s154 = sphi 0, %s154
      %s156 = sphi 0, %s154
      %s157 = sphi 0, %s156
      %s171 = sphi 0, %s157
      %s175 = sphi 0, %s175
      %s177 = sphi 0, %s175
      %s178 = sphi 0, %s177
      %s192 = sphi 0, %s178
      %s196 = sphi 0, %s196
      %s198 = sphi 0, %s196
      %s199 = sphi 0, %s198
      %s213 = sphi 0, %s199
      %s217 = sphi 0, %s217
      %s219 = sphi 0, %s217
      %s220 = sphi 0, %s219
      %s234 = sphi 0, %s220
      %s238 = sphi 0, %s238
      %s240 = sphi 0, %s238
      %s241 = sphi 0, %s240
      %s255 = sphi 0, %s241
      %s259 = sphi 0, %s259
      %s261 = sphi 0, %s259
      %s262 = sphi 0, %s261
      %s276 = sphi 0, %s262
      %s280 = sphi 0, %s280
      %s282 = sphi 0, %s280
      %s283 = sphi 0, %s282
      %s297 = sphi 0, %s283
      %s301 = sphi 0, %s301
      %s303 = sphi 0, %s301
      %s304 = sphi 0, %s303
      %s318 = sphi 0, %s304
      %s322 = sphi 0, %s322
      %s324 = sphi 0, %s322
      %s325 = sphi 0, %s324
      %s339 = sphi 0, %s325
      %s343 = sphi 0, %s343
      %s345 = sphi 0, %s343
      %s346 = sphi 0, %s345
      %s360 = sphi 0, %s346
      %s364 = sphi 0, %s364
      %s366 = sphi 0, %s364
      %s367 = sphi 0, %s366
      %s381 = sphi 0, %s367
    $region4: #{mplnet_forward.1} parent=1 // loop_header_branch
      %34 = sbr.rel (%p32) target = $region8
    $region5: #{mplnet_forward.1} parent=1 // loop_body
      %s36 = ssub.s32 %s31, 1
      %s37 = ssub.s32 %s31, 2
      %s38 = sadd.s32 %s31, 1
      %s39 = ssub.s32 %s31, %s38
      %p40 = scmp.eq.s32.totalorder %s39, 0
      %s42 = sadd.s32 %s41, 1
      %s43 = scalar_select %p40, %s41, %s42
      %p46 = pneg %p40
      %p47 = scmp.eq.s32.totalorder %s31, 2
      %p48 = por %p46, %p47
      %p49 = scmp.ne.s32.totalorder %s41, %s44
      %p50 = scmp.eq.s32.totalorder %s31, 0
      %p51 = por %p49, %p50
      %p52 = scmp.ne.s32.totalorder %s41, %s44
      %p53 = scmp.eq.s32.totalorder %s36, 2
      %p54 = por %p52, %p53
      %p55 = scmp.ne.s32.totalorder %s44, %s45
      %p56 = scmp.eq.s32.totalorder %s36, 0
      %p57 = por %p55, %p56
      %p58 = scmp.ne.s32.totalorder %s44, %s45
      %p59 = scmp.eq.s32.totalorder %s37, 2
      %p60 = por %p58, %p59
      %p62 = scmp.ne.s32.totalorder %s45, %s61
      %p63 = scmp.eq.s32.totalorder %s37, 0
      %p64 = por %p62, %p63
      %s65 = ssub.s32 %s31, %s38
      %p66 = scmp.eq.s32.totalorder %s65, 0
      %s68 = sadd.s32 %s67, 1
      %s69 = scalar_select %p66, %s67, %s68
      %p72 = pneg %p66
      %p73 = scmp.eq.s32.totalorder %s31, 2
      %p74 = por %p72, %p73
      %p75 = scmp.ne.s32.totalorder %s67, %s70
      %p76 = scmp.eq.s32.totalorder %s31, 0
      %p77 = por %p75, %p76
      %p78 = scmp.ne.s32.totalorder %s67, %s70
      %p79 = scmp.eq.s32.totalorder %s36, 2
      %p80 = por %p78, %p79
      %p81 = scmp.ne.s32.totalorder %s70, %s71
      %p82 = scmp.eq.s32.totalorder %s36, 0
      %p83 = por %p81, %p82
      %p84 = scmp.ne.s32.totalorder %s70, %s71
      %p85 = scmp.eq.s32.totalorder %s37, 2
      %p86 = por %p84, %p85
      %p88 = scmp.ne.s32.totalorder %s71, %s87
      %p89 = scmp.eq.s32.totalorder %s37, 0
      %p90 = por %p88, %p89
      %s92 = sadd.s32 %s91, 1
      %p95 = scmp.eq.s32.totalorder %s31, 2
      %p96 = scmp.ne.s32.totalorder %s91, %s93
      %p97 = scmp.eq.s32.totalorder %s31, 0
      %p98 = por %p96, %p97
      %p99 = scmp.ne.s32.totalorder %s91, %s93
      %p100 = scmp.eq.s32.totalorder %s36, 2
      %p101 = por %p99, %p100
      %p102 = scmp.ne.s32.totalorder %s93, %s94
      %p103 = scmp.eq.s32.totalorder %s36, 0
      %p104 = por %p102, %p103
      %p105 = scmp.ne.s32.totalorder %s93, %s94
      %p106 = scmp.eq.s32.totalorder %s37, 2
      %p107 = por %p105, %p106
      %p109 = scmp.ne.s32.totalorder %s94, %s108
      %p110 = scmp.eq.s32.totalorder %s37, 0
      %p111 = por %p109, %p110
      %s113 = sadd.s32 %s112, 1
      %p116 = scmp.eq.s32.totalorder %s31, 2
      %p117 = scmp.ne.s32.totalorder %s112, %s114
      %p118 = scmp.eq.s32.totalorder %s31, 0
      %p119 = por %p117, %p118
      %p120 = scmp.ne.s32.totalorder %s112, %s114
      %p121 = scmp.eq.s32.totalorder %s36, 2
      %p122 = por %p120, %p121
      %p123 = scmp.ne.s32.totalorder %s114, %s115
      %p124 = scmp.eq.s32.totalorder %s36, 0
      %p125 = por %p123, %p124
      %p126 = scmp.ne.s32.totalorder %s114, %s115
      %p127 = scmp.eq.s32.totalorder %s37, 2
      %p128 = por %p126, %p127
      %p130 = scmp.ne.s32.totalorder %s115, %s129
      %p131 = scmp.eq.s32.totalorder %s37, 0
      %p132 = por %p130, %p131
      %s134 = sadd.s32 %s133, 1
      %p137 = scmp.eq.s32.totalorder %s31, 2
      %p138 = scmp.ne.s32.totalorder %s133, %s135
      %p139 = scmp.eq.s32.totalorder %s31, 0
      %p140 = por %p138, %p139
      %p141 = scmp.ne.s32.totalorder %s133, %s135
      %p142 = scmp.eq.s32.totalorder %s36, 2
      %p143 = por %p141, %p142
      %p144 = scmp.ne.s32.totalorder %s135, %s136
      %p145 = scmp.eq.s32.totalorder %s36, 0
      %p146 = por %p144, %p145
      %p147 = scmp.ne.s32.totalorder %s135, %s136
      %p148 = scmp.eq.s32.totalorder %s37, 2
      %p149 = por %p147, %p148
      %p151 = scmp.ne.s32.totalorder %s136, %s150
      %p152 = scmp.eq.s32.totalorder %s37, 0
      %p153 = por %p151, %p152
      %s155 = sadd.s32 %s154, 1
      %p158 = scmp.eq.s32.totalorder %s31, 2
      %p159 = scmp.ne.s32.totalorder %s154, %s156
      %p160 = scmp.eq.s32.totalorder %s31, 0
      %p161 = por %p159, %p160
      %p162 = scmp.ne.s32.totalorder %s154, %s156
      %p163 = scmp.eq.s32.totalorder %s36, 2
      %p164 = por %p162, %p163
      %p165 = scmp.ne.s32.totalorder %s156, %s157
      %p166 = scmp.eq.s32.totalorder %s36, 0
      %p167 = por %p165, %p166
      %p168 = scmp.ne.s32.totalorder %s156, %s157
      %p169 = scmp.eq.s32.totalorder %s37, 2
      %p170 = por %p168, %p169
      %p172 = scmp.ne.s32.totalorder %s157, %s171
      %p173 = scmp.eq.s32.totalorder %s37, 0
      %p174 = por %p172, %p173
      %s176 = sadd.s32 %s175, 1
      %p179 = scmp.eq.s32.totalorder %s31, 2
      %p180 = scmp.ne.s32.totalorder %s175, %s177
      %p181 = scmp.eq.s32.totalorder %s31, 0
      %p182 = por %p180, %p181
      %p183 = scmp.ne.s32.totalorder %s175, %s177
      %p184 = scmp.eq.s32.totalorder %s36, 2
      %p185 = por %p183, %p184
      %p186 = scmp.ne.s32.totalorder %s177, %s178
      %p187 = scmp.eq.s32.totalorder %s36, 0
      %p188 = por %p186, %p187
      %p189 = scmp.ne.s32.totalorder %s177, %s178
      %p190 = scmp.eq.s32.totalorder %s37, 2
      %p191 = por %p189, %p190
      %p193 = scmp.ne.s32.totalorder %s178, %s192
      %p194 = scmp.eq.s32.totalorder %s37, 0
      %p195 = por %p193, %p194
      %s197 = sadd.s32 %s196, 1
      %p200 = scmp.eq.s32.totalorder %s31, 2
      %p201 = scmp.ne.s32.totalorder %s196, %s198
      %p202 = scmp.eq.s32.totalorder %s31, 0
      %p203 = por %p201, %p202
      %p204 = scmp.ne.s32.totalorder %s196, %s198
      %p205 = scmp.eq.s32.totalorder %s36, 2
      %p206 = por %p204, %p205
      %p207 = scmp.ne.s32.totalorder %s198, %s199
      %p208 = scmp.eq.s32.totalorder %s36, 0
      %p209 = por %p207, %p208
      %p210 = scmp.ne.s32.totalorder %s198, %s199
      %p211 = scmp.eq.s32.totalorder %s37, 2
      %p212 = por %p210, %p211
      %p214 = scmp.ne.s32.totalorder %s199, %s213
      %p215 = scmp.eq.s32.totalorder %s37, 0
      %p216 = por %p214, %p215
      %s218 = sadd.s32 %s217, 1
      %p221 = scmp.eq.s32.totalorder %s31, 2
      %p222 = scmp.ne.s32.totalorder %s217, %s219
      %p223 = scmp.eq.s32.totalorder %s31, 0
      %p224 = por %p222, %p223
      %p225 = scmp.ne.s32.totalorder %s217, %s219
      %p226 = scmp.eq.s32.totalorder %s36, 2
      %p227 = por %p225, %p226
      %p228 = scmp.ne.s32.totalorder %s219, %s220
      %p229 = scmp.eq.s32.totalorder %s36, 0
      %p230 = por %p228, %p229
      %p231 = scmp.ne.s32.totalorder %s219, %s220
      %p232 = scmp.eq.s32.totalorder %s37, 2
      %p233 = por %p231, %p232
      %p235 = scmp.ne.s32.totalorder %s220, %s234
      %p236 = scmp.eq.s32.totalorder %s37, 0
      %p237 = por %p235, %p236
      %s239 = sadd.s32 %s238, 1
      %p242 = scmp.eq.s32.totalorder %s31, 2
      %p243 = scmp.ne.s32.totalorder %s238, %s240
      %p244 = scmp.eq.s32.totalorder %s31, 0
      %p245 = por %p243, %p244
      %p246 = scmp.ne.s32.totalorder %s238, %s240
      %p247 = scmp.eq.s32.totalorder %s36, 2
      %p248 = por %p246, %p247
      %p249 = scmp.ne.s32.totalorder %s240, %s241
      %p250 = scmp.eq.s32.totalorder %s36, 0
      %p251 = por %p249, %p250
      %p252 = scmp.ne.s32.totalorder %s240, %s241
      %p253 = scmp.eq.s32.totalorder %s37, 2
      %p254 = por %p252, %p253
      %p256 = scmp.ne.s32.totalorder %s241, %s255
      %p257 = scmp.eq.s32.totalorder %s37, 0
      %p258 = por %p256, %p257
      %s260 = sadd.s32 %s259, 1
      %p263 = scmp.eq.s32.totalorder %s31, 2
      %p264 = scmp.ne.s32.totalorder %s259, %s261
      %p265 = scmp.eq.s32.totalorder %s31, 0
      %p266 = por %p264, %p265
      %p267 = scmp.ne.s32.totalorder %s259, %s261
      %p268 = scmp.eq.s32.totalorder %s36, 2
      %p269 = por %p267, %p268
      %p270 = scmp.ne.s32.totalorder %s261, %s262
      %p271 = scmp.eq.s32.totalorder %s36, 0
      %p272 = por %p270, %p271
      %p273 = scmp.ne.s32.totalorder %s261, %s262
      %p274 = scmp.eq.s32.totalorder %s37, 2
      %p275 = por %p273, %p274
      %p277 = scmp.ne.s32.totalorder %s262, %s276
      %p278 = scmp.eq.s32.totalorder %s37, 0
      %p279 = por %p277, %p278
      %s281 = sadd.s32 %s280, 1
      %p284 = scmp.eq.s32.totalorder %s31, 2
      %p285 = scmp.ne.s32.totalorder %s280, %s282
      %p286 = scmp.eq.s32.totalorder %s31, 0
      %p287 = por %p285, %p286
      %p288 = scmp.ne.s32.totalorder %s280, %s282
      %p289 = scmp.eq.s32.totalorder %s36, 2
      %p290 = por %p288, %p289
      %p291 = scmp.ne.s32.totalorder %s282, %s283
      %p292 = scmp.eq.s32.totalorder %s36, 0
      %p293 = por %p291, %p292
      %p294 = scmp.ne.s32.totalorder %s282, %s283
      %p295 = scmp.eq.s32.totalorder %s37, 2
      %p296 = por %p294, %p295
      %p298 = scmp.ne.s32.totalorder %s283, %s297
      %p299 = scmp.eq.s32.totalorder %s37, 0
      %p300 = por %p298, %p299
      %s302 = sadd.s32 %s301, 1
      %p305 = scmp.eq.s32.totalorder %s31, 2
      %p306 = scmp.ne.s32.totalorder %s301, %s303
      %p307 = scmp.eq.s32.totalorder %s31, 0
      %p308 = por %p306, %p307
      %p309 = scmp.ne.s32.totalorder %s301, %s303
      %p310 = scmp.eq.s32.totalorder %s36, 2
      %p311 = por %p309, %p310
      %p312 = scmp.ne.s32.totalorder %s303, %s304
      %p313 = scmp.eq.s32.totalorder %s36, 0
      %p314 = por %p312, %p313
      %p315 = scmp.ne.s32.totalorder %s303, %s304
      %p316 = scmp.eq.s32.totalorder %s37, 2
      %p317 = por %p315, %p316
      %p319 = scmp.ne.s32.totalorder %s304, %s318
      %p320 = scmp.eq.s32.totalorder %s37, 0
      %p321 = por %p319, %p320
      %s323 = sadd.s32 %s322, 1
      %p326 = scmp.eq.s32.totalorder %s31, 2
      %p327 = scmp.ne.s32.totalorder %s322, %s324
      %p328 = scmp.eq.s32.totalorder %s31, 0
      %p329 = por %p327, %p328
      %p330 = scmp.ne.s32.totalorder %s322, %s324
      %p331 = scmp.eq.s32.totalorder %s36, 2
      %p332 = por %p330, %p331
      %p333 = scmp.ne.s32.totalorder %s324, %s325
      %p334 = scmp.eq.s32.totalorder %s36, 0
      %p335 = por %p333, %p334
      %p336 = scmp.ne.s32.totalorder %s324, %s325
      %p337 = scmp.eq.s32.totalorder %s37, 2
      %p338 = por %p336, %p337
      %p340 = scmp.ne.s32.totalorder %s325, %s339
      %p341 = scmp.eq.s32.totalorder %s37, 0
      %p342 = por %p340, %p341
      %s344 = sadd.s32 %s343, 1
      %p347 = scmp.eq.s32.totalorder %s31, 2
      %p348 = scmp.ne.s32.totalorder %s343, %s345
      %p349 = scmp.eq.s32.totalorder %s31, 0
      %p350 = por %p348, %p349
      %p351 = scmp.ne.s32.totalorder %s343, %s345
      %p352 = scmp.eq.s32.totalorder %s36, 2
      %p353 = por %p351, %p352
      %p354 = scmp.ne.s32.totalorder %s345, %s346
      %p355 = scmp.eq.s32.totalorder %s36, 0
      %p356 = por %p354, %p355
      %p357 = scmp.ne.s32.totalorder %s345, %s346
      %p358 = scmp.eq.s32.totalorder %s37, 2
      %p359 = por %p357, %p358
      %p361 = scmp.ne.s32.totalorder %s346, %s360
      %p362 = scmp.eq.s32.totalorder %s37, 0
      %p363 = por %p361, %p362
      %s365 = sadd.s32 %s364, 1
      %p368 = scmp.eq.s32.totalorder %s31, 2
      %p369 = scmp.ne.s32.totalorder %s364, %s366
      %p370 = scmp.eq.s32.totalorder %s31, 0
      %p371 = por %p369, %p370
      %p372 = scmp.ne.s32.totalorder %s364, %s366
      %p373 = scmp.eq.s32.totalorder %s36, 2
      %p374 = por %p372, %p373
      %p375 = scmp.ne.s32.totalorder %s366, %s367
      %p376 = scmp.eq.s32.totalorder %s36, 0
      %p377 = por %p375, %p376
      %p378 = scmp.ne.s32.totalorder %s366, %s367
      %p379 = scmp.eq.s32.totalorder %s37, 2
      %p380 = por %p378, %p379
      %p382 = scmp.ne.s32.totalorder %s367, %s381
      %p383 = scmp.eq.s32.totalorder %s37, 0
      %p384 = por %p382, %p383
      %p385 = scmp.le.s32.totalorder 1, %s31
      %p386 = scmp.lt.s32.totalorder %s31, 4
      %p387 = pnand %p385, %p386
      %p388 = pneg %p387
      // Predicated region
      $region9: #{mplnet_forward.1} parent=5 // pred_check
        _
      $region10: #{mplnet_forward.1} parent=5 // pred_check_branch
        %390 = sbr.rel (%p387) target = $region12
      $region11: #{mplnet_forward.1} parent=5 // pred_region
        %s391 = ssub.s32 %s31, 1
        // Predicated region
        $region13: #{mplnet_forward.1} parent=11 // pred_check
          %p392 = pneg %p104
        $region14: #{mplnet_forward.1} parent=11 // pred_check_branch
          %394 = sbr.rel (%p392) target = $region16
        $region15: #{mplnet_forward.1} parent=11 // pred_region
          %s396 = ssub.s32 128, 128
          %397 = vsyncadd [#allocation7], %s396
          %s399 = sshll.u32 [#allocation6], 4
          %s400 = int_to_ptr.vmem [resolvable:$true] %s399
          %402 = dma.hbm_to_vmem [thread:$0]  %s2, 128, %s400, [#allocation7]
        $region16: #{mplnet_forward.1} parent=11 // pred_fallthru
          _
        // Predicated region
        $region17: #{mplnet_forward.1} parent=11 // pred_check
          %p403 = pneg %p125
        $region18: #{mplnet_forward.1} parent=11 // pred_check_branch
          %405 = sbr.rel (%p403) target = $region20
        $region19: #{mplnet_forward.1} parent=11 // pred_region
          %s407 = ssub.s32 128, 128
          %408 = vsyncadd [#allocation7], %s407
          %s410 = sshll.u32 [#allocation8], 4
          %s411 = int_to_ptr.vmem [resolvable:$true] %s410
          %413 = dma.hbm_to_vmem [thread:$0]  %s3, 128, %s411, [#allocation7]
        $region20: #{mplnet_forward.1} parent=11 // pred_fallthru
          _
        // Predicated region
        $region21: #{mplnet_forward.1} parent=11 // pred_check
          %p414 = pneg %p146
        $region22: #{mplnet_forward.1} parent=11 // pred_check_branch
          %416 = sbr.rel (%p414) target = $region24
        $region23: #{mplnet_forward.1} parent=11 // pred_region
          %s418 = ssub.s32 128, 128
          %419 = vsyncadd [#allocation10], %s418
          %s421 = sshll.u32 [#allocation9], 4
          %s422 = int_to_ptr.vmem [resolvable:$true] %s421
          %424 = dma.hbm_to_vmem [thread:$0]  %s4, 128, %s422, [#allocation10]
        $region24: #{mplnet_forward.1} parent=11 // pred_fallthru
          _
        // Predicated region
        $region25: #{mplnet_forward.1} parent=11 // pred_check
          %p425 = pneg %p167
        $region26: #{mplnet_forward.1} parent=11 // pred_check_branch
          %427 = sbr.rel (%p425) target = $region28
        $region27: #{mplnet_forward.1} parent=11 // pred_region
          _
        $region28: #{mplnet_forward.1} parent=11 // pred_fallthru
          _
        // Predicated region
        $region29: #{mplnet_forward.1} parent=11 // pred_check
          %p428 = pneg %p188
        $region30: #{mplnet_forward.1} parent=11 // pred_check_branch
          %430 = sbr.rel (%p428) target = $region32
        $region31: #{mplnet_forward.1} parent=11 // pred_region
          %s432 = ssub.s32 16, 16
          %433 = vsyncadd [#allocation10], %s432
          %s435 = sshll.u32 [#allocation11], 4
          %s436 = int_to_ptr.vmem [resolvable:$true] %s435
          %438 = dma.hbm_to_vmem [thread:$0]  %s6, 16, %s436, [#allocation10]
        $region32: #{mplnet_forward.1} parent=11 // pred_fallthru
          _
        // Predicated region
        $region33: #{mplnet_forward.1} parent=11 // pred_check
          %p439 = pneg %p209
        $region34: #{mplnet_forward.1} parent=11 // pred_check_branch
          %441 = sbr.rel (%p439) target = $region36
        $region35: #{mplnet_forward.1} parent=11 // pred_region
          %s443 = ssub.s32 16, 16
          %444 = vsyncadd [#allocation13], %s443
          %s446 = sshll.u32 [#allocation12], 4
          %s447 = int_to_ptr.vmem [resolvable:$true] %s446
          %449 = dma.hbm_to_vmem [thread:$0]  %s7, 16, %s447, [#allocation13]
        $region36: #{mplnet_forward.1} parent=11 // pred_fallthru
          _
        // Predicated region
        $region37: #{mplnet_forward.1} parent=11 // pred_check
          %p450 = pneg %p230
        $region38: #{mplnet_forward.1} parent=11 // pred_check_branch
          %452 = sbr.rel (%p450) target = $region40
        $region39: #{mplnet_forward.1} parent=11 // pred_region
          %s454 = ssub.s32 16, 16
          %455 = vsyncadd [#allocation13], %s454
          %s457 = sshll.u32 [#allocation14], 4
          %s458 = int_to_ptr.vmem [resolvable:$true] %s457
          %460 = dma.hbm_to_vmem [thread:$0]  %s8, 16, %s458, [#allocation13]
        $region40: #{mplnet_forward.1} parent=11 // pred_fallthru
          _
        // Predicated region
        $region41: #{mplnet_forward.1} parent=11 // pred_check
          %p461 = pneg %p251
        $region42: #{mplnet_forward.1} parent=11 // pred_check_branch
          %463 = sbr.rel (%p461) target = $region44
        $region43: #{mplnet_forward.1} parent=11 // pred_region
          _
        $region44: #{mplnet_forward.1} parent=11 // pred_fallthru
          _
        // Predicated region
        $region45: #{mplnet_forward.1} parent=11 // pred_check
          %p464 = pneg %p272
        $region46: #{mplnet_forward.1} parent=11 // pred_check_branch
          %466 = sbr.rel (%p464) target = $region48
        $region47: #{mplnet_forward.1} parent=11 // pred_region
          %s468 = ssub.s32 16, 16
          %469 = vsyncadd [#allocation16], %s468
          %s471 = sshll.u32 [#allocation15], 4
          %s472 = int_to_ptr.vmem [resolvable:$true] %s471
          %474 = dma.hbm_to_vmem [thread:$0]  %s10, 16, %s472, [#allocation16]
        $region48: #{mplnet_forward.1} parent=11 // pred_fallthru
          _
        // Predicated region
        $region49: #{mplnet_forward.1} parent=11 // pred_check
          %p475 = pneg %p293
        $region50: #{mplnet_forward.1} parent=11 // pred_check_branch
          %477 = sbr.rel (%p475) target = $region52
        $region51: #{mplnet_forward.1} parent=11 // pred_region
          %s479 = ssub.s32 16, 16
          %480 = vsyncadd [#allocation16], %s479
          %s482 = sshll.u32 [#allocation17], 4
          %s483 = int_to_ptr.vmem [resolvable:$true] %s482
          %485 = dma.hbm_to_vmem [thread:$0]  %s11, 16, %s483, [#allocation16]
        $region52: #{mplnet_forward.1} parent=11 // pred_fallthru
          _
        // Predicated region
        $region53: #{mplnet_forward.1} parent=11 // pred_check
          %p486 = pneg %p314
        $region54: #{mplnet_forward.1} parent=11 // pred_check_branch
          %488 = sbr.rel (%p486) target = $region56
        $region55: #{mplnet_forward.1} parent=11 // pred_region
          %s490 = ssub.s32 16, 16
          %491 = vsyncadd [#allocation19], %s490
          %s493 = sshll.u32 [#allocation18], 4
          %s494 = int_to_ptr.vmem [resolvable:$true] %s493
          %496 = dma.hbm_to_vmem [thread:$0]  %s12, 16, %s494, [#allocation19]
        $region56: #{mplnet_forward.1} parent=11 // pred_fallthru
          _
        // Predicated region
        $region57: #{mplnet_forward.1} parent=11 // pred_check
          %p497 = pneg %p335
        $region58: #{mplnet_forward.1} parent=11 // pred_check_branch
          %499 = sbr.rel (%p497) target = $region60
        $region59: #{mplnet_forward.1} parent=11 // pred_region
          _
        $region60: #{mplnet_forward.1} parent=11 // pred_fallthru
          _
        // Predicated region
        $region61: #{mplnet_forward.1} parent=11 // pred_check
          %p500 = pneg %p356
        $region62: #{mplnet_forward.1} parent=11 // pred_check_branch
          %502 = sbr.rel (%p500) target = $region64
        $region63: #{mplnet_forward.1} parent=11 // pred_region
          _
        $region64: #{mplnet_forward.1} parent=11 // pred_fallthru
          _
      $region12: #{mplnet_forward.1} parent=5 // pred_fallthru
        _
      %p503 = scmp.lt.s32.totalorder %s31, 3
      // Predicated region
      $region65: #{mplnet_forward.1} parent=5 // pred_check
        %p504 = pneg %p503
      $region66: #{mplnet_forward.1} parent=5 // pred_check_branch
        %506 = sbr.rel (%p504) target = $region68
      $region67: #{mplnet_forward.1} parent=5 // pred_region
        // Predicated region
        $region69: #{mplnet_forward.1} parent=67 // pred_check
          %p507 = pneg %p51
        $region70: #{mplnet_forward.1} parent=67 // pred_check_branch
          %509 = sbr.rel (%p507) target = $region72
        $region71: #{mplnet_forward.1} parent=67 // pred_region
          %s510 = smul.u32 14, %s31
          %p511 = scmp.lt.s32.totalorder %s510, 41
          %s512 = scalar_select %p511, %s510, 41
          %s513 = scalar_lea.vmem %s0, %s512
          %s514 = smul.u32 14, %s31
        $region72: #{mplnet_forward.1} parent=67 // pred_fallthru
          _
        // Predicated region
        $region73: #{mplnet_forward.1} parent=67 // pred_check
          %p515 = pneg %p77
        $region74: #{mplnet_forward.1} parent=67 // pred_check_branch
          %517 = sbr.rel (%p515) target = $region76
        $region75: #{mplnet_forward.1} parent=67 // pred_region
          %s518 = sand.u32 %s67, 1
          %s519 = scalar_lea.sflag [#allocation5], %s518
          %s520 = sand.u32 %s67, 1
          %s521 = smul.addr %s520, 7168
          %s522 = scalar_lea.vmem [#allocation4], %s521
          %s523 = smul.u32 224, %s31
          %s525 = ssub.s32 114688, 114688
          %526 = vsyncadd %s519, %s525
          %s527 = smul.addr %s523, 8
          %s528 = smul.addr %s527, 64
          %s529 = scalar_lea.hbm %s1, %s528
          %s530 = sshll.u32 %s522, 4
          %s531 = int_to_ptr.vmem [resolvable:$true] %s530
          %536 = dma.hbm_to_vmem [thread:$0]  %s529, 114688, %s531, %s519, 512, 512, 32
        $region76: #{mplnet_forward.1} parent=67 // pred_fallthru
          _
      $region68: #{mplnet_forward.1} parent=5 // pred_fallthru
        _
      %p537 = scmp.le.s32.totalorder 1, %s31
      %p538 = scmp.lt.s32.totalorder %s31, 4
      %p539 = pnand %p537, %p538
      %p540 = pneg %p539
      // Predicated region
      $region77: #{mplnet_forward.1} parent=5 // pred_check
        _
      $region78: #{mplnet_forward.1} parent=5 // pred_check_branch
        %542 = sbr.rel (%p539) target = $region80
      $region79: #{mplnet_forward.1} parent=5 // pred_region
        %s543 = ssub.s32 %s31, 1
        %s544 = sand.u32 %s70, 1
        %s545 = scalar_lea.sflag [#allocation5], %s544
        %s546 = sand.u32 %s70, 1
        %s547 = smul.addr %s546, 7168
        %s548 = scalar_lea.vmem [#allocation4], %s547
        // Predicated region
        $region81: #{mplnet_forward.1} parent=79 // pred_check
          %p549 = pneg %p83
        $region82: #{mplnet_forward.1} parent=79 // pred_check_branch
          %551 = sbr.rel (%p549) target = $region84
        $region83: #{mplnet_forward.1} parent=79 // pred_region
          %552 = dma.done %s545, 114688
        $region84: #{mplnet_forward.1} parent=79 // pred_fallthru
          _
        // Predicated region
        $region85: #{mplnet_forward.1} parent=79 // pred_check
          %p553 = pneg %p104
        $region86: #{mplnet_forward.1} parent=79 // pred_check_branch
          %555 = sbr.rel (%p553) target = $region88
        $region87: #{mplnet_forward.1} parent=79 // pred_region
          %556 = dma.done [#allocation7], 128
        $region88: #{mplnet_forward.1} parent=79 // pred_fallthru
          _
        // Predicated region
        $region89: #{mplnet_forward.1} parent=79 // pred_check
          %p557 = pneg %p125
        $region90: #{mplnet_forward.1} parent=79 // pred_check_branch
          %559 = sbr.rel (%p557) target = $region92
        $region91: #{mplnet_forward.1} parent=79 // pred_region
          %560 = dma.done [#allocation7], 128
        $region92: #{mplnet_forward.1} parent=79 // pred_fallthru
          _
        // Predicated region
        $region93: #{mplnet_forward.1} parent=79 // pred_check
          %p561 = pneg %p146
        $region94: #{mplnet_forward.1} parent=79 // pred_check_branch
          %563 = sbr.rel (%p561) target = $region96
        $region95: #{mplnet_forward.1} parent=79 // pred_region
          %564 = dma.done [#allocation10], 128
        $region96: #{mplnet_forward.1} parent=79 // pred_fallthru
          _
        // Predicated region
        $region97: #{mplnet_forward.1} parent=79 // pred_check
          %p565 = pneg %p188
        $region98: #{mplnet_forward.1} parent=79 // pred_check_branch
          %567 = sbr.rel (%p565) target = $region100
        $region99: #{mplnet_forward.1} parent=79 // pred_region
          %568 = dma.done [#allocation10], 16
        $region100: #{mplnet_forward.1} parent=79 // pred_fallthru
          _
        // Predicated region
        $region101: #{mplnet_forward.1} parent=79 // pred_check
          %p569 = pneg %p209
        $region102: #{mplnet_forward.1} parent=79 // pred_check_branch
          %571 = sbr.rel (%p569) target = $region104
        $region103: #{mplnet_forward.1} parent=79 // pred_region
          %572 = dma.done [#allocation13], 16
        $region104: #{mplnet_forward.1} parent=79 // pred_fallthru
          _
        // Predicated region
        $region105: #{mplnet_forward.1} parent=79 // pred_check
          %p573 = pneg %p230
        $region106: #{mplnet_forward.1} parent=79 // pred_check_branch
          %575 = sbr.rel (%p573) target = $region108
        $region107: #{mplnet_forward.1} parent=79 // pred_region
          %576 = dma.done [#allocation13], 16
        $region108: #{mplnet_forward.1} parent=79 // pred_fallthru
          _
        // Predicated region
        $region109: #{mplnet_forward.1} parent=79 // pred_check
          %p577 = pneg %p272
        $region110: #{mplnet_forward.1} parent=79 // pred_check_branch
          %579 = sbr.rel (%p577) target = $region112
        $region111: #{mplnet_forward.1} parent=79 // pred_region
          %580 = dma.done [#allocation16], 16
        $region112: #{mplnet_forward.1} parent=79 // pred_fallthru
          _
        // Predicated region
        $region113: #{mplnet_forward.1} parent=79 // pred_check
          %p581 = pneg %p293
        $region114: #{mplnet_forward.1} parent=79 // pred_check_branch
          %583 = sbr.rel (%p581) target = $region116
        $region115: #{mplnet_forward.1} parent=79 // pred_region
          %584 = dma.done [#allocation16], 16
        $region116: #{mplnet_forward.1} parent=79 // pred_fallthru
          _
        // Predicated region
        $region117: #{mplnet_forward.1} parent=79 // pred_check
          %p585 = pneg %p314
        $region118: #{mplnet_forward.1} parent=79 // pred_check_branch
          %587 = sbr.rel (%p585) target = $region120
        $region119: #{mplnet_forward.1} parent=79 // pred_region
          %588 = dma.done [#allocation19], 16
        $region120: #{mplnet_forward.1} parent=79 // pred_fallthru
          _
        %s589 = smul.u32 14, %s36
        %p590 = scmp.lt.s32.totalorder %s589, 41
        %s591 = scalar_select %p590, %s589, 41
        %s592 = scalar_lea.vmem %s0, %s591
        %p593 = pneg %p57
        %p594 = pneg %p54
        %s595 = sand.u32 %s70, 1
        %s596 = scalar_lea.sflag [#allocation5], %s595
        %s597 = sand.u32 %s70, 1
        %s598 = smul.addr %s597, 7168
        %s599 = scalar_lea.vmem [#allocation4], %s598
        %p600 = pneg %p83
        %p601 = pneg %p80
        %p602 = pneg %p104
        %p603 = pneg %p101
        %p604 = pneg %p125
        %p605 = pneg %p122
        %p606 = pneg %p146
        %p607 = pneg %p143
        %p608 = pneg %p167
        %p609 = pneg %p164
        %p610 = pneg %p188
        %p611 = pneg %p185
        %p612 = pneg %p209
        %p613 = pneg %p206
        %p614 = pneg %p230
        %p615 = pneg %p227
        %p616 = pneg %p251
        %p617 = pneg %p248
        %p618 = pneg %p272
        %p619 = pneg %p269
        %p620 = pneg %p293
        %p621 = pneg %p290
        %p622 = pneg %p314
        %p623 = pneg %p311
        %p624 = pneg %p335
        %p625 = pneg %p332
        %p626 = pneg %p356
        %p627 = pneg %p353
        %p628 = pneg %p377
        %p629 = pneg %p374
        %s630 = smul.u32 14, %s36
        %p631 = scmp.lt.s32.totalorder %s630, 41
        %s632 = scalar_select %p631, %s630, 41
        %s633 = scalar_lea.vmem %s0, %s632
        %s634 = smul.u32 14, %s36
        %s635 = smul.u32 224, %s36
        %p636 = scmp.eq.s32.totalorder %s36, 0
        // Predicated region
        $region121: #{mplnet_forward.1} parent=79 // pred_check
          %p637 = pneg %p636
        $region122: #{mplnet_forward.1} parent=79 // pred_check_branch
          %639 = sbr.rel (%p637) target = $region124
        $region123: #{mplnet_forward.1} parent=79 // pred_region
          %640 = vst [vmem:[#allocation2] sm:$0xff] 0.0
          %641 = vst [vmem:[#allocation2 + $0x8] sm:$0xff] 0.0
        $region124: #{mplnet_forward.1} parent=79 // pred_fallthru
          _
        %v642 = vld [vmem:[#allocation2] sm:$0xff]
        %v643 = vld [vmem:[#allocation2 + $0x8] sm:$0xff]
        %v644 = vld [vmem:[%s633] sm:$0xff]
        %v645 = vld [vmem:[%s633 + $0x8] sm:$0x3f]
        %v646 = vld [vmem:[%s548] sm:$0xff]
        %v647 = vld [vmem:[%s548 + $0x8] sm:$0xff]
        %v648 = vld [vmem:[%s548 + $0x10] sm:$0xff]
        %v649 = vld [vmem:[%s548 + $0x18] sm:$0xff]
        %v650 = vld [vmem:[%s548 + $0x20] sm:$0xff]
        %v651 = vld [vmem:[%s548 + $0x28] sm:$0xff]
        %v652 = vld [vmem:[%s548 + $0x30] sm:$0xff]
        %v653 = vld [vmem:[%s548 + $0x38] sm:$0xff]
        %v654 = vld [vmem:[%s548 + $0x40] sm:$0xff]
        %v655 = vld [vmem:[%s548 + $0x48] sm:$0xff]
        %v656 = vld [vmem:[%s548 + $0x50] sm:$0xff]
        %v657 = vld [vmem:[%s548 + $0x58] sm:$0xff]
        %v658 = vld [vmem:[%s548 + $0x60] sm:$0xff]
        %v659 = vld [vmem:[%s548 + $0x68] sm:$0xff]
        %v660 = vld [vmem:[%s548 + $0x70] sm:$0xff]
        %v661 = vld [vmem:[%s548 + $0x78] sm:$0xff]
        %v662 = vld [vmem:[%s548 + $0x80] sm:$0xff]
        %v663 = vld [vmem:[%s548 + $0x88] sm:$0xff]
        %v664 = vld [vmem:[%s548 + $0x90] sm:$0xff]
        %v665 = vld [vmem:[%s548 + $0x98] sm:$0xff]
        %v666 = vld [vmem:[%s548 + $0xa0] sm:$0xff]
        %v667 = vld [vmem:[%s548 + $0xa8] sm:$0xff]
        %v668 = vld [vmem:[%s548 + $0xb0] sm:$0xff]
        %v669 = vld [vmem:[%s548 + $0xb8] sm:$0xff]
        %v670 = vld [vmem:[%s548 + $0xc0] sm:$0xff]
        %v671 = vld [vmem:[%s548 + $0xc8] sm:$0xff]
        %v672 = vld [vmem:[%s548 + $0xd0] sm:$0xff]
        %v673 = vld [vmem:[%s548 + $0xd8] sm:$0xff]
        %v674 = vld [vmem:[%s548 + $0xe0] sm:$0xff]
        %v675 = vld [vmem:[%s548 + $0xe8] sm:$0xff]
        %v676 = vld [vmem:[%s548 + $0xf0] sm:$0xff]
        %v677 = vld [vmem:[%s548 + $0xf8] sm:$0xff]
        %v678 = vld [vmem:[%s548 + $0x100] sm:$0xff]
        %v679 = vld [vmem:[%s548 + $0x108] sm:$0xff]
        %v680 = vld [vmem:[%s548 + $0x110] sm:$0xff]
        %v681 = vld [vmem:[%s548 + $0x118] sm:$0xff]
        %v682 = vld [vmem:[%s548 + $0x120] sm:$0xff]
        %v683 = vld [vmem:[%s548 + $0x128] sm:$0xff]
        %v684 = vld [vmem:[%s548 + $0x130] sm:$0xff]
        %v685 = vld [vmem:[%s548 + $0x138] sm:$0xff]
        %v686 = vld [vmem:[%s548 + $0x140] sm:$0xff]
        %v687 = vld [vmem:[%s548 + $0x148] sm:$0xff]
        %v688 = vld [vmem:[%s548 + $0x150] sm:$0xff]
        %v689 = vld [vmem:[%s548 + $0x158] sm:$0xff]
        %v690 = vld [vmem:[%s548 + $0x160] sm:$0xff]
        %v691 = vld [vmem:[%s548 + $0x168] sm:$0xff]
        %v692 = vld [vmem:[%s548 + $0x170] sm:$0xff]
        %v693 = vld [vmem:[%s548 + $0x178] sm:$0xff]
        %v694 = vld [vmem:[%s548 + $0x180] sm:$0xff]
        %v695 = vld [vmem:[%s548 + $0x188] sm:$0xff]
        %v696 = vld [vmem:[%s548 + $0x190] sm:$0xff]
        %v697 = vld [vmem:[%s548 + $0x198] sm:$0xff]
        %v698 = vld [vmem:[%s548 + $0x1a0] sm:$0xff]
        %v699 = vld [vmem:[%s548 + $0x1a8] sm:$0xff]
        %v700 = vld [vmem:[%s548 + $0x1b0] sm:$0xff]
        %v701 = vld [vmem:[%s548 + $0x1b8] sm:$0xff]
        %v702 = vld [vmem:[%s548 + $0x1c0] sm:$0xff]
        %v703 = vld [vmem:[%s548 + $0x1c8] sm:$0xff]
        %v704 = vld [vmem:[%s548 + $0x1d0] sm:$0xff]
        %v705 = vld [vmem:[%s548 + $0x1d8] sm:$0xff]
        %v706 = vld [vmem:[%s548 + $0x1e0] sm:$0xff]
        %v707 = vld [vmem:[%s548 + $0x1e8] sm:$0xff]
        %v708 = vld [vmem:[%s548 + $0x1f0] sm:$0xff]
        %v709 = vld [vmem:[%s548 + $0x1f8] sm:$0xff]
        %v710 = vld [vmem:[%s548 + $0x200] sm:$0xff]
        %v711 = vld [vmem:[%s548 + $0x208] sm:$0xff]
        %v712 = vld [vmem:[%s548 + $0x210] sm:$0xff]
        %v713 = vld [vmem:[%s548 + $0x218] sm:$0xff]
        %v714 = vld [vmem:[%s548 + $0x220] sm:$0xff]
        %v715 = vld [vmem:[%s548 + $0x228] sm:$0xff]
        %v716 = vld [vmem:[%s548 + $0x230] sm:$0xff]
        %v717 = vld [vmem:[%s548 + $0x238] sm:$0xff]
        %v718 = vld [vmem:[%s548 + $0x240] sm:$0xff]
        %v719 = vld [vmem:[%s548 + $0x248] sm:$0xff]
        %v720 = vld [vmem:[%s548 + $0x250] sm:$0xff]
        %v721 = vld [vmem:[%s548 + $0x258] sm:$0xff]
        %v722 = vld [vmem:[%s548 + $0x260] sm:$0xff]
        %v723 = vld [vmem:[%s548 + $0x268] sm:$0xff]
        %v724 = vld [vmem:[%s548 + $0x270] sm:$0xff]
        %v725 = vld [vmem:[%s548 + $0x278] sm:$0xff]
        %v726 = vld [vmem:[%s548 + $0x280] sm:$0xff]
        %v727 = vld [vmem:[%s548 + $0x288] sm:$0xff]
        %v728 = vld [vmem:[%s548 + $0x290] sm:$0xff]
        %v729 = vld [vmem:[%s548 + $0x298] sm:$0xff]
        %v730 = vld [vmem:[%s548 + $0x2a0] sm:$0xff]
        %v731 = vld [vmem:[%s548 + $0x2a8] sm:$0xff]
        %v732 = vld [vmem:[%s548 + $0x2b0] sm:$0xff]
        %v733 = vld [vmem:[%s548 + $0x2b8] sm:$0xff]
        %v734 = vld [vmem:[%s548 + $0x2c0] sm:$0xff]
        %v735 = vld [vmem:[%s548 + $0x2c8] sm:$0xff]
        %v736 = vld [vmem:[%s548 + $0x2d0] sm:$0xff]
        %v737 = vld [vmem:[%s548 + $0x2d8] sm:$0xff]
        %v738 = vld [vmem:[%s548 + $0x2e0] sm:$0xff]
        %v739 = vld [vmem:[%s548 + $0x2e8] sm:$0xff]
        %v740 = vld [vmem:[%s548 + $0x2f0] sm:$0xff]
        %v741 = vld [vmem:[%s548 + $0x2f8] sm:$0xff]
        %v742 = vld [vmem:[%s548 + $0x300] sm:$0xff]
        %v743 = vld [vmem:[%s548 + $0x308] sm:$0xff]
        %v744 = vld [vmem:[%s548 + $0x310] sm:$0xff]
        %v745 = vld [vmem:[%s548 + $0x318] sm:$0xff]
        %v746 = vld [vmem:[%s548 + $0x320] sm:$0xff]
        %v747 = vld [vmem:[%s548 + $0x328] sm:$0xff]
        %v748 = vld [vmem:[%s548 + $0x330] sm:$0xff]
        %v749 = vld [vmem:[%s548 + $0x338] sm:$0xff]
        %v750 = vld [vmem:[%s548 + $0x340] sm:$0xff]
        %v751 = vld [vmem:[%s548 + $0x348] sm:$0xff]
        %v752 = vld [vmem:[%s548 + $0x350] sm:$0xff]
        %v753 = vld [vmem:[%s548 + $0x358] sm:$0xff]
        %v754 = vld [vmem:[%s548 + $0x360] sm:$0xff]
        %v755 = vld [vmem:[%s548 + $0x368] sm:$0xff]
        %v756 = vld [vmem:[%s548 + $0x370] sm:$0xff]
        %v757 = vld [vmem:[%s548 + $0x378] sm:$0xff]
        %v758 = vld [vmem:[%s548 + $0x380] sm:$0xff]
        %v759 = vld [vmem:[%s548 + $0x388] sm:$0xff]
        %v760 = vld [vmem:[%s548 + $0x390] sm:$0xff]
        %v761 = vld [vmem:[%s548 + $0x398] sm:$0xff]
        %v762 = vld [vmem:[%s548 + $0x3a0] sm:$0xff]
        %v763 = vld [vmem:[%s548 + $0x3a8] sm:$0xff]
        %v764 = vld [vmem:[%s548 + $0x3b0] sm:$0xff]
        %v765 = vld [vmem:[%s548 + $0x3b8] sm:$0xff]
        %v766 = vld [vmem:[%s548 + $0x3c0] sm:$0xff]
        %v767 = vld [vmem:[%s548 + $0x3c8] sm:$0xff]
        %v768 = vld [vmem:[%s548 + $0x3d0] sm:$0xff]
        %v769 = vld [vmem:[%s548 + $0x3d8] sm:$0xff]
        %v770 = vld [vmem:[%s548 + $0x3e0] sm:$0xff]
        %v771 = vld [vmem:[%s548 + $0x3e8] sm:$0xff]
        %v772 = vld [vmem:[%s548 + $0x3f0] sm:$0xff]
        %v773 = vld [vmem:[%s548 + $0x3f8] sm:$0xff]
        %v774 = vld [vmem:[%s548 + $0x400] sm:$0xff]
        %v775 = vld [vmem:[%s548 + $0x408] sm:$0xff]
        %v776 = vld [vmem:[%s548 + $0x410] sm:$0xff]
        %v777 = vld [vmem:[%s548 + $0x418] sm:$0xff]
        %v778 = vld [vmem:[%s548 + $0x420] sm:$0xff]
        %v779 = vld [vmem:[%s548 + $0x428] sm:$0xff]
        %v780 = vld [vmem:[%s548 + $0x430] sm:$0xff]
        %v781 = vld [vmem:[%s548 + $0x438] sm:$0xff]
        %v782 = vld [vmem:[%s548 + $0x440] sm:$0xff]
        %v783 = vld [vmem:[%s548 + $0x448] sm:$0xff]
        %v784 = vld [vmem:[%s548 + $0x450] sm:$0xff]
        %v785 = vld [vmem:[%s548 + $0x458] sm:$0xff]
        %v786 = vld [vmem:[%s548 + $0x460] sm:$0xff]
        %v787 = vld [vmem:[%s548 + $0x468] sm:$0xff]
        %v788 = vld [vmem:[%s548 + $0x470] sm:$0xff]
        %v789 = vld [vmem:[%s548 + $0x478] sm:$0xff]
        %v790 = vld [vmem:[%s548 + $0x480] sm:$0xff]
        %v791 = vld [vmem:[%s548 + $0x488] sm:$0xff]
        %v792 = vld [vmem:[%s548 + $0x490] sm:$0xff]
        %v793 = vld [vmem:[%s548 + $0x498] sm:$0xff]
        %v794 = vld [vmem:[%s548 + $0x4a0] sm:$0xff]
        %v795 = vld [vmem:[%s548 + $0x4a8] sm:$0xff]
        %v796 = vld [vmem:[%s548 + $0x4b0] sm:$0xff]
        %v797 = vld [vmem:[%s548 + $0x4b8] sm:$0xff]
        %v798 = vld [vmem:[%s548 + $0x4c0] sm:$0xff]
        %v799 = vld [vmem:[%s548 + $0x4c8] sm:$0xff]
        %v800 = vld [vmem:[%s548 + $0x4d0] sm:$0xff]
        %v801 = vld [vmem:[%s548 + $0x4d8] sm:$0xff]
        %v802 = vld [vmem:[%s548 + $0x4e0] sm:$0xff]
        %v803 = vld [vmem:[%s548 + $0x4e8] sm:$0xff]
        %v804 = vld [vmem:[%s548 + $0x4f0] sm:$0xff]
        %v805 = vld [vmem:[%s548 + $0x4f8] sm:$0xff]
        %v806 = vld [vmem:[%s548 + $0x500] sm:$0xff]
        %v807 = vld [vmem:[%s548 + $0x508] sm:$0xff]
        %v808 = vld [vmem:[%s548 + $0x510] sm:$0xff]
        %v809 = vld [vmem:[%s548 + $0x518] sm:$0xff]
        %v810 = vld [vmem:[%s548 + $0x520] sm:$0xff]
        %v811 = vld [vmem:[%s548 + $0x528] sm:$0xff]
        %v812 = vld [vmem:[%s548 + $0x530] sm:$0xff]
        %v813 = vld [vmem:[%s548 + $0x538] sm:$0xff]
        %v814 = vld [vmem:[%s548 + $0x540] sm:$0xff]
        %v815 = vld [vmem:[%s548 + $0x548] sm:$0xff]
        %v816 = vld [vmem:[%s548 + $0x550] sm:$0xff]
        %v817 = vld [vmem:[%s548 + $0x558] sm:$0xff]
        %v818 = vld [vmem:[%s548 + $0x560] sm:$0xff]
        %v819 = vld [vmem:[%s548 + $0x568] sm:$0xff]
        %v820 = vld [vmem:[%s548 + $0x570] sm:$0xff]
        %v821 = vld [vmem:[%s548 + $0x578] sm:$0xff]
        %v822 = vld [vmem:[%s548 + $0x580] sm:$0xff]
        %v823 = vld [vmem:[%s548 + $0x588] sm:$0xff]
        %v824 = vld [vmem:[%s548 + $0x590] sm:$0xff]
        %v825 = vld [vmem:[%s548 + $0x598] sm:$0xff]
        %v826 = vld [vmem:[%s548 + $0x5a0] sm:$0xff]
        %v827 = vld [vmem:[%s548 + $0x5a8] sm:$0xff]
        %v828 = vld [vmem:[%s548 + $0x5b0] sm:$0xff]
        %v829 = vld [vmem:[%s548 + $0x5b8] sm:$0xff]
        %v830 = vld [vmem:[%s548 + $0x5c0] sm:$0xff]
        %v831 = vld [vmem:[%s548 + $0x5c8] sm:$0xff]
        %v832 = vld [vmem:[%s548 + $0x5d0] sm:$0xff]
        %v833 = vld [vmem:[%s548 + $0x5d8] sm:$0xff]
        %v834 = vld [vmem:[%s548 + $0x5e0] sm:$0xff]
        %v835 = vld [vmem:[%s548 + $0x5e8] sm:$0xff]
        %v836 = vld [vmem:[%s548 + $0x5f0] sm:$0xff]
        %v837 = vld [vmem:[%s548 + $0x5f8] sm:$0xff]
        %v838 = vld [vmem:[%s548 + $0x600] sm:$0xff]
        %v839 = vld [vmem:[%s548 + $0x608] sm:$0xff]
        %v840 = vld [vmem:[%s548 + $0x610] sm:$0xff]
        %v841 = vld [vmem:[%s548 + $0x618] sm:$0xff]
        %v842 = vld [vmem:[%s548 + $0x620] sm:$0xff]
        %v843 = vld [vmem:[%s548 + $0x628] sm:$0xff]
        %v844 = vld [vmem:[%s548 + $0x630] sm:$0xff]
        %v845 = vld [vmem:[%s548 + $0x638] sm:$0xff]
        %v846 = vld [vmem:[%s548 + $0x640] sm:$0xff]
        %v847 = vld [vmem:[%s548 + $0x648] sm:$0xff]
        %v848 = vld [vmem:[%s548 + $0x650] sm:$0xff]
        %v849 = vld [vmem:[%s548 + $0x658] sm:$0xff]
        %v850 = vld [vmem:[%s548 + $0x660] sm:$0xff]
        %v851 = vld [vmem:[%s548 + $0x668] sm:$0xff]
        %v852 = vld [vmem:[%s548 + $0x670] sm:$0xff]
        %v853 = vld [vmem:[%s548 + $0x678] sm:$0xff]
        %v854 = vld [vmem:[%s548 + $0x680] sm:$0xff]
        %v855 = vld [vmem:[%s548 + $0x688] sm:$0xff]
        %v856 = vld [vmem:[%s548 + $0x690] sm:$0xff]
        %v857 = vld [vmem:[%s548 + $0x698] sm:$0xff]
        %v858 = vld [vmem:[%s548 + $0x6a0] sm:$0xff]
        %v859 = vld [vmem:[%s548 + $0x6a8] sm:$0xff]
        %v860 = vld [vmem:[%s548 + $0x6b0] sm:$0xff]
        %v861 = vld [vmem:[%s548 + $0x6b8] sm:$0xff]
        %v862 = vld [vmem:[%s548 + $0x6c0] sm:$0xff]
        %v863 = vld [vmem:[%s548 + $0x6c8] sm:$0xff]
        %v864 = vld [vmem:[%s548 + $0x6d0] sm:$0xff]
        %v865 = vld [vmem:[%s548 + $0x6d8] sm:$0xff]
        %v866 = vld [vmem:[%s548 + $0x6e0] sm:$0xff]
        %v867 = vld [vmem:[%s548 + $0x6e8] sm:$0xff]
        %v868 = vld [vmem:[%s548 + $0x6f0] sm:$0xff]
        %v869 = vld [vmem:[%s548 + $0x6f8] sm:$0xff]
        %v870 = vld [vmem:[%s548 + $0x700] sm:$0xff]
        %v871 = vld [vmem:[%s548 + $0x708] sm:$0xff]
        %v872 = vld [vmem:[%s548 + $0x710] sm:$0xff]
        %v873 = vld [vmem:[%s548 + $0x718] sm:$0xff]
        %v874 = vld [vmem:[%s548 + $0x720] sm:$0xff]
        %v875 = vld [vmem:[%s548 + $0x728] sm:$0xff]
        %v876 = vld [vmem:[%s548 + $0x730] sm:$0xff]
        %v877 = vld [vmem:[%s548 + $0x738] sm:$0xff]
        %v878 = vld [vmem:[%s548 + $0x740] sm:$0xff]
        %v879 = vld [vmem:[%s548 + $0x748] sm:$0xff]
        %v880 = vld [vmem:[%s548 + $0x750] sm:$0xff]
        %v881 = vld [vmem:[%s548 + $0x758] sm:$0xff]
        %v882 = vld [vmem:[%s548 + $0x760] sm:$0xff]
        %v883 = vld [vmem:[%s548 + $0x768] sm:$0xff]
        %v884 = vld [vmem:[%s548 + $0x770] sm:$0xff]
        %v885 = vld [vmem:[%s548 + $0x778] sm:$0xff]
        %v886 = vld [vmem:[%s548 + $0x780] sm:$0xff]
        %v887 = vld [vmem:[%s548 + $0x788] sm:$0xff]
        %v888 = vld [vmem:[%s548 + $0x790] sm:$0xff]
        %v889 = vld [vmem:[%s548 + $0x798] sm:$0xff]
        %v890 = vld [vmem:[%s548 + $0x7a0] sm:$0xff]
        %v891 = vld [vmem:[%s548 + $0x7a8] sm:$0xff]
        %v892 = vld [vmem:[%s548 + $0x7b0] sm:$0xff]
        %v893 = vld [vmem:[%s548 + $0x7b8] sm:$0xff]
        %v894 = vld [vmem:[%s548 + $0x7c0] sm:$0xff]
        %v895 = vld [vmem:[%s548 + $0x7c8] sm:$0xff]
        %v896 = vld [vmem:[%s548 + $0x7d0] sm:$0xff]
        %v897 = vld [vmem:[%s548 + $0x7d8] sm:$0xff]
        %v898 = vld [vmem:[%s548 + $0x7e0] sm:$0xff]
        %v899 = vld [vmem:[%s548 + $0x7e8] sm:$0xff]
        %v900 = vld [vmem:[%s548 + $0x7f0] sm:$0xff]
        %v901 = vld [vmem:[%s548 + $0x7f8] sm:$0xff]
        %v902 = vld [vmem:[%s548 + $0x800] sm:$0xff]
        %v903 = vld [vmem:[%s548 + $0x808] sm:$0xff]
        %v904 = vld [vmem:[%s548 + $0x810] sm:$0xff]
        %v905 = vld [vmem:[%s548 + $0x818] sm:$0xff]
        %v906 = vld [vmem:[%s548 + $0x820] sm:$0xff]
        %v907 = vld [vmem:[%s548 + $0x828] sm:$0xff]
        %v908 = vld [vmem:[%s548 + $0x830] sm:$0xff]
        %v909 = vld [vmem:[%s548 + $0x838] sm:$0xff]
        %v910 = vld [vmem:[%s548 + $0x840] sm:$0xff]
        %v911 = vld [vmem:[%s548 + $0x848] sm:$0xff]
        %v912 = vld [vmem:[%s548 + $0x850] sm:$0xff]
        %v913 = vld [vmem:[%s548 + $0x858] sm:$0xff]
        %v914 = vld [vmem:[%s548 + $0x860] sm:$0xff]
        %v915 = vld [vmem:[%s548 + $0x868] sm:$0xff]
        %v916 = vld [vmem:[%s548 + $0x870] sm:$0xff]
        %v917 = vld [vmem:[%s548 + $0x878] sm:$0xff]
        %v918 = vld [vmem:[%s548 + $0x880] sm:$0xff]
        %v919 = vld [vmem:[%s548 + $0x888] sm:$0xff]
        %v920 = vld [vmem:[%s548 + $0x890] sm:$0xff]
        %v921 = vld [vmem:[%s548 + $0x898] sm:$0xff]
        %v922 = vld [vmem:[%s548 + $0x8a0] sm:$0xff]
        %v923 = vld [vmem:[%s548 + $0x8a8] sm:$0xff]
        %v924 = vld [vmem:[%s548 + $0x8b0] sm:$0xff]
        %v925 = vld [vmem:[%s548 + $0x8b8] sm:$0xff]
        %v926 = vld [vmem:[%s548 + $0x8c0] sm:$0xff]
        %v927 = vld [vmem:[%s548 + $0x8c8] sm:$0xff]
        %v928 = vld [vmem:[%s548 + $0x8d0] sm:$0xff]
        %v929 = vld [vmem:[%s548 + $0x8d8] sm:$0xff]
        %v930 = vld [vmem:[%s548 + $0x8e0] sm:$0xff]
        %v931 = vld [vmem:[%s548 + $0x8e8] sm:$0xff]
        %v932 = vld [vmem:[%s548 + $0x8f0] sm:$0xff]
        %v933 = vld [vmem:[%s548 + $0x8f8] sm:$0xff]
        %v934 = vld [vmem:[%s548 + $0x900] sm:$0xff]
        %v935 = vld [vmem:[%s548 + $0x908] sm:$0xff]
        %v936 = vld [vmem:[%s548 + $0x910] sm:$0xff]
        %v937 = vld [vmem:[%s548 + $0x918] sm:$0xff]
        %v938 = vld [vmem:[%s548 + $0x920] sm:$0xff]
        %v939 = vld [vmem:[%s548 + $0x928] sm:$0xff]
        %v940 = vld [vmem:[%s548 + $0x930] sm:$0xff]
        %v941 = vld [vmem:[%s548 + $0x938] sm:$0xff]
        %v942 = vld [vmem:[%s548 + $0x940] sm:$0xff]
        %v943 = vld [vmem:[%s548 + $0x948] sm:$0xff]
        %v944 = vld [vmem:[%s548 + $0x950] sm:$0xff]
        %v945 = vld [vmem:[%s548 + $0x958] sm:$0xff]
        %v946 = vld [vmem:[%s548 + $0x960] sm:$0xff]
        %v947 = vld [vmem:[%s548 + $0x968] sm:$0xff]
        %v948 = vld [vmem:[%s548 + $0x970] sm:$0xff]
        %v949 = vld [vmem:[%s548 + $0x978] sm:$0xff]
        %v950 = vld [vmem:[%s548 + $0x980] sm:$0xff]
        %v951 = vld [vmem:[%s548 + $0x988] sm:$0xff]
        %v952 = vld [vmem:[%s548 + $0x990] sm:$0xff]
        %v953 = vld [vmem:[%s548 + $0x998] sm:$0xff]
        %v954 = vld [vmem:[%s548 + $0x9a0] sm:$0xff]
        %v955 = vld [vmem:[%s548 + $0x9a8] sm:$0xff]
        %v956 = vld [vmem:[%s548 + $0x9b0] sm:$0xff]
        %v957 = vld [vmem:[%s548 + $0x9b8] sm:$0xff]
        %v958 = vld [vmem:[%s548 + $0x9c0] sm:$0xff]
        %v959 = vld [vmem:[%s548 + $0x9c8] sm:$0xff]
        %v960 = vld [vmem:[%s548 + $0x9d0] sm:$0xff]
        %v961 = vld [vmem:[%s548 + $0x9d8] sm:$0xff]
        %v962 = vld [vmem:[%s548 + $0x9e0] sm:$0xff]
        %v963 = vld [vmem:[%s548 + $0x9e8] sm:$0xff]
        %v964 = vld [vmem:[%s548 + $0x9f0] sm:$0xff]
        %v965 = vld [vmem:[%s548 + $0x9f8] sm:$0xff]
        %v966 = vld [vmem:[%s548 + $0xa00] sm:$0xff]
        %v967 = vld [vmem:[%s548 + $0xa08] sm:$0xff]
        %v968 = vld [vmem:[%s548 + $0xa10] sm:$0xff]
        %v969 = vld [vmem:[%s548 + $0xa18] sm:$0xff]
        %v970 = vld [vmem:[%s548 + $0xa20] sm:$0xff]
        %v971 = vld [vmem:[%s548 + $0xa28] sm:$0xff]
        %v972 = vld [vmem:[%s548 + $0xa30] sm:$0xff]
        %v973 = vld [vmem:[%s548 + $0xa38] sm:$0xff]
        %v974 = vld [vmem:[%s548 + $0xa40] sm:$0xff]
        %v975 = vld [vmem:[%s548 + $0xa48] sm:$0xff]
        %v976 = vld [vmem:[%s548 + $0xa50] sm:$0xff]
        %v977 = vld [vmem:[%s548 + $0xa58] sm:$0xff]
        %v978 = vld [vmem:[%s548 + $0xa60] sm:$0xff]
        %v979 = vld [vmem:[%s548 + $0xa68] sm:$0xff]
        %v980 = vld [vmem:[%s548 + $0xa70] sm:$0xff]
        %v981 = vld [vmem:[%s548 + $0xa78] sm:$0xff]
        %v982 = vld [vmem:[%s548 + $0xa80] sm:$0xff]
        %v983 = vld [vmem:[%s548 + $0xa88] sm:$0xff]
        %v984 = vld [vmem:[%s548 + $0xa90] sm:$0xff]
        %v985 = vld [vmem:[%s548 + $0xa98] sm:$0xff]
        %v986 = vld [vmem:[%s548 + $0xaa0] sm:$0xff]
        %v987 = vld [vmem:[%s548 + $0xaa8] sm:$0xff]
        %v988 = vld [vmem:[%s548 + $0xab0] sm:$0xff]
        %v989 = vld [vmem:[%s548 + $0xab8] sm:$0xff]
        %v990 = vld [vmem:[%s548 + $0xac0] sm:$0xff]
        %v991 = vld [vmem:[%s548 + $0xac8] sm:$0xff]
        %v992 = vld [vmem:[%s548 + $0xad0] sm:$0xff]
        %v993 = vld [vmem:[%s548 + $0xad8] sm:$0xff]
        %v994 = vld [vmem:[%s548 + $0xae0] sm:$0xff]
        %v995 = vld [vmem:[%s548 + $0xae8] sm:$0xff]
        %v996 = vld [vmem:[%s548 + $0xaf0] sm:$0xff]
        %v997 = vld [vmem:[%s548 + $0xaf8] sm:$0xff]
        %v998 = vld [vmem:[%s548 + $0xb00] sm:$0xff]
        %v999 = vld [vmem:[%s548 + $0xb08] sm:$0xff]
        %v1000 = vld [vmem:[%s548 + $0xb10] sm:$0xff]
        %v1001 = vld [vmem:[%s548 + $0xb18] sm:$0xff]
        %v1002 = vld [vmem:[%s548 + $0xb20] sm:$0xff]
        %v1003 = vld [vmem:[%s548 + $0xb28] sm:$0xff]
        %v1004 = vld [vmem:[%s548 + $0xb30] sm:$0xff]
        %v1005 = vld [vmem:[%s548 + $0xb38] sm:$0xff]
        %v1006 = vld [vmem:[%s548 + $0xb40] sm:$0xff]
        %v1007 = vld [vmem:[%s548 + $0xb48] sm:$0xff]
        %v1008 = vld [vmem:[%s548 + $0xb50] sm:$0xff]
        %v1009 = vld [vmem:[%s548 + $0xb58] sm:$0xff]
        %v1010 = vld [vmem:[%s548 + $0xb60] sm:$0xff]
        %v1011 = vld [vmem:[%s548 + $0xb68] sm:$0xff]
        %v1012 = vld [vmem:[%s548 + $0xb70] sm:$0xff]
        %v1013 = vld [vmem:[%s548 + $0xb78] sm:$0xff]
        %v1014 = vld [vmem:[%s548 + $0xb80] sm:$0xff]
        %v1015 = vld [vmem:[%s548 + $0xb88] sm:$0xff]
        %v1016 = vld [vmem:[%s548 + $0xb90] sm:$0xff]
        %v1017 = vld [vmem:[%s548 + $0xb98] sm:$0xff]
        %v1018 = vld [vmem:[%s548 + $0xba0] sm:$0xff]
        %v1019 = vld [vmem:[%s548 + $0xba8] sm:$0xff]
        %v1020 = vld [vmem:[%s548 + $0xbb0] sm:$0xff]
        %v1021 = vld [vmem:[%s548 + $0xbb8] sm:$0xff]
        %v1022 = vld [vmem:[%s548 + $0xbc0] sm:$0xff]
        %v1023 = vld [vmem:[%s548 + $0xbc8] sm:$0xff]
        %v1024 = vld [vmem:[%s548 + $0xbd0] sm:$0xff]
        %v1025 = vld [vmem:[%s548 + $0xbd8] sm:$0xff]
        %v1026 = vld [vmem:[%s548 + $0xbe0] sm:$0xff]
        %v1027 = vld [vmem:[%s548 + $0xbe8] sm:$0xff]
        %v1028 = vld [vmem:[%s548 + $0xbf0] sm:$0xff]
        %v1029 = vld [vmem:[%s548 + $0xbf8] sm:$0xff]
        %v1030 = vld [vmem:[%s548 + $0xc00] sm:$0xff]
        %v1031 = vld [vmem:[%s548 + $0xc08] sm:$0xff]
        %v1032 = vld [vmem:[%s548 + $0xc10] sm:$0xff]
        %v1033 = vld [vmem:[%s548 + $0xc18] sm:$0xff]
        %v1034 = vld [vmem:[%s548 + $0xc20] sm:$0xff]
        %v1035 = vld [vmem:[%s548 + $0xc28] sm:$0xff]
        %v1036 = vld [vmem:[%s548 + $0xc30] sm:$0xff]
        %v1037 = vld [vmem:[%s548 + $0xc38] sm:$0xff]
        %v1038 = vld [vmem:[%s548 + $0xc40] sm:$0xff]
        %v1039 = vld [vmem:[%s548 + $0xc48] sm:$0xff]
        %v1040 = vld [vmem:[%s548 + $0xc50] sm:$0xff]
        %v1041 = vld [vmem:[%s548 + $0xc58] sm:$0xff]
        %v1042 = vld [vmem:[%s548 + $0xc60] sm:$0xff]
        %v1043 = vld [vmem:[%s548 + $0xc68] sm:$0xff]
        %v1044 = vld [vmem:[%s548 + $0xc70] sm:$0xff]
        %v1045 = vld [vmem:[%s548 + $0xc78] sm:$0xff]
        %v1046 = vld [vmem:[%s548 + $0xc80] sm:$0xff]
        %v1047 = vld [vmem:[%s548 + $0xc88] sm:$0xff]
        %v1048 = vld [vmem:[%s548 + $0xc90] sm:$0xff]
        %v1049 = vld [vmem:[%s548 + $0xc98] sm:$0xff]
        %v1050 = vld [vmem:[%s548 + $0xca0] sm:$0xff]
        %v1051 = vld [vmem:[%s548 + $0xca8] sm:$0xff]
        %v1052 = vld [vmem:[%s548 + $0xcb0] sm:$0xff]
        %v1053 = vld [vmem:[%s548 + $0xcb8] sm:$0xff]
        %v1054 = vld [vmem:[%s548 + $0xcc0] sm:$0xff]
        %v1055 = vld [vmem:[%s548 + $0xcc8] sm:$0xff]
        %v1056 = vld [vmem:[%s548 + $0xcd0] sm:$0xff]
        %v1057 = vld [vmem:[%s548 + $0xcd8] sm:$0xff]
        %v1058 = vld [vmem:[%s548 + $0xce0] sm:$0xff]
        %v1059 = vld [vmem:[%s548 + $0xce8] sm:$0xff]
        %v1060 = vld [vmem:[%s548 + $0xcf0] sm:$0xff]
        %v1061 = vld [vmem:[%s548 + $0xcf8] sm:$0xff]
        %v1062 = vld [vmem:[%s548 + $0xd00] sm:$0xff]
        %v1063 = vld [vmem:[%s548 + $0xd08] sm:$0xff]
        %v1064 = vld [vmem:[%s548 + $0xd10] sm:$0xff]
        %v1065 = vld [vmem:[%s548 + $0xd18] sm:$0xff]
        %v1066 = vld [vmem:[%s548 + $0xd20] sm:$0xff]
        %v1067 = vld [vmem:[%s548 + $0xd28] sm:$0xff]
        %v1068 = vld [vmem:[%s548 + $0xd30] sm:$0xff]
        %v1069 = vld [vmem:[%s548 + $0xd38] sm:$0xff]
        %v1070 = vld [vmem:[%s548 + $0xd40] sm:$0xff]
        %v1071 = vld [vmem:[%s548 + $0xd48] sm:$0xff]
        %v1072 = vld [vmem:[%s548 + $0xd50] sm:$0xff]
        %v1073 = vld [vmem:[%s548 + $0xd58] sm:$0xff]
        %v1074 = vld [vmem:[%s548 + $0xd60] sm:$0xff]
        %v1075 = vld [vmem:[%s548 + $0xd68] sm:$0xff]
        %v1076 = vld [vmem:[%s548 + $0xd70] sm:$0xff]
        %v1077 = vld [vmem:[%s548 + $0xd78] sm:$0xff]
        %v1078 = vld [vmem:[%s548 + $0xd80] sm:$0xff]
        %v1079 = vld [vmem:[%s548 + $0xd88] sm:$0xff]
        %v1080 = vld [vmem:[%s548 + $0xd90] sm:$0xff]
        %v1081 = vld [vmem:[%s548 + $0xd98] sm:$0xff]
        %v1082 = vld [vmem:[%s548 + $0xda0] sm:$0xff]
        %v1083 = vld [vmem:[%s548 + $0xda8] sm:$0xff]
        %v1084 = vld [vmem:[%s548 + $0xdb0] sm:$0xff]
        %v1085 = vld [vmem:[%s548 + $0xdb8] sm:$0xff]
        %v1086 = vld [vmem:[%s548 + $0xdc0] sm:$0xff]
        %v1087 = vld [vmem:[%s548 + $0xdc8] sm:$0xff]
        %v1088 = vld [vmem:[%s548 + $0xdd0] sm:$0xff]
        %v1089 = vld [vmem:[%s548 + $0xdd8] sm:$0xff]
        %v1090 = vld [vmem:[%s548 + $0xde0] sm:$0xff]
        %v1091 = vld [vmem:[%s548 + $0xde8] sm:$0xff]
        %v1092 = vld [vmem:[%s548 + $0xdf0] sm:$0xff]
        %v1093 = vld [vmem:[%s548 + $0xdf8] sm:$0xff]
        %v1094 = vld [vmem:[%s548 + $0xe00] sm:$0xff]
        %v1095 = vld [vmem:[%s548 + $0xe08] sm:$0xff]
        %v1096 = vld [vmem:[%s548 + $0xe10] sm:$0xff]
        %v1097 = vld [vmem:[%s548 + $0xe18] sm:$0xff]
        %v1098 = vld [vmem:[%s548 + $0xe20] sm:$0xff]
        %v1099 = vld [vmem:[%s548 + $0xe28] sm:$0xff]
        %v1100 = vld [vmem:[%s548 + $0xe30] sm:$0xff]
        %v1101 = vld [vmem:[%s548 + $0xe38] sm:$0xff]
        %v1102 = vld [vmem:[%s548 + $0xe40] sm:$0xff]
        %v1103 = vld [vmem:[%s548 + $0xe48] sm:$0xff]
        %v1104 = vld [vmem:[%s548 + $0xe50] sm:$0xff]
        %v1105 = vld [vmem:[%s548 + $0xe58] sm:$0xff]
        %v1106 = vld [vmem:[%s548 + $0xe60] sm:$0xff]
        %v1107 = vld [vmem:[%s548 + $0xe68] sm:$0xff]
        %v1108 = vld [vmem:[%s548 + $0xe70] sm:$0xff]
        %v1109 = vld [vmem:[%s548 + $0xe78] sm:$0xff]
        %v1110 = vld [vmem:[%s548 + $0xe80] sm:$0xff]
        %v1111 = vld [vmem:[%s548 + $0xe88] sm:$0xff]
        %v1112 = vld [vmem:[%s548 + $0xe90] sm:$0xff]
        %v1113 = vld [vmem:[%s548 + $0xe98] sm:$0xff]
        %v1114 = vld [vmem:[%s548 + $0xea0] sm:$0xff]
        %v1115 = vld [vmem:[%s548 + $0xea8] sm:$0xff]
        %v1116 = vld [vmem:[%s548 + $0xeb0] sm:$0xff]
        %v1117 = vld [vmem:[%s548 + $0xeb8] sm:$0xff]
        %v1118 = vld [vmem:[%s548 + $0xec0] sm:$0xff]
        %v1119 = vld [vmem:[%s548 + $0xec8] sm:$0xff]
        %v1120 = vld [vmem:[%s548 + $0xed0] sm:$0xff]
        %v1121 = vld [vmem:[%s548 + $0xed8] sm:$0xff]
        %v1122 = vld [vmem:[%s548 + $0xee0] sm:$0xff]
        %v1123 = vld [vmem:[%s548 + $0xee8] sm:$0xff]
        %v1124 = vld [vmem:[%s548 + $0xef0] sm:$0xff]
        %v1125 = vld [vmem:[%s548 + $0xef8] sm:$0xff]
        %v1126 = vld [vmem:[%s548 + $0xf00] sm:$0xff]
        %v1127 = vld [vmem:[%s548 + $0xf08] sm:$0xff]
        %v1128 = vld [vmem:[%s548 + $0xf10] sm:$0xff]
        %v1129 = vld [vmem:[%s548 + $0xf18] sm:$0xff]
        %v1130 = vld [vmem:[%s548 + $0xf20] sm:$0xff]
        %v1131 = vld [vmem:[%s548 + $0xf28] sm:$0xff]
        %v1132 = vld [vmem:[%s548 + $0xf30] sm:$0xff]
        %v1133 = vld [vmem:[%s548 + $0xf38] sm:$0xff]
        %v1134 = vld [vmem:[%s548 + $0xf40] sm:$0xff]
        %v1135 = vld [vmem:[%s548 + $0xf48] sm:$0xff]
        %v1136 = vld [vmem:[%s548 + $0xf50] sm:$0xff]
        %v1137 = vld [vmem:[%s548 + $0xf58] sm:$0xff]
        %v1138 = vld [vmem:[%s548 + $0xf60] sm:$0xff]
        %v1139 = vld [vmem:[%s548 + $0xf68] sm:$0xff]
        %v1140 = vld [vmem:[%s548 + $0xf70] sm:$0xff]
        %v1141 = vld [vmem:[%s548 + $0xf78] sm:$0xff]
        %v1142 = vld [vmem:[%s548 + $0xf80] sm:$0xff]
        %v1143 = vld [vmem:[%s548 + $0xf88] sm:$0xff]
        %v1144 = vld [vmem:[%s548 + $0xf90] sm:$0xff]
        %v1145 = vld [vmem:[%s548 + $0xf98] sm:$0xff]
        %v1146 = vld [vmem:[%s548 + $0xfa0] sm:$0xff]
        %v1147 = vld [vmem:[%s548 + $0xfa8] sm:$0xff]
        %v1148 = vld [vmem:[%s548 + $0xfb0] sm:$0xff]
        %v1149 = vld [vmem:[%s548 + $0xfb8] sm:$0xff]
        %v1150 = vld [vmem:[%s548 + $0xfc0] sm:$0xff]
        %v1151 = vld [vmem:[%s548 + $0xfc8] sm:$0xff]
        %v1152 = vld [vmem:[%s548 + $0xfd0] sm:$0xff]
        %v1153 = vld [vmem:[%s548 + $0xfd8] sm:$0xff]
        %v1154 = vld [vmem:[%s548 + $0xfe0] sm:$0xff]
        %v1155 = vld [vmem:[%s548 + $0xfe8] sm:$0xff]
        %v1156 = vld [vmem:[%s548 + $0xff0] sm:$0xff]
        %v1157 = vld [vmem:[%s548 + $0xff8] sm:$0xff]
        %v1158 = vld [vmem:[%s548 + $0x1000] sm:$0xff]
        %v1159 = vld [vmem:[%s548 + $0x1008] sm:$0xff]
        %v1160 = vld [vmem:[%s548 + $0x1010] sm:$0xff]
        %v1161 = vld [vmem:[%s548 + $0x1018] sm:$0xff]
        %v1162 = vld [vmem:[%s548 + $0x1020] sm:$0xff]
        %v1163 = vld [vmem:[%s548 + $0x1028] sm:$0xff]
        %v1164 = vld [vmem:[%s548 + $0x1030] sm:$0xff]
        %v1165 = vld [vmem:[%s548 + $0x1038] sm:$0xff]
        %v1166 = vld [vmem:[%s548 + $0x1040] sm:$0xff]
        %v1167 = vld [vmem:[%s548 + $0x1048] sm:$0xff]
        %v1168 = vld [vmem:[%s548 + $0x1050] sm:$0xff]
        %v1169 = vld [vmem:[%s548 + $0x1058] sm:$0xff]
        %v1170 = vld [vmem:[%s548 + $0x1060] sm:$0xff]
        %v1171 = vld [vmem:[%s548 + $0x1068] sm:$0xff]
        %v1172 = vld [vmem:[%s548 + $0x1070] sm:$0xff]
        %v1173 = vld [vmem:[%s548 + $0x1078] sm:$0xff]
        %v1174 = vld [vmem:[%s548 + $0x1080] sm:$0xff]
        %v1175 = vld [vmem:[%s548 + $0x1088] sm:$0xff]
        %v1176 = vld [vmem:[%s548 + $0x1090] sm:$0xff]
        %v1177 = vld [vmem:[%s548 + $0x1098] sm:$0xff]
        %v1178 = vld [vmem:[%s548 + $0x10a0] sm:$0xff]
        %v1179 = vld [vmem:[%s548 + $0x10a8] sm:$0xff]
        %v1180 = vld [vmem:[%s548 + $0x10b0] sm:$0xff]
        %v1181 = vld [vmem:[%s548 + $0x10b8] sm:$0xff]
        %v1182 = vld [vmem:[%s548 + $0x10c0] sm:$0xff]
        %v1183 = vld [vmem:[%s548 + $0x10c8] sm:$0xff]
        %v1184 = vld [vmem:[%s548 + $0x10d0] sm:$0xff]
        %v1185 = vld [vmem:[%s548 + $0x10d8] sm:$0xff]
        %v1186 = vld [vmem:[%s548 + $0x10e0] sm:$0xff]
        %v1187 = vld [vmem:[%s548 + $0x10e8] sm:$0xff]
        %v1188 = vld [vmem:[%s548 + $0x10f0] sm:$0xff]
        %v1189 = vld [vmem:[%s548 + $0x10f8] sm:$0xff]
        %v1190 = vld [vmem:[%s548 + $0x1100] sm:$0xff]
        %v1191 = vld [vmem:[%s548 + $0x1108] sm:$0xff]
        %v1192 = vld [vmem:[%s548 + $0x1110] sm:$0xff]
        %v1193 = vld [vmem:[%s548 + $0x1118] sm:$0xff]
        %v1194 = vld [vmem:[%s548 + $0x1120] sm:$0xff]
        %v1195 = vld [vmem:[%s548 + $0x1128] sm:$0xff]
        %v1196 = vld [vmem:[%s548 + $0x1130] sm:$0xff]
        %v1197 = vld [vmem:[%s548 + $0x1138] sm:$0xff]
        %v1198 = vld [vmem:[%s548 + $0x1140] sm:$0xff]
        %v1199 = vld [vmem:[%s548 + $0x1148] sm:$0xff]
        %v1200 = vld [vmem:[%s548 + $0x1150] sm:$0xff]
        %v1201 = vld [vmem:[%s548 + $0x1158] sm:$0xff]
        %v1202 = vld [vmem:[%s548 + $0x1160] sm:$0xff]
        %v1203 = vld [vmem:[%s548 + $0x1168] sm:$0xff]
        %v1204 = vld [vmem:[%s548 + $0x1170] sm:$0xff]
        %v1205 = vld [vmem:[%s548 + $0x1178] sm:$0xff]
        %v1206 = vld [vmem:[%s548 + $0x1180] sm:$0xff]
        %v1207 = vld [vmem:[%s548 + $0x1188] sm:$0xff]
        %v1208 = vld [vmem:[%s548 + $0x1190] sm:$0xff]
        %v1209 = vld [vmem:[%s548 + $0x1198] sm:$0xff]
        %v1210 = vld [vmem:[%s548 + $0x11a0] sm:$0xff]
        %v1211 = vld [vmem:[%s548 + $0x11a8] sm:$0xff]
        %v1212 = vld [vmem:[%s548 + $0x11b0] sm:$0xff]
        %v1213 = vld [vmem:[%s548 + $0x11b8] sm:$0xff]
        %v1214 = vld [vmem:[%s548 + $0x11c0] sm:$0xff]
        %v1215 = vld [vmem:[%s548 + $0x11c8] sm:$0xff]
        %v1216 = vld [vmem:[%s548 + $0x11d0] sm:$0xff]
        %v1217 = vld [vmem:[%s548 + $0x11d8] sm:$0xff]
        %v1218 = vld [vmem:[%s548 + $0x11e0] sm:$0xff]
        %v1219 = vld [vmem:[%s548 + $0x11e8] sm:$0xff]
        %v1220 = vld [vmem:[%s548 + $0x11f0] sm:$0xff]
        %v1221 = vld [vmem:[%s548 + $0x11f8] sm:$0xff]
        %v1222 = vld [vmem:[%s548 + $0x1200] sm:$0xff]
        %v1223 = vld [vmem:[%s548 + $0x1208] sm:$0xff]
        %v1224 = vld [vmem:[%s548 + $0x1210] sm:$0xff]
        %v1225 = vld [vmem:[%s548 + $0x1218] sm:$0xff]
        %v1226 = vld [vmem:[%s548 + $0x1220] sm:$0xff]
        %v1227 = vld [vmem:[%s548 + $0x1228] sm:$0xff]
        %v1228 = vld [vmem:[%s548 + $0x1230] sm:$0xff]
        %v1229 = vld [vmem:[%s548 + $0x1238] sm:$0xff]
        %v1230 = vld [vmem:[%s548 + $0x1240] sm:$0xff]
        %v1231 = vld [vmem:[%s548 + $0x1248] sm:$0xff]
        %v1232 = vld [vmem:[%s548 + $0x1250] sm:$0xff]
        %v1233 = vld [vmem:[%s548 + $0x1258] sm:$0xff]
        %v1234 = vld [vmem:[%s548 + $0x1260] sm:$0xff]
        %v1235 = vld [vmem:[%s548 + $0x1268] sm:$0xff]
        %v1236 = vld [vmem:[%s548 + $0x1270] sm:$0xff]
        %v1237 = vld [vmem:[%s548 + $0x1278] sm:$0xff]
        %v1238 = vld [vmem:[%s548 + $0x1280] sm:$0xff]
        %v1239 = vld [vmem:[%s548 + $0x1288] sm:$0xff]
        %v1240 = vld [vmem:[%s548 + $0x1290] sm:$0xff]
        %v1241 = vld [vmem:[%s548 + $0x1298] sm:$0xff]
        %v1242 = vld [vmem:[%s548 + $0x12a0] sm:$0xff]
        %v1243 = vld [vmem:[%s548 + $0x12a8] sm:$0xff]
        %v1244 = vld [vmem:[%s548 + $0x12b0] sm:$0xff]
        %v1245 = vld [vmem:[%s548 + $0x12b8] sm:$0xff]
        %v1246 = vld [vmem:[%s548 + $0x12c0] sm:$0xff]
        %v1247 = vld [vmem:[%s548 + $0x12c8] sm:$0xff]
        %v1248 = vld [vmem:[%s548 + $0x12d0] sm:$0xff]
        %v1249 = vld [vmem:[%s548 + $0x12d8] sm:$0xff]
        %v1250 = vld [vmem:[%s548 + $0x12e0] sm:$0xff]
        %v1251 = vld [vmem:[%s548 + $0x12e8] sm:$0xff]
        %v1252 = vld [vmem:[%s548 + $0x12f0] sm:$0xff]
        %v1253 = vld [vmem:[%s548 + $0x12f8] sm:$0xff]
        %v1254 = vld [vmem:[%s548 + $0x1300] sm:$0xff]
        %v1255 = vld [vmem:[%s548 + $0x1308] sm:$0xff]
        %v1256 = vld [vmem:[%s548 + $0x1310] sm:$0xff]
        %v1257 = vld [vmem:[%s548 + $0x1318] sm:$0xff]
        %v1258 = vld [vmem:[%s548 + $0x1320] sm:$0xff]
        %v1259 = vld [vmem:[%s548 + $0x1328] sm:$0xff]
        %v1260 = vld [vmem:[%s548 + $0x1330] sm:$0xff]
        %v1261 = vld [vmem:[%s548 + $0x1338] sm:$0xff]
        %v1262 = vld [vmem:[%s548 + $0x1340] sm:$0xff]
        %v1263 = vld [vmem:[%s548 + $0x1348] sm:$0xff]
        %v1264 = vld [vmem:[%s548 + $0x1350] sm:$0xff]
        %v1265 = vld [vmem:[%s548 + $0x1358] sm:$0xff]
        %v1266 = vld [vmem:[%s548 + $0x1360] sm:$0xff]
        %v1267 = vld [vmem:[%s548 + $0x1368] sm:$0xff]
        %v1268 = vld [vmem:[%s548 + $0x1370] sm:$0xff]
        %v1269 = vld [vmem:[%s548 + $0x1378] sm:$0xff]
        %v1270 = vld [vmem:[%s548 + $0x1380] sm:$0xff]
        %v1271 = vld [vmem:[%s548 + $0x1388] sm:$0xff]
        %v1272 = vld [vmem:[%s548 + $0x1390] sm:$0xff]
        %v1273 = vld [vmem:[%s548 + $0x1398] sm:$0xff]
        %v1274 = vld [vmem:[%s548 + $0x13a0] sm:$0xff]
        %v1275 = vld [vmem:[%s548 + $0x13a8] sm:$0xff]
        %v1276 = vld [vmem:[%s548 + $0x13b0] sm:$0xff]
        %v1277 = vld [vmem:[%s548 + $0x13b8] sm:$0xff]
        %v1278 = vld [vmem:[%s548 + $0x13c0] sm:$0xff]
        %v1279 = vld [vmem:[%s548 + $0x13c8] sm:$0xff]
        %v1280 = vld [vmem:[%s548 + $0x13d0] sm:$0xff]
        %v1281 = vld [vmem:[%s548 + $0x13d8] sm:$0xff]
        %v1282 = vld [vmem:[%s548 + $0x13e0] sm:$0xff]
        %v1283 = vld [vmem:[%s548 + $0x13e8] sm:$0xff]
        %v1284 = vld [vmem:[%s548 + $0x13f0] sm:$0xff]
        %v1285 = vld [vmem:[%s548 + $0x13f8] sm:$0xff]
        %v1286 = vld [vmem:[%s548 + $0x1400] sm:$0xff]
        %v1287 = vld [vmem:[%s548 + $0x1408] sm:$0xff]
        %v1288 = vld [vmem:[%s548 + $0x1410] sm:$0xff]
        %v1289 = vld [vmem:[%s548 + $0x1418] sm:$0xff]
        %v1290 = vld [vmem:[%s548 + $0x1420] sm:$0xff]
        %v1291 = vld [vmem:[%s548 + $0x1428] sm:$0xff]
        %v1292 = vld [vmem:[%s548 + $0x1430] sm:$0xff]
        %v1293 = vld [vmem:[%s548 + $0x1438] sm:$0xff]
        %v1294 = vld [vmem:[%s548 + $0x1440] sm:$0xff]
        %v1295 = vld [vmem:[%s548 + $0x1448] sm:$0xff]
        %v1296 = vld [vmem:[%s548 + $0x1450] sm:$0xff]
        %v1297 = vld [vmem:[%s548 + $0x1458] sm:$0xff]
        %v1298 = vld [vmem:[%s548 + $0x1460] sm:$0xff]
        %v1299 = vld [vmem:[%s548 + $0x1468] sm:$0xff]
        %v1300 = vld [vmem:[%s548 + $0x1470] sm:$0xff]
        %v1301 = vld [vmem:[%s548 + $0x1478] sm:$0xff]
        %v1302 = vld [vmem:[%s548 + $0x1480] sm:$0xff]
        %v1303 = vld [vmem:[%s548 + $0x1488] sm:$0xff]
        %v1304 = vld [vmem:[%s548 + $0x1490] sm:$0xff]
        %v1305 = vld [vmem:[%s548 + $0x1498] sm:$0xff]
        %v1306 = vld [vmem:[%s548 + $0x14a0] sm:$0xff]
        %v1307 = vld [vmem:[%s548 + $0x14a8] sm:$0xff]
        %v1308 = vld [vmem:[%s548 + $0x14b0] sm:$0xff]
        %v1309 = vld [vmem:[%s548 + $0x14b8] sm:$0xff]
        %v1310 = vld [vmem:[%s548 + $0x14c0] sm:$0xff]
        %v1311 = vld [vmem:[%s548 + $0x14c8] sm:$0xff]
        %v1312 = vld [vmem:[%s548 + $0x14d0] sm:$0xff]
        %v1313 = vld [vmem:[%s548 + $0x14d8] sm:$0xff]
        %v1314 = vld [vmem:[%s548 + $0x14e0] sm:$0xff]
        %v1315 = vld [vmem:[%s548 + $0x14e8] sm:$0xff]
        %v1316 = vld [vmem:[%s548 + $0x14f0] sm:$0xff]
        %v1317 = vld [vmem:[%s548 + $0x14f8] sm:$0xff]
        %v1318 = vld [vmem:[%s548 + $0x1500] sm:$0xff]
        %v1319 = vld [vmem:[%s548 + $0x1508] sm:$0xff]
        %v1320 = vld [vmem:[%s548 + $0x1510] sm:$0xff]
        %v1321 = vld [vmem:[%s548 + $0x1518] sm:$0xff]
        %v1322 = vld [vmem:[%s548 + $0x1520] sm:$0xff]
        %v1323 = vld [vmem:[%s548 + $0x1528] sm:$0xff]
        %v1324 = vld [vmem:[%s548 + $0x1530] sm:$0xff]
        %v1325 = vld [vmem:[%s548 + $0x1538] sm:$0xff]
        %v1326 = vld [vmem:[%s548 + $0x1540] sm:$0xff]
        %v1327 = vld [vmem:[%s548 + $0x1548] sm:$0xff]
        %v1328 = vld [vmem:[%s548 + $0x1550] sm:$0xff]
        %v1329 = vld [vmem:[%s548 + $0x1558] sm:$0xff]
        %v1330 = vld [vmem:[%s548 + $0x1560] sm:$0xff]
        %v1331 = vld [vmem:[%s548 + $0x1568] sm:$0xff]
        %v1332 = vld [vmem:[%s548 + $0x1570] sm:$0xff]
        %v1333 = vld [vmem:[%s548 + $0x1578] sm:$0xff]
        %v1334 = vld [vmem:[%s548 + $0x1580] sm:$0xff]
        %v1335 = vld [vmem:[%s548 + $0x1588] sm:$0xff]
        %v1336 = vld [vmem:[%s548 + $0x1590] sm:$0xff]
        %v1337 = vld [vmem:[%s548 + $0x1598] sm:$0xff]
        %v1338 = vld [vmem:[%s548 + $0x15a0] sm:$0xff]
        %v1339 = vld [vmem:[%s548 + $0x15a8] sm:$0xff]
        %v1340 = vld [vmem:[%s548 + $0x15b0] sm:$0xff]
        %v1341 = vld [vmem:[%s548 + $0x15b8] sm:$0xff]
        %v1342 = vld [vmem:[%s548 + $0x15c0] sm:$0xff]
        %v1343 = vld [vmem:[%s548 + $0x15c8] sm:$0xff]
        %v1344 = vld [vmem:[%s548 + $0x15d0] sm:$0xff]
        %v1345 = vld [vmem:[%s548 + $0x15d8] sm:$0xff]
        %v1346 = vld [vmem:[%s548 + $0x15e0] sm:$0xff]
        %v1347 = vld [vmem:[%s548 + $0x15e8] sm:$0xff]
        %v1348 = vld [vmem:[%s548 + $0x15f0] sm:$0xff]
        %v1349 = vld [vmem:[%s548 + $0x15f8] sm:$0xff]
        %v1350 = vld [vmem:[%s548 + $0x1600] sm:$0xff]
        %v1351 = vld [vmem:[%s548 + $0x1608] sm:$0xff]
        %v1352 = vld [vmem:[%s548 + $0x1610] sm:$0xff]
        %v1353 = vld [vmem:[%s548 + $0x1618] sm:$0xff]
        %v1354 = vld [vmem:[%s548 + $0x1620] sm:$0xff]
        %v1355 = vld [vmem:[%s548 + $0x1628] sm:$0xff]
        %v1356 = vld [vmem:[%s548 + $0x1630] sm:$0xff]
        %v1357 = vld [vmem:[%s548 + $0x1638] sm:$0xff]
        %v1358 = vld [vmem:[%s548 + $0x1640] sm:$0xff]
        %v1359 = vld [vmem:[%s548 + $0x1648] sm:$0xff]
        %v1360 = vld [vmem:[%s548 + $0x1650] sm:$0xff]
        %v1361 = vld [vmem:[%s548 + $0x1658] sm:$0xff]
        %v1362 = vld [vmem:[%s548 + $0x1660] sm:$0xff]
        %v1363 = vld [vmem:[%s548 + $0x1668] sm:$0xff]
        %v1364 = vld [vmem:[%s548 + $0x1670] sm:$0xff]
        %v1365 = vld [vmem:[%s548 + $0x1678] sm:$0xff]
        %v1366 = vld [vmem:[%s548 + $0x1680] sm:$0xff]
        %v1367 = vld [vmem:[%s548 + $0x1688] sm:$0xff]
        %v1368 = vld [vmem:[%s548 + $0x1690] sm:$0xff]
        %v1369 = vld [vmem:[%s548 + $0x1698] sm:$0xff]
        %v1370 = vld [vmem:[%s548 + $0x16a0] sm:$0xff]
        %v1371 = vld [vmem:[%s548 + $0x16a8] sm:$0xff]
        %v1372 = vld [vmem:[%s548 + $0x16b0] sm:$0xff]
        %v1373 = vld [vmem:[%s548 + $0x16b8] sm:$0xff]
        %v1374 = vld [vmem:[%s548 + $0x16c0] sm:$0xff]
        %v1375 = vld [vmem:[%s548 + $0x16c8] sm:$0xff]
        %v1376 = vld [vmem:[%s548 + $0x16d0] sm:$0xff]
        %v1377 = vld [vmem:[%s548 + $0x16d8] sm:$0xff]
        %v1378 = vld [vmem:[%s548 + $0x16e0] sm:$0xff]
        %v1379 = vld [vmem:[%s548 + $0x16e8] sm:$0xff]
        %v1380 = vld [vmem:[%s548 + $0x16f0] sm:$0xff]
        %v1381 = vld [vmem:[%s548 + $0x16f8] sm:$0xff]
        %v1382 = vld [vmem:[%s548 + $0x1700] sm:$0xff]
        %v1383 = vld [vmem:[%s548 + $0x1708] sm:$0xff]
        %v1384 = vld [vmem:[%s548 + $0x1710] sm:$0xff]
        %v1385 = vld [vmem:[%s548 + $0x1718] sm:$0xff]
        %v1386 = vld [vmem:[%s548 + $0x1720] sm:$0xff]
        %v1387 = vld [vmem:[%s548 + $0x1728] sm:$0xff]
        %v1388 = vld [vmem:[%s548 + $0x1730] sm:$0xff]
        %v1389 = vld [vmem:[%s548 + $0x1738] sm:$0xff]
        %v1390 = vld [vmem:[%s548 + $0x1740] sm:$0xff]
        %v1391 = vld [vmem:[%s548 + $0x1748] sm:$0xff]
        %v1392 = vld [vmem:[%s548 + $0x1750] sm:$0xff]
        %v1393 = vld [vmem:[%s548 + $0x1758] sm:$0xff]
        %v1394 = vld [vmem:[%s548 + $0x1760] sm:$0xff]
        %v1395 = vld [vmem:[%s548 + $0x1768] sm:$0xff]
        %v1396 = vld [vmem:[%s548 + $0x1770] sm:$0xff]
        %v1397 = vld [vmem:[%s548 + $0x1778] sm:$0xff]
        %v1398 = vld [vmem:[%s548 + $0x1780] sm:$0xff]
        %v1399 = vld [vmem:[%s548 + $0x1788] sm:$0xff]
        %v1400 = vld [vmem:[%s548 + $0x1790] sm:$0xff]
        %v1401 = vld [vmem:[%s548 + $0x1798] sm:$0xff]
        %v1402 = vld [vmem:[%s548 + $0x17a0] sm:$0xff]
        %v1403 = vld [vmem:[%s548 + $0x17a8] sm:$0xff]
        %v1404 = vld [vmem:[%s548 + $0x17b0] sm:$0xff]
        %v1405 = vld [vmem:[%s548 + $0x17b8] sm:$0xff]
        %v1406 = vld [vmem:[%s548 + $0x17c0] sm:$0xff]
        %v1407 = vld [vmem:[%s548 + $0x17c8] sm:$0xff]
        %v1408 = vld [vmem:[%s548 + $0x17d0] sm:$0xff]
        %v1409 = vld [vmem:[%s548 + $0x17d8] sm:$0xff]
        %v1410 = vld [vmem:[%s548 + $0x17e0] sm:$0xff]
        %v1411 = vld [vmem:[%s548 + $0x17e8] sm:$0xff]
        %v1412 = vld [vmem:[%s548 + $0x17f0] sm:$0xff]
        %v1413 = vld [vmem:[%s548 + $0x17f8] sm:$0xff]
        %v1414 = vld [vmem:[%s548 + $0x1800] sm:$0xff]
        %v1415 = vld [vmem:[%s548 + $0x1808] sm:$0xff]
        %v1416 = vld [vmem:[%s548 + $0x1810] sm:$0xff]
        %v1417 = vld [vmem:[%s548 + $0x1818] sm:$0xff]
        %v1418 = vld [vmem:[%s548 + $0x1820] sm:$0xff]
        %v1419 = vld [vmem:[%s548 + $0x1828] sm:$0xff]
        %v1420 = vld [vmem:[%s548 + $0x1830] sm:$0xff]
        %v1421 = vld [vmem:[%s548 + $0x1838] sm:$0xff]
        %v1422 = vld [vmem:[%s548 + $0x1840] sm:$0xff]
        %v1423 = vld [vmem:[%s548 + $0x1848] sm:$0xff]
        %v1424 = vld [vmem:[%s548 + $0x1850] sm:$0xff]
        %v1425 = vld [vmem:[%s548 + $0x1858] sm:$0xff]
        %v1426 = vld [vmem:[%s548 + $0x1860] sm:$0xff]
        %v1427 = vld [vmem:[%s548 + $0x1868] sm:$0xff]
        %v1428 = vld [vmem:[%s548 + $0x1870] sm:$0xff]
        %v1429 = vld [vmem:[%s548 + $0x1878] sm:$0xff]
        %v1430 = vld [vmem:[%s548 + $0x1880] sm:$0xff]
        %v1431 = vld [vmem:[%s548 + $0x1888] sm:$0xff]
        %v1432 = vld [vmem:[%s548 + $0x1890] sm:$0xff]
        %v1433 = vld [vmem:[%s548 + $0x1898] sm:$0xff]
        %v1434 = vld [vmem:[%s548 + $0x18a0] sm:$0xff]
        %v1435 = vld [vmem:[%s548 + $0x18a8] sm:$0xff]
        %v1436 = vld [vmem:[%s548 + $0x18b0] sm:$0xff]
        %v1437 = vld [vmem:[%s548 + $0x18b8] sm:$0xff]
        %v1438 = vld [vmem:[%s548 + $0x18c0] sm:$0xff]
        %v1439 = vld [vmem:[%s548 + $0x18c8] sm:$0xff]
        %v1440 = vld [vmem:[%s548 + $0x18d0] sm:$0xff]
        %v1441 = vld [vmem:[%s548 + $0x18d8] sm:$0xff]
        %v1442 = vld [vmem:[%s548 + $0x18e0] sm:$0xff]
        %v1443 = vld [vmem:[%s548 + $0x18e8] sm:$0xff]
        %v1444 = vld [vmem:[%s548 + $0x18f0] sm:$0xff]
        %v1445 = vld [vmem:[%s548 + $0x18f8] sm:$0xff]
        %v1446 = vld [vmem:[%s548 + $0x1900] sm:$0xff]
        %v1447 = vld [vmem:[%s548 + $0x1908] sm:$0xff]
        %v1448 = vld [vmem:[%s548 + $0x1910] sm:$0xff]
        %v1449 = vld [vmem:[%s548 + $0x1918] sm:$0xff]
        %v1450 = vld [vmem:[%s548 + $0x1920] sm:$0xff]
        %v1451 = vld [vmem:[%s548 + $0x1928] sm:$0xff]
        %v1452 = vld [vmem:[%s548 + $0x1930] sm:$0xff]
        %v1453 = vld [vmem:[%s548 + $0x1938] sm:$0xff]
        %v1454 = vld [vmem:[%s548 + $0x1940] sm:$0xff]
        %v1455 = vld [vmem:[%s548 + $0x1948] sm:$0xff]
        %v1456 = vld [vmem:[%s548 + $0x1950] sm:$0xff]
        %v1457 = vld [vmem:[%s548 + $0x1958] sm:$0xff]
        %v1458 = vld [vmem:[%s548 + $0x1960] sm:$0xff]
        %v1459 = vld [vmem:[%s548 + $0x1968] sm:$0xff]
        %v1460 = vld [vmem:[%s548 + $0x1970] sm:$0xff]
        %v1461 = vld [vmem:[%s548 + $0x1978] sm:$0xff]
        %v1462 = vld [vmem:[%s548 + $0x1980] sm:$0xff]
        %v1463 = vld [vmem:[%s548 + $0x1988] sm:$0xff]
        %v1464 = vld [vmem:[%s548 + $0x1990] sm:$0xff]
        %v1465 = vld [vmem:[%s548 + $0x1998] sm:$0xff]
        %v1466 = vld [vmem:[%s548 + $0x19a0] sm:$0xff]
        %v1467 = vld [vmem:[%s548 + $0x19a8] sm:$0xff]
        %v1468 = vld [vmem:[%s548 + $0x19b0] sm:$0xff]
        %v1469 = vld [vmem:[%s548 + $0x19b8] sm:$0xff]
        %v1470 = vld [vmem:[%s548 + $0x19c0] sm:$0xff]
        %v1471 = vld [vmem:[%s548 + $0x19c8] sm:$0xff]
        %v1472 = vld [vmem:[%s548 + $0x19d0] sm:$0xff]
        %v1473 = vld [vmem:[%s548 + $0x19d8] sm:$0xff]
        %v1474 = vld [vmem:[%s548 + $0x19e0] sm:$0xff]
        %v1475 = vld [vmem:[%s548 + $0x19e8] sm:$0xff]
        %v1476 = vld [vmem:[%s548 + $0x19f0] sm:$0xff]
        %v1477 = vld [vmem:[%s548 + $0x19f8] sm:$0xff]
        %v1478 = vld [vmem:[%s548 + $0x1a00] sm:$0xff]
        %v1479 = vld [vmem:[%s548 + $0x1a08] sm:$0xff]
        %v1480 = vld [vmem:[%s548 + $0x1a10] sm:$0xff]
        %v1481 = vld [vmem:[%s548 + $0x1a18] sm:$0xff]
        %v1482 = vld [vmem:[%s548 + $0x1a20] sm:$0xff]
        %v1483 = vld [vmem:[%s548 + $0x1a28] sm:$0xff]
        %v1484 = vld [vmem:[%s548 + $0x1a30] sm:$0xff]
        %v1485 = vld [vmem:[%s548 + $0x1a38] sm:$0xff]
        %v1486 = vld [vmem:[%s548 + $0x1a40] sm:$0xff]
        %v1487 = vld [vmem:[%s548 + $0x1a48] sm:$0xff]
        %v1488 = vld [vmem:[%s548 + $0x1a50] sm:$0xff]
        %v1489 = vld [vmem:[%s548 + $0x1a58] sm:$0xff]
        %v1490 = vld [vmem:[%s548 + $0x1a60] sm:$0xff]
        %v1491 = vld [vmem:[%s548 + $0x1a68] sm:$0xff]
        %v1492 = vld [vmem:[%s548 + $0x1a70] sm:$0xff]
        %v1493 = vld [vmem:[%s548 + $0x1a78] sm:$0xff]
        %v1494 = vld [vmem:[%s548 + $0x1a80] sm:$0xff]
        %v1495 = vld [vmem:[%s548 + $0x1a88] sm:$0xff]
        %v1496 = vld [vmem:[%s548 + $0x1a90] sm:$0xff]
        %v1497 = vld [vmem:[%s548 + $0x1a98] sm:$0xff]
        %v1498 = vld [vmem:[%s548 + $0x1aa0] sm:$0xff]
        %v1499 = vld [vmem:[%s548 + $0x1aa8] sm:$0xff]
        %v1500 = vld [vmem:[%s548 + $0x1ab0] sm:$0xff]
        %v1501 = vld [vmem:[%s548 + $0x1ab8] sm:$0xff]
        %v1502 = vld [vmem:[%s548 + $0x1ac0] sm:$0xff]
        %v1503 = vld [vmem:[%s548 + $0x1ac8] sm:$0xff]
        %v1504 = vld [vmem:[%s548 + $0x1ad0] sm:$0xff]
        %v1505 = vld [vmem:[%s548 + $0x1ad8] sm:$0xff]
        %v1506 = vld [vmem:[%s548 + $0x1ae0] sm:$0xff]
        %v1507 = vld [vmem:[%s548 + $0x1ae8] sm:$0xff]
        %v1508 = vld [vmem:[%s548 + $0x1af0] sm:$0xff]
        %v1509 = vld [vmem:[%s548 + $0x1af8] sm:$0xff]
        %v1510 = vld [vmem:[%s548 + $0x1b00] sm:$0xff]
        %v1511 = vld [vmem:[%s548 + $0x1b08] sm:$0xff]
        %v1512 = vld [vmem:[%s548 + $0x1b10] sm:$0xff]
        %v1513 = vld [vmem:[%s548 + $0x1b18] sm:$0xff]
        %v1514 = vld [vmem:[%s548 + $0x1b20] sm:$0xff]
        %v1515 = vld [vmem:[%s548 + $0x1b28] sm:$0xff]
        %v1516 = vld [vmem:[%s548 + $0x1b30] sm:$0xff]
        %v1517 = vld [vmem:[%s548 + $0x1b38] sm:$0xff]
        %v1518 = vld [vmem:[%s548 + $0x1b40] sm:$0xff]
        %v1519 = vld [vmem:[%s548 + $0x1b48] sm:$0xff]
        %v1520 = vld [vmem:[%s548 + $0x1b50] sm:$0xff]
        %v1521 = vld [vmem:[%s548 + $0x1b58] sm:$0xff]
        %v1522 = vld [vmem:[%s548 + $0x1b60] sm:$0xff]
        %v1523 = vld [vmem:[%s548 + $0x1b68] sm:$0xff]
        %v1524 = vld [vmem:[%s548 + $0x1b70] sm:$0xff]
        %v1525 = vld [vmem:[%s548 + $0x1b78] sm:$0xff]
        %v1526 = vld [vmem:[%s548 + $0x1b80] sm:$0xff]
        %v1527 = vld [vmem:[%s548 + $0x1b88] sm:$0xff]
        %v1528 = vld [vmem:[%s548 + $0x1b90] sm:$0xff]
        %v1529 = vld [vmem:[%s548 + $0x1b98] sm:$0xff]
        %v1530 = vld [vmem:[%s548 + $0x1ba0] sm:$0xff]
        %v1531 = vld [vmem:[%s548 + $0x1ba8] sm:$0xff]
        %v1532 = vld [vmem:[%s548 + $0x1bb0] sm:$0xff]
        %v1533 = vld [vmem:[%s548 + $0x1bb8] sm:$0xff]
        %v1534 = vld [vmem:[%s548 + $0x1bc0] sm:$0xff]
        %v1535 = vld [vmem:[%s548 + $0x1bc8] sm:$0xff]
        %v1536 = vld [vmem:[%s548 + $0x1bd0] sm:$0xff]
        %v1537 = vld [vmem:[%s548 + $0x1bd8] sm:$0xff]
        %v1538 = vld [vmem:[%s548 + $0x1be0] sm:$0xff]
        %v1539 = vld [vmem:[%s548 + $0x1be8] sm:$0xff]
        %v1540 = vld [vmem:[%s548 + $0x1bf0] sm:$0xff]
        %v1541 = vld [vmem:[%s548 + $0x1bf8] sm:$0xff]
        %v1544 = vcombine.high %v644, %v644
        %v1546 = vunpack.c.l.s4 1966171168
        %v1547 = vunpack.c.0.s8 %v1546
        %v1548 = vlaneseq
        %v1549 = vshrl.u32 %v1548, 7
        %v1550 = vsub.s32 %v1547, %v1549
        %v1551 = vrot.slane %v644, %v1550
        %v1553 = vunpack.c.l.s4 1966171168
        %v1554 = vunpack.c.0.s8 %v1553
        %v1555 = vlaneseq
        %v1556 = vshrl.u32 %v1555, 7
        %v1557 = vsub.s32 %v1554, %v1556
        %v1558 = vrot.slane %v1544, %v1557
        %v1559 = vcombine.high %v1551, %v1551
        %v1560 = vcombine.high %v1558, %v1558
        %v1562 = vunpack.c.l.s4 1966171168
        %v1563 = vunpack.c.0.s8 %v1562
        %v1564 = vlaneseq
        %v1565 = vshrl.u32 %v1564, 7
        %v1566 = vsub.s32 %v1563, %v1565
        %v1567 = vrot.slane %v1551, %v1566
        %v1569 = vunpack.c.l.s4 1966171168
        %v1570 = vunpack.c.0.s8 %v1569
        %v1571 = vlaneseq
        %v1572 = vshrl.u32 %v1571, 7
        %v1573 = vsub.s32 %v1570, %v1572
        %v1574 = vrot.slane %v1558, %v1573
        %v1576 = vunpack.c.l.s4 1966171168
        %v1577 = vunpack.c.0.s8 %v1576
        %v1578 = vlaneseq
        %v1579 = vshrl.u32 %v1578, 7
        %v1580 = vsub.s32 %v1577, %v1579
        %v1581 = vrot.slane %v1559, %v1580
        %v1583 = vunpack.c.l.s4 1966171168
        %v1584 = vunpack.c.0.s8 %v1583
        %v1585 = vlaneseq
        %v1586 = vshrl.u32 %v1585, 7
        %v1587 = vsub.s32 %v1584, %v1586
        %v1588 = vrot.slane %v1560, %v1587
        %v1589 = vcombine.high %v1567, %v1567
        %v1590 = vcombine.high %v1574, %v1574
        %v1591 = vcombine.high %v1581, %v1581
        %v1592 = vcombine.high %v1588, %v1588
        %v1593 = vcombine.high %v645, %v645
        %v1595 = vunpack.c.l.s4 1966171168
        %v1596 = vunpack.c.0.s8 %v1595
        %v1597 = vlaneseq
        %v1598 = vshrl.u32 %v1597, 7
        %v1599 = vsub.s32 %v1596, %v1598
        %v1600 = vrot.slane %v645, %v1599
        %v1602 = vunpack.c.l.s4 1966171168
        %v1603 = vunpack.c.0.s8 %v1602
        %v1604 = vlaneseq
        %v1605 = vshrl.u32 %v1604, 7
        %v1606 = vsub.s32 %v1603, %v1605
        %v1607 = vrot.slane %v1593, %v1606
        %v1608 = vcombine.high %v1600, %v1600
        %v1609 = vcombine.high %v1607, %v1607
        %v1611 = vunpack.c.l.s4 1966171168
        %v1612 = vunpack.c.0.s8 %v1611
        %v1613 = vlaneseq
        %v1614 = vshrl.u32 %v1613, 7
        %v1615 = vsub.s32 %v1612, %v1614
        %v1616 = vrot.slane %v1600, %v1615
        %v1618 = vunpack.c.l.s4 1966171168
        %v1619 = vunpack.c.0.s8 %v1618
        %v1620 = vlaneseq
        %v1621 = vshrl.u32 %v1620, 7
        %v1622 = vsub.s32 %v1619, %v1621
        %v1623 = vrot.slane %v1607, %v1622
        %v1625 = vunpack.c.l.s4 1966171168
        %v1626 = vunpack.c.0.s8 %v1625
        %v1627 = vlaneseq
        %v1628 = vshrl.u32 %v1627, 7
        %v1629 = vsub.s32 %v1626, %v1628
        %v1630 = vrot.slane %v1608, %v1629
        %v1632 = vunpack.c.l.s4 1966171168
        %v1633 = vunpack.c.0.s8 %v1632
        %v1634 = vlaneseq
        %v1635 = vshrl.u32 %v1634, 7
        %v1636 = vsub.s32 %v1633, %v1635
        %v1637 = vrot.slane %v1609, %v1636
        %v1638 = vcombine.high %v1616, %v1616
        %v1639 = vcombine.high %v1630, %v1630
        %v2550 = vunpack.c.l.b16 %v646
        %v2551 = vunpack.c.h.b16 %v646
        %v2552 = vunpack.c.l.b16 %v647
        %v2553 = vunpack.c.h.b16 %v647
        %v2554 = vunpack.c.l.b16 %v648
        %v2555 = vunpack.c.h.b16 %v648
        %v2556 = vunpack.c.l.b16 %v649
        %v2557 = vunpack.c.h.b16 %v649
        %v2558 = vunpack.c.l.b16 %v650
        %v2559 = vunpack.c.h.b16 %v650
        %v2560 = vunpack.c.l.b16 %v651
        %v2561 = vunpack.c.h.b16 %v651
        %v2562 = vunpack.c.l.b16 %v652
        %v2563 = vunpack.c.h.b16 %v652
        %v2564 = vunpack.c.l.b16 %v653
        %v2565 = vunpack.c.h.b16 %v653
        %v2566 = vunpack.c.l.b16 %v654
        %v2567 = vunpack.c.h.b16 %v654
        %v2568 = vunpack.c.l.b16 %v655
        %v2569 = vunpack.c.h.b16 %v655
        %v2570 = vunpack.c.l.b16 %v656
        %v2571 = vunpack.c.h.b16 %v656
        %v2572 = vunpack.c.l.b16 %v657
        %v2573 = vunpack.c.h.b16 %v657
        %v2574 = vunpack.c.l.b16 %v658
        %v2575 = vunpack.c.h.b16 %v658
        %v2576 = vunpack.c.l.b16 %v659
        %v2577 = vunpack.c.h.b16 %v659
        %v2578 = vunpack.c.l.b16 %v660
        %v2579 = vunpack.c.h.b16 %v660
        %v2580 = vunpack.c.l.b16 %v661
        %v2581 = vunpack.c.h.b16 %v661
        %v2582 = vunpack.c.l.b16 %v662
        %v2583 = vunpack.c.h.b16 %v662
        %v2584 = vunpack.c.l.b16 %v663
        %v2585 = vunpack.c.h.b16 %v663
        %v2586 = vunpack.c.l.b16 %v664
        %v2587 = vunpack.c.h.b16 %v664
        %v2588 = vunpack.c.l.b16 %v665
        %v2589 = vunpack.c.h.b16 %v665
        %v2590 = vunpack.c.l.b16 %v666
        %v2591 = vunpack.c.h.b16 %v666
        %v2592 = vunpack.c.l.b16 %v667
        %v2593 = vunpack.c.h.b16 %v667
        %v2594 = vunpack.c.l.b16 %v668
        %v2595 = vunpack.c.h.b16 %v668
        %v2596 = vunpack.c.l.b16 %v669
        %v2597 = vunpack.c.h.b16 %v669
        %v2598 = vunpack.c.l.b16 %v670
        %v2599 = vunpack.c.h.b16 %v670
        %v2600 = vunpack.c.l.b16 %v671
        %v2601 = vunpack.c.h.b16 %v671
        %v2602 = vunpack.c.l.b16 %v672
        %v2603 = vunpack.c.h.b16 %v672
        %v2604 = vunpack.c.l.b16 %v673
        %v2605 = vunpack.c.h.b16 %v673
        %v2606 = vunpack.c.l.b16 %v674
        %v2607 = vunpack.c.h.b16 %v674
        %v2608 = vunpack.c.l.b16 %v675
        %v2609 = vunpack.c.h.b16 %v675
        %v2610 = vunpack.c.l.b16 %v676
        %v2611 = vunpack.c.h.b16 %v676
        %v2612 = vunpack.c.l.b16 %v677
        %v2613 = vunpack.c.h.b16 %v677
        %v2614 = vunpack.c.l.b16 %v678
        %v2615 = vunpack.c.h.b16 %v678
        %v2616 = vunpack.c.l.b16 %v679
        %v2617 = vunpack.c.h.b16 %v679
        %v2618 = vunpack.c.l.b16 %v680
        %v2619 = vunpack.c.h.b16 %v680
        %v2620 = vunpack.c.l.b16 %v681
        %v2621 = vunpack.c.h.b16 %v681
        %v2622 = vunpack.c.l.b16 %v682
        %v2623 = vunpack.c.h.b16 %v682
        %v2624 = vunpack.c.l.b16 %v683
        %v2625 = vunpack.c.h.b16 %v683
        %v2626 = vunpack.c.l.b16 %v684
        %v2627 = vunpack.c.h.b16 %v684
        %v2628 = vunpack.c.l.b16 %v685
        %v2629 = vunpack.c.h.b16 %v685
        %v2630 = vunpack.c.l.b16 %v686
        %v2631 = vunpack.c.h.b16 %v686
        %v2632 = vunpack.c.l.b16 %v687
        %v2633 = vunpack.c.h.b16 %v687
        %v2634 = vunpack.c.l.b16 %v688
        %v2635 = vunpack.c.h.b16 %v688
        %v2636 = vunpack.c.l.b16 %v689
        %v2637 = vunpack.c.h.b16 %v689
        %v2638 = vunpack.c.l.b16 %v690
        %v2639 = vunpack.c.h.b16 %v690
        %v2640 = vunpack.c.l.b16 %v691
        %v2641 = vunpack.c.h.b16 %v691
        %v2642 = vunpack.c.l.b16 %v692
        %v2643 = vunpack.c.h.b16 %v692
        %v2644 = vunpack.c.l.b16 %v693
        %v2645 = vunpack.c.h.b16 %v693
        %v2646 = vunpack.c.l.b16 %v694
        %v2647 = vunpack.c.h.b16 %v694
        %v2648 = vunpack.c.l.b16 %v695
        %v2649 = vunpack.c.h.b16 %v695
        %v2650 = vunpack.c.l.b16 %v696
        %v2651 = vunpack.c.h.b16 %v696
        %v2652 = vunpack.c.l.b16 %v697
        %v2653 = vunpack.c.h.b16 %v697
        %v2654 = vunpack.c.l.b16 %v698
        %v2655 = vunpack.c.h.b16 %v698
        %v2656 = vunpack.c.l.b16 %v699
        %v2657 = vunpack.c.h.b16 %v699
        %v2658 = vunpack.c.l.b16 %v700
        %v2659 = vunpack.c.h.b16 %v700
        %v2660 = vunpack.c.l.b16 %v701
        %v2661 = vunpack.c.h.b16 %v701
        %v2662 = vunpack.c.l.b16 %v702
        %v2663 = vunpack.c.h.b16 %v702
        %v2664 = vunpack.c.l.b16 %v703
        %v2665 = vunpack.c.h.b16 %v703
        %v2666 = vunpack.c.l.b16 %v704
        %v2667 = vunpack.c.h.b16 %v704
        %v2668 = vunpack.c.l.b16 %v705
        %v2669 = vunpack.c.h.b16 %v705
        %v2670 = vunpack.c.l.b16 %v706
        %v2671 = vunpack.c.h.b16 %v706
        %v2672 = vunpack.c.l.b16 %v707
        %v2673 = vunpack.c.h.b16 %v707
        %v2674 = vunpack.c.l.b16 %v708
        %v2675 = vunpack.c.h.b16 %v708
        %v2676 = vunpack.c.l.b16 %v709
        %v2677 = vunpack.c.h.b16 %v709
        %v2678 = vunpack.c.l.b16 %v710
        %v2679 = vunpack.c.h.b16 %v710
        %v2680 = vunpack.c.l.b16 %v711
        %v2681 = vunpack.c.h.b16 %v711
        %v2682 = vunpack.c.l.b16 %v712
        %v2683 = vunpack.c.h.b16 %v712
        %v2684 = vunpack.c.l.b16 %v713
        %v2685 = vunpack.c.h.b16 %v713
        %v2686 = vunpack.c.l.b16 %v714
        %v2687 = vunpack.c.h.b16 %v714
        %v2688 = vunpack.c.l.b16 %v715
        %v2689 = vunpack.c.h.b16 %v715
        %v2690 = vunpack.c.l.b16 %v716
        %v2691 = vunpack.c.h.b16 %v716
        %v2692 = vunpack.c.l.b16 %v717
        %v2693 = vunpack.c.h.b16 %v717
        %v2694 = vunpack.c.l.b16 %v718
        %v2695 = vunpack.c.h.b16 %v718
        %v2696 = vunpack.c.l.b16 %v719
        %v2697 = vunpack.c.h.b16 %v719
        %v2698 = vunpack.c.l.b16 %v720
        %v2699 = vunpack.c.h.b16 %v720
        %v2700 = vunpack.c.l.b16 %v721
        %v2701 = vunpack.c.h.b16 %v721
        %v2702 = vunpack.c.l.b16 %v722
        %v2703 = vunpack.c.h.b16 %v722
        %v2704 = vunpack.c.l.b16 %v723
        %v2705 = vunpack.c.h.b16 %v723
        %v2706 = vunpack.c.l.b16 %v724
        %v2707 = vunpack.c.h.b16 %v724
        %v2708 = vunpack.c.l.b16 %v725
        %v2709 = vunpack.c.h.b16 %v725
        %v2710 = vunpack.c.l.b16 %v726
        %v2711 = vunpack.c.h.b16 %v726
        %v2712 = vunpack.c.l.b16 %v727
        %v2713 = vunpack.c.h.b16 %v727
        %v2714 = vunpack.c.l.b16 %v728
        %v2715 = vunpack.c.h.b16 %v728
        %v2716 = vunpack.c.l.b16 %v729
        %v2717 = vunpack.c.h.b16 %v729
        %v2718 = vunpack.c.l.b16 %v730
        %v2719 = vunpack.c.h.b16 %v730
        %v2720 = vunpack.c.l.b16 %v731
        %v2721 = vunpack.c.h.b16 %v731
        %v2722 = vunpack.c.l.b16 %v732
        %v2723 = vunpack.c.h.b16 %v732
        %v2724 = vunpack.c.l.b16 %v733
        %v2725 = vunpack.c.h.b16 %v733
        %v2726 = vunpack.c.l.b16 %v734
        %v2727 = vunpack.c.h.b16 %v734
        %v2728 = vunpack.c.l.b16 %v735
        %v2729 = vunpack.c.h.b16 %v735
        %v2730 = vunpack.c.l.b16 %v736
        %v2731 = vunpack.c.h.b16 %v736
        %v2732 = vunpack.c.l.b16 %v737
        %v2733 = vunpack.c.h.b16 %v737
        %v2734 = vunpack.c.l.b16 %v738
        %v2735 = vunpack.c.h.b16 %v738
        %v2736 = vunpack.c.l.b16 %v739
        %v2737 = vunpack.c.h.b16 %v739
        %v2738 = vunpack.c.l.b16 %v740
        %v2739 = vunpack.c.h.b16 %v740
        %v2740 = vunpack.c.l.b16 %v741
        %v2741 = vunpack.c.h.b16 %v741
        %v2742 = vunpack.c.l.b16 %v742
        %v2743 = vunpack.c.h.b16 %v742
        %v2744 = vunpack.c.l.b16 %v743
        %v2745 = vunpack.c.h.b16 %v743
        %v2746 = vunpack.c.l.b16 %v744
        %v2747 = vunpack.c.h.b16 %v744
        %v2748 = vunpack.c.l.b16 %v745
        %v2749 = vunpack.c.h.b16 %v745
        %v2750 = vunpack.c.l.b16 %v746
        %v2751 = vunpack.c.h.b16 %v746
        %v2752 = vunpack.c.l.b16 %v747
        %v2753 = vunpack.c.h.b16 %v747
        %v2754 = vunpack.c.l.b16 %v748
        %v2755 = vunpack.c.h.b16 %v748
        %v2756 = vunpack.c.l.b16 %v749
        %v2757 = vunpack.c.h.b16 %v749
        %v2758 = vunpack.c.l.b16 %v750
        %v2759 = vunpack.c.h.b16 %v750
        %v2760 = vunpack.c.l.b16 %v751
        %v2761 = vunpack.c.h.b16 %v751
        %v2762 = vunpack.c.l.b16 %v752
        %v2763 = vunpack.c.h.b16 %v752
        %v2764 = vunpack.c.l.b16 %v753
        %v2765 = vunpack.c.h.b16 %v753
        %v2766 = vunpack.c.l.b16 %v754
        %v2767 = vunpack.c.h.b16 %v754
        %v2768 = vunpack.c.l.b16 %v755
        %v2769 = vunpack.c.h.b16 %v755
        %v2770 = vunpack.c.l.b16 %v756
        %v2771 = vunpack.c.h.b16 %v756
        %v2772 = vunpack.c.l.b16 %v757
        %v2773 = vunpack.c.h.b16 %v757
        %v2774 = vunpack.c.l.b16 %v758
        %v2775 = vunpack.c.h.b16 %v758
        %v2776 = vunpack.c.l.b16 %v759
        %v2777 = vunpack.c.h.b16 %v759
        %v2778 = vunpack.c.l.b16 %v760
        %v2779 = vunpack.c.h.b16 %v760
        %v2780 = vunpack.c.l.b16 %v761
        %v2781 = vunpack.c.h.b16 %v761
        %v2782 = vunpack.c.l.b16 %v762
        %v2783 = vunpack.c.h.b16 %v762
        %v2784 = vunpack.c.l.b16 %v763
        %v2785 = vunpack.c.h.b16 %v763
        %v2786 = vunpack.c.l.b16 %v764
        %v2787 = vunpack.c.h.b16 %v764
        %v2788 = vunpack.c.l.b16 %v765
        %v2789 = vunpack.c.h.b16 %v765
        %v2790 = vunpack.c.l.b16 %v766
        %v2791 = vunpack.c.h.b16 %v766
        %v2792 = vunpack.c.l.b16 %v767
        %v2793 = vunpack.c.h.b16 %v767
        %v2794 = vunpack.c.l.b16 %v768
        %v2795 = vunpack.c.h.b16 %v768
        %v2796 = vunpack.c.l.b16 %v769
        %v2797 = vunpack.c.h.b16 %v769
        %v2798 = vunpack.c.l.b16 %v770
        %v2799 = vunpack.c.h.b16 %v770
        %v2800 = vunpack.c.l.b16 %v771
        %v2801 = vunpack.c.h.b16 %v771
        %v2802 = vunpack.c.l.b16 %v772
        %v2803 = vunpack.c.h.b16 %v772
        %v2804 = vunpack.c.l.b16 %v773
        %v2805 = vunpack.c.h.b16 %v773
        %v2806 = vunpack.c.l.b16 %v774
        %v2807 = vunpack.c.h.b16 %v774
        %v2808 = vunpack.c.l.b16 %v775
        %v2809 = vunpack.c.h.b16 %v775
        %v2810 = vunpack.c.l.b16 %v776
        %v2811 = vunpack.c.h.b16 %v776
        %v2812 = vunpack.c.l.b16 %v777
        %v2813 = vunpack.c.h.b16 %v777
        %v2814 = vunpack.c.l.b16 %v778
        %v2815 = vunpack.c.h.b16 %v778
        %v2816 = vunpack.c.l.b16 %v779
        %v2817 = vunpack.c.h.b16 %v779
        %v2818 = vunpack.c.l.b16 %v780
        %v2819 = vunpack.c.h.b16 %v780
        %v2820 = vunpack.c.l.b16 %v781
        %v2821 = vunpack.c.h.b16 %v781
        %v2822 = vunpack.c.l.b16 %v782
        %v2823 = vunpack.c.h.b16 %v782
        %v2824 = vunpack.c.l.b16 %v783
        %v2825 = vunpack.c.h.b16 %v783
        %v2826 = vunpack.c.l.b16 %v784
        %v2827 = vunpack.c.h.b16 %v784
        %v2828 = vunpack.c.l.b16 %v785
        %v2829 = vunpack.c.h.b16 %v785
        %v2830 = vunpack.c.l.b16 %v786
        %v2831 = vunpack.c.h.b16 %v786
        %v2832 = vunpack.c.l.b16 %v787
        %v2833 = vunpack.c.h.b16 %v787
        %v2834 = vunpack.c.l.b16 %v788
        %v2835 = vunpack.c.h.b16 %v788
        %v2836 = vunpack.c.l.b16 %v789
        %v2837 = vunpack.c.h.b16 %v789
        %v2838 = vunpack.c.l.b16 %v790
        %v2839 = vunpack.c.h.b16 %v790
        %v2840 = vunpack.c.l.b16 %v791
        %v2841 = vunpack.c.h.b16 %v791
        %v2842 = vunpack.c.l.b16 %v792
        %v2843 = vunpack.c.h.b16 %v792
        %v2844 = vunpack.c.l.b16 %v793
        %v2845 = vunpack.c.h.b16 %v793
        %v2846 = vunpack.c.l.b16 %v794
        %v2847 = vunpack.c.h.b16 %v794
        %v2848 = vunpack.c.l.b16 %v795
        %v2849 = vunpack.c.h.b16 %v795
        %v2850 = vunpack.c.l.b16 %v796
        %v2851 = vunpack.c.h.b16 %v796
        %v2852 = vunpack.c.l.b16 %v797
        %v2853 = vunpack.c.h.b16 %v797
        %v2854 = vunpack.c.l.b16 %v798
        %v2855 = vunpack.c.h.b16 %v798
        %v2856 = vunpack.c.l.b16 %v799
        %v2857 = vunpack.c.h.b16 %v799
        %v2858 = vunpack.c.l.b16 %v800
        %v2859 = vunpack.c.h.b16 %v800
        %v2860 = vunpack.c.l.b16 %v801
        %v2861 = vunpack.c.h.b16 %v801
        %v2862 = vunpack.c.l.b16 %v802
        %v2863 = vunpack.c.h.b16 %v802
        %v2864 = vunpack.c.l.b16 %v803
        %v2865 = vunpack.c.h.b16 %v803
        %v2866 = vunpack.c.l.b16 %v804
        %v2867 = vunpack.c.h.b16 %v804
        %v2868 = vunpack.c.l.b16 %v805
        %v2869 = vunpack.c.h.b16 %v805
        %v2870 = vunpack.c.l.b16 %v806
        %v2871 = vunpack.c.h.b16 %v806
        %v2872 = vunpack.c.l.b16 %v807
        %v2873 = vunpack.c.h.b16 %v807
        %v2874 = vunpack.c.l.b16 %v808
        %v2875 = vunpack.c.h.b16 %v808
        %v2876 = vunpack.c.l.b16 %v809
        %v2877 = vunpack.c.h.b16 %v809
        %v2878 = vunpack.c.l.b16 %v810
        %v2879 = vunpack.c.h.b16 %v810
        %v2880 = vunpack.c.l.b16 %v811
        %v2881 = vunpack.c.h.b16 %v811
        %v2882 = vunpack.c.l.b16 %v812
        %v2883 = vunpack.c.h.b16 %v812
        %v2884 = vunpack.c.l.b16 %v813
        %v2885 = vunpack.c.h.b16 %v813
        %v2886 = vunpack.c.l.b16 %v814
        %v2887 = vunpack.c.h.b16 %v814
        %v2888 = vunpack.c.l.b16 %v815
        %v2889 = vunpack.c.h.b16 %v815
        %v2890 = vunpack.c.l.b16 %v816
        %v2891 = vunpack.c.h.b16 %v816
        %v2892 = vunpack.c.l.b16 %v817
        %v2893 = vunpack.c.h.b16 %v817
        %v2894 = vunpack.c.l.b16 %v818
        %v2895 = vunpack.c.h.b16 %v818
        %v2896 = vunpack.c.l.b16 %v819
        %v2897 = vunpack.c.h.b16 %v819
        %v2898 = vunpack.c.l.b16 %v820
        %v2899 = vunpack.c.h.b16 %v820
        %v2900 = vunpack.c.l.b16 %v821
        %v2901 = vunpack.c.h.b16 %v821
        %v2902 = vunpack.c.l.b16 %v822
        %v2903 = vunpack.c.h.b16 %v822
        %v2904 = vunpack.c.l.b16 %v823
        %v2905 = vunpack.c.h.b16 %v823
        %v2906 = vunpack.c.l.b16 %v824
        %v2907 = vunpack.c.h.b16 %v824
        %v2908 = vunpack.c.l.b16 %v825
        %v2909 = vunpack.c.h.b16 %v825
        %v2910 = vunpack.c.l.b16 %v826
        %v2911 = vunpack.c.h.b16 %v826
        %v2912 = vunpack.c.l.b16 %v827
        %v2913 = vunpack.c.h.b16 %v827
        %v2914 = vunpack.c.l.b16 %v828
        %v2915 = vunpack.c.h.b16 %v828
        %v2916 = vunpack.c.l.b16 %v829
        %v2917 = vunpack.c.h.b16 %v829
        %v2918 = vunpack.c.l.b16 %v830
        %v2919 = vunpack.c.h.b16 %v830
        %v2920 = vunpack.c.l.b16 %v831
        %v2921 = vunpack.c.h.b16 %v831
        %v2922 = vunpack.c.l.b16 %v832
        %v2923 = vunpack.c.h.b16 %v832
        %v2924 = vunpack.c.l.b16 %v833
        %v2925 = vunpack.c.h.b16 %v833
        %v2926 = vunpack.c.l.b16 %v834
        %v2927 = vunpack.c.h.b16 %v834
        %v2928 = vunpack.c.l.b16 %v835
        %v2929 = vunpack.c.h.b16 %v835
        %v2930 = vunpack.c.l.b16 %v836
        %v2931 = vunpack.c.h.b16 %v836
        %v2932 = vunpack.c.l.b16 %v837
        %v2933 = vunpack.c.h.b16 %v837
        %v2934 = vunpack.c.l.b16 %v838
        %v2935 = vunpack.c.h.b16 %v838
        %v2936 = vunpack.c.l.b16 %v839
        %v2937 = vunpack.c.h.b16 %v839
        %v2938 = vunpack.c.l.b16 %v840
        %v2939 = vunpack.c.h.b16 %v840
        %v2940 = vunpack.c.l.b16 %v841
        %v2941 = vunpack.c.h.b16 %v841
        %v2942 = vunpack.c.l.b16 %v842
        %v2943 = vunpack.c.h.b16 %v842
        %v2944 = vunpack.c.l.b16 %v843
        %v2945 = vunpack.c.h.b16 %v843
        %v2946 = vunpack.c.l.b16 %v844
        %v2947 = vunpack.c.h.b16 %v844
        %v2948 = vunpack.c.l.b16 %v845
        %v2949 = vunpack.c.h.b16 %v845
        %v2950 = vunpack.c.l.b16 %v846
        %v2951 = vunpack.c.h.b16 %v846
        %v2952 = vunpack.c.l.b16 %v847
        %v2953 = vunpack.c.h.b16 %v847
        %v2954 = vunpack.c.l.b16 %v848
        %v2955 = vunpack.c.h.b16 %v848
        %v2956 = vunpack.c.l.b16 %v849
        %v2957 = vunpack.c.h.b16 %v849
        %v2958 = vunpack.c.l.b16 %v850
        %v2959 = vunpack.c.h.b16 %v850
        %v2960 = vunpack.c.l.b16 %v851
        %v2961 = vunpack.c.h.b16 %v851
        %v2962 = vunpack.c.l.b16 %v852
        %v2963 = vunpack.c.h.b16 %v852
        %v2964 = vunpack.c.l.b16 %v853
        %v2965 = vunpack.c.h.b16 %v853
        %v2966 = vunpack.c.l.b16 %v854
        %v2967 = vunpack.c.h.b16 %v854
        %v2968 = vunpack.c.l.b16 %v855
        %v2969 = vunpack.c.h.b16 %v855
        %v2970 = vunpack.c.l.b16 %v856
        %v2971 = vunpack.c.h.b16 %v856
        %v2972 = vunpack.c.l.b16 %v857
        %v2973 = vunpack.c.h.b16 %v857
        %v2974 = vunpack.c.l.b16 %v858
        %v2975 = vunpack.c.h.b16 %v858
        %v2976 = vunpack.c.l.b16 %v859
        %v2977 = vunpack.c.h.b16 %v859
        %v2978 = vunpack.c.l.b16 %v860
        %v2979 = vunpack.c.h.b16 %v860
        %v2980 = vunpack.c.l.b16 %v861
        %v2981 = vunpack.c.h.b16 %v861
        %v2982 = vunpack.c.l.b16 %v862
        %v2983 = vunpack.c.h.b16 %v862
        %v2984 = vunpack.c.l.b16 %v863
        %v2985 = vunpack.c.h.b16 %v863
        %v2986 = vunpack.c.l.b16 %v864
        %v2987 = vunpack.c.h.b16 %v864
        %v2988 = vunpack.c.l.b16 %v865
        %v2989 = vunpack.c.h.b16 %v865
        %v2990 = vunpack.c.l.b16 %v866
        %v2991 = vunpack.c.h.b16 %v866
        %v2992 = vunpack.c.l.b16 %v867
        %v2993 = vunpack.c.h.b16 %v867
        %v2994 = vunpack.c.l.b16 %v868
        %v2995 = vunpack.c.h.b16 %v868
        %v2996 = vunpack.c.l.b16 %v869
        %v2997 = vunpack.c.h.b16 %v869
        %v2998 = vunpack.c.l.b16 %v870
        %v2999 = vunpack.c.h.b16 %v870
        %v3000 = vunpack.c.l.b16 %v871
        %v3001 = vunpack.c.h.b16 %v871
        %v3002 = vunpack.c.l.b16 %v872
        %v3003 = vunpack.c.h.b16 %v872
        %v3004 = vunpack.c.l.b16 %v873
        %v3005 = vunpack.c.h.b16 %v873
        %v3006 = vunpack.c.l.b16 %v874
        %v3007 = vunpack.c.h.b16 %v874
        %v3008 = vunpack.c.l.b16 %v875
        %v3009 = vunpack.c.h.b16 %v875
        %v3010 = vunpack.c.l.b16 %v876
        %v3011 = vunpack.c.h.b16 %v876
        %v3012 = vunpack.c.l.b16 %v877
        %v3013 = vunpack.c.h.b16 %v877
        %v3014 = vunpack.c.l.b16 %v878
        %v3015 = vunpack.c.h.b16 %v878
        %v3016 = vunpack.c.l.b16 %v879
        %v3017 = vunpack.c.h.b16 %v879
        %v3018 = vunpack.c.l.b16 %v880
        %v3019 = vunpack.c.h.b16 %v880
        %v3020 = vunpack.c.l.b16 %v881
        %v3021 = vunpack.c.h.b16 %v881
        %v3022 = vunpack.c.l.b16 %v882
        %v3023 = vunpack.c.h.b16 %v882
        %v3024 = vunpack.c.l.b16 %v883
        %v3025 = vunpack.c.h.b16 %v883
        %v3026 = vunpack.c.l.b16 %v884
        %v3027 = vunpack.c.h.b16 %v884
        %v3028 = vunpack.c.l.b16 %v885
        %v3029 = vunpack.c.h.b16 %v885
        %v3030 = vunpack.c.l.b16 %v886
        %v3031 = vunpack.c.h.b16 %v886
        %v3032 = vunpack.c.l.b16 %v887
        %v3033 = vunpack.c.h.b16 %v887
        %v3034 = vunpack.c.l.b16 %v888
        %v3035 = vunpack.c.h.b16 %v888
        %v3036 = vunpack.c.l.b16 %v889
        %v3037 = vunpack.c.h.b16 %v889
        %v3038 = vunpack.c.l.b16 %v890
        %v3039 = vunpack.c.h.b16 %v890
        %v3040 = vunpack.c.l.b16 %v891
        %v3041 = vunpack.c.h.b16 %v891
        %v3042 = vunpack.c.l.b16 %v892
        %v3043 = vunpack.c.h.b16 %v892
        %v3044 = vunpack.c.l.b16 %v893
        %v3045 = vunpack.c.h.b16 %v893
        %v3046 = vunpack.c.l.b16 %v894
        %v3047 = vunpack.c.h.b16 %v894
        %v3048 = vunpack.c.l.b16 %v895
        %v3049 = vunpack.c.h.b16 %v895
        %v3050 = vunpack.c.l.b16 %v896
        %v3051 = vunpack.c.h.b16 %v896
        %v3052 = vunpack.c.l.b16 %v897
        %v3053 = vunpack.c.h.b16 %v897
        %v3054 = vunpack.c.l.b16 %v898
        %v3055 = vunpack.c.h.b16 %v898
        %v3056 = vunpack.c.l.b16 %v899
        %v3057 = vunpack.c.h.b16 %v899
        %v3058 = vunpack.c.l.b16 %v900
        %v3059 = vunpack.c.h.b16 %v900
        %v3060 = vunpack.c.l.b16 %v901
        %v3061 = vunpack.c.h.b16 %v901
        %v3062 = vunpack.c.l.b16 %v902
        %v3063 = vunpack.c.h.b16 %v902
        %v3064 = vunpack.c.l.b16 %v903
        %v3065 = vunpack.c.h.b16 %v903
        %v3066 = vunpack.c.l.b16 %v904
        %v3067 = vunpack.c.h.b16 %v904
        %v3068 = vunpack.c.l.b16 %v905
        %v3069 = vunpack.c.h.b16 %v905
        %v3070 = vunpack.c.l.b16 %v906
        %v3071 = vunpack.c.h.b16 %v906
        %v3072 = vunpack.c.l.b16 %v907
        %v3073 = vunpack.c.h.b16 %v907
        %v3074 = vunpack.c.l.b16 %v908
        %v3075 = vunpack.c.h.b16 %v908
        %v3076 = vunpack.c.l.b16 %v909
        %v3077 = vunpack.c.h.b16 %v909
        %v3078 = vunpack.c.l.b16 %v910
        %v3079 = vunpack.c.h.b16 %v910
        %v3080 = vunpack.c.l.b16 %v911
        %v3081 = vunpack.c.h.b16 %v911
        %v3082 = vunpack.c.l.b16 %v912
        %v3083 = vunpack.c.h.b16 %v912
        %v3084 = vunpack.c.l.b16 %v913
        %v3085 = vunpack.c.h.b16 %v913
        %v3086 = vunpack.c.l.b16 %v914
        %v3087 = vunpack.c.h.b16 %v914
        %v3088 = vunpack.c.l.b16 %v915
        %v3089 = vunpack.c.h.b16 %v915
        %v3090 = vunpack.c.l.b16 %v916
        %v3091 = vunpack.c.h.b16 %v916
        %v3092 = vunpack.c.l.b16 %v917
        %v3093 = vunpack.c.h.b16 %v917
        %v3094 = vunpack.c.l.b16 %v918
        %v3095 = vunpack.c.h.b16 %v918
        %v3096 = vunpack.c.l.b16 %v919
        %v3097 = vunpack.c.h.b16 %v919
        %v3098 = vunpack.c.l.b16 %v920
        %v3099 = vunpack.c.h.b16 %v920
        %v3100 = vunpack.c.l.b16 %v921
        %v3101 = vunpack.c.h.b16 %v921
        %v3102 = vunpack.c.l.b16 %v922
        %v3103 = vunpack.c.h.b16 %v922
        %v3104 = vunpack.c.l.b16 %v923
        %v3105 = vunpack.c.h.b16 %v923
        %v3106 = vunpack.c.l.b16 %v924
        %v3107 = vunpack.c.h.b16 %v924
        %v3108 = vunpack.c.l.b16 %v925
        %v3109 = vunpack.c.h.b16 %v925
        %v3110 = vunpack.c.l.b16 %v926
        %v3111 = vunpack.c.h.b16 %v926
        %v3112 = vunpack.c.l.b16 %v927
        %v3113 = vunpack.c.h.b16 %v927
        %v3114 = vunpack.c.l.b16 %v928
        %v3115 = vunpack.c.h.b16 %v928
        %v3116 = vunpack.c.l.b16 %v929
        %v3117 = vunpack.c.h.b16 %v929
        %v3118 = vunpack.c.l.b16 %v930
        %v3119 = vunpack.c.h.b16 %v930
        %v3120 = vunpack.c.l.b16 %v931
        %v3121 = vunpack.c.h.b16 %v931
        %v3122 = vunpack.c.l.b16 %v932
        %v3123 = vunpack.c.h.b16 %v932
        %v3124 = vunpack.c.l.b16 %v933
        %v3125 = vunpack.c.h.b16 %v933
        %v3126 = vunpack.c.l.b16 %v934
        %v3127 = vunpack.c.h.b16 %v934
        %v3128 = vunpack.c.l.b16 %v935
        %v3129 = vunpack.c.h.b16 %v935
        %v3130 = vunpack.c.l.b16 %v936
        %v3131 = vunpack.c.h.b16 %v936
        %v3132 = vunpack.c.l.b16 %v937
        %v3133 = vunpack.c.h.b16 %v937
        %v3134 = vunpack.c.l.b16 %v938
        %v3135 = vunpack.c.h.b16 %v938
        %v3136 = vunpack.c.l.b16 %v939
        %v3137 = vunpack.c.h.b16 %v939
        %v3138 = vunpack.c.l.b16 %v940
        %v3139 = vunpack.c.h.b16 %v940
        %v3140 = vunpack.c.l.b16 %v941
        %v3141 = vunpack.c.h.b16 %v941
        %v3142 = vunpack.c.l.b16 %v942
        %v3143 = vunpack.c.h.b16 %v942
        %v3144 = vunpack.c.l.b16 %v943
        %v3145 = vunpack.c.h.b16 %v943
        %v3146 = vunpack.c.l.b16 %v944
        %v3147 = vunpack.c.h.b16 %v944
        %v3148 = vunpack.c.l.b16 %v945
        %v3149 = vunpack.c.h.b16 %v945
        %v3150 = vunpack.c.l.b16 %v946
        %v3151 = vunpack.c.h.b16 %v946
        %v3152 = vunpack.c.l.b16 %v947
        %v3153 = vunpack.c.h.b16 %v947
        %v3154 = vunpack.c.l.b16 %v948
        %v3155 = vunpack.c.h.b16 %v948
        %v3156 = vunpack.c.l.b16 %v949
        %v3157 = vunpack.c.h.b16 %v949
        %v3158 = vunpack.c.l.b16 %v950
        %v3159 = vunpack.c.h.b16 %v950
        %v3160 = vunpack.c.l.b16 %v951
        %v3161 = vunpack.c.h.b16 %v951
        %v3162 = vunpack.c.l.b16 %v952
        %v3163 = vunpack.c.h.b16 %v952
        %v3164 = vunpack.c.l.b16 %v953
        %v3165 = vunpack.c.h.b16 %v953
        %v3166 = vunpack.c.l.b16 %v954
        %v3167 = vunpack.c.h.b16 %v954
        %v3168 = vunpack.c.l.b16 %v955
        %v3169 = vunpack.c.h.b16 %v955
        %v3170 = vunpack.c.l.b16 %v956
        %v3171 = vunpack.c.h.b16 %v956
        %v3172 = vunpack.c.l.b16 %v957
        %v3173 = vunpack.c.h.b16 %v957
        %v3174 = vunpack.c.l.b16 %v958
        %v3175 = vunpack.c.h.b16 %v958
        %v3176 = vunpack.c.l.b16 %v959
        %v3177 = vunpack.c.h.b16 %v959
        %v3178 = vunpack.c.l.b16 %v960
        %v3179 = vunpack.c.h.b16 %v960
        %v3180 = vunpack.c.l.b16 %v961
        %v3181 = vunpack.c.h.b16 %v961
        %v3182 = vunpack.c.l.b16 %v962
        %v3183 = vunpack.c.h.b16 %v962
        %v3184 = vunpack.c.l.b16 %v963
        %v3185 = vunpack.c.h.b16 %v963
        %v3186 = vunpack.c.l.b16 %v964
        %v3187 = vunpack.c.h.b16 %v964
        %v3188 = vunpack.c.l.b16 %v965
        %v3189 = vunpack.c.h.b16 %v965
        %v3190 = vunpack.c.l.b16 %v966
        %v3191 = vunpack.c.h.b16 %v966
        %v3192 = vunpack.c.l.b16 %v967
        %v3193 = vunpack.c.h.b16 %v967
        %v3194 = vunpack.c.l.b16 %v968
        %v3195 = vunpack.c.h.b16 %v968
        %v3196 = vunpack.c.l.b16 %v969
        %v3197 = vunpack.c.h.b16 %v969
        %v3198 = vunpack.c.l.b16 %v970
        %v3199 = vunpack.c.h.b16 %v970
        %v3200 = vunpack.c.l.b16 %v971
        %v3201 = vunpack.c.h.b16 %v971
        %v3202 = vunpack.c.l.b16 %v972
        %v3203 = vunpack.c.h.b16 %v972
        %v3204 = vunpack.c.l.b16 %v973
        %v3205 = vunpack.c.h.b16 %v973
        %v3206 = vunpack.c.l.b16 %v974
        %v3207 = vunpack.c.h.b16 %v974
        %v3208 = vunpack.c.l.b16 %v975
        %v3209 = vunpack.c.h.b16 %v975
        %v3210 = vunpack.c.l.b16 %v976
        %v3211 = vunpack.c.h.b16 %v976
        %v3212 = vunpack.c.l.b16 %v977
        %v3213 = vunpack.c.h.b16 %v977
        %v3214 = vunpack.c.l.b16 %v978
        %v3215 = vunpack.c.h.b16 %v978
        %v3216 = vunpack.c.l.b16 %v979
        %v3217 = vunpack.c.h.b16 %v979
        %v3218 = vunpack.c.l.b16 %v980
        %v3219 = vunpack.c.h.b16 %v980
        %v3220 = vunpack.c.l.b16 %v981
        %v3221 = vunpack.c.h.b16 %v981
        %v3222 = vunpack.c.l.b16 %v982
        %v3223 = vunpack.c.h.b16 %v982
        %v3224 = vunpack.c.l.b16 %v983
        %v3225 = vunpack.c.h.b16 %v983
        %v3226 = vunpack.c.l.b16 %v984
        %v3227 = vunpack.c.h.b16 %v984
        %v3228 = vunpack.c.l.b16 %v985
        %v3229 = vunpack.c.h.b16 %v985
        %v3230 = vunpack.c.l.b16 %v986
        %v3231 = vunpack.c.h.b16 %v986
        %v3232 = vunpack.c.l.b16 %v987
        %v3233 = vunpack.c.h.b16 %v987
        %v3234 = vunpack.c.l.b16 %v988
        %v3235 = vunpack.c.h.b16 %v988
        %v3236 = vunpack.c.l.b16 %v989
        %v3237 = vunpack.c.h.b16 %v989
        %v3238 = vunpack.c.l.b16 %v990
        %v3239 = vunpack.c.h.b16 %v990
        %v3240 = vunpack.c.l.b16 %v991
        %v3241 = vunpack.c.h.b16 %v991
        %v3242 = vunpack.c.l.b16 %v992
        %v3243 = vunpack.c.h.b16 %v992
        %v3244 = vunpack.c.l.b16 %v993
        %v3245 = vunpack.c.h.b16 %v993
        %v3246 = vunpack.c.l.b16 %v994
        %v3247 = vunpack.c.h.b16 %v994
        %v3248 = vunpack.c.l.b16 %v995
        %v3249 = vunpack.c.h.b16 %v995
        %v3250 = vunpack.c.l.b16 %v996
        %v3251 = vunpack.c.h.b16 %v996
        %v3252 = vunpack.c.l.b16 %v997
        %v3253 = vunpack.c.h.b16 %v997
        %v3254 = vunpack.c.l.b16 %v998
        %v3255 = vunpack.c.h.b16 %v998
        %v3256 = vunpack.c.l.b16 %v999
        %v3257 = vunpack.c.h.b16 %v999
        %v3258 = vunpack.c.l.b16 %v1000
        %v3259 = vunpack.c.h.b16 %v1000
        %v3260 = vunpack.c.l.b16 %v1001
        %v3261 = vunpack.c.h.b16 %v1001
        %v3262 = vunpack.c.l.b16 %v1002
        %v3263 = vunpack.c.h.b16 %v1002
        %v3264 = vunpack.c.l.b16 %v1003
        %v3265 = vunpack.c.h.b16 %v1003
        %v3266 = vunpack.c.l.b16 %v1004
        %v3267 = vunpack.c.h.b16 %v1004
        %v3268 = vunpack.c.l.b16 %v1005
        %v3269 = vunpack.c.h.b16 %v1005
        %v3270 = vunpack.c.l.b16 %v1006
        %v3271 = vunpack.c.h.b16 %v1006
        %v3272 = vunpack.c.l.b16 %v1007
        %v3273 = vunpack.c.h.b16 %v1007
        %v3274 = vunpack.c.l.b16 %v1008
        %v3275 = vunpack.c.h.b16 %v1008
        %v3276 = vunpack.c.l.b16 %v1009
        %v3277 = vunpack.c.h.b16 %v1009
        %v3278 = vunpack.c.l.b16 %v1010
        %v3279 = vunpack.c.h.b16 %v1010
        %v3280 = vunpack.c.l.b16 %v1011
        %v3281 = vunpack.c.h.b16 %v1011
        %v3282 = vunpack.c.l.b16 %v1012
        %v3283 = vunpack.c.h.b16 %v1012
        %v3284 = vunpack.c.l.b16 %v1013
        %v3285 = vunpack.c.h.b16 %v1013
        %v3286 = vunpack.c.l.b16 %v1014
        %v3287 = vunpack.c.h.b16 %v1014
        %v3288 = vunpack.c.l.b16 %v1015
        %v3289 = vunpack.c.h.b16 %v1015
        %v3290 = vunpack.c.l.b16 %v1016
        %v3291 = vunpack.c.h.b16 %v1016
        %v3292 = vunpack.c.l.b16 %v1017
        %v3293 = vunpack.c.h.b16 %v1017
        %v3294 = vunpack.c.l.b16 %v1018
        %v3295 = vunpack.c.h.b16 %v1018
        %v3296 = vunpack.c.l.b16 %v1019
        %v3297 = vunpack.c.h.b16 %v1019
        %v3298 = vunpack.c.l.b16 %v1020
        %v3299 = vunpack.c.h.b16 %v1020
        %v3300 = vunpack.c.l.b16 %v1021
        %v3301 = vunpack.c.h.b16 %v1021
        %v3302 = vunpack.c.l.b16 %v1022
        %v3303 = vunpack.c.h.b16 %v1022
        %v3304 = vunpack.c.l.b16 %v1023
        %v3305 = vunpack.c.h.b16 %v1023
        %v3306 = vunpack.c.l.b16 %v1024
        %v3307 = vunpack.c.h.b16 %v1024
        %v3308 = vunpack.c.l.b16 %v1025
        %v3309 = vunpack.c.h.b16 %v1025
        %v3310 = vunpack.c.l.b16 %v1026
        %v3311 = vunpack.c.h.b16 %v1026
        %v3312 = vunpack.c.l.b16 %v1027
        %v3313 = vunpack.c.h.b16 %v1027
        %v3314 = vunpack.c.l.b16 %v1028
        %v3315 = vunpack.c.h.b16 %v1028
        %v3316 = vunpack.c.l.b16 %v1029
        %v3317 = vunpack.c.h.b16 %v1029
        %v3318 = vunpack.c.l.b16 %v1030
        %v3319 = vunpack.c.h.b16 %v1030
        %v3320 = vunpack.c.l.b16 %v1031
        %v3321 = vunpack.c.h.b16 %v1031
        %v3322 = vunpack.c.l.b16 %v1032
        %v3323 = vunpack.c.h.b16 %v1032
        %v3324 = vunpack.c.l.b16 %v1033
        %v3325 = vunpack.c.h.b16 %v1033
        %v3326 = vunpack.c.l.b16 %v1034
        %v3327 = vunpack.c.h.b16 %v1034
        %v3328 = vunpack.c.l.b16 %v1035
        %v3329 = vunpack.c.h.b16 %v1035
        %v3330 = vunpack.c.l.b16 %v1036
        %v3331 = vunpack.c.h.b16 %v1036
        %v3332 = vunpack.c.l.b16 %v1037
        %v3333 = vunpack.c.h.b16 %v1037
        %v3334 = vunpack.c.l.b16 %v1038
        %v3335 = vunpack.c.h.b16 %v1038
        %v3336 = vunpack.c.l.b16 %v1039
        %v3337 = vunpack.c.h.b16 %v1039
        %v3338 = vunpack.c.l.b16 %v1040
        %v3339 = vunpack.c.h.b16 %v1040
        %v3340 = vunpack.c.l.b16 %v1041
        %v3341 = vunpack.c.h.b16 %v1041
        %v3342 = vunpack.c.l.b16 %v1042
        %v3343 = vunpack.c.h.b16 %v1042
        %v3344 = vunpack.c.l.b16 %v1043
        %v3345 = vunpack.c.h.b16 %v1043
        %v3346 = vunpack.c.l.b16 %v1044
        %v3347 = vunpack.c.h.b16 %v1044
        %v3348 = vunpack.c.l.b16 %v1045
        %v3349 = vunpack.c.h.b16 %v1045
        %v3350 = vunpack.c.l.b16 %v1046
        %v3351 = vunpack.c.h.b16 %v1046
        %v3352 = vunpack.c.l.b16 %v1047
        %v3353 = vunpack.c.h.b16 %v1047
        %v3354 = vunpack.c.l.b16 %v1048
        %v3355 = vunpack.c.h.b16 %v1048
        %v3356 = vunpack.c.l.b16 %v1049
        %v3357 = vunpack.c.h.b16 %v1049
        %v3358 = vunpack.c.l.b16 %v1050
        %v3359 = vunpack.c.h.b16 %v1050
        %v3360 = vunpack.c.l.b16 %v1051
        %v3361 = vunpack.c.h.b16 %v1051
        %v3362 = vunpack.c.l.b16 %v1052
        %v3363 = vunpack.c.h.b16 %v1052
        %v3364 = vunpack.c.l.b16 %v1053
        %v3365 = vunpack.c.h.b16 %v1053
        %v3366 = vunpack.c.l.b16 %v1054
        %v3367 = vunpack.c.h.b16 %v1054
        %v3368 = vunpack.c.l.b16 %v1055
        %v3369 = vunpack.c.h.b16 %v1055
        %v3370 = vunpack.c.l.b16 %v1056
        %v3371 = vunpack.c.h.b16 %v1056
        %v3372 = vunpack.c.l.b16 %v1057
        %v3373 = vunpack.c.h.b16 %v1057
        %v3374 = vunpack.c.l.b16 %v1058
        %v3375 = vunpack.c.h.b16 %v1058
        %v3376 = vunpack.c.l.b16 %v1059
        %v3377 = vunpack.c.h.b16 %v1059
        %v3378 = vunpack.c.l.b16 %v1060
        %v3379 = vunpack.c.h.b16 %v1060
        %v3380 = vunpack.c.l.b16 %v1061
        %v3381 = vunpack.c.h.b16 %v1061
        %v3382 = vunpack.c.l.b16 %v1062
        %v3383 = vunpack.c.h.b16 %v1062
        %v3384 = vunpack.c.l.b16 %v1063
        %v3385 = vunpack.c.h.b16 %v1063
        %v3386 = vunpack.c.l.b16 %v1064
        %v3387 = vunpack.c.h.b16 %v1064
        %v3388 = vunpack.c.l.b16 %v1065
        %v3389 = vunpack.c.h.b16 %v1065
        %v3390 = vunpack.c.l.b16 %v1066
        %v3391 = vunpack.c.h.b16 %v1066
        %v3392 = vunpack.c.l.b16 %v1067
        %v3393 = vunpack.c.h.b16 %v1067
        %v3394 = vunpack.c.l.b16 %v1068
        %v3395 = vunpack.c.h.b16 %v1068
        %v3396 = vunpack.c.l.b16 %v1069
        %v3397 = vunpack.c.h.b16 %v1069
        %v3398 = vunpack.c.l.b16 %v1070
        %v3399 = vunpack.c.h.b16 %v1070
        %v3400 = vunpack.c.l.b16 %v1071
        %v3401 = vunpack.c.h.b16 %v1071
        %v3402 = vunpack.c.l.b16 %v1072
        %v3403 = vunpack.c.h.b16 %v1072
        %v3404 = vunpack.c.l.b16 %v1073
        %v3405 = vunpack.c.h.b16 %v1073
        %v3406 = vunpack.c.l.b16 %v1074
        %v3407 = vunpack.c.h.b16 %v1074
        %v3408 = vunpack.c.l.b16 %v1075
        %v3409 = vunpack.c.h.b16 %v1075
        %v3410 = vunpack.c.l.b16 %v1076
        %v3411 = vunpack.c.h.b16 %v1076
        %v3412 = vunpack.c.l.b16 %v1077
        %v3413 = vunpack.c.h.b16 %v1077
        %v3414 = vunpack.c.l.b16 %v1078
        %v3415 = vunpack.c.h.b16 %v1078
        %v3416 = vunpack.c.l.b16 %v1079
        %v3417 = vunpack.c.h.b16 %v1079
        %v3418 = vunpack.c.l.b16 %v1080
        %v3419 = vunpack.c.h.b16 %v1080
        %v3420 = vunpack.c.l.b16 %v1081
        %v3421 = vunpack.c.h.b16 %v1081
        %v3422 = vunpack.c.l.b16 %v1082
        %v3423 = vunpack.c.h.b16 %v1082
        %v3424 = vunpack.c.l.b16 %v1083
        %v3425 = vunpack.c.h.b16 %v1083
        %v3426 = vunpack.c.l.b16 %v1084
        %v3427 = vunpack.c.h.b16 %v1084
        %v3428 = vunpack.c.l.b16 %v1085
        %v3429 = vunpack.c.h.b16 %v1085
        %v3430 = vunpack.c.l.b16 %v1086
        %v3431 = vunpack.c.h.b16 %v1086
        %v3432 = vunpack.c.l.b16 %v1087
        %v3433 = vunpack.c.h.b16 %v1087
        %v3434 = vunpack.c.l.b16 %v1088
        %v3435 = vunpack.c.h.b16 %v1088
        %v3436 = vunpack.c.l.b16 %v1089
        %v3437 = vunpack.c.h.b16 %v1089
        %v3438 = vunpack.c.l.b16 %v1090
        %v3439 = vunpack.c.h.b16 %v1090
        %v3440 = vunpack.c.l.b16 %v1091
        %v3441 = vunpack.c.h.b16 %v1091
        %v3442 = vunpack.c.l.b16 %v1092
        %v3443 = vunpack.c.h.b16 %v1092
        %v3444 = vunpack.c.l.b16 %v1093
        %v3445 = vunpack.c.h.b16 %v1093
        %v3446 = vunpack.c.l.b16 %v1094
        %v3447 = vunpack.c.h.b16 %v1094
        %v3448 = vunpack.c.l.b16 %v1095
        %v3449 = vunpack.c.h.b16 %v1095
        %v3450 = vunpack.c.l.b16 %v1096
        %v3451 = vunpack.c.h.b16 %v1096
        %v3452 = vunpack.c.l.b16 %v1097
        %v3453 = vunpack.c.h.b16 %v1097
        %v3454 = vunpack.c.l.b16 %v1098
        %v3455 = vunpack.c.h.b16 %v1098
        %v3456 = vunpack.c.l.b16 %v1099
        %v3457 = vunpack.c.h.b16 %v1099
        %v3458 = vunpack.c.l.b16 %v1100
        %v3459 = vunpack.c.h.b16 %v1100
        %v3460 = vunpack.c.l.b16 %v1101
        %v3461 = vunpack.c.h.b16 %v1101
        %v3462 = vunpack.c.l.b16 %v1102
        %v3463 = vunpack.c.h.b16 %v1102
        %v3464 = vunpack.c.l.b16 %v1103
        %v3465 = vunpack.c.h.b16 %v1103
        %v3466 = vunpack.c.l.b16 %v1104
        %v3467 = vunpack.c.h.b16 %v1104
        %v3468 = vunpack.c.l.b16 %v1105
        %v3469 = vunpack.c.h.b16 %v1105
        %v3470 = vunpack.c.l.b16 %v1106
        %v3471 = vunpack.c.h.b16 %v1106
        %v3472 = vunpack.c.l.b16 %v1107
        %v3473 = vunpack.c.h.b16 %v1107
        %v3474 = vunpack.c.l.b16 %v1108
        %v3475 = vunpack.c.h.b16 %v1108
        %v3476 = vunpack.c.l.b16 %v1109
        %v3477 = vunpack.c.h.b16 %v1109
        %v3478 = vunpack.c.l.b16 %v1110
        %v3479 = vunpack.c.h.b16 %v1110
        %v3480 = vunpack.c.l.b16 %v1111
        %v3481 = vunpack.c.h.b16 %v1111
        %v3482 = vunpack.c.l.b16 %v1112
        %v3483 = vunpack.c.h.b16 %v1112
        %v3484 = vunpack.c.l.b16 %v1113
        %v3485 = vunpack.c.h.b16 %v1113
        %v3486 = vunpack.c.l.b16 %v1114
        %v3487 = vunpack.c.h.b16 %v1114
        %v3488 = vunpack.c.l.b16 %v1115
        %v3489 = vunpack.c.h.b16 %v1115
        %v3490 = vunpack.c.l.b16 %v1116
        %v3491 = vunpack.c.h.b16 %v1116
        %v3492 = vunpack.c.l.b16 %v1117
        %v3493 = vunpack.c.h.b16 %v1117
        %v3494 = vunpack.c.l.b16 %v1118
        %v3495 = vunpack.c.h.b16 %v1118
        %v3496 = vunpack.c.l.b16 %v1119
        %v3497 = vunpack.c.h.b16 %v1119
        %v3498 = vunpack.c.l.b16 %v1120
        %v3499 = vunpack.c.h.b16 %v1120
        %v3500 = vunpack.c.l.b16 %v1121
        %v3501 = vunpack.c.h.b16 %v1121
        %v3502 = vunpack.c.l.b16 %v1122
        %v3503 = vunpack.c.h.b16 %v1122
        %v3504 = vunpack.c.l.b16 %v1123
        %v3505 = vunpack.c.h.b16 %v1123
        %v3506 = vunpack.c.l.b16 %v1124
        %v3507 = vunpack.c.h.b16 %v1124
        %v3508 = vunpack.c.l.b16 %v1125
        %v3509 = vunpack.c.h.b16 %v1125
        %v3510 = vunpack.c.l.b16 %v1126
        %v3511 = vunpack.c.h.b16 %v1126
        %v3512 = vunpack.c.l.b16 %v1127
        %v3513 = vunpack.c.h.b16 %v1127
        %v3514 = vunpack.c.l.b16 %v1128
        %v3515 = vunpack.c.h.b16 %v1128
        %v3516 = vunpack.c.l.b16 %v1129
        %v3517 = vunpack.c.h.b16 %v1129
        %v3518 = vunpack.c.l.b16 %v1130
        %v3519 = vunpack.c.h.b16 %v1130
        %v3520 = vunpack.c.l.b16 %v1131
        %v3521 = vunpack.c.h.b16 %v1131
        %v3522 = vunpack.c.l.b16 %v1132
        %v3523 = vunpack.c.h.b16 %v1132
        %v3524 = vunpack.c.l.b16 %v1133
        %v3525 = vunpack.c.h.b16 %v1133
        %v3526 = vunpack.c.l.b16 %v1134
        %v3527 = vunpack.c.h.b16 %v1134
        %v3528 = vunpack.c.l.b16 %v1135
        %v3529 = vunpack.c.h.b16 %v1135
        %v3530 = vunpack.c.l.b16 %v1136
        %v3531 = vunpack.c.h.b16 %v1136
        %v3532 = vunpack.c.l.b16 %v1137
        %v3533 = vunpack.c.h.b16 %v1137
        %v3534 = vunpack.c.l.b16 %v1138
        %v3535 = vunpack.c.h.b16 %v1138
        %v3536 = vunpack.c.l.b16 %v1139
        %v3537 = vunpack.c.h.b16 %v1139
        %v3538 = vunpack.c.l.b16 %v1140
        %v3539 = vunpack.c.h.b16 %v1140
        %v3540 = vunpack.c.l.b16 %v1141
        %v3541 = vunpack.c.h.b16 %v1141
        %v3542 = vunpack.c.l.b16 %v1142
        %v3543 = vunpack.c.h.b16 %v1142
        %v3544 = vunpack.c.l.b16 %v1143
        %v3545 = vunpack.c.h.b16 %v1143
        %v3546 = vunpack.c.l.b16 %v1144
        %v3547 = vunpack.c.h.b16 %v1144
        %v3548 = vunpack.c.l.b16 %v1145
        %v3549 = vunpack.c.h.b16 %v1145
        %v3550 = vunpack.c.l.b16 %v1146
        %v3551 = vunpack.c.h.b16 %v1146
        %v3552 = vunpack.c.l.b16 %v1147
        %v3553 = vunpack.c.h.b16 %v1147
        %v3554 = vunpack.c.l.b16 %v1148
        %v3555 = vunpack.c.h.b16 %v1148
        %v3556 = vunpack.c.l.b16 %v1149
        %v3557 = vunpack.c.h.b16 %v1149
        %v3558 = vunpack.c.l.b16 %v1150
        %v3559 = vunpack.c.h.b16 %v1150
        %v3560 = vunpack.c.l.b16 %v1151
        %v3561 = vunpack.c.h.b16 %v1151
        %v3562 = vunpack.c.l.b16 %v1152
        %v3563 = vunpack.c.h.b16 %v1152
        %v3564 = vunpack.c.l.b16 %v1153
        %v3565 = vunpack.c.h.b16 %v1153
        %v3566 = vunpack.c.l.b16 %v1154
        %v3567 = vunpack.c.h.b16 %v1154
        %v3568 = vunpack.c.l.b16 %v1155
        %v3569 = vunpack.c.h.b16 %v1155
        %v3570 = vunpack.c.l.b16 %v1156
        %v3571 = vunpack.c.h.b16 %v1156
        %v3572 = vunpack.c.l.b16 %v1157
        %v3573 = vunpack.c.h.b16 %v1157
        %v3574 = vunpack.c.l.b16 %v1158
        %v3575 = vunpack.c.h.b16 %v1158
        %v3576 = vunpack.c.l.b16 %v1159
        %v3577 = vunpack.c.h.b16 %v1159
        %v3578 = vunpack.c.l.b16 %v1160
        %v3579 = vunpack.c.h.b16 %v1160
        %v3580 = vunpack.c.l.b16 %v1161
        %v3581 = vunpack.c.h.b16 %v1161
        %v3582 = vunpack.c.l.b16 %v1162
        %v3583 = vunpack.c.h.b16 %v1162
        %v3584 = vunpack.c.l.b16 %v1163
        %v3585 = vunpack.c.h.b16 %v1163
        %v3586 = vunpack.c.l.b16 %v1164
        %v3587 = vunpack.c.h.b16 %v1164
        %v3588 = vunpack.c.l.b16 %v1165
        %v3589 = vunpack.c.h.b16 %v1165
        %v3590 = vunpack.c.l.b16 %v1166
        %v3591 = vunpack.c.h.b16 %v1166
        %v3592 = vunpack.c.l.b16 %v1167
        %v3593 = vunpack.c.h.b16 %v1167
        %v3594 = vunpack.c.l.b16 %v1168
        %v3595 = vunpack.c.h.b16 %v1168
        %v3596 = vunpack.c.l.b16 %v1169
        %v3597 = vunpack.c.h.b16 %v1169
        %v3598 = vunpack.c.l.b16 %v1170
        %v3599 = vunpack.c.h.b16 %v1170
        %v3600 = vunpack.c.l.b16 %v1171
        %v3601 = vunpack.c.h.b16 %v1171
        %v3602 = vunpack.c.l.b16 %v1172
        %v3603 = vunpack.c.h.b16 %v1172
        %v3604 = vunpack.c.l.b16 %v1173
        %v3605 = vunpack.c.h.b16 %v1173
        %v3606 = vunpack.c.l.b16 %v1174
        %v3607 = vunpack.c.h.b16 %v1174
        %v3608 = vunpack.c.l.b16 %v1175
        %v3609 = vunpack.c.h.b16 %v1175
        %v3610 = vunpack.c.l.b16 %v1176
        %v3611 = vunpack.c.h.b16 %v1176
        %v3612 = vunpack.c.l.b16 %v1177
        %v3613 = vunpack.c.h.b16 %v1177
        %v3614 = vunpack.c.l.b16 %v1178
        %v3615 = vunpack.c.h.b16 %v1178
        %v3616 = vunpack.c.l.b16 %v1179
        %v3617 = vunpack.c.h.b16 %v1179
        %v3618 = vunpack.c.l.b16 %v1180
        %v3619 = vunpack.c.h.b16 %v1180
        %v3620 = vunpack.c.l.b16 %v1181
        %v3621 = vunpack.c.h.b16 %v1181
        %v3622 = vunpack.c.l.b16 %v1182
        %v3623 = vunpack.c.h.b16 %v1182
        %v3624 = vunpack.c.l.b16 %v1183
        %v3625 = vunpack.c.h.b16 %v1183
        %v3626 = vunpack.c.l.b16 %v1184
        %v3627 = vunpack.c.h.b16 %v1184
        %v3628 = vunpack.c.l.b16 %v1185
        %v3629 = vunpack.c.h.b16 %v1185
        %v3630 = vunpack.c.l.b16 %v1186
        %v3631 = vunpack.c.h.b16 %v1186
        %v3632 = vunpack.c.l.b16 %v1187
        %v3633 = vunpack.c.h.b16 %v1187
        %v3634 = vunpack.c.l.b16 %v1188
        %v3635 = vunpack.c.h.b16 %v1188
        %v3636 = vunpack.c.l.b16 %v1189
        %v3637 = vunpack.c.h.b16 %v1189
        %v3638 = vunpack.c.l.b16 %v1190
        %v3639 = vunpack.c.h.b16 %v1190
        %v3640 = vunpack.c.l.b16 %v1191
        %v3641 = vunpack.c.h.b16 %v1191
        %v3642 = vunpack.c.l.b16 %v1192
        %v3643 = vunpack.c.h.b16 %v1192
        %v3644 = vunpack.c.l.b16 %v1193
        %v3645 = vunpack.c.h.b16 %v1193
        %v3646 = vunpack.c.l.b16 %v1194
        %v3647 = vunpack.c.h.b16 %v1194
        %v3648 = vunpack.c.l.b16 %v1195
        %v3649 = vunpack.c.h.b16 %v1195
        %v3650 = vunpack.c.l.b16 %v1196
        %v3651 = vunpack.c.h.b16 %v1196
        %v3652 = vunpack.c.l.b16 %v1197
        %v3653 = vunpack.c.h.b16 %v1197
        %v3654 = vunpack.c.l.b16 %v1198
        %v3655 = vunpack.c.h.b16 %v1198
        %v3656 = vunpack.c.l.b16 %v1199
        %v3657 = vunpack.c.h.b16 %v1199
        %v3658 = vunpack.c.l.b16 %v1200
        %v3659 = vunpack.c.h.b16 %v1200
        %v3660 = vunpack.c.l.b16 %v1201
        %v3661 = vunpack.c.h.b16 %v1201
        %v3662 = vunpack.c.l.b16 %v1202
        %v3663 = vunpack.c.h.b16 %v1202
        %v3664 = vunpack.c.l.b16 %v1203
        %v3665 = vunpack.c.h.b16 %v1203
        %v3666 = vunpack.c.l.b16 %v1204
        %v3667 = vunpack.c.h.b16 %v1204
        %v3668 = vunpack.c.l.b16 %v1205
        %v3669 = vunpack.c.h.b16 %v1205
        %v3670 = vunpack.c.l.b16 %v1206
        %v3671 = vunpack.c.h.b16 %v1206
        %v3672 = vunpack.c.l.b16 %v1207
        %v3673 = vunpack.c.h.b16 %v1207
        %v3674 = vunpack.c.l.b16 %v1208
        %v3675 = vunpack.c.h.b16 %v1208
        %v3676 = vunpack.c.l.b16 %v1209
        %v3677 = vunpack.c.h.b16 %v1209
        %v3678 = vunpack.c.l.b16 %v1210
        %v3679 = vunpack.c.h.b16 %v1210
        %v3680 = vunpack.c.l.b16 %v1211
        %v3681 = vunpack.c.h.b16 %v1211
        %v3682 = vunpack.c.l.b16 %v1212
        %v3683 = vunpack.c.h.b16 %v1212
        %v3684 = vunpack.c.l.b16 %v1213
        %v3685 = vunpack.c.h.b16 %v1213
        %v3686 = vunpack.c.l.b16 %v1214
        %v3687 = vunpack.c.h.b16 %v1214
        %v3688 = vunpack.c.l.b16 %v1215
        %v3689 = vunpack.c.h.b16 %v1215
        %v3690 = vunpack.c.l.b16 %v1216
        %v3691 = vunpack.c.h.b16 %v1216
        %v3692 = vunpack.c.l.b16 %v1217
        %v3693 = vunpack.c.h.b16 %v1217
        %v3694 = vunpack.c.l.b16 %v1218
        %v3695 = vunpack.c.h.b16 %v1218
        %v3696 = vunpack.c.l.b16 %v1219
        %v3697 = vunpack.c.h.b16 %v1219
        %v3698 = vunpack.c.l.b16 %v1220
        %v3699 = vunpack.c.h.b16 %v1220
        %v3700 = vunpack.c.l.b16 %v1221
        %v3701 = vunpack.c.h.b16 %v1221
        %v3702 = vunpack.c.l.b16 %v1222
        %v3703 = vunpack.c.h.b16 %v1222
        %v3704 = vunpack.c.l.b16 %v1223
        %v3705 = vunpack.c.h.b16 %v1223
        %v3706 = vunpack.c.l.b16 %v1224
        %v3707 = vunpack.c.h.b16 %v1224
        %v3708 = vunpack.c.l.b16 %v1225
        %v3709 = vunpack.c.h.b16 %v1225
        %v3710 = vunpack.c.l.b16 %v1226
        %v3711 = vunpack.c.h.b16 %v1226
        %v3712 = vunpack.c.l.b16 %v1227
        %v3713 = vunpack.c.h.b16 %v1227
        %v3714 = vunpack.c.l.b16 %v1228
        %v3715 = vunpack.c.h.b16 %v1228
        %v3716 = vunpack.c.l.b16 %v1229
        %v3717 = vunpack.c.h.b16 %v1229
        %v3718 = vunpack.c.l.b16 %v1230
        %v3719 = vunpack.c.h.b16 %v1230
        %v3720 = vunpack.c.l.b16 %v1231
        %v3721 = vunpack.c.h.b16 %v1231
        %v3722 = vunpack.c.l.b16 %v1232
        %v3723 = vunpack.c.h.b16 %v1232
        %v3724 = vunpack.c.l.b16 %v1233
        %v3725 = vunpack.c.h.b16 %v1233
        %v3726 = vunpack.c.l.b16 %v1234
        %v3727 = vunpack.c.h.b16 %v1234
        %v3728 = vunpack.c.l.b16 %v1235
        %v3729 = vunpack.c.h.b16 %v1235
        %v3730 = vunpack.c.l.b16 %v1236
        %v3731 = vunpack.c.h.b16 %v1236
        %v3732 = vunpack.c.l.b16 %v1237
        %v3733 = vunpack.c.h.b16 %v1237
        %v3734 = vunpack.c.l.b16 %v1238
        %v3735 = vunpack.c.h.b16 %v1238
        %v3736 = vunpack.c.l.b16 %v1239
        %v3737 = vunpack.c.h.b16 %v1239
        %v3738 = vunpack.c.l.b16 %v1240
        %v3739 = vunpack.c.h.b16 %v1240
        %v3740 = vunpack.c.l.b16 %v1241
        %v3741 = vunpack.c.h.b16 %v1241
        %v3742 = vunpack.c.l.b16 %v1242
        %v3743 = vunpack.c.h.b16 %v1242
        %v3744 = vunpack.c.l.b16 %v1243
        %v3745 = vunpack.c.h.b16 %v1243
        %v3746 = vunpack.c.l.b16 %v1244
        %v3747 = vunpack.c.h.b16 %v1244
        %v3748 = vunpack.c.l.b16 %v1245
        %v3749 = vunpack.c.h.b16 %v1245
        %v3750 = vunpack.c.l.b16 %v1246
        %v3751 = vunpack.c.h.b16 %v1246
        %v3752 = vunpack.c.l.b16 %v1247
        %v3753 = vunpack.c.h.b16 %v1247
        %v3754 = vunpack.c.l.b16 %v1248
        %v3755 = vunpack.c.h.b16 %v1248
        %v3756 = vunpack.c.l.b16 %v1249
        %v3757 = vunpack.c.h.b16 %v1249
        %v3758 = vunpack.c.l.b16 %v1250
        %v3759 = vunpack.c.h.b16 %v1250
        %v3760 = vunpack.c.l.b16 %v1251
        %v3761 = vunpack.c.h.b16 %v1251
        %v3762 = vunpack.c.l.b16 %v1252
        %v3763 = vunpack.c.h.b16 %v1252
        %v3764 = vunpack.c.l.b16 %v1253
        %v3765 = vunpack.c.h.b16 %v1253
        %v3766 = vunpack.c.l.b16 %v1254
        %v3767 = vunpack.c.h.b16 %v1254
        %v3768 = vunpack.c.l.b16 %v1255
        %v3769 = vunpack.c.h.b16 %v1255
        %v3770 = vunpack.c.l.b16 %v1256
        %v3771 = vunpack.c.h.b16 %v1256
        %v3772 = vunpack.c.l.b16 %v1257
        %v3773 = vunpack.c.h.b16 %v1257
        %v3774 = vunpack.c.l.b16 %v1258
        %v3775 = vunpack.c.h.b16 %v1258
        %v3776 = vunpack.c.l.b16 %v1259
        %v3777 = vunpack.c.h.b16 %v1259
        %v3778 = vunpack.c.l.b16 %v1260
        %v3779 = vunpack.c.h.b16 %v1260
        %v3780 = vunpack.c.l.b16 %v1261
        %v3781 = vunpack.c.h.b16 %v1261
        %v3782 = vunpack.c.l.b16 %v1262
        %v3783 = vunpack.c.h.b16 %v1262
        %v3784 = vunpack.c.l.b16 %v1263
        %v3785 = vunpack.c.h.b16 %v1263
        %v3786 = vunpack.c.l.b16 %v1264
        %v3787 = vunpack.c.h.b16 %v1264
        %v3788 = vunpack.c.l.b16 %v1265
        %v3789 = vunpack.c.h.b16 %v1265
        %v3790 = vunpack.c.l.b16 %v1266
        %v3791 = vunpack.c.h.b16 %v1266
        %v3792 = vunpack.c.l.b16 %v1267
        %v3793 = vunpack.c.h.b16 %v1267
        %v3794 = vunpack.c.l.b16 %v1268
        %v3795 = vunpack.c.h.b16 %v1268
        %v3796 = vunpack.c.l.b16 %v1269
        %v3797 = vunpack.c.h.b16 %v1269
        %v3798 = vunpack.c.l.b16 %v1270
        %v3799 = vunpack.c.h.b16 %v1270
        %v3800 = vunpack.c.l.b16 %v1271
        %v3801 = vunpack.c.h.b16 %v1271
        %v3802 = vunpack.c.l.b16 %v1272
        %v3803 = vunpack.c.h.b16 %v1272
        %v3804 = vunpack.c.l.b16 %v1273
        %v3805 = vunpack.c.h.b16 %v1273
        %v3806 = vunpack.c.l.b16 %v1274
        %v3807 = vunpack.c.h.b16 %v1274
        %v3808 = vunpack.c.l.b16 %v1275
        %v3809 = vunpack.c.h.b16 %v1275
        %v3810 = vunpack.c.l.b16 %v1276
        %v3811 = vunpack.c.h.b16 %v1276
        %v3812 = vunpack.c.l.b16 %v1277
        %v3813 = vunpack.c.h.b16 %v1277
        %v3814 = vunpack.c.l.b16 %v1278
        %v3815 = vunpack.c.h.b16 %v1278
        %v3816 = vunpack.c.l.b16 %v1279
        %v3817 = vunpack.c.h.b16 %v1279
        %v3818 = vunpack.c.l.b16 %v1280
        %v3819 = vunpack.c.h.b16 %v1280
        %v3820 = vunpack.c.l.b16 %v1281
        %v3821 = vunpack.c.h.b16 %v1281
        %v3822 = vunpack.c.l.b16 %v1282
        %v3823 = vunpack.c.h.b16 %v1282
        %v3824 = vunpack.c.l.b16 %v1283
        %v3825 = vunpack.c.h.b16 %v1283
        %v3826 = vunpack.c.l.b16 %v1284
        %v3827 = vunpack.c.h.b16 %v1284
        %v3828 = vunpack.c.l.b16 %v1285
        %v3829 = vunpack.c.h.b16 %v1285
        %v3830 = vunpack.c.l.b16 %v1286
        %v3831 = vunpack.c.h.b16 %v1286
        %v3832 = vunpack.c.l.b16 %v1287
        %v3833 = vunpack.c.h.b16 %v1287
        %v3834 = vunpack.c.l.b16 %v1288
        %v3835 = vunpack.c.h.b16 %v1288
        %v3836 = vunpack.c.l.b16 %v1289
        %v3837 = vunpack.c.h.b16 %v1289
        %v3838 = vunpack.c.l.b16 %v1290
        %v3839 = vunpack.c.h.b16 %v1290
        %v3840 = vunpack.c.l.b16 %v1291
        %v3841 = vunpack.c.h.b16 %v1291
        %v3842 = vunpack.c.l.b16 %v1292
        %v3843 = vunpack.c.h.b16 %v1292
        %v3844 = vunpack.c.l.b16 %v1293
        %v3845 = vunpack.c.h.b16 %v1293
        %v3846 = vunpack.c.l.b16 %v1294
        %v3847 = vunpack.c.h.b16 %v1294
        %v3848 = vunpack.c.l.b16 %v1295
        %v3849 = vunpack.c.h.b16 %v1295
        %v3850 = vunpack.c.l.b16 %v1296
        %v3851 = vunpack.c.h.b16 %v1296
        %v3852 = vunpack.c.l.b16 %v1297
        %v3853 = vunpack.c.h.b16 %v1297
        %v3854 = vunpack.c.l.b16 %v1298
        %v3855 = vunpack.c.h.b16 %v1298
        %v3856 = vunpack.c.l.b16 %v1299
        %v3857 = vunpack.c.h.b16 %v1299
        %v3858 = vunpack.c.l.b16 %v1300
        %v3859 = vunpack.c.h.b16 %v1300
        %v3860 = vunpack.c.l.b16 %v1301
        %v3861 = vunpack.c.h.b16 %v1301
        %v3862 = vunpack.c.l.b16 %v1302
        %v3863 = vunpack.c.h.b16 %v1302
        %v3864 = vunpack.c.l.b16 %v1303
        %v3865 = vunpack.c.h.b16 %v1303
        %v3866 = vunpack.c.l.b16 %v1304
        %v3867 = vunpack.c.h.b16 %v1304
        %v3868 = vunpack.c.l.b16 %v1305
        %v3869 = vunpack.c.h.b16 %v1305
        %v3870 = vunpack.c.l.b16 %v1306
        %v3871 = vunpack.c.h.b16 %v1306
        %v3872 = vunpack.c.l.b16 %v1307
        %v3873 = vunpack.c.h.b16 %v1307
        %v3874 = vunpack.c.l.b16 %v1308
        %v3875 = vunpack.c.h.b16 %v1308
        %v3876 = vunpack.c.l.b16 %v1309
        %v3877 = vunpack.c.h.b16 %v1309
        %v3878 = vunpack.c.l.b16 %v1310
        %v3879 = vunpack.c.h.b16 %v1310
        %v3880 = vunpack.c.l.b16 %v1311
        %v3881 = vunpack.c.h.b16 %v1311
        %v3882 = vunpack.c.l.b16 %v1312
        %v3883 = vunpack.c.h.b16 %v1312
        %v3884 = vunpack.c.l.b16 %v1313
        %v3885 = vunpack.c.h.b16 %v1313
        %v3886 = vunpack.c.l.b16 %v1314
        %v3887 = vunpack.c.h.b16 %v1314
        %v3888 = vunpack.c.l.b16 %v1315
        %v3889 = vunpack.c.h.b16 %v1315
        %v3890 = vunpack.c.l.b16 %v1316
        %v3891 = vunpack.c.h.b16 %v1316
        %v3892 = vunpack.c.l.b16 %v1317
        %v3893 = vunpack.c.h.b16 %v1317
        %v3894 = vunpack.c.l.b16 %v1318
        %v3895 = vunpack.c.h.b16 %v1318
        %v3896 = vunpack.c.l.b16 %v1319
        %v3897 = vunpack.c.h.b16 %v1319
        %v3898 = vunpack.c.l.b16 %v1320
        %v3899 = vunpack.c.h.b16 %v1320
        %v3900 = vunpack.c.l.b16 %v1321
        %v3901 = vunpack.c.h.b16 %v1321
        %v3902 = vunpack.c.l.b16 %v1322
        %v3903 = vunpack.c.h.b16 %v1322
        %v3904 = vunpack.c.l.b16 %v1323
        %v3905 = vunpack.c.h.b16 %v1323
        %v3906 = vunpack.c.l.b16 %v1324
        %v3907 = vunpack.c.h.b16 %v1324
        %v3908 = vunpack.c.l.b16 %v1325
        %v3909 = vunpack.c.h.b16 %v1325
        %v3910 = vunpack.c.l.b16 %v1326
        %v3911 = vunpack.c.h.b16 %v1326
        %v3912 = vunpack.c.l.b16 %v1327
        %v3913 = vunpack.c.h.b16 %v1327
        %v3914 = vunpack.c.l.b16 %v1328
        %v3915 = vunpack.c.h.b16 %v1328
        %v3916 = vunpack.c.l.b16 %v1329
        %v3917 = vunpack.c.h.b16 %v1329
        %v3918 = vunpack.c.l.b16 %v1330
        %v3919 = vunpack.c.h.b16 %v1330
        %v3920 = vunpack.c.l.b16 %v1331
        %v3921 = vunpack.c.h.b16 %v1331
        %v3922 = vunpack.c.l.b16 %v1332
        %v3923 = vunpack.c.h.b16 %v1332
        %v3924 = vunpack.c.l.b16 %v1333
        %v3925 = vunpack.c.h.b16 %v1333
        %v3926 = vunpack.c.l.b16 %v1334
        %v3927 = vunpack.c.h.b16 %v1334
        %v3928 = vunpack.c.l.b16 %v1335
        %v3929 = vunpack.c.h.b16 %v1335
        %v3930 = vunpack.c.l.b16 %v1336
        %v3931 = vunpack.c.h.b16 %v1336
        %v3932 = vunpack.c.l.b16 %v1337
        %v3933 = vunpack.c.h.b16 %v1337
        %v3934 = vunpack.c.l.b16 %v1338
        %v3935 = vunpack.c.h.b16 %v1338
        %v3936 = vunpack.c.l.b16 %v1339
        %v3937 = vunpack.c.h.b16 %v1339
        %v3938 = vunpack.c.l.b16 %v1340
        %v3939 = vunpack.c.h.b16 %v1340
        %v3940 = vunpack.c.l.b16 %v1341
        %v3941 = vunpack.c.h.b16 %v1341
        %v3942 = vunpack.c.l.b16 %v1342
        %v3943 = vunpack.c.h.b16 %v1342
        %v3944 = vunpack.c.l.b16 %v1343
        %v3945 = vunpack.c.h.b16 %v1343
        %v3946 = vunpack.c.l.b16 %v1344
        %v3947 = vunpack.c.h.b16 %v1344
        %v3948 = vunpack.c.l.b16 %v1345
        %v3949 = vunpack.c.h.b16 %v1345
        %v3950 = vunpack.c.l.b16 %v1346
        %v3951 = vunpack.c.h.b16 %v1346
        %v3952 = vunpack.c.l.b16 %v1347
        %v3953 = vunpack.c.h.b16 %v1347
        %v3954 = vunpack.c.l.b16 %v1348
        %v3955 = vunpack.c.h.b16 %v1348
        %v3956 = vunpack.c.l.b16 %v1349
        %v3957 = vunpack.c.h.b16 %v1349
        %v3958 = vunpack.c.l.b16 %v1350
        %v3959 = vunpack.c.h.b16 %v1350
        %v3960 = vunpack.c.l.b16 %v1351
        %v3961 = vunpack.c.h.b16 %v1351
        %v3962 = vunpack.c.l.b16 %v1352
        %v3963 = vunpack.c.h.b16 %v1352
        %v3964 = vunpack.c.l.b16 %v1353
        %v3965 = vunpack.c.h.b16 %v1353
        %v3966 = vunpack.c.l.b16 %v1354
        %v3967 = vunpack.c.h.b16 %v1354
        %v3968 = vunpack.c.l.b16 %v1355
        %v3969 = vunpack.c.h.b16 %v1355
        %v3970 = vunpack.c.l.b16 %v1356
        %v3971 = vunpack.c.h.b16 %v1356
        %v3972 = vunpack.c.l.b16 %v1357
        %v3973 = vunpack.c.h.b16 %v1357
        %v3974 = vunpack.c.l.b16 %v1358
        %v3975 = vunpack.c.h.b16 %v1358
        %v3976 = vunpack.c.l.b16 %v1359
        %v3977 = vunpack.c.h.b16 %v1359
        %v3978 = vunpack.c.l.b16 %v1360
        %v3979 = vunpack.c.h.b16 %v1360
        %v3980 = vunpack.c.l.b16 %v1361
        %v3981 = vunpack.c.h.b16 %v1361
        %v3982 = vunpack.c.l.b16 %v1362
        %v3983 = vunpack.c.h.b16 %v1362
        %v3984 = vunpack.c.l.b16 %v1363
        %v3985 = vunpack.c.h.b16 %v1363
        %v3986 = vunpack.c.l.b16 %v1364
        %v3987 = vunpack.c.h.b16 %v1364
        %v3988 = vunpack.c.l.b16 %v1365
        %v3989 = vunpack.c.h.b16 %v1365
        %v3990 = vunpack.c.l.b16 %v1366
        %v3991 = vunpack.c.h.b16 %v1366
        %v3992 = vunpack.c.l.b16 %v1367
        %v3993 = vunpack.c.h.b16 %v1367
        %v3994 = vunpack.c.l.b16 %v1368
        %v3995 = vunpack.c.h.b16 %v1368
        %v3996 = vunpack.c.l.b16 %v1369
        %v3997 = vunpack.c.h.b16 %v1369
        %v3998 = vunpack.c.l.b16 %v1370
        %v3999 = vunpack.c.h.b16 %v1370
        %v4000 = vunpack.c.l.b16 %v1371
        %v4001 = vunpack.c.h.b16 %v1371
        %v4002 = vunpack.c.l.b16 %v1372
        %v4003 = vunpack.c.h.b16 %v1372
        %v4004 = vunpack.c.l.b16 %v1373
        %v4005 = vunpack.c.h.b16 %v1373
        %v4006 = vunpack.c.l.b16 %v1374
        %v4007 = vunpack.c.h.b16 %v1374
        %v4008 = vunpack.c.l.b16 %v1375
        %v4009 = vunpack.c.h.b16 %v1375
        %v4010 = vunpack.c.l.b16 %v1376
        %v4011 = vunpack.c.h.b16 %v1376
        %v4012 = vunpack.c.l.b16 %v1377
        %v4013 = vunpack.c.h.b16 %v1377
        %v4014 = vunpack.c.l.b16 %v1378
        %v4015 = vunpack.c.h.b16 %v1378
        %v4016 = vunpack.c.l.b16 %v1379
        %v4017 = vunpack.c.h.b16 %v1379
        %v4018 = vunpack.c.l.b16 %v1380
        %v4019 = vunpack.c.h.b16 %v1380
        %v4020 = vunpack.c.l.b16 %v1381
        %v4021 = vunpack.c.h.b16 %v1381
        %v4022 = vunpack.c.l.b16 %v1382
        %v4023 = vunpack.c.h.b16 %v1382
        %v4024 = vunpack.c.l.b16 %v1383
        %v4025 = vunpack.c.h.b16 %v1383
        %v4026 = vunpack.c.l.b16 %v1384
        %v4027 = vunpack.c.h.b16 %v1384
        %v4028 = vunpack.c.l.b16 %v1385
        %v4029 = vunpack.c.h.b16 %v1385
        %v4030 = vunpack.c.l.b16 %v1386
        %v4031 = vunpack.c.h.b16 %v1386
        %v4032 = vunpack.c.l.b16 %v1387
        %v4033 = vunpack.c.h.b16 %v1387
        %v4034 = vunpack.c.l.b16 %v1388
        %v4035 = vunpack.c.h.b16 %v1388
        %v4036 = vunpack.c.l.b16 %v1389
        %v4037 = vunpack.c.h.b16 %v1389
        %v4038 = vunpack.c.l.b16 %v1390
        %v4039 = vunpack.c.h.b16 %v1390
        %v4040 = vunpack.c.l.b16 %v1391
        %v4041 = vunpack.c.h.b16 %v1391
        %v4042 = vunpack.c.l.b16 %v1392
        %v4043 = vunpack.c.h.b16 %v1392
        %v4044 = vunpack.c.l.b16 %v1393
        %v4045 = vunpack.c.h.b16 %v1393
        %v4046 = vunpack.c.l.b16 %v1394
        %v4047 = vunpack.c.h.b16 %v1394
        %v4048 = vunpack.c.l.b16 %v1395
        %v4049 = vunpack.c.h.b16 %v1395
        %v4050 = vunpack.c.l.b16 %v1396
        %v4051 = vunpack.c.h.b16 %v1396
        %v4052 = vunpack.c.l.b16 %v1397
        %v4053 = vunpack.c.h.b16 %v1397
        %v4054 = vunpack.c.l.b16 %v1398
        %v4055 = vunpack.c.h.b16 %v1398
        %v4056 = vunpack.c.l.b16 %v1399
        %v4057 = vunpack.c.h.b16 %v1399
        %v4058 = vunpack.c.l.b16 %v1400
        %v4059 = vunpack.c.h.b16 %v1400
        %v4060 = vunpack.c.l.b16 %v1401
        %v4061 = vunpack.c.h.b16 %v1401
        %v4062 = vunpack.c.l.b16 %v1402
        %v4063 = vunpack.c.h.b16 %v1402
        %v4064 = vunpack.c.l.b16 %v1403
        %v4065 = vunpack.c.h.b16 %v1403
        %v4066 = vunpack.c.l.b16 %v1404
        %v4067 = vunpack.c.h.b16 %v1404
        %v4068 = vunpack.c.l.b16 %v1405
        %v4069 = vunpack.c.h.b16 %v1405
        %v4070 = vunpack.c.l.b16 %v1406
        %v4071 = vunpack.c.h.b16 %v1406
        %v4072 = vunpack.c.l.b16 %v1407
        %v4073 = vunpack.c.h.b16 %v1407
        %v4074 = vunpack.c.l.b16 %v1408
        %v4075 = vunpack.c.h.b16 %v1408
        %v4076 = vunpack.c.l.b16 %v1409
        %v4077 = vunpack.c.h.b16 %v1409
        %v4078 = vunpack.c.l.b16 %v1410
        %v4079 = vunpack.c.h.b16 %v1410
        %v4080 = vunpack.c.l.b16 %v1411
        %v4081 = vunpack.c.h.b16 %v1411
        %v4082 = vunpack.c.l.b16 %v1412
        %v4083 = vunpack.c.h.b16 %v1412
        %v4084 = vunpack.c.l.b16 %v1413
        %v4085 = vunpack.c.h.b16 %v1413
        %v4086 = vunpack.c.l.b16 %v1414
        %v4087 = vunpack.c.h.b16 %v1414
        %v4088 = vunpack.c.l.b16 %v1415
        %v4089 = vunpack.c.h.b16 %v1415
        %v4090 = vunpack.c.l.b16 %v1416
        %v4091 = vunpack.c.h.b16 %v1416
        %v4092 = vunpack.c.l.b16 %v1417
        %v4093 = vunpack.c.h.b16 %v1417
        %v4094 = vunpack.c.l.b16 %v1418
        %v4095 = vunpack.c.h.b16 %v1418
        %v4096 = vunpack.c.l.b16 %v1419
        %v4097 = vunpack.c.h.b16 %v1419
        %v4098 = vunpack.c.l.b16 %v1420
        %v4099 = vunpack.c.h.b16 %v1420
        %v4100 = vunpack.c.l.b16 %v1421
        %v4101 = vunpack.c.h.b16 %v1421
        %v4102 = vunpack.c.l.b16 %v1422
        %v4103 = vunpack.c.h.b16 %v1422
        %v4104 = vunpack.c.l.b16 %v1423
        %v4105 = vunpack.c.h.b16 %v1423
        %v4106 = vunpack.c.l.b16 %v1424
        %v4107 = vunpack.c.h.b16 %v1424
        %v4108 = vunpack.c.l.b16 %v1425
        %v4109 = vunpack.c.h.b16 %v1425
        %v4110 = vunpack.c.l.b16 %v1426
        %v4111 = vunpack.c.h.b16 %v1426
        %v4112 = vunpack.c.l.b16 %v1427
        %v4113 = vunpack.c.h.b16 %v1427
        %v4114 = vunpack.c.l.b16 %v1428
        %v4115 = vunpack.c.h.b16 %v1428
        %v4116 = vunpack.c.l.b16 %v1429
        %v4117 = vunpack.c.h.b16 %v1429
        %v4118 = vunpack.c.l.b16 %v1430
        %v4119 = vunpack.c.h.b16 %v1430
        %v4120 = vunpack.c.l.b16 %v1431
        %v4121 = vunpack.c.h.b16 %v1431
        %v4122 = vunpack.c.l.b16 %v1432
        %v4123 = vunpack.c.h.b16 %v1432
        %v4124 = vunpack.c.l.b16 %v1433
        %v4125 = vunpack.c.h.b16 %v1433
        %v4126 = vunpack.c.l.b16 %v1434
        %v4127 = vunpack.c.h.b16 %v1434
        %v4128 = vunpack.c.l.b16 %v1435
        %v4129 = vunpack.c.h.b16 %v1435
        %v4130 = vunpack.c.l.b16 %v1436
        %v4131 = vunpack.c.h.b16 %v1436
        %v4132 = vunpack.c.l.b16 %v1437
        %v4133 = vunpack.c.h.b16 %v1437
        %v4134 = vunpack.c.l.b16 %v1438
        %v4135 = vunpack.c.h.b16 %v1438
        %v4136 = vunpack.c.l.b16 %v1439
        %v4137 = vunpack.c.h.b16 %v1439
        %v4138 = vunpack.c.l.b16 %v1440
        %v4139 = vunpack.c.h.b16 %v1440
        %v4140 = vunpack.c.l.b16 %v1441
        %v4141 = vunpack.c.h.b16 %v1441
        %v4142 = vunpack.c.l.b16 %v1442
        %v4143 = vunpack.c.h.b16 %v1442
        %v4144 = vunpack.c.l.b16 %v1443
        %v4145 = vunpack.c.h.b16 %v1443
        %v4146 = vunpack.c.l.b16 %v1444
        %v4147 = vunpack.c.h.b16 %v1444
        %v4148 = vunpack.c.l.b16 %v1445
        %v4149 = vunpack.c.h.b16 %v1445
        %v4150 = vunpack.c.l.b16 %v1446
        %v4151 = vunpack.c.h.b16 %v1446
        %v4152 = vunpack.c.l.b16 %v1447
        %v4153 = vunpack.c.h.b16 %v1447
        %v4154 = vunpack.c.l.b16 %v1448
        %v4155 = vunpack.c.h.b16 %v1448
        %v4156 = vunpack.c.l.b16 %v1449
        %v4157 = vunpack.c.h.b16 %v1449
        %v4158 = vunpack.c.l.b16 %v1450
        %v4159 = vunpack.c.h.b16 %v1450
        %v4160 = vunpack.c.l.b16 %v1451
        %v4161 = vunpack.c.h.b16 %v1451
        %v4162 = vunpack.c.l.b16 %v1452
        %v4163 = vunpack.c.h.b16 %v1452
        %v4164 = vunpack.c.l.b16 %v1453
        %v4165 = vunpack.c.h.b16 %v1453
        %v4166 = vunpack.c.l.b16 %v1454
        %v4167 = vunpack.c.h.b16 %v1454
        %v4168 = vunpack.c.l.b16 %v1455
        %v4169 = vunpack.c.h.b16 %v1455
        %v4170 = vunpack.c.l.b16 %v1456
        %v4171 = vunpack.c.h.b16 %v1456
        %v4172 = vunpack.c.l.b16 %v1457
        %v4173 = vunpack.c.h.b16 %v1457
        %v4174 = vunpack.c.l.b16 %v1458
        %v4175 = vunpack.c.h.b16 %v1458
        %v4176 = vunpack.c.l.b16 %v1459
        %v4177 = vunpack.c.h.b16 %v1459
        %v4178 = vunpack.c.l.b16 %v1460
        %v4179 = vunpack.c.h.b16 %v1460
        %v4180 = vunpack.c.l.b16 %v1461
        %v4181 = vunpack.c.h.b16 %v1461
        %v4182 = vunpack.c.l.b16 %v1462
        %v4183 = vunpack.c.h.b16 %v1462
        %v4184 = vunpack.c.l.b16 %v1463
        %v4185 = vunpack.c.h.b16 %v1463
        %v4186 = vunpack.c.l.b16 %v1464
        %v4187 = vunpack.c.h.b16 %v1464
        %v4188 = vunpack.c.l.b16 %v1465
        %v4189 = vunpack.c.h.b16 %v1465
        %v4190 = vunpack.c.l.b16 %v1466
        %v4191 = vunpack.c.h.b16 %v1466
        %v4192 = vunpack.c.l.b16 %v1467
        %v4193 = vunpack.c.h.b16 %v1467
        %v4194 = vunpack.c.l.b16 %v1468
        %v4195 = vunpack.c.h.b16 %v1468
        %v4196 = vunpack.c.l.b16 %v1469
        %v4197 = vunpack.c.h.b16 %v1469
        %v4198 = vunpack.c.l.b16 %v1470
        %v4199 = vunpack.c.h.b16 %v1470
        %v4200 = vunpack.c.l.b16 %v1471
        %v4201 = vunpack.c.h.b16 %v1471
        %v4202 = vunpack.c.l.b16 %v1472
        %v4203 = vunpack.c.h.b16 %v1472
        %v4204 = vunpack.c.l.b16 %v1473
        %v4205 = vunpack.c.h.b16 %v1473
        %v4206 = vunpack.c.l.b16 %v1474
        %v4207 = vunpack.c.h.b16 %v1474
        %v4208 = vunpack.c.l.b16 %v1475
        %v4209 = vunpack.c.h.b16 %v1475
        %v4210 = vunpack.c.l.b16 %v1476
        %v4211 = vunpack.c.h.b16 %v1476
        %v4212 = vunpack.c.l.b16 %v1477
        %v4213 = vunpack.c.h.b16 %v1477
        %v4214 = vunpack.c.l.b16 %v1478
        %v4215 = vunpack.c.h.b16 %v1478
        %v4216 = vunpack.c.l.b16 %v1479
        %v4217 = vunpack.c.h.b16 %v1479
        %v4218 = vunpack.c.l.b16 %v1480
        %v4219 = vunpack.c.h.b16 %v1480
        %v4220 = vunpack.c.l.b16 %v1481
        %v4221 = vunpack.c.h.b16 %v1481
        %v4222 = vunpack.c.l.b16 %v1482
        %v4223 = vunpack.c.h.b16 %v1482
        %v4224 = vunpack.c.l.b16 %v1483
        %v4225 = vunpack.c.h.b16 %v1483
        %v4226 = vunpack.c.l.b16 %v1484
        %v4227 = vunpack.c.h.b16 %v1484
        %v4228 = vunpack.c.l.b16 %v1485
        %v4229 = vunpack.c.h.b16 %v1485
        %v4230 = vunpack.c.l.b16 %v1486
        %v4231 = vunpack.c.h.b16 %v1486
        %v4232 = vunpack.c.l.b16 %v1487
        %v4233 = vunpack.c.h.b16 %v1487
        %v4234 = vunpack.c.l.b16 %v1488
        %v4235 = vunpack.c.h.b16 %v1488
        %v4236 = vunpack.c.l.b16 %v1489
        %v4237 = vunpack.c.h.b16 %v1489
        %v4238 = vunpack.c.l.b16 %v1490
        %v4239 = vunpack.c.h.b16 %v1490
        %v4240 = vunpack.c.l.b16 %v1491
        %v4241 = vunpack.c.h.b16 %v1491
        %v4242 = vunpack.c.l.b16 %v1492
        %v4243 = vunpack.c.h.b16 %v1492
        %v4244 = vunpack.c.l.b16 %v1493
        %v4245 = vunpack.c.h.b16 %v1493
        %v4246 = vunpack.c.l.b16 %v1494
        %v4247 = vunpack.c.h.b16 %v1494
        %v4248 = vunpack.c.l.b16 %v1495
        %v4249 = vunpack.c.h.b16 %v1495
        %v4250 = vunpack.c.l.b16 %v1496
        %v4251 = vunpack.c.h.b16 %v1496
        %v4252 = vunpack.c.l.b16 %v1497
        %v4253 = vunpack.c.h.b16 %v1497
        %v4254 = vunpack.c.l.b16 %v1498
        %v4255 = vunpack.c.h.b16 %v1498
        %v4256 = vunpack.c.l.b16 %v1499
        %v4257 = vunpack.c.h.b16 %v1499
        %v4258 = vunpack.c.l.b16 %v1500
        %v4259 = vunpack.c.h.b16 %v1500
        %v4260 = vunpack.c.l.b16 %v1501
        %v4261 = vunpack.c.h.b16 %v1501
        %v4262 = vunpack.c.l.b16 %v1502
        %v4263 = vunpack.c.h.b16 %v1502
        %v4264 = vunpack.c.l.b16 %v1503
        %v4265 = vunpack.c.h.b16 %v1503
        %v4266 = vunpack.c.l.b16 %v1504
        %v4267 = vunpack.c.h.b16 %v1504
        %v4268 = vunpack.c.l.b16 %v1505
        %v4269 = vunpack.c.h.b16 %v1505
        %v4270 = vunpack.c.l.b16 %v1506
        %v4271 = vunpack.c.h.b16 %v1506
        %v4272 = vunpack.c.l.b16 %v1507
        %v4273 = vunpack.c.h.b16 %v1507
        %v4274 = vunpack.c.l.b16 %v1508
        %v4275 = vunpack.c.h.b16 %v1508
        %v4276 = vunpack.c.l.b16 %v1509
        %v4277 = vunpack.c.h.b16 %v1509
        %v4278 = vunpack.c.l.b16 %v1510
        %v4279 = vunpack.c.h.b16 %v1510
        %v4280 = vunpack.c.l.b16 %v1511
        %v4281 = vunpack.c.h.b16 %v1511
        %v4282 = vunpack.c.l.b16 %v1512
        %v4283 = vunpack.c.h.b16 %v1512
        %v4284 = vunpack.c.l.b16 %v1513
        %v4285 = vunpack.c.h.b16 %v1513
        %v4286 = vunpack.c.l.b16 %v1514
        %v4287 = vunpack.c.h.b16 %v1514
        %v4288 = vunpack.c.l.b16 %v1515
        %v4289 = vunpack.c.h.b16 %v1515
        %v4290 = vunpack.c.l.b16 %v1516
        %v4291 = vunpack.c.h.b16 %v1516
        %v4292 = vunpack.c.l.b16 %v1517
        %v4293 = vunpack.c.h.b16 %v1517
        %v4294 = vunpack.c.l.b16 %v1518
        %v4295 = vunpack.c.h.b16 %v1518
        %v4296 = vunpack.c.l.b16 %v1519
        %v4297 = vunpack.c.h.b16 %v1519
        %v4298 = vunpack.c.l.b16 %v1520
        %v4299 = vunpack.c.h.b16 %v1520
        %v4300 = vunpack.c.l.b16 %v1521
        %v4301 = vunpack.c.h.b16 %v1521
        %v4302 = vunpack.c.l.b16 %v1522
        %v4303 = vunpack.c.h.b16 %v1522
        %v4304 = vunpack.c.l.b16 %v1523
        %v4305 = vunpack.c.h.b16 %v1523
        %v4306 = vunpack.c.l.b16 %v1524
        %v4307 = vunpack.c.h.b16 %v1524
        %v4308 = vunpack.c.l.b16 %v1525
        %v4309 = vunpack.c.h.b16 %v1525
        %v4310 = vunpack.c.l.b16 %v1526
        %v4311 = vunpack.c.h.b16 %v1526
        %v4312 = vunpack.c.l.b16 %v1527
        %v4313 = vunpack.c.h.b16 %v1527
        %v4314 = vunpack.c.l.b16 %v1528
        %v4315 = vunpack.c.h.b16 %v1528
        %v4316 = vunpack.c.l.b16 %v1529
        %v4317 = vunpack.c.h.b16 %v1529
        %v4318 = vunpack.c.l.b16 %v1530
        %v4319 = vunpack.c.h.b16 %v1530
        %v4320 = vunpack.c.l.b16 %v1531
        %v4321 = vunpack.c.h.b16 %v1531
        %v4322 = vunpack.c.l.b16 %v1532
        %v4323 = vunpack.c.h.b16 %v1532
        %v4324 = vunpack.c.l.b16 %v1533
        %v4325 = vunpack.c.h.b16 %v1533
        %v4326 = vunpack.c.l.b16 %v1534
        %v4327 = vunpack.c.h.b16 %v1534
        %v4328 = vunpack.c.l.b16 %v1535
        %v4329 = vunpack.c.h.b16 %v1535
        %v4330 = vunpack.c.l.b16 %v1536
        %v4331 = vunpack.c.h.b16 %v1536
        %v4332 = vunpack.c.l.b16 %v1537
        %v4333 = vunpack.c.h.b16 %v1537
        %v4334 = vunpack.c.l.b16 %v1538
        %v4335 = vunpack.c.h.b16 %v1538
        %v4336 = vunpack.c.l.b16 %v1539
        %v4337 = vunpack.c.h.b16 %v1539
        %v4338 = vunpack.c.l.b16 %v1540
        %v4339 = vunpack.c.h.b16 %v1540
        %v4340 = vunpack.c.l.b16 %v1541
        %v4341 = vunpack.c.h.b16 %v1541
        %v4342 = vpack.c.b16 %v2558, %v2550
        %v4343 = vpack.c.b16 %v2559, %v2551
        %v4344 = vpack.c.b16 %v2560, %v2552
        %v4345 = vpack.c.b16 %v2561, %v2553
        %v4346 = vpack.c.b16 %v2562, %v2554
        %v4347 = vpack.c.b16 %v2563, %v2555
        %v4348 = vpack.c.b16 %v2564, %v2556
        %v4349 = vpack.c.b16 %v2565, %v2557
        %v4350 = vpack.c.b16 %v2574, %v2566
        %v4351 = vpack.c.b16 %v2575, %v2567
        %v4352 = vpack.c.b16 %v2576, %v2568
        %v4353 = vpack.c.b16 %v2577, %v2569
        %v4354 = vpack.c.b16 %v2578, %v2570
        %v4355 = vpack.c.b16 %v2579, %v2571
        %v4356 = vpack.c.b16 %v2580, %v2572
        %v4357 = vpack.c.b16 %v2581, %v2573
        %v4358 = vpack.c.b16 %v2590, %v2582
        %v4359 = vpack.c.b16 %v2591, %v2583
        %v4360 = vpack.c.b16 %v2592, %v2584
        %v4361 = vpack.c.b16 %v2593, %v2585
        %v4362 = vpack.c.b16 %v2594, %v2586
        %v4363 = vpack.c.b16 %v2595, %v2587
        %v4364 = vpack.c.b16 %v2596, %v2588
        %v4365 = vpack.c.b16 %v2597, %v2589
        %v4366 = vpack.c.b16 %v2606, %v2598
        %v4367 = vpack.c.b16 %v2607, %v2599
        %v4368 = vpack.c.b16 %v2608, %v2600
        %v4369 = vpack.c.b16 %v2609, %v2601
        %v4370 = vpack.c.b16 %v2610, %v2602
        %v4371 = vpack.c.b16 %v2611, %v2603
        %v4372 = vpack.c.b16 %v2612, %v2604
        %v4373 = vpack.c.b16 %v2613, %v2605
        %v4374 = vpack.c.b16 %v2622, %v2614
        %v4375 = vpack.c.b16 %v2623, %v2615
        %v4376 = vpack.c.b16 %v2624, %v2616
        %v4377 = vpack.c.b16 %v2625, %v2617
        %v4378 = vpack.c.b16 %v2626, %v2618
        %v4379 = vpack.c.b16 %v2627, %v2619
        %v4380 = vpack.c.b16 %v2628, %v2620
        %v4381 = vpack.c.b16 %v2629, %v2621
        %v4382 = vpack.c.b16 %v2638, %v2630
        %v4383 = vpack.c.b16 %v2639, %v2631
        %v4384 = vpack.c.b16 %v2640, %v2632
        %v4385 = vpack.c.b16 %v2641, %v2633
        %v4386 = vpack.c.b16 %v2642, %v2634
        %v4387 = vpack.c.b16 %v2643, %v2635
        %v4388 = vpack.c.b16 %v2644, %v2636
        %v4389 = vpack.c.b16 %v2645, %v2637
        %v4390 = vpack.c.b16 %v2654, %v2646
        %v4391 = vpack.c.b16 %v2655, %v2647
        %v4392 = vpack.c.b16 %v2656, %v2648
        %v4393 = vpack.c.b16 %v2657, %v2649
        %v4394 = vpack.c.b16 %v2658, %v2650
        %v4395 = vpack.c.b16 %v2659, %v2651
        %v4396 = vpack.c.b16 %v2660, %v2652
        %v4397 = vpack.c.b16 %v2661, %v2653
        %v4398 = vpack.c.b16 %v2670, %v2662
        %v4399 = vpack.c.b16 %v2671, %v2663
        %v4400 = vpack.c.b16 %v2672, %v2664
        %v4401 = vpack.c.b16 %v2673, %v2665
        %v4402 = vpack.c.b16 %v2674, %v2666
        %v4403 = vpack.c.b16 %v2675, %v2667
        %v4404 = vpack.c.b16 %v2676, %v2668
        %v4405 = vpack.c.b16 %v2677, %v2669
        %v4406 = vpack.c.b16 %v2686, %v2678
        %v4407 = vpack.c.b16 %v2687, %v2679
        %v4408 = vpack.c.b16 %v2688, %v2680
        %v4409 = vpack.c.b16 %v2689, %v2681
        %v4410 = vpack.c.b16 %v2690, %v2682
        %v4411 = vpack.c.b16 %v2691, %v2683
        %v4412 = vpack.c.b16 %v2692, %v2684
        %v4413 = vpack.c.b16 %v2693, %v2685
        %v4414 = vpack.c.b16 %v2702, %v2694
        %v4415 = vpack.c.b16 %v2703, %v2695
        %v4416 = vpack.c.b16 %v2704, %v2696
        %v4417 = vpack.c.b16 %v2705, %v2697
        %v4418 = vpack.c.b16 %v2706, %v2698
        %v4419 = vpack.c.b16 %v2707, %v2699
        %v4420 = vpack.c.b16 %v2708, %v2700
        %v4421 = vpack.c.b16 %v2709, %v2701
        %v4422 = vpack.c.b16 %v2718, %v2710
        %v4423 = vpack.c.b16 %v2719, %v2711
        %v4424 = vpack.c.b16 %v2720, %v2712
        %v4425 = vpack.c.b16 %v2721, %v2713
        %v4426 = vpack.c.b16 %v2722, %v2714
        %v4427 = vpack.c.b16 %v2723, %v2715
        %v4428 = vpack.c.b16 %v2724, %v2716
        %v4429 = vpack.c.b16 %v2725, %v2717
        %v4430 = vpack.c.b16 %v2734, %v2726
        %v4431 = vpack.c.b16 %v2735, %v2727
        %v4432 = vpack.c.b16 %v2736, %v2728
        %v4433 = vpack.c.b16 %v2737, %v2729
        %v4434 = vpack.c.b16 %v2738, %v2730
        %v4435 = vpack.c.b16 %v2739, %v2731
        %v4436 = vpack.c.b16 %v2740, %v2732
        %v4437 = vpack.c.b16 %v2741, %v2733
        %v4438 = vpack.c.b16 %v2750, %v2742
        %v4439 = vpack.c.b16 %v2751, %v2743
        %v4440 = vpack.c.b16 %v2752, %v2744
        %v4441 = vpack.c.b16 %v2753, %v2745
        %v4442 = vpack.c.b16 %v2754, %v2746
        %v4443 = vpack.c.b16 %v2755, %v2747
        %v4444 = vpack.c.b16 %v2756, %v2748
        %v4445 = vpack.c.b16 %v2757, %v2749
        %v4446 = vpack.c.b16 %v2766, %v2758
        %v4447 = vpack.c.b16 %v2767, %v2759
        %v4448 = vpack.c.b16 %v2768, %v2760
        %v4449 = vpack.c.b16 %v2769, %v2761
        %v4450 = vpack.c.b16 %v2770, %v2762
        %v4451 = vpack.c.b16 %v2771, %v2763
        %v4452 = vpack.c.b16 %v2772, %v2764
        %v4453 = vpack.c.b16 %v2773, %v2765
        %v4454 = vpack.c.b16 %v2782, %v2774
        %v4455 = vpack.c.b16 %v2783, %v2775
        %v4456 = vpack.c.b16 %v2784, %v2776
        %v4457 = vpack.c.b16 %v2785, %v2777
        %v4458 = vpack.c.b16 %v2786, %v2778
        %v4459 = vpack.c.b16 %v2787, %v2779
        %v4460 = vpack.c.b16 %v2788, %v2780
        %v4461 = vpack.c.b16 %v2789, %v2781
        %v4462 = vpack.c.b16 %v2798, %v2790
        %v4463 = vpack.c.b16 %v2799, %v2791
        %v4464 = vpack.c.b16 %v2800, %v2792
        %v4465 = vpack.c.b16 %v2801, %v2793
        %v4466 = vpack.c.b16 %v2802, %v2794
        %v4467 = vpack.c.b16 %v2803, %v2795
        %v4468 = vpack.c.b16 %v2804, %v2796
        %v4469 = vpack.c.b16 %v2805, %v2797
        %v4470 = vpack.c.b16 %v2814, %v2806
        %v4471 = vpack.c.b16 %v2815, %v2807
        %v4472 = vpack.c.b16 %v2816, %v2808
        %v4473 = vpack.c.b16 %v2817, %v2809
        %v4474 = vpack.c.b16 %v2818, %v2810
        %v4475 = vpack.c.b16 %v2819, %v2811
        %v4476 = vpack.c.b16 %v2820, %v2812
        %v4477 = vpack.c.b16 %v2821, %v2813
        %v4478 = vpack.c.b16 %v2830, %v2822
        %v4479 = vpack.c.b16 %v2831, %v2823
        %v4480 = vpack.c.b16 %v2832, %v2824
        %v4481 = vpack.c.b16 %v2833, %v2825
        %v4482 = vpack.c.b16 %v2834, %v2826
        %v4483 = vpack.c.b16 %v2835, %v2827
        %v4484 = vpack.c.b16 %v2836, %v2828
        %v4485 = vpack.c.b16 %v2837, %v2829
        %v4486 = vpack.c.b16 %v2846, %v2838
        %v4487 = vpack.c.b16 %v2847, %v2839
        %v4488 = vpack.c.b16 %v2848, %v2840
        %v4489 = vpack.c.b16 %v2849, %v2841
        %v4490 = vpack.c.b16 %v2850, %v2842
        %v4491 = vpack.c.b16 %v2851, %v2843
        %v4492 = vpack.c.b16 %v2852, %v2844
        %v4493 = vpack.c.b16 %v2853, %v2845
        %v4494 = vpack.c.b16 %v2862, %v2854
        %v4495 = vpack.c.b16 %v2863, %v2855
        %v4496 = vpack.c.b16 %v2864, %v2856
        %v4497 = vpack.c.b16 %v2865, %v2857
        %v4498 = vpack.c.b16 %v2866, %v2858
        %v4499 = vpack.c.b16 %v2867, %v2859
        %v4500 = vpack.c.b16 %v2868, %v2860
        %v4501 = vpack.c.b16 %v2869, %v2861
        %v4502 = vpack.c.b16 %v2878, %v2870
        %v4503 = vpack.c.b16 %v2879, %v2871
        %v4504 = vpack.c.b16 %v2880, %v2872
        %v4505 = vpack.c.b16 %v2881, %v2873
        %v4506 = vpack.c.b16 %v2882, %v2874
        %v4507 = vpack.c.b16 %v2883, %v2875
        %v4508 = vpack.c.b16 %v2884, %v2876
        %v4509 = vpack.c.b16 %v2885, %v2877
        %v4510 = vpack.c.b16 %v2894, %v2886
        %v4511 = vpack.c.b16 %v2895, %v2887
        %v4512 = vpack.c.b16 %v2896, %v2888
        %v4513 = vpack.c.b16 %v2897, %v2889
        %v4514 = vpack.c.b16 %v2898, %v2890
        %v4515 = vpack.c.b16 %v2899, %v2891
        %v4516 = vpack.c.b16 %v2900, %v2892
        %v4517 = vpack.c.b16 %v2901, %v2893
        %v4518 = vpack.c.b16 %v2910, %v2902
        %v4519 = vpack.c.b16 %v2911, %v2903
        %v4520 = vpack.c.b16 %v2912, %v2904
        %v4521 = vpack.c.b16 %v2913, %v2905
        %v4522 = vpack.c.b16 %v2914, %v2906
        %v4523 = vpack.c.b16 %v2915, %v2907
        %v4524 = vpack.c.b16 %v2916, %v2908
        %v4525 = vpack.c.b16 %v2917, %v2909
        %v4526 = vpack.c.b16 %v2926, %v2918
        %v4527 = vpack.c.b16 %v2927, %v2919
        %v4528 = vpack.c.b16 %v2928, %v2920
        %v4529 = vpack.c.b16 %v2929, %v2921
        %v4530 = vpack.c.b16 %v2930, %v2922
        %v4531 = vpack.c.b16 %v2931, %v2923
        %v4532 = vpack.c.b16 %v2932, %v2924
        %v4533 = vpack.c.b16 %v2933, %v2925
        %v4534 = vpack.c.b16 %v2942, %v2934
        %v4535 = vpack.c.b16 %v2943, %v2935
        %v4536 = vpack.c.b16 %v2944, %v2936
        %v4537 = vpack.c.b16 %v2945, %v2937
        %v4538 = vpack.c.b16 %v2946, %v2938
        %v4539 = vpack.c.b16 %v2947, %v2939
        %v4540 = vpack.c.b16 %v2948, %v2940
        %v4541 = vpack.c.b16 %v2949, %v2941
        %v4542 = vpack.c.b16 %v2958, %v2950
        %v4543 = vpack.c.b16 %v2959, %v2951
        %v4544 = vpack.c.b16 %v2960, %v2952
        %v4545 = vpack.c.b16 %v2961, %v2953
        %v4546 = vpack.c.b16 %v2962, %v2954
        %v4547 = vpack.c.b16 %v2963, %v2955
        %v4548 = vpack.c.b16 %v2964, %v2956
        %v4549 = vpack.c.b16 %v2965, %v2957
        %v4550 = vpack.c.b16 %v2974, %v2966
        %v4551 = vpack.c.b16 %v2975, %v2967
        %v4552 = vpack.c.b16 %v2976, %v2968
        %v4553 = vpack.c.b16 %v2977, %v2969
        %v4554 = vpack.c.b16 %v2978, %v2970
        %v4555 = vpack.c.b16 %v2979, %v2971
        %v4556 = vpack.c.b16 %v2980, %v2972
        %v4557 = vpack.c.b16 %v2981, %v2973
        %v4558 = vpack.c.b16 %v2990, %v2982
        %v4559 = vpack.c.b16 %v2991, %v2983
        %v4560 = vpack.c.b16 %v2992, %v2984
        %v4561 = vpack.c.b16 %v2993, %v2985
        %v4562 = vpack.c.b16 %v2994, %v2986
        %v4563 = vpack.c.b16 %v2995, %v2987
        %v4564 = vpack.c.b16 %v2996, %v2988
        %v4565 = vpack.c.b16 %v2997, %v2989
        %v4566 = vpack.c.b16 %v3006, %v2998
        %v4567 = vpack.c.b16 %v3007, %v2999
        %v4568 = vpack.c.b16 %v3008, %v3000
        %v4569 = vpack.c.b16 %v3009, %v3001
        %v4570 = vpack.c.b16 %v3010, %v3002
        %v4571 = vpack.c.b16 %v3011, %v3003
        %v4572 = vpack.c.b16 %v3012, %v3004
        %v4573 = vpack.c.b16 %v3013, %v3005
        %v4574 = vpack.c.b16 %v3022, %v3014
        %v4575 = vpack.c.b16 %v3023, %v3015
        %v4576 = vpack.c.b16 %v3024, %v3016
        %v4577 = vpack.c.b16 %v3025, %v3017
        %v4578 = vpack.c.b16 %v3026, %v3018
        %v4579 = vpack.c.b16 %v3027, %v3019
        %v4580 = vpack.c.b16 %v3028, %v3020
        %v4581 = vpack.c.b16 %v3029, %v3021
        %v4582 = vpack.c.b16 %v3038, %v3030
        %v4583 = vpack.c.b16 %v3039, %v3031
        %v4584 = vpack.c.b16 %v3040, %v3032
        %v4585 = vpack.c.b16 %v3041, %v3033
        %v4586 = vpack.c.b16 %v3042, %v3034
        %v4587 = vpack.c.b16 %v3043, %v3035
        %v4588 = vpack.c.b16 %v3044, %v3036
        %v4589 = vpack.c.b16 %v3045, %v3037
        %v4590 = vpack.c.b16 %v3054, %v3046
        %v4591 = vpack.c.b16 %v3055, %v3047
        %v4592 = vpack.c.b16 %v3056, %v3048
        %v4593 = vpack.c.b16 %v3057, %v3049
        %v4594 = vpack.c.b16 %v3058, %v3050
        %v4595 = vpack.c.b16 %v3059, %v3051
        %v4596 = vpack.c.b16 %v3060, %v3052
        %v4597 = vpack.c.b16 %v3061, %v3053
        %v4598 = vpack.c.b16 %v3070, %v3062
        %v4599 = vpack.c.b16 %v3071, %v3063
        %v4600 = vpack.c.b16 %v3072, %v3064
        %v4601 = vpack.c.b16 %v3073, %v3065
        %v4602 = vpack.c.b16 %v3074, %v3066
        %v4603 = vpack.c.b16 %v3075, %v3067
        %v4604 = vpack.c.b16 %v3076, %v3068
        %v4605 = vpack.c.b16 %v3077, %v3069
        %v4606 = vpack.c.b16 %v3086, %v3078
        %v4607 = vpack.c.b16 %v3087, %v3079
        %v4608 = vpack.c.b16 %v3088, %v3080
        %v4609 = vpack.c.b16 %v3089, %v3081
        %v4610 = vpack.c.b16 %v3090, %v3082
        %v4611 = vpack.c.b16 %v3091, %v3083
        %v4612 = vpack.c.b16 %v3092, %v3084
        %v4613 = vpack.c.b16 %v3093, %v3085
        %v4614 = vpack.c.b16 %v3102, %v3094
        %v4615 = vpack.c.b16 %v3103, %v3095
        %v4616 = vpack.c.b16 %v3104, %v3096
        %v4617 = vpack.c.b16 %v3105, %v3097
        %v4618 = vpack.c.b16 %v3106, %v3098
        %v4619 = vpack.c.b16 %v3107, %v3099
        %v4620 = vpack.c.b16 %v3108, %v3100
        %v4621 = vpack.c.b16 %v3109, %v3101
        %v4622 = vpack.c.b16 %v3118, %v3110
        %v4623 = vpack.c.b16 %v3119, %v3111
        %v4624 = vpack.c.b16 %v3120, %v3112
        %v4625 = vpack.c.b16 %v3121, %v3113
        %v4626 = vpack.c.b16 %v3122, %v3114
        %v4627 = vpack.c.b16 %v3123, %v3115
        %v4628 = vpack.c.b16 %v3124, %v3116
        %v4629 = vpack.c.b16 %v3125, %v3117
        %v4630 = vpack.c.b16 %v3134, %v3126
        %v4631 = vpack.c.b16 %v3135, %v3127
        %v4632 = vpack.c.b16 %v3136, %v3128
        %v4633 = vpack.c.b16 %v3137, %v3129
        %v4634 = vpack.c.b16 %v3138, %v3130
        %v4635 = vpack.c.b16 %v3139, %v3131
        %v4636 = vpack.c.b16 %v3140, %v3132
        %v4637 = vpack.c.b16 %v3141, %v3133
        %v4638 = vpack.c.b16 %v3150, %v3142
        %v4639 = vpack.c.b16 %v3151, %v3143
        %v4640 = vpack.c.b16 %v3152, %v3144
        %v4641 = vpack.c.b16 %v3153, %v3145
        %v4642 = vpack.c.b16 %v3154, %v3146
        %v4643 = vpack.c.b16 %v3155, %v3147
        %v4644 = vpack.c.b16 %v3156, %v3148
        %v4645 = vpack.c.b16 %v3157, %v3149
        %v4646 = vpack.c.b16 %v3166, %v3158
        %v4647 = vpack.c.b16 %v3167, %v3159
        %v4648 = vpack.c.b16 %v3168, %v3160
        %v4649 = vpack.c.b16 %v3169, %v3161
        %v4650 = vpack.c.b16 %v3170, %v3162
        %v4651 = vpack.c.b16 %v3171, %v3163
        %v4652 = vpack.c.b16 %v3172, %v3164
        %v4653 = vpack.c.b16 %v3173, %v3165
        %v4654 = vpack.c.b16 %v3182, %v3174
        %v4655 = vpack.c.b16 %v3183, %v3175
        %v4656 = vpack.c.b16 %v3184, %v3176
        %v4657 = vpack.c.b16 %v3185, %v3177
        %v4658 = vpack.c.b16 %v3186, %v3178
        %v4659 = vpack.c.b16 %v3187, %v3179
        %v4660 = vpack.c.b16 %v3188, %v3180
        %v4661 = vpack.c.b16 %v3189, %v3181
        %v4662 = vpack.c.b16 %v3198, %v3190
        %v4663 = vpack.c.b16 %v3199, %v3191
        %v4664 = vpack.c.b16 %v3200, %v3192
        %v4665 = vpack.c.b16 %v3201, %v3193
        %v4666 = vpack.c.b16 %v3202, %v3194
        %v4667 = vpack.c.b16 %v3203, %v3195
        %v4668 = vpack.c.b16 %v3204, %v3196
        %v4669 = vpack.c.b16 %v3205, %v3197
        %v4670 = vpack.c.b16 %v3214, %v3206
        %v4671 = vpack.c.b16 %v3215, %v3207
        %v4672 = vpack.c.b16 %v3216, %v3208
        %v4673 = vpack.c.b16 %v3217, %v3209
        %v4674 = vpack.c.b16 %v3218, %v3210
        %v4675 = vpack.c.b16 %v3219, %v3211
        %v4676 = vpack.c.b16 %v3220, %v3212
        %v4677 = vpack.c.b16 %v3221, %v3213
        %v4678 = vpack.c.b16 %v3230, %v3222
        %v4679 = vpack.c.b16 %v3231, %v3223
        %v4680 = vpack.c.b16 %v3232, %v3224
        %v4681 = vpack.c.b16 %v3233, %v3225
        %v4682 = vpack.c.b16 %v3234, %v3226
        %v4683 = vpack.c.b16 %v3235, %v3227
        %v4684 = vpack.c.b16 %v3236, %v3228
        %v4685 = vpack.c.b16 %v3237, %v3229
        %v4686 = vpack.c.b16 %v3246, %v3238
        %v4687 = vpack.c.b16 %v3247, %v3239
        %v4688 = vpack.c.b16 %v3248, %v3240
        %v4689 = vpack.c.b16 %v3249, %v3241
        %v4690 = vpack.c.b16 %v3250, %v3242
        %v4691 = vpack.c.b16 %v3251, %v3243
        %v4692 = vpack.c.b16 %v3252, %v3244
        %v4693 = vpack.c.b16 %v3253, %v3245
        %v4694 = vpack.c.b16 %v3262, %v3254
        %v4695 = vpack.c.b16 %v3263, %v3255
        %v4696 = vpack.c.b16 %v3264, %v3256
        %v4697 = vpack.c.b16 %v3265, %v3257
        %v4698 = vpack.c.b16 %v3266, %v3258
        %v4699 = vpack.c.b16 %v3267, %v3259
        %v4700 = vpack.c.b16 %v3268, %v3260
        %v4701 = vpack.c.b16 %v3269, %v3261
        %v4702 = vpack.c.b16 %v3278, %v3270
        %v4703 = vpack.c.b16 %v3279, %v3271
        %v4704 = vpack.c.b16 %v3280, %v3272
        %v4705 = vpack.c.b16 %v3281, %v3273
        %v4706 = vpack.c.b16 %v3282, %v3274
        %v4707 = vpack.c.b16 %v3283, %v3275
        %v4708 = vpack.c.b16 %v3284, %v3276
        %v4709 = vpack.c.b16 %v3285, %v3277
        %v4710 = vpack.c.b16 %v3294, %v3286
        %v4711 = vpack.c.b16 %v3295, %v3287
        %v4712 = vpack.c.b16 %v3296, %v3288
        %v4713 = vpack.c.b16 %v3297, %v3289
        %v4714 = vpack.c.b16 %v3298, %v3290
        %v4715 = vpack.c.b16 %v3299, %v3291
        %v4716 = vpack.c.b16 %v3300, %v3292
        %v4717 = vpack.c.b16 %v3301, %v3293
        %v4718 = vpack.c.b16 %v3310, %v3302
        %v4719 = vpack.c.b16 %v3311, %v3303
        %v4720 = vpack.c.b16 %v3312, %v3304
        %v4721 = vpack.c.b16 %v3313, %v3305
        %v4722 = vpack.c.b16 %v3314, %v3306
        %v4723 = vpack.c.b16 %v3315, %v3307
        %v4724 = vpack.c.b16 %v3316, %v3308
        %v4725 = vpack.c.b16 %v3317, %v3309
        %v4726 = vpack.c.b16 %v3326, %v3318
        %v4727 = vpack.c.b16 %v3327, %v3319
        %v4728 = vpack.c.b16 %v3328, %v3320
        %v4729 = vpack.c.b16 %v3329, %v3321
        %v4730 = vpack.c.b16 %v3330, %v3322
        %v4731 = vpack.c.b16 %v3331, %v3323
        %v4732 = vpack.c.b16 %v3332, %v3324
        %v4733 = vpack.c.b16 %v3333, %v3325
        %v4734 = vpack.c.b16 %v3342, %v3334
        %v4735 = vpack.c.b16 %v3343, %v3335
        %v4736 = vpack.c.b16 %v3344, %v3336
        %v4737 = vpack.c.b16 %v3345, %v3337
        %v4738 = vpack.c.b16 %v3346, %v3338
        %v4739 = vpack.c.b16 %v3347, %v3339
        %v4740 = vpack.c.b16 %v3348, %v3340
        %v4741 = vpack.c.b16 %v3349, %v3341
        %v4742 = vpack.c.b16 %v3358, %v3350
        %v4743 = vpack.c.b16 %v3359, %v3351
        %v4744 = vpack.c.b16 %v3360, %v3352
        %v4745 = vpack.c.b16 %v3361, %v3353
        %v4746 = vpack.c.b16 %v3362, %v3354
        %v4747 = vpack.c.b16 %v3363, %v3355
        %v4748 = vpack.c.b16 %v3364, %v3356
        %v4749 = vpack.c.b16 %v3365, %v3357
        %v4750 = vpack.c.b16 %v3374, %v3366
        %v4751 = vpack.c.b16 %v3375, %v3367
        %v4752 = vpack.c.b16 %v3376, %v3368
        %v4753 = vpack.c.b16 %v3377, %v3369
        %v4754 = vpack.c.b16 %v3378, %v3370
        %v4755 = vpack.c.b16 %v3379, %v3371
        %v4756 = vpack.c.b16 %v3380, %v3372
        %v4757 = vpack.c.b16 %v3381, %v3373
        %v4758 = vpack.c.b16 %v3390, %v3382
        %v4759 = vpack.c.b16 %v3391, %v3383
        %v4760 = vpack.c.b16 %v3392, %v3384
        %v4761 = vpack.c.b16 %v3393, %v3385
        %v4762 = vpack.c.b16 %v3394, %v3386
        %v4763 = vpack.c.b16 %v3395, %v3387
        %v4764 = vpack.c.b16 %v3396, %v3388
        %v4765 = vpack.c.b16 %v3397, %v3389
        %v4766 = vpack.c.b16 %v3406, %v3398
        %v4767 = vpack.c.b16 %v3407, %v3399
        %v4768 = vpack.c.b16 %v3408, %v3400
        %v4769 = vpack.c.b16 %v3409, %v3401
        %v4770 = vpack.c.b16 %v3410, %v3402
        %v4771 = vpack.c.b16 %v3411, %v3403
        %v4772 = vpack.c.b16 %v3412, %v3404
        %v4773 = vpack.c.b16 %v3413, %v3405
        %v4774 = vpack.c.b16 %v3422, %v3414
        %v4775 = vpack.c.b16 %v3423, %v3415
        %v4776 = vpack.c.b16 %v3424, %v3416
        %v4777 = vpack.c.b16 %v3425, %v3417
        %v4778 = vpack.c.b16 %v3426, %v3418
        %v4779 = vpack.c.b16 %v3427, %v3419
        %v4780 = vpack.c.b16 %v3428, %v3420
        %v4781 = vpack.c.b16 %v3429, %v3421
        %v4782 = vpack.c.b16 %v3438, %v3430
        %v4783 = vpack.c.b16 %v3439, %v3431
        %v4784 = vpack.c.b16 %v3440, %v3432
        %v4785 = vpack.c.b16 %v3441, %v3433
        %v4786 = vpack.c.b16 %v3442, %v3434
        %v4787 = vpack.c.b16 %v3443, %v3435
        %v4788 = vpack.c.b16 %v3444, %v3436
        %v4789 = vpack.c.b16 %v3445, %v3437
        %v4790 = vpack.c.b16 %v3454, %v3446
        %v4791 = vpack.c.b16 %v3455, %v3447
        %v4792 = vpack.c.b16 %v3456, %v3448
        %v4793 = vpack.c.b16 %v3457, %v3449
        %v4794 = vpack.c.b16 %v3458, %v3450
        %v4795 = vpack.c.b16 %v3459, %v3451
        %v4796 = vpack.c.b16 %v3460, %v3452
        %v4797 = vpack.c.b16 %v3461, %v3453
        %v4798 = vpack.c.b16 %v3470, %v3462
        %v4799 = vpack.c.b16 %v3471, %v3463
        %v4800 = vpack.c.b16 %v3472, %v3464
        %v4801 = vpack.c.b16 %v3473, %v3465
        %v4802 = vpack.c.b16 %v3474, %v3466
        %v4803 = vpack.c.b16 %v3475, %v3467
        %v4804 = vpack.c.b16 %v3476, %v3468
        %v4805 = vpack.c.b16 %v3477, %v3469
        %v4806 = vpack.c.b16 %v3486, %v3478
        %v4807 = vpack.c.b16 %v3487, %v3479
        %v4808 = vpack.c.b16 %v3488, %v3480
        %v4809 = vpack.c.b16 %v3489, %v3481
        %v4810 = vpack.c.b16 %v3490, %v3482
        %v4811 = vpack.c.b16 %v3491, %v3483
        %v4812 = vpack.c.b16 %v3492, %v3484
        %v4813 = vpack.c.b16 %v3493, %v3485
        %v4814 = vpack.c.b16 %v3502, %v3494
        %v4815 = vpack.c.b16 %v3503, %v3495
        %v4816 = vpack.c.b16 %v3504, %v3496
        %v4817 = vpack.c.b16 %v3505, %v3497
        %v4818 = vpack.c.b16 %v3506, %v3498
        %v4819 = vpack.c.b16 %v3507, %v3499
        %v4820 = vpack.c.b16 %v3508, %v3500
        %v4821 = vpack.c.b16 %v3509, %v3501
        %v4822 = vpack.c.b16 %v3518, %v3510
        %v4823 = vpack.c.b16 %v3519, %v3511
        %v4824 = vpack.c.b16 %v3520, %v3512
        %v4825 = vpack.c.b16 %v3521, %v3513
        %v4826 = vpack.c.b16 %v3522, %v3514
        %v4827 = vpack.c.b16 %v3523, %v3515
        %v4828 = vpack.c.b16 %v3524, %v3516
        %v4829 = vpack.c.b16 %v3525, %v3517
        %v4830 = vpack.c.b16 %v3534, %v3526
        %v4831 = vpack.c.b16 %v3535, %v3527
        %v4832 = vpack.c.b16 %v3536, %v3528
        %v4833 = vpack.c.b16 %v3537, %v3529
        %v4834 = vpack.c.b16 %v3538, %v3530
        %v4835 = vpack.c.b16 %v3539, %v3531
        %v4836 = vpack.c.b16 %v3540, %v3532
        %v4837 = vpack.c.b16 %v3541, %v3533
        %v4838 = vpack.c.b16 %v3550, %v3542
        %v4839 = vpack.c.b16 %v3551, %v3543
        %v4840 = vpack.c.b16 %v3552, %v3544
        %v4841 = vpack.c.b16 %v3553, %v3545
        %v4842 = vpack.c.b16 %v3554, %v3546
        %v4843 = vpack.c.b16 %v3555, %v3547
        %v4844 = vpack.c.b16 %v3556, %v3548
        %v4845 = vpack.c.b16 %v3557, %v3549
        %v4846 = vpack.c.b16 %v3566, %v3558
        %v4847 = vpack.c.b16 %v3567, %v3559
        %v4848 = vpack.c.b16 %v3568, %v3560
        %v4849 = vpack.c.b16 %v3569, %v3561
        %v4850 = vpack.c.b16 %v3570, %v3562
        %v4851 = vpack.c.b16 %v3571, %v3563
        %v4852 = vpack.c.b16 %v3572, %v3564
        %v4853 = vpack.c.b16 %v3573, %v3565
        %v4854 = vpack.c.b16 %v3582, %v3574
        %v4855 = vpack.c.b16 %v3583, %v3575
        %v4856 = vpack.c.b16 %v3584, %v3576
        %v4857 = vpack.c.b16 %v3585, %v3577
        %v4858 = vpack.c.b16 %v3586, %v3578
        %v4859 = vpack.c.b16 %v3587, %v3579
        %v4860 = vpack.c.b16 %v3588, %v3580
        %v4861 = vpack.c.b16 %v3589, %v3581
        %v4862 = vpack.c.b16 %v3598, %v3590
        %v4863 = vpack.c.b16 %v3599, %v3591
        %v4864 = vpack.c.b16 %v3600, %v3592
        %v4865 = vpack.c.b16 %v3601, %v3593
        %v4866 = vpack.c.b16 %v3602, %v3594
        %v4867 = vpack.c.b16 %v3603, %v3595
        %v4868 = vpack.c.b16 %v3604, %v3596
        %v4869 = vpack.c.b16 %v3605, %v3597
        %v4870 = vpack.c.b16 %v3614, %v3606
        %v4871 = vpack.c.b16 %v3615, %v3607
        %v4872 = vpack.c.b16 %v3616, %v3608
        %v4873 = vpack.c.b16 %v3617, %v3609
        %v4874 = vpack.c.b16 %v3618, %v3610
        %v4875 = vpack.c.b16 %v3619, %v3611
        %v4876 = vpack.c.b16 %v3620, %v3612
        %v4877 = vpack.c.b16 %v3621, %v3613
        %v4878 = vpack.c.b16 %v3630, %v3622
        %v4879 = vpack.c.b16 %v3631, %v3623
        %v4880 = vpack.c.b16 %v3632, %v3624
        %v4881 = vpack.c.b16 %v3633, %v3625
        %v4882 = vpack.c.b16 %v3634, %v3626
        %v4883 = vpack.c.b16 %v3635, %v3627
        %v4884 = vpack.c.b16 %v3636, %v3628
        %v4885 = vpack.c.b16 %v3637, %v3629
        %v4886 = vpack.c.b16 %v3646, %v3638
        %v4887 = vpack.c.b16 %v3647, %v3639
        %v4888 = vpack.c.b16 %v3648, %v3640
        %v4889 = vpack.c.b16 %v3649, %v3641
        %v4890 = vpack.c.b16 %v3650, %v3642
        %v4891 = vpack.c.b16 %v3651, %v3643
        %v4892 = vpack.c.b16 %v3652, %v3644
        %v4893 = vpack.c.b16 %v3653, %v3645
        %v4894 = vpack.c.b16 %v3662, %v3654
        %v4895 = vpack.c.b16 %v3663, %v3655
        %v4896 = vpack.c.b16 %v3664, %v3656
        %v4897 = vpack.c.b16 %v3665, %v3657
        %v4898 = vpack.c.b16 %v3666, %v3658
        %v4899 = vpack.c.b16 %v3667, %v3659
        %v4900 = vpack.c.b16 %v3668, %v3660
        %v4901 = vpack.c.b16 %v3669, %v3661
        %v4902 = vpack.c.b16 %v3678, %v3670
        %v4903 = vpack.c.b16 %v3679, %v3671
        %v4904 = vpack.c.b16 %v3680, %v3672
        %v4905 = vpack.c.b16 %v3681, %v3673
        %v4906 = vpack.c.b16 %v3682, %v3674
        %v4907 = vpack.c.b16 %v3683, %v3675
        %v4908 = vpack.c.b16 %v3684, %v3676
        %v4909 = vpack.c.b16 %v3685, %v3677
        %v4910 = vpack.c.b16 %v3694, %v3686
        %v4911 = vpack.c.b16 %v3695, %v3687
        %v4912 = vpack.c.b16 %v3696, %v3688
        %v4913 = vpack.c.b16 %v3697, %v3689
        %v4914 = vpack.c.b16 %v3698, %v3690
        %v4915 = vpack.c.b16 %v3699, %v3691
        %v4916 = vpack.c.b16 %v3700, %v3692
        %v4917 = vpack.c.b16 %v3701, %v3693
        %v4918 = vpack.c.b16 %v3710, %v3702
        %v4919 = vpack.c.b16 %v3711, %v3703
        %v4920 = vpack.c.b16 %v3712, %v3704
        %v4921 = vpack.c.b16 %v3713, %v3705
        %v4922 = vpack.c.b16 %v3714, %v3706
        %v4923 = vpack.c.b16 %v3715, %v3707
        %v4924 = vpack.c.b16 %v3716, %v3708
        %v4925 = vpack.c.b16 %v3717, %v3709
        %v4926 = vpack.c.b16 %v3726, %v3718
        %v4927 = vpack.c.b16 %v3727, %v3719
        %v4928 = vpack.c.b16 %v3728, %v3720
        %v4929 = vpack.c.b16 %v3729, %v3721
        %v4930 = vpack.c.b16 %v3730, %v3722
        %v4931 = vpack.c.b16 %v3731, %v3723
        %v4932 = vpack.c.b16 %v3732, %v3724
        %v4933 = vpack.c.b16 %v3733, %v3725
        %v4934 = vpack.c.b16 %v3742, %v3734
        %v4935 = vpack.c.b16 %v3743, %v3735
        %v4936 = vpack.c.b16 %v3744, %v3736
        %v4937 = vpack.c.b16 %v3745, %v3737
        %v4938 = vpack.c.b16 %v3746, %v3738
        %v4939 = vpack.c.b16 %v3747, %v3739
        %v4940 = vpack.c.b16 %v3748, %v3740
        %v4941 = vpack.c.b16 %v3749, %v3741
        %v4942 = vpack.c.b16 %v3758, %v3750
        %v4943 = vpack.c.b16 %v3759, %v3751
        %v4944 = vpack.c.b16 %v3760, %v3752
        %v4945 = vpack.c.b16 %v3761, %v3753
        %v4946 = vpack.c.b16 %v3762, %v3754
        %v4947 = vpack.c.b16 %v3763, %v3755
        %v4948 = vpack.c.b16 %v3764, %v3756
        %v4949 = vpack.c.b16 %v3765, %v3757
        %v4950 = vpack.c.b16 %v3774, %v3766
        %v4951 = vpack.c.b16 %v3775, %v3767
        %v4952 = vpack.c.b16 %v3776, %v3768
        %v4953 = vpack.c.b16 %v3777, %v3769
        %v4954 = vpack.c.b16 %v3778, %v3770
        %v4955 = vpack.c.b16 %v3779, %v3771
        %v4956 = vpack.c.b16 %v3780, %v3772
        %v4957 = vpack.c.b16 %v3781, %v3773
        %v4958 = vpack.c.b16 %v3790, %v3782
        %v4959 = vpack.c.b16 %v3791, %v3783
        %v4960 = vpack.c.b16 %v3792, %v3784
        %v4961 = vpack.c.b16 %v3793, %v3785
        %v4962 = vpack.c.b16 %v3794, %v3786
        %v4963 = vpack.c.b16 %v3795, %v3787
        %v4964 = vpack.c.b16 %v3796, %v3788
        %v4965 = vpack.c.b16 %v3797, %v3789
        %v4966 = vpack.c.b16 %v3806, %v3798
        %v4967 = vpack.c.b16 %v3807, %v3799
        %v4968 = vpack.c.b16 %v3808, %v3800
        %v4969 = vpack.c.b16 %v3809, %v3801
        %v4970 = vpack.c.b16 %v3810, %v3802
        %v4971 = vpack.c.b16 %v3811, %v3803
        %v4972 = vpack.c.b16 %v3812, %v3804
        %v4973 = vpack.c.b16 %v3813, %v3805
        %v4974 = vpack.c.b16 %v3822, %v3814
        %v4975 = vpack.c.b16 %v3823, %v3815
        %v4976 = vpack.c.b16 %v3824, %v3816
        %v4977 = vpack.c.b16 %v3825, %v3817
        %v4978 = vpack.c.b16 %v3826, %v3818
        %v4979 = vpack.c.b16 %v3827, %v3819
        %v4980 = vpack.c.b16 %v3828, %v3820
        %v4981 = vpack.c.b16 %v3829, %v3821
        %v4982 = vpack.c.b16 %v3838, %v3830
        %v4983 = vpack.c.b16 %v3839, %v3831
        %v4984 = vpack.c.b16 %v3840, %v3832
        %v4985 = vpack.c.b16 %v3841, %v3833
        %v4986 = vpack.c.b16 %v3842, %v3834
        %v4987 = vpack.c.b16 %v3843, %v3835
        %v4988 = vpack.c.b16 %v3844, %v3836
        %v4989 = vpack.c.b16 %v3845, %v3837
        %v4990 = vpack.c.b16 %v3854, %v3846
        %v4991 = vpack.c.b16 %v3855, %v3847
        %v4992 = vpack.c.b16 %v3856, %v3848
        %v4993 = vpack.c.b16 %v3857, %v3849
        %v4994 = vpack.c.b16 %v3858, %v3850
        %v4995 = vpack.c.b16 %v3859, %v3851
        %v4996 = vpack.c.b16 %v3860, %v3852
        %v4997 = vpack.c.b16 %v3861, %v3853
        %v4998 = vpack.c.b16 %v3870, %v3862
        %v4999 = vpack.c.b16 %v3871, %v3863
        %v5000 = vpack.c.b16 %v3872, %v3864
        %v5001 = vpack.c.b16 %v3873, %v3865
        %v5002 = vpack.c.b16 %v3874, %v3866
        %v5003 = vpack.c.b16 %v3875, %v3867
        %v5004 = vpack.c.b16 %v3876, %v3868
        %v5005 = vpack.c.b16 %v3877, %v3869
        %v5006 = vpack.c.b16 %v3886, %v3878
        %v5007 = vpack.c.b16 %v3887, %v3879
        %v5008 = vpack.c.b16 %v3888, %v3880
        %v5009 = vpack.c.b16 %v3889, %v3881
        %v5010 = vpack.c.b16 %v3890, %v3882
        %v5011 = vpack.c.b16 %v3891, %v3883
        %v5012 = vpack.c.b16 %v3892, %v3884
        %v5013 = vpack.c.b16 %v3893, %v3885
        %v5014 = vpack.c.b16 %v3902, %v3894
        %v5015 = vpack.c.b16 %v3903, %v3895
        %v5016 = vpack.c.b16 %v3904, %v3896
        %v5017 = vpack.c.b16 %v3905, %v3897
        %v5018 = vpack.c.b16 %v3906, %v3898
        %v5019 = vpack.c.b16 %v3907, %v3899
        %v5020 = vpack.c.b16 %v3908, %v3900
        %v5021 = vpack.c.b16 %v3909, %v3901
        %v5022 = vpack.c.b16 %v3918, %v3910
        %v5023 = vpack.c.b16 %v3919, %v3911
        %v5024 = vpack.c.b16 %v3920, %v3912
        %v5025 = vpack.c.b16 %v3921, %v3913
        %v5026 = vpack.c.b16 %v3922, %v3914
        %v5027 = vpack.c.b16 %v3923, %v3915
        %v5028 = vpack.c.b16 %v3924, %v3916
        %v5029 = vpack.c.b16 %v3925, %v3917
        %v5030 = vpack.c.b16 %v3934, %v3926
        %v5031 = vpack.c.b16 %v3935, %v3927
        %v5032 = vpack.c.b16 %v3936, %v3928
        %v5033 = vpack.c.b16 %v3937, %v3929
        %v5034 = vpack.c.b16 %v3938, %v3930
        %v5035 = vpack.c.b16 %v3939, %v3931
        %v5036 = vpack.c.b16 %v3940, %v3932
        %v5037 = vpack.c.b16 %v3941, %v3933
        %v5038 = vpack.c.b16 %v3950, %v3942
        %v5039 = vpack.c.b16 %v3951, %v3943
        %v5040 = vpack.c.b16 %v3952, %v3944
        %v5041 = vpack.c.b16 %v3953, %v3945
        %v5042 = vpack.c.b16 %v3954, %v3946
        %v5043 = vpack.c.b16 %v3955, %v3947
        %v5044 = vpack.c.b16 %v3956, %v3948
        %v5045 = vpack.c.b16 %v3957, %v3949
        %v5046 = vpack.c.b16 %v3966, %v3958
        %v5047 = vpack.c.b16 %v3967, %v3959
        %v5048 = vpack.c.b16 %v3968, %v3960
        %v5049 = vpack.c.b16 %v3969, %v3961
        %v5050 = vpack.c.b16 %v3970, %v3962
        %v5051 = vpack.c.b16 %v3971, %v3963
        %v5052 = vpack.c.b16 %v3972, %v3964
        %v5053 = vpack.c.b16 %v3973, %v3965
        %v5054 = vpack.c.b16 %v3982, %v3974
        %v5055 = vpack.c.b16 %v3983, %v3975
        %v5056 = vpack.c.b16 %v3984, %v3976
        %v5057 = vpack.c.b16 %v3985, %v3977
        %v5058 = vpack.c.b16 %v3986, %v3978
        %v5059 = vpack.c.b16 %v3987, %v3979
        %v5060 = vpack.c.b16 %v3988, %v3980
        %v5061 = vpack.c.b16 %v3989, %v3981
        %v5062 = vpack.c.b16 %v3998, %v3990
        %v5063 = vpack.c.b16 %v3999, %v3991
        %v5064 = vpack.c.b16 %v4000, %v3992
        %v5065 = vpack.c.b16 %v4001, %v3993
        %v5066 = vpack.c.b16 %v4002, %v3994
        %v5067 = vpack.c.b16 %v4003, %v3995
        %v5068 = vpack.c.b16 %v4004, %v3996
        %v5069 = vpack.c.b16 %v4005, %v3997
        %v5070 = vpack.c.b16 %v4014, %v4006
        %v5071 = vpack.c.b16 %v4015, %v4007
        %v5072 = vpack.c.b16 %v4016, %v4008
        %v5073 = vpack.c.b16 %v4017, %v4009
        %v5074 = vpack.c.b16 %v4018, %v4010
        %v5075 = vpack.c.b16 %v4019, %v4011
        %v5076 = vpack.c.b16 %v4020, %v4012
        %v5077 = vpack.c.b16 %v4021, %v4013
        %v5078 = vpack.c.b16 %v4030, %v4022
        %v5079 = vpack.c.b16 %v4031, %v4023
        %v5080 = vpack.c.b16 %v4032, %v4024
        %v5081 = vpack.c.b16 %v4033, %v4025
        %v5082 = vpack.c.b16 %v4034, %v4026
        %v5083 = vpack.c.b16 %v4035, %v4027
        %v5084 = vpack.c.b16 %v4036, %v4028
        %v5085 = vpack.c.b16 %v4037, %v4029
        %v5086 = vpack.c.b16 %v4046, %v4038
        %v5087 = vpack.c.b16 %v4047, %v4039
        %v5088 = vpack.c.b16 %v4048, %v4040
        %v5089 = vpack.c.b16 %v4049, %v4041
        %v5090 = vpack.c.b16 %v4050, %v4042
        %v5091 = vpack.c.b16 %v4051, %v4043
        %v5092 = vpack.c.b16 %v4052, %v4044
        %v5093 = vpack.c.b16 %v4053, %v4045
        %v5094 = vpack.c.b16 %v4062, %v4054
        %v5095 = vpack.c.b16 %v4063, %v4055
        %v5096 = vpack.c.b16 %v4064, %v4056
        %v5097 = vpack.c.b16 %v4065, %v4057
        %v5098 = vpack.c.b16 %v4066, %v4058
        %v5099 = vpack.c.b16 %v4067, %v4059
        %v5100 = vpack.c.b16 %v4068, %v4060
        %v5101 = vpack.c.b16 %v4069, %v4061
        %v5102 = vpack.c.b16 %v4078, %v4070
        %v5103 = vpack.c.b16 %v4079, %v4071
        %v5104 = vpack.c.b16 %v4080, %v4072
        %v5105 = vpack.c.b16 %v4081, %v4073
        %v5106 = vpack.c.b16 %v4082, %v4074
        %v5107 = vpack.c.b16 %v4083, %v4075
        %v5108 = vpack.c.b16 %v4084, %v4076
        %v5109 = vpack.c.b16 %v4085, %v4077
        %v5110 = vpack.c.b16 %v4094, %v4086
        %v5111 = vpack.c.b16 %v4095, %v4087
        %v5112 = vpack.c.b16 %v4096, %v4088
        %v5113 = vpack.c.b16 %v4097, %v4089
        %v5114 = vpack.c.b16 %v4098, %v4090
        %v5115 = vpack.c.b16 %v4099, %v4091
        %v5116 = vpack.c.b16 %v4100, %v4092
        %v5117 = vpack.c.b16 %v4101, %v4093
        %v5118 = vpack.c.b16 %v4110, %v4102
        %v5119 = vpack.c.b16 %v4111, %v4103
        %v5120 = vpack.c.b16 %v4112, %v4104
        %v5121 = vpack.c.b16 %v4113, %v4105
        %v5122 = vpack.c.b16 %v4114, %v4106
        %v5123 = vpack.c.b16 %v4115, %v4107
        %v5124 = vpack.c.b16 %v4116, %v4108
        %v5125 = vpack.c.b16 %v4117, %v4109
        %v5126 = vpack.c.b16 %v4126, %v4118
        %v5127 = vpack.c.b16 %v4127, %v4119
        %v5128 = vpack.c.b16 %v4128, %v4120
        %v5129 = vpack.c.b16 %v4129, %v4121
        %v5130 = vpack.c.b16 %v4130, %v4122
        %v5131 = vpack.c.b16 %v4131, %v4123
        %v5132 = vpack.c.b16 %v4132, %v4124
        %v5133 = vpack.c.b16 %v4133, %v4125
        %v5134 = vpack.c.b16 %v4142, %v4134
        %v5135 = vpack.c.b16 %v4143, %v4135
        %v5136 = vpack.c.b16 %v4144, %v4136
        %v5137 = vpack.c.b16 %v4145, %v4137
        %v5138 = vpack.c.b16 %v4146, %v4138
        %v5139 = vpack.c.b16 %v4147, %v4139
        %v5140 = vpack.c.b16 %v4148, %v4140
        %v5141 = vpack.c.b16 %v4149, %v4141
        %v5142 = vpack.c.b16 %v4158, %v4150
        %v5143 = vpack.c.b16 %v4159, %v4151
        %v5144 = vpack.c.b16 %v4160, %v4152
        %v5145 = vpack.c.b16 %v4161, %v4153
        %v5146 = vpack.c.b16 %v4162, %v4154
        %v5147 = vpack.c.b16 %v4163, %v4155
        %v5148 = vpack.c.b16 %v4164, %v4156
        %v5149 = vpack.c.b16 %v4165, %v4157
        %v5150 = vpack.c.b16 %v4174, %v4166
        %v5151 = vpack.c.b16 %v4175, %v4167
        %v5152 = vpack.c.b16 %v4176, %v4168
        %v5153 = vpack.c.b16 %v4177, %v4169
        %v5154 = vpack.c.b16 %v4178, %v4170
        %v5155 = vpack.c.b16 %v4179, %v4171
        %v5156 = vpack.c.b16 %v4180, %v4172
        %v5157 = vpack.c.b16 %v4181, %v4173
        %v5158 = vpack.c.b16 %v4190, %v4182
        %v5159 = vpack.c.b16 %v4191, %v4183
        %v5160 = vpack.c.b16 %v4192, %v4184
        %v5161 = vpack.c.b16 %v4193, %v4185
        %v5162 = vpack.c.b16 %v4194, %v4186
        %v5163 = vpack.c.b16 %v4195, %v4187
        %v5164 = vpack.c.b16 %v4196, %v4188
        %v5165 = vpack.c.b16 %v4197, %v4189
        %v5166 = vpack.c.b16 %v4206, %v4198
        %v5167 = vpack.c.b16 %v4207, %v4199
        %v5168 = vpack.c.b16 %v4208, %v4200
        %v5169 = vpack.c.b16 %v4209, %v4201
        %v5170 = vpack.c.b16 %v4210, %v4202
        %v5171 = vpack.c.b16 %v4211, %v4203
        %v5172 = vpack.c.b16 %v4212, %v4204
        %v5173 = vpack.c.b16 %v4213, %v4205
        %v5174 = vpack.c.b16 %v4222, %v4214
        %v5175 = vpack.c.b16 %v4223, %v4215
        %v5176 = vpack.c.b16 %v4224, %v4216
        %v5177 = vpack.c.b16 %v4225, %v4217
        %v5178 = vpack.c.b16 %v4226, %v4218
        %v5179 = vpack.c.b16 %v4227, %v4219
        %v5180 = vpack.c.b16 %v4228, %v4220
        %v5181 = vpack.c.b16 %v4229, %v4221
        %v5182 = vpack.c.b16 %v4238, %v4230
        %v5183 = vpack.c.b16 %v4239, %v4231
        %v5184 = vpack.c.b16 %v4240, %v4232
        %v5185 = vpack.c.b16 %v4241, %v4233
        %v5186 = vpack.c.b16 %v4242, %v4234
        %v5187 = vpack.c.b16 %v4243, %v4235
        %v5188 = vpack.c.b16 %v4244, %v4236
        %v5189 = vpack.c.b16 %v4245, %v4237
        %v5190 = vpack.c.b16 %v4254, %v4246
        %v5191 = vpack.c.b16 %v4255, %v4247
        %v5192 = vpack.c.b16 %v4256, %v4248
        %v5193 = vpack.c.b16 %v4257, %v4249
        %v5194 = vpack.c.b16 %v4258, %v4250
        %v5195 = vpack.c.b16 %v4259, %v4251
        %v5196 = vpack.c.b16 %v4260, %v4252
        %v5197 = vpack.c.b16 %v4261, %v4253
        %v5198 = vpack.c.b16 %v4270, %v4262
        %v5199 = vpack.c.b16 %v4271, %v4263
        %v5200 = vpack.c.b16 %v4272, %v4264
        %v5201 = vpack.c.b16 %v4273, %v4265
        %v5202 = vpack.c.b16 %v4274, %v4266
        %v5203 = vpack.c.b16 %v4275, %v4267
        %v5204 = vpack.c.b16 %v4276, %v4268
        %v5205 = vpack.c.b16 %v4277, %v4269
        %v5206 = vpack.c.b16 %v4286, %v4278
        %v5207 = vpack.c.b16 %v4287, %v4279
        %v5208 = vpack.c.b16 %v4288, %v4280
        %v5209 = vpack.c.b16 %v4289, %v4281
        %v5210 = vpack.c.b16 %v4290, %v4282
        %v5211 = vpack.c.b16 %v4291, %v4283
        %v5212 = vpack.c.b16 %v4292, %v4284
        %v5213 = vpack.c.b16 %v4293, %v4285
        %v5214 = vpack.c.b16 %v4302, %v4294
        %v5215 = vpack.c.b16 %v4303, %v4295
        %v5216 = vpack.c.b16 %v4304, %v4296
        %v5217 = vpack.c.b16 %v4305, %v4297
        %v5218 = vpack.c.b16 %v4306, %v4298
        %v5219 = vpack.c.b16 %v4307, %v4299
        %v5220 = vpack.c.b16 %v4308, %v4300
        %v5221 = vpack.c.b16 %v4309, %v4301
        %v5222 = vpack.c.b16 %v4318, %v4310
        %v5223 = vpack.c.b16 %v4319, %v4311
        %v5224 = vpack.c.b16 %v4320, %v4312
        %v5225 = vpack.c.b16 %v4321, %v4313
        %v5226 = vpack.c.b16 %v4322, %v4314
        %v5227 = vpack.c.b16 %v4323, %v4315
        %v5228 = vpack.c.b16 %v4324, %v4316
        %v5229 = vpack.c.b16 %v4325, %v4317
        %v5230 = vpack.c.b16 %v4334, %v4326
        %v5231 = vpack.c.b16 %v4335, %v4327
        %v5232 = vpack.c.b16 %v4336, %v4328
        %v5233 = vpack.c.b16 %v4337, %v4329
        %v5234 = vpack.c.b16 %v4338, %v4330
        %v5235 = vpack.c.b16 %v4339, %v4331
        %v5236 = vpack.c.b16 %v4340, %v4332
        %v5237 = vpack.c.b16 %v4341, %v4333
        %6134 = vmatprep.subr.bf16.mxu0 %v4343
        %6135 = vmatpush1.bf16.msra.mxu0 %v4342
        %6136 = vmatprep.subr.bf16.mxu0 %v4351
        %6137 = vmatpush1.bf16.msra.mxu0 %v4350
        %6138 = vmatprep.subr.bf16.mxu0 %v4359
        %6139 = vmatpush1.bf16.msra.mxu0 %v4358
        %6140 = vmatprep.subr.bf16.mxu0 %v4367
        %6141 = vmatpush1.bf16.msra.mxu0 %v4366
        %6142 = vmatprep.subr.bf16.mxu0 %v4375
        %6143 = vmatpush1.bf16.msra.mxu0 %v4374
        %6144 = vmatprep.subr.bf16.mxu0 %v4383
        %6145 = vmatpush1.bf16.msra.mxu0 %v4382
        %6146 = vmatprep.subr.bf16.mxu0 %v4391
        %6147 = vmatpush1.bf16.msra.mxu0 %v4390
        %6148 = vmatprep.subr.bf16.mxu0 %v4399
        %6149 = vmatpush1.bf16.msra.mxu0 %v4398
        %6150 = vmatprep.subr.bf16.mxu0 %v4407
        %6151 = vmatpush1.bf16.msra.mxu0 %v4406
        %6152 = vmatprep.subr.bf16.mxu0 %v4415
        %6153 = vmatpush1.bf16.msra.mxu0 %v4414
        %6154 = vmatprep.subr.bf16.mxu0 %v4423
        %6155 = vmatpush1.bf16.msra.mxu0 %v4422
        %6156 = vmatprep.subr.bf16.mxu0 %v4431
        %6157 = vmatpush1.bf16.msra.mxu0 %v4430
        %6158 = vmatprep.subr.bf16.mxu0 %v4439
        %6159 = vmatpush1.bf16.msra.mxu0 %v4438
        %6160 = vmatprep.subr.bf16.mxu0 %v4447
        %6161 = vmatpush1.bf16.msra.mxu0 %v4446
        %6162 = vmatprep.subr.bf16.mxu0 %v4455
        %6163 = vmatpush1.bf16.msra.mxu0 %v4454
        %6164 = vmatprep.subr.bf16.mxu0 %v4463
        %6165 = vmatpush1.bf16.msra.mxu0 %v4462
        %6166 = vmatprep.mubr.bf16.mxu0 %v1581
        %6167 = vmatmul.mubr.bf16.gmra.mrb[0].mxu0 %v1567
        %v6168 = vpop.f32.mrb[0].mxu0
        %v6169 = vadd.f32 0.0, %v6168
        %v6170 = vpop.f32.mrb[0].mxu0
        %v6171 = vadd.f32 0.0, %v6170
        %v6172 = vpop.f32.mrb[0].mxu0
        %v6173 = vpop.f32.mrb[0].mxu0
        %6174 = vdwg.mxu0
        %6175 = vmatprep.subr.bf16.mxu0 %v4471
        %6176 = vmatpush1.bf16.msra.mxu0 %v4470
        %6177 = vmatprep.subr.bf16.mxu0 %v4479
        %6178 = vmatpush1.bf16.msra.mxu0 %v4478
        %6179 = vmatprep.subr.bf16.mxu0 %v4487
        %6180 = vmatpush1.bf16.msra.mxu0 %v4486
        %6181 = vmatprep.subr.bf16.mxu0 %v4495
        %6182 = vmatpush1.bf16.msra.mxu0 %v4494
        %6183 = vmatprep.subr.bf16.mxu0 %v4503
        %6184 = vmatpush1.bf16.msra.mxu0 %v4502
        %6185 = vmatprep.subr.bf16.mxu0 %v4511
        %6186 = vmatpush1.bf16.msra.mxu0 %v4510
        %6187 = vmatprep.subr.bf16.mxu0 %v4519
        %6188 = vmatpush1.bf16.msra.mxu0 %v4518
        %6189 = vmatprep.subr.bf16.mxu0 %v4527
        %6190 = vmatpush1.bf16.msra.mxu0 %v4526
        %6191 = vmatprep.subr.bf16.mxu0 %v4535
        %6192 = vmatpush1.bf16.msra.mxu0 %v4534
        %6193 = vmatprep.subr.bf16.mxu0 %v4543
        %6194 = vmatpush1.bf16.msra.mxu0 %v4542
        %6195 = vmatprep.subr.bf16.mxu0 %v4551
        %6196 = vmatpush1.bf16.msra.mxu0 %v4550
        %6197 = vmatprep.subr.bf16.mxu0 %v4559
        %6198 = vmatpush1.bf16.msra.mxu0 %v4558
        %6199 = vmatprep.subr.bf16.mxu0 %v4567
        %6200 = vmatpush1.bf16.msra.mxu0 %v4566
        %6201 = vmatprep.subr.bf16.mxu0 %v4575
        %6202 = vmatpush1.bf16.msra.mxu0 %v4574
        %6203 = vmatprep.subr.bf16.mxu0 %v4583
        %6204 = vmatpush1.bf16.msra.mxu0 %v4582
        %6205 = vmatprep.subr.bf16.mxu0 %v4591
        %6206 = vmatpush1.bf16.msra.mxu0 %v4590
        %6207 = vmatprep.mubr.bf16.mxu0 %v1591
        %6208 = vmatmul.mubr.bf16.gmra.mrb[0].mxu0 %v1589
        %v6209 = vpop.f32.mrb[0].mxu0
        %v6210 = vadd.f32 %v6169, %v6209
        %v6211 = vpop.f32.mrb[0].mxu0
        %v6212 = vadd.f32 %v6171, %v6211
        %v6213 = vpop.f32.mrb[0].mxu0
        %v6214 = vpop.f32.mrb[0].mxu0
        %6215 = vdwg.mxu0
        %6216 = vmatprep.subr.bf16.mxu0 %v4599
        %6217 = vmatpush1.bf16.msra.mxu0 %v4598
        %6218 = vmatprep.subr.bf16.mxu0 %v4607
        %6219 = vmatpush1.bf16.msra.mxu0 %v4606
        %6220 = vmatprep.subr.bf16.mxu0 %v4615
        %6221 = vmatpush1.bf16.msra.mxu0 %v4614
        %6222 = vmatprep.subr.bf16.mxu0 %v4623
        %6223 = vmatpush1.bf16.msra.mxu0 %v4622
        %6224 = vmatprep.subr.bf16.mxu0 %v4631
        %6225 = vmatpush1.bf16.msra.mxu0 %v4630
        %6226 = vmatprep.subr.bf16.mxu0 %v4639
        %6227 = vmatpush1.bf16.msra.mxu0 %v4638
        %6228 = vmatprep.subr.bf16.mxu0 %v4647
        %6229 = vmatpush1.bf16.msra.mxu0 %v4646
        %6230 = vmatprep.subr.bf16.mxu0 %v4655
        %6231 = vmatpush1.bf16.msra.mxu0 %v4654
        %6232 = vmatprep.subr.bf16.mxu0 %v4663
        %6233 = vmatpush1.bf16.msra.mxu0 %v4662
        %6234 = vmatprep.subr.bf16.mxu0 %v4671
        %6235 = vmatpush1.bf16.msra.mxu0 %v4670
        %6236 = vmatprep.subr.bf16.mxu0 %v4679
        %6237 = vmatpush1.bf16.msra.mxu0 %v4678
        %6238 = vmatprep.subr.bf16.mxu0 %v4687
        %6239 = vmatpush1.bf16.msra.mxu0 %v4686
        %6240 = vmatprep.subr.bf16.mxu0 %v4695
        %6241 = vmatpush1.bf16.msra.mxu0 %v4694
        %6242 = vmatprep.subr.bf16.mxu0 %v4703
        %6243 = vmatpush1.bf16.msra.mxu0 %v4702
        %6244 = vmatprep.subr.bf16.mxu0 %v4711
        %6245 = vmatpush1.bf16.msra.mxu0 %v4710
        %6246 = vmatprep.subr.bf16.mxu0 %v4719
        %6247 = vmatpush1.bf16.msra.mxu0 %v4718
        %6248 = vmatprep.mubr.bf16.mxu0 %v1588
        %6249 = vmatmul.mubr.bf16.gmra.mrb[0].mxu0 %v1574
        %v6250 = vpop.f32.mrb[0].mxu0
        %v6251 = vadd.f32 %v6210, %v6250
        %v6252 = vpop.f32.mrb[0].mxu0
        %v6253 = vadd.f32 %v6212, %v6252
        %v6254 = vpop.f32.mrb[0].mxu0
        %v6255 = vpop.f32.mrb[0].mxu0
        %6256 = vdwg.mxu0
        %6257 = vmatprep.subr.bf16.mxu0 %v4727
        %6258 = vmatpush1.bf16.msra.mxu0 %v4726
        %6259 = vmatprep.subr.bf16.mxu0 %v4735
        %6260 = vmatpush1.bf16.msra.mxu0 %v4734
        %6261 = vmatprep.subr.bf16.mxu0 %v4743
        %6262 = vmatpush1.bf16.msra.mxu0 %v4742
        %6263 = vmatprep.subr.bf16.mxu0 %v4751
        %6264 = vmatpush1.bf16.msra.mxu0 %v4750
        %6265 = vmatprep.subr.bf16.mxu0 %v4759
        %6266 = vmatpush1.bf16.msra.mxu0 %v4758
        %6267 = vmatprep.subr.bf16.mxu0 %v4767
        %6268 = vmatpush1.bf16.msra.mxu0 %v4766
        %6269 = vmatprep.subr.bf16.mxu0 %v4775
        %6270 = vmatpush1.bf16.msra.mxu0 %v4774
        %6271 = vmatprep.subr.bf16.mxu0 %v4783
        %6272 = vmatpush1.bf16.msra.mxu0 %v4782
        %6273 = vmatprep.subr.bf16.mxu0 %v4791
        %6274 = vmatpush1.bf16.msra.mxu0 %v4790
        %6275 = vmatprep.subr.bf16.mxu0 %v4799
        %6276 = vmatpush1.bf16.msra.mxu0 %v4798
        %6277 = vmatprep.subr.bf16.mxu0 %v4807
        %6278 = vmatpush1.bf16.msra.mxu0 %v4806
        %6279 = vmatprep.subr.bf16.mxu0 %v4815
        %6280 = vmatpush1.bf16.msra.mxu0 %v4814
        %6281 = vmatprep.subr.bf16.mxu0 %v4823
        %6282 = vmatpush1.bf16.msra.mxu0 %v4822
        %6283 = vmatprep.subr.bf16.mxu0 %v4831
        %6284 = vmatpush1.bf16.msra.mxu0 %v4830
        %6285 = vmatprep.subr.bf16.mxu0 %v4839
        %6286 = vmatpush1.bf16.msra.mxu0 %v4838
        %6287 = vmatprep.subr.bf16.mxu0 %v4847
        %6288 = vmatpush1.bf16.msra.mxu0 %v4846
        %6289 = vmatprep.mubr.bf16.mxu0 %v1592
        %6290 = vmatmul.mubr.bf16.gmra.mrb[0].mxu0 %v1590
        %v6291 = vpop.f32.mrb[0].mxu0
        %v6292 = vadd.f32 %v6251, %v6291
        %v6293 = vpop.f32.mrb[0].mxu0
        %v6294 = vadd.f32 %v6253, %v6293
        %v6295 = vpop.f32.mrb[0].mxu0
        %v6296 = vpop.f32.mrb[0].mxu0
        %6297 = vdwg.mxu0
        %6298 = vmatprep.subr.bf16.mxu0 %v4855
        %6299 = vmatpush1.bf16.msra.mxu0 %v4854
        %6300 = vmatprep.subr.bf16.mxu0 %v4863
        %6301 = vmatpush1.bf16.msra.mxu0 %v4862
        %6302 = vmatprep.subr.bf16.mxu0 %v4871
        %6303 = vmatpush1.bf16.msra.mxu0 %v4870
        %6304 = vmatprep.subr.bf16.mxu0 %v4879
        %6305 = vmatpush1.bf16.msra.mxu0 %v4878
        %6306 = vmatprep.subr.bf16.mxu0 %v4887
        %6307 = vmatpush1.bf16.msra.mxu0 %v4886
        %6308 = vmatprep.subr.bf16.mxu0 %v4895
        %6309 = vmatpush1.bf16.msra.mxu0 %v4894
        %6310 = vmatprep.subr.bf16.mxu0 %v4903
        %6311 = vmatpush1.bf16.msra.mxu0 %v4902
        %6312 = vmatprep.subr.bf16.mxu0 %v4911
        %6313 = vmatpush1.bf16.msra.mxu0 %v4910
        %6314 = vmatprep.subr.bf16.mxu0 %v4919
        %6315 = vmatpush1.bf16.msra.mxu0 %v4918
        %6316 = vmatprep.subr.bf16.mxu0 %v4927
        %6317 = vmatpush1.bf16.msra.mxu0 %v4926
        %6318 = vmatprep.subr.bf16.mxu0 %v4935
        %6319 = vmatpush1.bf16.msra.mxu0 %v4934
        %6320 = vmatprep.subr.bf16.mxu0 %v4943
        %6321 = vmatpush1.bf16.msra.mxu0 %v4942
        %6322 = vmatprep.subr.bf16.mxu0 %v4951
        %6323 = vmatpush1.bf16.msra.mxu0 %v4950
        %6324 = vmatprep.subr.bf16.mxu0 %v4959
        %6325 = vmatpush1.bf16.msra.mxu0 %v4958
        %6326 = vmatprep.subr.bf16.mxu0 %v4967
        %6327 = vmatpush1.bf16.msra.mxu0 %v4966
        %6328 = vmatprep.subr.bf16.mxu0 %v4975
        %6329 = vmatpush1.bf16.msra.mxu0 %v4974
        %6330 = vmatprep.mubr.bf16.mxu0 %v1630
        %6331 = vmatmul.mubr.bf16.gmra.mrb[0].mxu0 %v1616
        %v6332 = vpop.f32.mrb[0].mxu0
        %v6333 = vadd.f32 %v6292, %v6332
        %v6334 = vpop.f32.mrb[0].mxu0
        %v6335 = vadd.f32 %v6294, %v6334
        %v6336 = vpop.f32.mrb[0].mxu0
        %v6337 = vpop.f32.mrb[0].mxu0
        %6338 = vdwg.mxu0
        %6339 = vmatprep.subr.bf16.mxu0 %v4983
        %6340 = vmatpush1.bf16.msra.mxu0 %v4982
        %6341 = vmatprep.subr.bf16.mxu0 %v4991
        %6342 = vmatpush1.bf16.msra.mxu0 %v4990
        %6343 = vmatprep.subr.bf16.mxu0 %v4999
        %6344 = vmatpush1.bf16.msra.mxu0 %v4998
        %6345 = vmatprep.subr.bf16.mxu0 %v5007
        %6346 = vmatpush1.bf16.msra.mxu0 %v5006
        %6347 = vmatprep.subr.bf16.mxu0 %v5015
        %6348 = vmatpush1.bf16.msra.mxu0 %v5014
        %6349 = vmatprep.subr.bf16.mxu0 %v5023
        %6350 = vmatpush1.bf16.msra.mxu0 %v5022
        %6351 = vmatprep.subr.bf16.mxu0 %v5031
        %6352 = vmatpush1.bf16.msra.mxu0 %v5030
        %6353 = vmatprep.subr.bf16.mxu0 %v5039
        %6354 = vmatpush1.bf16.msra.mxu0 %v5038
        %6355 = vmatprep.subr.bf16.mxu0 %v5047
        %6356 = vmatpush1.bf16.msra.mxu0 %v5046
        %6357 = vmatprep.subr.bf16.mxu0 %v5055
        %6358 = vmatpush1.bf16.msra.mxu0 %v5054
        %6359 = vmatprep.subr.bf16.mxu0 %v5063
        %6360 = vmatpush1.bf16.msra.mxu0 %v5062
        %6361 = vmatprep.subr.bf16.mxu0 %v5071
        %6362 = vmatpush1.bf16.msra.mxu0 %v5070
        %6363 = vmatprep.subr.bf16.mxu0 %v5079
        %6364 = vmatpush1.bf16.msra.mxu0 %v5078
        %6365 = vmatprep.subr.bf16.mxu0 %v5087
        %6366 = vmatpush1.bf16.msra.mxu0 %v5086
        %6367 = vmatprep.subr.bf16.mxu0 %v5095
        %6368 = vmatpush1.bf16.msra.mxu0 %v5094
        %6369 = vmatprep.subr.bf16.mxu0 %v5103
        %6370 = vmatpush1.bf16.msra.mxu0 %v5102
        %6371 = vmatprep.mubr.bf16.mxu0 %v1639
        %6372 = vmatmul.mubr.bf16.gmra.mrb[0].mxu0 %v1638
        %v6373 = vpop.f32.mrb[0].mxu0
        %v6374 = vadd.f32 %v6333, %v6373
        %v6375 = vpop.f32.mrb[0].mxu0
        %v6376 = vadd.f32 %v6335, %v6375
        %v6377 = vpop.f32.mrb[0].mxu0
        %v6378 = vpop.f32.mrb[0].mxu0
        %6379 = vdwg.mxu0
        %6380 = vmatprep.subr.bf16.mxu0 %v5111
        %6381 = vmatpush1.bf16.msra.mxu0 %v5110
        %6382 = vmatprep.subr.bf16.mxu0 %v5119
        %6383 = vmatpush1.bf16.msra.mxu0 %v5118
        %6384 = vmatprep.subr.bf16.mxu0 %v5127
        %6385 = vmatpush1.bf16.msra.mxu0 %v5126
        %6386 = vmatprep.subr.bf16.mxu0 %v5135
        %6387 = vmatpush1.bf16.msra.mxu0 %v5134
        %6388 = vmatprep.subr.bf16.mxu0 %v5143
        %6389 = vmatpush1.bf16.msra.mxu0 %v5142
        %6390 = vmatprep.subr.bf16.mxu0 %v5151
        %6391 = vmatpush1.bf16.msra.mxu0 %v5150
        %6392 = vmatprep.subr.bf16.mxu0 %v5159
        %6393 = vmatpush1.bf16.msra.mxu0 %v5158
        %6394 = vmatprep.subr.bf16.mxu0 %v5167
        %6395 = vmatpush1.bf16.msra.mxu0 %v5166
        %6396 = vmatprep.subr.bf16.mxu0 %v5175
        %6397 = vmatpush1.bf16.msra.mxu0 %v5174
        %6398 = vmatprep.subr.bf16.mxu0 %v5183
        %6399 = vmatpush1.bf16.msra.mxu0 %v5182
        %6400 = vmatprep.subr.bf16.mxu0 %v5191
        %6401 = vmatpush1.bf16.msra.mxu0 %v5190
        %6402 = vmatprep.subr.bf16.mxu0 %v5199
        %6403 = vmatpush1.bf16.msra.mxu0 %v5198
        %6404 = vmatprep.subr.bf16.mxu0 %v5207
        %6405 = vmatpush1.bf16.msra.mxu0 %v5206
        %6406 = vmatprep.subr.bf16.mxu0 %v5215
        %6407 = vmatpush1.bf16.msra.mxu0 %v5214
        %6408 = vmatprep.subr.bf16.mxu0 %v5223
        %6409 = vmatpush1.bf16.msra.mxu0 %v5222
        %6410 = vmatprep.subr.bf16.mxu0 %v5231
        %6411 = vmatpush1.bf16.msra.mxu0 %v5230
        %6412 = vmatprep.mubr.bf16.mxu0 %v1637
        %6413 = vmatmul.mubr.bf16.gmra.mrb[0].mxu0 %v1623
        %v6414 = vpop.f32.mrb[0].mxu0
        %v6415 = vadd.f32 %v6374, %v6414
        %v6416 = vpop.f32.mrb[0].mxu0
        %v6417 = vadd.f32 %v6376, %v6416
        %v6418 = vpop.f32.mrb[0].mxu0
        %v6419 = vpop.f32.mrb[0].mxu0
        %6420 = vdwg.mxu0
        %6421 = vmatprep.subr.bf16.mxu0 %v4345
        %6422 = vmatpush1.bf16.msra.mxu0 %v4344
        %6423 = vmatprep.subr.bf16.mxu0 %v4353
        %6424 = vmatpush1.bf16.msra.mxu0 %v4352
        %6425 = vmatprep.subr.bf16.mxu0 %v4361
        %6426 = vmatpush1.bf16.msra.mxu0 %v4360
        %6427 = vmatprep.subr.bf16.mxu0 %v4369
        %6428 = vmatpush1.bf16.msra.mxu0 %v4368
        %6429 = vmatprep.subr.bf16.mxu0 %v4377
        %6430 = vmatpush1.bf16.msra.mxu0 %v4376
        %6431 = vmatprep.subr.bf16.mxu0 %v4385
        %6432 = vmatpush1.bf16.msra.mxu0 %v4384
        %6433 = vmatprep.subr.bf16.mxu0 %v4393
        %6434 = vmatpush1.bf16.msra.mxu0 %v4392
        %6435 = vmatprep.subr.bf16.mxu0 %v4401
        %6436 = vmatpush1.bf16.msra.mxu0 %v4400
        %6437 = vmatprep.subr.bf16.mxu0 %v4409
        %6438 = vmatpush1.bf16.msra.mxu0 %v4408
        %6439 = vmatprep.subr.bf16.mxu0 %v4417
        %6440 = vmatpush1.bf16.msra.mxu0 %v4416
        %6441 = vmatprep.subr.bf16.mxu0 %v4425
        %6442 = vmatpush1.bf16.msra.mxu0 %v4424
        %6443 = vmatprep.subr.bf16.mxu0 %v4433
        %6444 = vmatpush1.bf16.msra.mxu0 %v4432
        %6445 = vmatprep.subr.bf16.mxu0 %v4441
        %6446 = vmatpush1.bf16.msra.mxu0 %v4440
        %6447 = vmatprep.subr.bf16.mxu0 %v4449
        %6448 = vmatpush1.bf16.msra.mxu0 %v4448
        %6449 = vmatprep.subr.bf16.mxu0 %v4457
        %6450 = vmatpush1.bf16.msra.mxu0 %v4456
        %6451 = vmatprep.subr.bf16.mxu0 %v4465
        %6452 = vmatpush1.bf16.msra.mxu0 %v4464
        %6453 = vmatprep.mubr.bf16.mxu0 %v1581
        %6454 = vmatmul.mubr.bf16.gmra.mrb[0].mxu0 %v1567
        %v6455 = vpop.f32.mrb[0].mxu0
        %v6456 = vadd.f32 0.0, %v6455
        %v6457 = vpop.f32.mrb[0].mxu0
        %v6458 = vadd.f32 0.0, %v6457
        %v6459 = vpop.f32.mrb[0].mxu0
        %v6460 = vpop.f32.mrb[0].mxu0
        %6461 = vdwg.mxu0
        %6462 = vmatprep.subr.bf16.mxu0 %v4473
        %6463 = vmatpush1.bf16.msra.mxu0 %v4472
        %6464 = vmatprep.subr.bf16.mxu0 %v4481
        %6465 = vmatpush1.bf16.msra.mxu0 %v4480
        %6466 = vmatprep.subr.bf16.mxu0 %v4489
        %6467 = vmatpush1.bf16.msra.mxu0 %v4488
        %6468 = vmatprep.subr.bf16.mxu0 %v4497
        %6469 = vmatpush1.bf16.msra.mxu0 %v4496
        %6470 = vmatprep.subr.bf16.mxu0 %v4505
        %6471 = vmatpush1.bf16.msra.mxu0 %v4504
        %6472 = vmatprep.subr.bf16.mxu0 %v4513
        %6473 = vmatpush1.bf16.msra.mxu0 %v4512
        %6474 = vmatprep.subr.bf16.mxu0 %v4521
        %6475 = vmatpush1.bf16.msra.mxu0 %v4520
        %6476 = vmatprep.subr.bf16.mxu0 %v4529
        %6477 = vmatpush1.bf16.msra.mxu0 %v4528
        %6478 = vmatprep.subr.bf16.mxu0 %v4537
        %6479 = vmatpush1.bf16.msra.mxu0 %v4536
        %6480 = vmatprep.subr.bf16.mxu0 %v4545
        %6481 = vmatpush1.bf16.msra.mxu0 %v4544
        %6482 = vmatprep.subr.bf16.mxu0 %v4553
        %6483 = vmatpush1.bf16.msra.mxu0 %v4552
        %6484 = vmatprep.subr.bf16.mxu0 %v4561
        %6485 = vmatpush1.bf16.msra.mxu0 %v4560
        %6486 = vmatprep.subr.bf16.mxu0 %v4569
        %6487 = vmatpush1.bf16.msra.mxu0 %v4568
        %6488 = vmatprep.subr.bf16.mxu0 %v4577
        %6489 = vmatpush1.bf16.msra.mxu0 %v4576
        %6490 = vmatprep.subr.bf16.mxu0 %v4585
        %6491 = vmatpush1.bf16.msra.mxu0 %v4584
        %6492 = vmatprep.subr.bf16.mxu0 %v4593
        %6493 = vmatpush1.bf16.msra.mxu0 %v4592
        %6494 = vmatprep.mubr.bf16.mxu0 %v1591
        %6495 = vmatmul.mubr.bf16.gmra.mrb[0].mxu0 %v1589
        %v6496 = vpop.f32.mrb[0].mxu0
        %v6497 = vadd.f32 %v6456, %v6496
        %v6498 = vpop.f32.mrb[0].mxu0
        %v6499 = vadd.f32 %v6458, %v6498
        %v6500 = vpop.f32.mrb[0].mxu0
        %v6501 = vpop.f32.mrb[0].mxu0
        %6502 = vdwg.mxu0
        %6503 = vmatprep.subr.bf16.mxu0 %v4601
        %6504 = vmatpush1.bf16.msra.mxu0 %v4600
        %6505 = vmatprep.subr.bf16.mxu0 %v4609
        %6506 = vmatpush1.bf16.msra.mxu0 %v4608
        %6507 = vmatprep.subr.bf16.mxu0 %v4617
        %6508 = vmatpush1.bf16.msra.mxu0 %v4616
        %6509 = vmatprep.subr.bf16.mxu0 %v4625
        %6510 = vmatpush1.bf16.msra.mxu0 %v4624
        %6511 = vmatprep.subr.bf16.mxu0 %v4633
        %6512 = vmatpush1.bf16.msra.mxu0 %v4632
        %6513 = vmatprep.subr.bf16.mxu0 %v4641
        %6514 = vmatpush1.bf16.msra.mxu0 %v4640
        %6515 = vmatprep.subr.bf16.mxu0 %v4649
        %6516 = vmatpush1.bf16.msra.mxu0 %v4648
        %6517 = vmatprep.subr.bf16.mxu0 %v4657
        %6518 = vmatpush1.bf16.msra.mxu0 %v4656
        %6519 = vmatprep.subr.bf16.mxu0 %v4665
        %6520 = vmatpush1.bf16.msra.mxu0 %v4664
        %6521 = vmatprep.subr.bf16.mxu0 %v4673
        %6522 = vmatpush1.bf16.msra.mxu0 %v4672
        %6523 = vmatprep.subr.bf16.mxu0 %v4681
        %6524 = vmatpush1.bf16.msra.mxu0 %v4680
        %6525 = vmatprep.subr.bf16.mxu0 %v4689
        %6526 = vmatpush1.bf16.msra.mxu0 %v4688
        %6527 = vmatprep.subr.bf16.mxu0 %v4697
        %6528 = vmatpush1.bf16.msra.mxu0 %v4696
        %6529 = vmatprep.subr.bf16.mxu0 %v4705
        %6530 = vmatpush1.bf16.msra.mxu0 %v4704
        %6531 = vmatprep.subr.bf16.mxu0 %v4713
        %6532 = vmatpush1.bf16.msra.mxu0 %v4712
        %6533 = vmatprep.subr.bf16.mxu0 %v4721
        %6534 = vmatpush1.bf16.msra.mxu0 %v4720
        %6535 = vmatprep.mubr.bf16.mxu0 %v1588
        %6536 = vmatmul.mubr.bf16.gmra.mrb[0].mxu0 %v1574
        %v6537 = vpop.f32.mrb[0].mxu0
        %v6538 = vadd.f32 %v6497, %v6537
        %v6539 = vpop.f32.mrb[0].mxu0
        %v6540 = vadd.f32 %v6499, %v6539
        %v6541 = vpop.f32.mrb[0].mxu0
        %v6542 = vpop.f32.mrb[0].mxu0
        %6543 = vdwg.mxu0
        %6544 = vmatprep.subr.bf16.mxu0 %v4729
        %6545 = vmatpush1.bf16.msra.mxu0 %v4728
        %6546 = vmatprep.subr.bf16.mxu0 %v4737
        %6547 = vmatpush1.bf16.msra.mxu0 %v4736
        %6548 = vmatprep.subr.bf16.mxu0 %v4745
        %6549 = vmatpush1.bf16.msra.mxu0 %v4744
        %6550 = vmatprep.subr.bf16.mxu0 %v4753
        %6551 = vmatpush1.bf16.msra.mxu0 %v4752
        %6552 = vmatprep.subr.bf16.mxu0 %v4761
        %6553 = vmatpush1.bf16.msra.mxu0 %v4760
        %6554 = vmatprep.subr.bf16.mxu0 %v4769
        %6555 = vmatpush1.bf16.msra.mxu0 %v4768
        %6556 = vmatprep.subr.bf16.mxu0 %v4777
        %6557 = vmatpush1.bf16.msra.mxu0 %v4776
        %6558 = vmatprep.subr.bf16.mxu0 %v4785
        %6559 = vmatpush1.bf16.msra.mxu0 %v4784
        %6560 = vmatprep.subr.bf16.mxu0 %v4793
        %6561 = vmatpush1.bf16.msra.mxu0 %v4792
        %6562 = vmatprep.subr.bf16.mxu0 %v4801
        %6563 = vmatpush1.bf16.msra.mxu0 %v4800
        %6564 = vmatprep.subr.bf16.mxu0 %v4809
        %6565 = vmatpush1.bf16.msra.mxu0 %v4808
        %6566 = vmatprep.subr.bf16.mxu0 %v4817
        %6567 = vmatpush1.bf16.msra.mxu0 %v4816
        %6568 = vmatprep.subr.bf16.mxu0 %v4825
        %6569 = vmatpush1.bf16.msra.mxu0 %v4824
        %6570 = vmatprep.subr.bf16.mxu0 %v4833
        %6571 = vmatpush1.bf16.msra.mxu0 %v4832
        %6572 = vmatprep.subr.bf16.mxu0 %v4841
        %6573 = vmatpush1.bf16.msra.mxu0 %v4840
        %6574 = vmatprep.subr.bf16.mxu0 %v4849
        %6575 = vmatpush1.bf16.msra.mxu0 %v4848
        %6576 = vmatprep.mubr.bf16.mxu0 %v1592
        %6577 = vmatmul.mubr.bf16.gmra.mrb[0].mxu0 %v1590
        %v6578 = vpop.f32.mrb[0].mxu0
        %v6579 = vadd.f32 %v6538, %v6578
        %v6580 = vpop.f32.mrb[0].mxu0
        %v6581 = vadd.f32 %v6540, %v6580
        %v6582 = vpop.f32.mrb[0].mxu0
        %v6583 = vpop.f32.mrb[0].mxu0
        %6584 = vdwg.mxu0
        %6585 = vmatprep.subr.bf16.mxu0 %v4857
        %6586 = vmatpush1.bf16.msra.mxu0 %v4856
        %6587 = vmatprep.subr.bf16.mxu0 %v4865
        %6588 = vmatpush1.bf16.msra.mxu0 %v4864
        %6589 = vmatprep.subr.bf16.mxu0 %v4873
        %6590 = vmatpush1.bf16.msra.mxu0 %v4872
        %6591 = vmatprep.subr.bf16.mxu0 %v4881
        %6592 = vmatpush1.bf16.msra.mxu0 %v4880
        %6593 = vmatprep.subr.bf16.mxu0 %v4889
        %6594 = vmatpush1.bf16.msra.mxu0 %v4888
        %6595 = vmatprep.subr.bf16.mxu0 %v4897
        %6596 = vmatpush1.bf16.msra.mxu0 %v4896
        %6597 = vmatprep.subr.bf16.mxu0 %v4905
        %6598 = vmatpush1.bf16.msra.mxu0 %v4904
        %6599 = vmatprep.subr.bf16.mxu0 %v4913
        %6600 = vmatpush1.bf16.msra.mxu0 %v4912
        %6601 = vmatprep.subr.bf16.mxu0 %v4921
        %6602 = vmatpush1.bf16.msra.mxu0 %v4920
        %6603 = vmatprep.subr.bf16.mxu0 %v4929
        %6604 = vmatpush1.bf16.msra.mxu0 %v4928
        %6605 = vmatprep.subr.bf16.mxu0 %v4937
        %6606 = vmatpush1.bf16.msra.mxu0 %v4936
        %6607 = vmatprep.subr.bf16.mxu0 %v4945
        %6608 = vmatpush1.bf16.msra.mxu0 %v4944
        %6609 = vmatprep.subr.bf16.mxu0 %v4953
        %6610 = vmatpush1.bf16.msra.mxu0 %v4952
        %6611 = vmatprep.subr.bf16.mxu0 %v4961
        %6612 = vmatpush1.bf16.msra.mxu0 %v4960
        %6613 = vmatprep.subr.bf16.mxu0 %v4969
        %6614 = vmatpush1.bf16.msra.mxu0 %v4968
        %6615 = vmatprep.subr.bf16.mxu0 %v4977
        %6616 = vmatpush1.bf16.msra.mxu0 %v4976
        %6617 = vmatprep.mubr.bf16.mxu0 %v1630
        %6618 = vmatmul.mubr.bf16.gmra.mrb[0].mxu0 %v1616
        %v6619 = vpop.f32.mrb[0].mxu0
        %v6620 = vadd.f32 %v6579, %v6619
        %v6621 = vpop.f32.mrb[0].mxu0
        %v6622 = vadd.f32 %v6581, %v6621
        %v6623 = vpop.f32.mrb[0].mxu0
        %v6624 = vpop.f32.mrb[0].mxu0
        %6625 = vdwg.mxu0
        %6626 = vmatprep.subr.bf16.mxu0 %v4985
        %6627 = vmatpush1.bf16.msra.mxu0 %v4984
        %6628 = vmatprep.subr.bf16.mxu0 %v4993
        %6629 = vmatpush1.bf16.msra.mxu0 %v4992
        %6630 = vmatprep.subr.bf16.mxu0 %v5001
        %6631 = vmatpush1.bf16.msra.mxu0 %v5000
        %6632 = vmatprep.subr.bf16.mxu0 %v5009
        %6633 = vmatpush1.bf16.msra.mxu0 %v5008
        %6634 = vmatprep.subr.bf16.mxu0 %v5017
        %6635 = vmatpush1.bf16.msra.mxu0 %v5016
        %6636 = vmatprep.subr.bf16.mxu0 %v5025
        %6637 = vmatpush1.bf16.msra.mxu0 %v5024
        %6638 = vmatprep.subr.bf16.mxu0 %v5033
        %6639 = vmatpush1.bf16.msra.mxu0 %v5032
        %6640 = vmatprep.subr.bf16.mxu0 %v5041
        %6641 = vmatpush1.bf16.msra.mxu0 %v5040
        %6642 = vmatprep.subr.bf16.mxu0 %v5049
        %6643 = vmatpush1.bf16.msra.mxu0 %v5048
        %6644 = vmatprep.subr.bf16.mxu0 %v5057
        %6645 = vmatpush1.bf16.msra.mxu0 %v5056
        %6646 = vmatprep.subr.bf16.mxu0 %v5065
        %6647 = vmatpush1.bf16.msra.mxu0 %v5064
        %6648 = vmatprep.subr.bf16.mxu0 %v5073
        %6649 = vmatpush1.bf16.msra.mxu0 %v5072
        %6650 = vmatprep.subr.bf16.mxu0 %v5081
        %6651 = vmatpush1.bf16.msra.mxu0 %v5080
        %6652 = vmatprep.subr.bf16.mxu0 %v5089
        %6653 = vmatpush1.bf16.msra.mxu0 %v5088
        %6654 = vmatprep.subr.bf16.mxu0 %v5097
        %6655 = vmatpush1.bf16.msra.mxu0 %v5096
        %6656 = vmatprep.subr.bf16.mxu0 %v5105
        %6657 = vmatpush1.bf16.msra.mxu0 %v5104
        %6658 = vmatprep.mubr.bf16.mxu0 %v1639
        %6659 = vmatmul.mubr.bf16.gmra.mrb[0].mxu0 %v1638
        %v6660 = vpop.f32.mrb[0].mxu0
        %v6661 = vadd.f32 %v6620, %v6660
        %v6662 = vpop.f32.mrb[0].mxu0
        %v6663 = vadd.f32 %v6622, %v6662
        %v6664 = vpop.f32.mrb[0].mxu0
        %v6665 = vpop.f32.mrb[0].mxu0
        %6666 = vdwg.mxu0
        %6667 = vmatprep.subr.bf16.mxu0 %v5113
        %6668 = vmatpush1.bf16.msra.mxu0 %v5112
        %6669 = vmatprep.subr.bf16.mxu0 %v5121
        %6670 = vmatpush1.bf16.msra.mxu0 %v5120
        %6671 = vmatprep.subr.bf16.mxu0 %v5129
        %6672 = vmatpush1.bf16.msra.mxu0 %v5128
        %6673 = vmatprep.subr.bf16.mxu0 %v5137
        %6674 = vmatpush1.bf16.msra.mxu0 %v5136
        %6675 = vmatprep.subr.bf16.mxu0 %v5145
        %6676 = vmatpush1.bf16.msra.mxu0 %v5144
        %6677 = vmatprep.subr.bf16.mxu0 %v5153
        %6678 = vmatpush1.bf16.msra.mxu0 %v5152
        %6679 = vmatprep.subr.bf16.mxu0 %v5161
        %6680 = vmatpush1.bf16.msra.mxu0 %v5160
        %6681 = vmatprep.subr.bf16.mxu0 %v5169
        %6682 = vmatpush1.bf16.msra.mxu0 %v5168
        %6683 = vmatprep.subr.bf16.mxu0 %v5177
        %6684 = vmatpush1.bf16.msra.mxu0 %v5176
        %6685 = vmatprep.subr.bf16.mxu0 %v5185
        %6686 = vmatpush1.bf16.msra.mxu0 %v5184
        %6687 = vmatprep.subr.bf16.mxu0 %v5193
        %6688 = vmatpush1.bf16.msra.mxu0 %v5192
        %6689 = vmatprep.subr.bf16.mxu0 %v5201
        %6690 = vmatpush1.bf16.msra.mxu0 %v5200
        %6691 = vmatprep.subr.bf16.mxu0 %v5209
        %6692 = vmatpush1.bf16.msra.mxu0 %v5208
        %6693 = vmatprep.subr.bf16.mxu0 %v5217
        %6694 = vmatpush1.bf16.msra.mxu0 %v5216
        %6695 = vmatprep.subr.bf16.mxu0 %v5225
        %6696 = vmatpush1.bf16.msra.mxu0 %v5224
        %6697 = vmatprep.subr.bf16.mxu0 %v5233
        %6698 = vmatpush1.bf16.msra.mxu0 %v5232
        %6699 = vmatprep.mubr.bf16.mxu0 %v1637
        %6700 = vmatmul.mubr.bf16.gmra.mrb[0].mxu0 %v1623
        %v6701 = vpop.f32.mrb[0].mxu0
        %v6702 = vadd.f32 %v6661, %v6701
        %v6703 = vpop.f32.mrb[0].mxu0
        %v6704 = vadd.f32 %v6663, %v6703
        %v6705 = vpop.f32.mrb[0].mxu0
        %v6706 = vpop.f32.mrb[0].mxu0
        %6707 = vdwg.mxu0
        %6708 = vmatprep.subr.bf16.mxu0 %v4347
        %6709 = vmatpush1.bf16.msra.mxu0 %v4346
        %6710 = vmatprep.subr.bf16.mxu0 %v4355
        %6711 = vmatpush1.bf16.msra.mxu0 %v4354
        %6712 = vmatprep.subr.bf16.mxu0 %v4363
        %6713 = vmatpush1.bf16.msra.mxu0 %v4362
        %6714 = vmatprep.subr.bf16.mxu0 %v4371
        %6715 = vmatpush1.bf16.msra.mxu0 %v4370
        %6716 = vmatprep.subr.bf16.mxu0 %v4379
        %6717 = vmatpush1.bf16.msra.mxu0 %v4378
        %6718 = vmatprep.subr.bf16.mxu0 %v4387
        %6719 = vmatpush1.bf16.msra.mxu0 %v4386
        %6720 = vmatprep.subr.bf16.mxu0 %v4395
        %6721 = vmatpush1.bf16.msra.mxu0 %v4394
        %6722 = vmatprep.subr.bf16.mxu0 %v4403
        %6723 = vmatpush1.bf16.msra.mxu0 %v4402
        %6724 = vmatprep.subr.bf16.mxu0 %v4411
        %6725 = vmatpush1.bf16.msra.mxu0 %v4410
        %6726 = vmatprep.subr.bf16.mxu0 %v4419
        %6727 = vmatpush1.bf16.msra.mxu0 %v4418
        %6728 = vmatprep.subr.bf16.mxu0 %v4427
        %6729 = vmatpush1.bf16.msra.mxu0 %v4426
        %6730 = vmatprep.subr.bf16.mxu0 %v4435
        %6731 = vmatpush1.bf16.msra.mxu0 %v4434
        %6732 = vmatprep.subr.bf16.mxu0 %v4443
        %6733 = vmatpush1.bf16.msra.mxu0 %v4442
        %6734 = vmatprep.subr.bf16.mxu0 %v4451
        %6735 = vmatpush1.bf16.msra.mxu0 %v4450
        %6736 = vmatprep.subr.bf16.mxu0 %v4459
        %6737 = vmatpush1.bf16.msra.mxu0 %v4458
        %6738 = vmatprep.subr.bf16.mxu0 %v4467
        %6739 = vmatpush1.bf16.msra.mxu0 %v4466
        %6740 = vmatprep.mubr.bf16.mxu0 %v1581
        %6741 = vmatmul.mubr.bf16.gmra.mrb[0].mxu0 %v1567
        %v6742 = vpop.f32.mrb[0].mxu0
        %v6743 = vadd.f32 0.0, %v6742
        %v6744 = vpop.f32.mrb[0].mxu0
        %v6745 = vadd.f32 0.0, %v6744
        %v6746 = vpop.f32.mrb[0].mxu0
        %v6747 = vpop.f32.mrb[0].mxu0
        %6748 = vdwg.mxu0
        %6749 = vmatprep.subr.bf16.mxu0 %v4475
        %6750 = vmatpush1.bf16.msra.mxu0 %v4474
        %6751 = vmatprep.subr.bf16.mxu0 %v4483
        %6752 = vmatpush1.bf16.msra.mxu0 %v4482
        %6753 = vmatprep.subr.bf16.mxu0 %v4491
        %6754 = vmatpush1.bf16.msra.mxu0 %v4490
        %6755 = vmatprep.subr.bf16.mxu0 %v4499
        %6756 = vmatpush1.bf16.msra.mxu0 %v4498
        %6757 = vmatprep.subr.bf16.mxu0 %v4507
        %6758 = vmatpush1.bf16.msra.mxu0 %v4506
        %6759 = vmatprep.subr.bf16.mxu0 %v4515
        %6760 = vmatpush1.bf16.msra.mxu0 %v4514
        %6761 = vmatprep.subr.bf16.mxu0 %v4523
        %6762 = vmatpush1.bf16.msra.mxu0 %v4522
        %6763 = vmatprep.subr.bf16.mxu0 %v4531
        %6764 = vmatpush1.bf16.msra.mxu0 %v4530
        %6765 = vmatprep.subr.bf16.mxu0 %v4539
        %6766 = vmatpush1.bf16.msra.mxu0 %v4538
        %6767 = vmatprep.subr.bf16.mxu0 %v4547
        %6768 = vmatpush1.bf16.msra.mxu0 %v4546
        %6769 = vmatprep.subr.bf16.mxu0 %v4555
        %6770 = vmatpush1.bf16.msra.mxu0 %v4554
        %6771 = vmatprep.subr.bf16.mxu0 %v4563
        %6772 = vmatpush1.bf16.msra.mxu0 %v4562
        %6773 = vmatprep.subr.bf16.mxu0 %v4571
        %6774 = vmatpush1.bf16.msra.mxu0 %v4570
        %6775 = vmatprep.subr.bf16.mxu0 %v4579
        %6776 = vmatpush1.bf16.msra.mxu0 %v4578
        %6777 = vmatprep.subr.bf16.mxu0 %v4587
        %6778 = vmatpush1.bf16.msra.mxu0 %v4586
        %6779 = vmatprep.subr.bf16.mxu0 %v4595
        %6780 = vmatpush1.bf16.msra.mxu0 %v4594
        %6781 = vmatprep.mubr.bf16.mxu0 %v1591
        %6782 = vmatmul.mubr.bf16.gmra.mrb[0].mxu0 %v1589
        %v6783 = vpop.f32.mrb[0].mxu0
        %v6784 = vadd.f32 %v6743, %v6783
        %v6785 = vpop.f32.mrb[0].mxu0
        %v6786 = vadd.f32 %v6745, %v6785
        %v6787 = vpop.f32.mrb[0].mxu0
        %v6788 = vpop.f32.mrb[0].mxu0
        %6789 = vdwg.mxu0
        %6790 = vmatprep.subr.bf16.mxu0 %v4603
        %6791 = vmatpush1.bf16.msra.mxu0 %v4602
        %6792 = vmatprep.subr.bf16.mxu0 %v4611
        %6793 = vmatpush1.bf16.msra.mxu0 %v4610
        %6794 = vmatprep.subr.bf16.mxu0 %v4619
        %6795 = vmatpush1.bf16.msra.mxu0 %v4618
        %6796 = vmatprep.subr.bf16.mxu0 %v4627
        %6797 = vmatpush1.bf16.msra.mxu0 %v4626
        %6798 = vmatprep.subr.bf16.mxu0 %v4635
        %6799 = vmatpush1.bf16.msra.mxu0 %v4634
        %6800 = vmatprep.subr.bf16.mxu0 %v4643
        %6801 = vmatpush1.bf16.msra.mxu0 %v4642
        %6802 = vmatprep.subr.bf16.mxu0 %v4651
        %6803 = vmatpush1.bf16.msra.mxu0 %v4650
        %6804 = vmatprep.subr.bf16.mxu0 %v4659
        %6805 = vmatpush1.bf16.msra.mxu0 %v4658
        %6806 = vmatprep.subr.bf16.mxu0 %v4667
        %6807 = vmatpush1.bf16.msra.mxu0 %v4666
        %6808 = vmatprep.subr.bf16.mxu0 %v4675
        %6809 = vmatpush1.bf16.msra.mxu0 %v4674
        %6810 = vmatprep.subr.bf16.mxu0 %v4683
        %6811 = vmatpush1.bf16.msra.mxu0 %v4682
        %6812 = vmatprep.subr.bf16.mxu0 %v4691
        %6813 = vmatpush1.bf16.msra.mxu0 %v4690
        %6814 = vmatprep.subr.bf16.mxu0 %v4699
        %6815 = vmatpush1.bf16.msra.mxu0 %v4698
        %6816 = vmatprep.subr.bf16.mxu0 %v4707
        %6817 = vmatpush1.bf16.msra.mxu0 %v4706
        %6818 = vmatprep.subr.bf16.mxu0 %v4715
        %6819 = vmatpush1.bf16.msra.mxu0 %v4714
        %6820 = vmatprep.subr.bf16.mxu0 %v4723
        %6821 = vmatpush1.bf16.msra.mxu0 %v4722
        %6822 = vmatprep.mubr.bf16.mxu0 %v1588
        %6823 = vmatmul.mubr.bf16.gmra.mrb[0].mxu0 %v1574
        %v6824 = vpop.f32.mrb[0].mxu0
        %v6825 = vadd.f32 %v6784, %v6824
        %v6826 = vpop.f32.mrb[0].mxu0
        %v6827 = vadd.f32 %v6786, %v6826
        %v6828 = vpop.f32.mrb[0].mxu0
        %v6829 = vpop.f32.mrb[0].mxu0
        %6830 = vdwg.mxu0
        %6831 = vmatprep.subr.bf16.mxu0 %v4731
        %6832 = vmatpush1.bf16.msra.mxu0 %v4730
        %6833 = vmatprep.subr.bf16.mxu0 %v4739
        %6834 = vmatpush1.bf16.msra.mxu0 %v4738
        %6835 = vmatprep.subr.bf16.mxu0 %v4747
        %6836 = vmatpush1.bf16.msra.mxu0 %v4746
        %6837 = vmatprep.subr.bf16.mxu0 %v4755
        %6838 = vmatpush1.bf16.msra.mxu0 %v4754
        %6839 = vmatprep.subr.bf16.mxu0 %v4763
        %6840 = vmatpush1.bf16.msra.mxu0 %v4762
        %6841 = vmatprep.subr.bf16.mxu0 %v4771
        %6842 = vmatpush1.bf16.msra.mxu0 %v4770
        %6843 = vmatprep.subr.bf16.mxu0 %v4779
        %6844 = vmatpush1.bf16.msra.mxu0 %v4778
        %6845 = vmatprep.subr.bf16.mxu0 %v4787
        %6846 = vmatpush1.bf16.msra.mxu0 %v4786
        %6847 = vmatprep.subr.bf16.mxu0 %v4795
        %6848 = vmatpush1.bf16.msra.mxu0 %v4794
        %6849 = vmatprep.subr.bf16.mxu0 %v4803
        %6850 = vmatpush1.bf16.msra.mxu0 %v4802
        %6851 = vmatprep.subr.bf16.mxu0 %v4811
        %6852 = vmatpush1.bf16.msra.mxu0 %v4810
        %6853 = vmatprep.subr.bf16.mxu0 %v4819
        %6854 = vmatpush1.bf16.msra.mxu0 %v4818
        %6855 = vmatprep.subr.bf16.mxu0 %v4827
        %6856 = vmatpush1.bf16.msra.mxu0 %v4826
        %6857 = vmatprep.subr.bf16.mxu0 %v4835
        %6858 = vmatpush1.bf16.msra.mxu0 %v4834
        %6859 = vmatprep.subr.bf16.mxu0 %v4843
        %6860 = vmatpush1.bf16.msra.mxu0 %v4842
        %6861 = vmatprep.subr.bf16.mxu0 %v4851
        %6862 = vmatpush1.bf16.msra.mxu0 %v4850
        %6863 = vmatprep.mubr.bf16.mxu0 %v1592
        %6864 = vmatmul.mubr.bf16.gmra.mrb[0].mxu0 %v1590
        %v6865 = vpop.f32.mrb[0].mxu0
        %v6866 = vadd.f32 %v6825, %v6865
        %v6867 = vpop.f32.mrb[0].mxu0
        %v6868 = vadd.f32 %v6827, %v6867
        %v6869 = vpop.f32.mrb[0].mxu0
        %v6870 = vpop.f32.mrb[0].mxu0
        %6871 = vdwg.mxu0
        %6872 = vmatprep.subr.bf16.mxu0 %v4859
        %6873 = vmatpush1.bf16.msra.mxu0 %v4858
        %6874 = vmatprep.subr.bf16.mxu0 %v4867
        %6875 = vmatpush1.bf16.msra.mxu0 %v4866
        %6876 = vmatprep.subr.bf16.mxu0 %v4875
        %6877 = vmatpush1.bf16.msra.mxu0 %v4874
        %6878 = vmatprep.subr.bf16.mxu0 %v4883
        %6879 = vmatpush1.bf16.msra.mxu0 %v4882
        %6880 = vmatprep.subr.bf16.mxu0 %v4891
        %6881 = vmatpush1.bf16.msra.mxu0 %v4890
        %6882 = vmatprep.subr.bf16.mxu0 %v4899
        %6883 = vmatpush1.bf16.msra.mxu0 %v4898
        %6884 = vmatprep.subr.bf16.mxu0 %v4907
        %6885 = vmatpush1.bf16.msra.mxu0 %v4906
        %6886 = vmatprep.subr.bf16.mxu0 %v4915
        %6887 = vmatpush1.bf16.msra.mxu0 %v4914
        %6888 = vmatprep.subr.bf16.mxu0 %v4923
        %6889 = vmatpush1.bf16.msra.mxu0 %v4922
        %6890 = vmatprep.subr.bf16.mxu0 %v4931
        %6891 = vmatpush1.bf16.msra.mxu0 %v4930
        %6892 = vmatprep.subr.bf16.mxu0 %v4939
        %6893 = vmatpush1.bf16.msra.mxu0 %v4938
        %6894 = vmatprep.subr.bf16.mxu0 %v4947
        %6895 = vmatpush1.bf16.msra.mxu0 %v4946
        %6896 = vmatprep.subr.bf16.mxu0 %v4955
        %6897 = vmatpush1.bf16.msra.mxu0 %v4954
        %6898 = vmatprep.subr.bf16.mxu0 %v4963
        %6899 = vmatpush1.bf16.msra.mxu0 %v4962
        %6900 = vmatprep.subr.bf16.mxu0 %v4971
        %6901 = vmatpush1.bf16.msra.mxu0 %v4970
        %6902 = vmatprep.subr.bf16.mxu0 %v4979
        %6903 = vmatpush1.bf16.msra.mxu0 %v4978
        %6904 = vmatprep.mubr.bf16.mxu0 %v1630
        %6905 = vmatmul.mubr.bf16.gmra.mrb[0].mxu0 %v1616
        %v6906 = vpop.f32.mrb[0].mxu0
        %v6907 = vadd.f32 %v6866, %v6906
        %v6908 = vpop.f32.mrb[0].mxu0
        %v6909 = vadd.f32 %v6868, %v6908
        %v6910 = vpop.f32.mrb[0].mxu0
        %v6911 = vpop.f32.mrb[0].mxu0
        %6912 = vdwg.mxu0
        %6913 = vmatprep.subr.bf16.mxu0 %v4987
        %6914 = vmatpush1.bf16.msra.mxu0 %v4986
        %6915 = vmatprep.subr.bf16.mxu0 %v4995
        %6916 = vmatpush1.bf16.msra.mxu0 %v4994
        %6917 = vmatprep.subr.bf16.mxu0 %v5003
        %6918 = vmatpush1.bf16.msra.mxu0 %v5002
        %6919 = vmatprep.subr.bf16.mxu0 %v5011
        %6920 = vmatpush1.bf16.msra.mxu0 %v5010
        %6921 = vmatprep.subr.bf16.mxu0 %v5019
        %6922 = vmatpush1.bf16.msra.mxu0 %v5018
        %6923 = vmatprep.subr.bf16.mxu0 %v5027
        %6924 = vmatpush1.bf16.msra.mxu0 %v5026
        %6925 = vmatprep.subr.bf16.mxu0 %v5035
        %6926 = vmatpush1.bf16.msra.mxu0 %v5034
        %6927 = vmatprep.subr.bf16.mxu0 %v5043
        %6928 = vmatpush1.bf16.msra.mxu0 %v5042
        %6929 = vmatprep.subr.bf16.mxu0 %v5051
        %6930 = vmatpush1.bf16.msra.mxu0 %v5050
        %6931 = vmatprep.subr.bf16.mxu0 %v5059
        %6932 = vmatpush1.bf16.msra.mxu0 %v5058
        %6933 = vmatprep.subr.bf16.mxu0 %v5067
        %6934 = vmatpush1.bf16.msra.mxu0 %v5066
        %6935 = vmatprep.subr.bf16.mxu0 %v5075
        %6936 = vmatpush1.bf16.msra.mxu0 %v5074
        %6937 = vmatprep.subr.bf16.mxu0 %v5083
        %6938 = vmatpush1.bf16.msra.mxu0 %v5082
        %6939 = vmatprep.subr.bf16.mxu0 %v5091
        %6940 = vmatpush1.bf16.msra.mxu0 %v5090
        %6941 = vmatprep.subr.bf16.mxu0 %v5099
        %6942 = vmatpush1.bf16.msra.mxu0 %v5098
        %6943 = vmatprep.subr.bf16.mxu0 %v5107
        %6944 = vmatpush1.bf16.msra.mxu0 %v5106
        %6945 = vmatprep.mubr.bf16.mxu0 %v1639
        %6946 = vmatmul.mubr.bf16.gmra.mrb[0].mxu0 %v1638
        %v6947 = vpop.f32.mrb[0].mxu0
        %v6948 = vadd.f32 %v6907, %v6947
        %v6949 = vpop.f32.mrb[0].mxu0
        %v6950 = vadd.f32 %v6909, %v6949
        %v6951 = vpop.f32.mrb[0].mxu0
        %v6952 = vpop.f32.mrb[0].mxu0
        %6953 = vdwg.mxu0
        %6954 = vmatprep.subr.bf16.mxu0 %v5115
        %6955 = vmatpush1.bf16.msra.mxu0 %v5114
        %6956 = vmatprep.subr.bf16.mxu0 %v5123
        %6957 = vmatpush1.bf16.msra.mxu0 %v5122
        %6958 = vmatprep.subr.bf16.mxu0 %v5131
        %6959 = vmatpush1.bf16.msra.mxu0 %v5130
        %6960 = vmatprep.subr.bf16.mxu0 %v5139
        %6961 = vmatpush1.bf16.msra.mxu0 %v5138
        %6962 = vmatprep.subr.bf16.mxu0 %v5147
        %6963 = vmatpush1.bf16.msra.mxu0 %v5146
        %6964 = vmatprep.subr.bf16.mxu0 %v5155
        %6965 = vmatpush1.bf16.msra.mxu0 %v5154
        %6966 = vmatprep.subr.bf16.mxu0 %v5163
        %6967 = vmatpush1.bf16.msra.mxu0 %v5162
        %6968 = vmatprep.subr.bf16.mxu0 %v5171
        %6969 = vmatpush1.bf16.msra.mxu0 %v5170
        %6970 = vmatprep.subr.bf16.mxu0 %v5179
        %6971 = vmatpush1.bf16.msra.mxu0 %v5178
        %6972 = vmatprep.subr.bf16.mxu0 %v5187
        %6973 = vmatpush1.bf16.msra.mxu0 %v5186
        %6974 = vmatprep.subr.bf16.mxu0 %v5195
        %6975 = vmatpush1.bf16.msra.mxu0 %v5194
        %6976 = vmatprep.subr.bf16.mxu0 %v5203
        %6977 = vmatpush1.bf16.msra.mxu0 %v5202
        %6978 = vmatprep.subr.bf16.mxu0 %v5211
        %6979 = vmatpush1.bf16.msra.mxu0 %v5210
        %6980 = vmatprep.subr.bf16.mxu0 %v5219
        %6981 = vmatpush1.bf16.msra.mxu0 %v5218
        %6982 = vmatprep.subr.bf16.mxu0 %v5227
        %6983 = vmatpush1.bf16.msra.mxu0 %v5226
        %6984 = vmatprep.subr.bf16.mxu0 %v5235
        %6985 = vmatpush1.bf16.msra.mxu0 %v5234
        %6986 = vmatprep.mubr.bf16.mxu0 %v1637
        %6987 = vmatmul.mubr.bf16.gmra.mrb[0].mxu0 %v1623
        %v6988 = vpop.f32.mrb[0].mxu0
        %v6989 = vadd.f32 %v6948, %v6988
        %v6990 = vpop.f32.mrb[0].mxu0
        %v6991 = vadd.f32 %v6950, %v6990
        %v6992 = vpop.f32.mrb[0].mxu0
        %v6993 = vpop.f32.mrb[0].mxu0
        %6994 = vdwg.mxu0
        %6995 = vmatprep.subr.bf16.mxu0 %v4349
        %6996 = vmatpush1.bf16.msra.mxu0 %v4348
        %6997 = vmatprep.subr.bf16.mxu0 %v4357
        %6998 = vmatpush1.bf16.msra.mxu0 %v4356
        %6999 = vmatprep.subr.bf16.mxu0 %v4365
        %7000 = vmatpush1.bf16.msra.mxu0 %v4364
        %7001 = vmatprep.subr.bf16.mxu0 %v4373
        %7002 = vmatpush1.bf16.msra.mxu0 %v4372
        %7003 = vmatprep.subr.bf16.mxu0 %v4381
        %7004 = vmatpush1.bf16.msra.mxu0 %v4380
        %7005 = vmatprep.subr.bf16.mxu0 %v4389
        %7006 = vmatpush1.bf16.msra.mxu0 %v4388
        %7007 = vmatprep.subr.bf16.mxu0 %v4397
        %7008 = vmatpush1.bf16.msra.mxu0 %v4396
        %7009 = vmatprep.subr.bf16.mxu0 %v4405
        %7010 = vmatpush1.bf16.msra.mxu0 %v4404
        %7011 = vmatprep.subr.bf16.mxu0 %v4413
        %7012 = vmatpush1.bf16.msra.mxu0 %v4412
        %7013 = vmatprep.subr.bf16.mxu0 %v4421
        %7014 = vmatpush1.bf16.msra.mxu0 %v4420
        %7015 = vmatprep.subr.bf16.mxu0 %v4429
        %7016 = vmatpush1.bf16.msra.mxu0 %v4428
        %7017 = vmatprep.subr.bf16.mxu0 %v4437
        %7018 = vmatpush1.bf16.msra.mxu0 %v4436
        %7019 = vmatprep.subr.bf16.mxu0 %v4445
        %7020 = vmatpush1.bf16.msra.mxu0 %v4444
        %7021 = vmatprep.subr.bf16.mxu0 %v4453
        %7022 = vmatpush1.bf16.msra.mxu0 %v4452
        %7023 = vmatprep.subr.bf16.mxu0 %v4461
        %7024 = vmatpush1.bf16.msra.mxu0 %v4460
        %7025 = vmatprep.subr.bf16.mxu0 %v4469
        %7026 = vmatpush1.bf16.msra.mxu0 %v4468
        %7027 = vmatprep.mubr.bf16.mxu0 %v1581
        %7028 = vmatmul.mubr.bf16.gmra.mrb[0].mxu0 %v1567
        %v7029 = vpop.f32.mrb[0].mxu0
        %v7030 = vadd.f32 0.0, %v7029
        %v7031 = vpop.f32.mrb[0].mxu0
        %v7032 = vadd.f32 0.0, %v7031
        %v7033 = vpop.f32.mrb[0].mxu0
        %v7034 = vpop.f32.mrb[0].mxu0
        %7035 = vdwg.mxu0
        %7036 = vmatprep.subr.bf16.mxu0 %v4477
        %7037 = vmatpush1.bf16.msra.mxu0 %v4476
        %7038 = vmatprep.subr.bf16.mxu0 %v4485
        %7039 = vmatpush1.bf16.msra.mxu0 %v4484
        %7040 = vmatprep.subr.bf16.mxu0 %v4493
        %7041 = vmatpush1.bf16.msra.mxu0 %v4492
        %7042 = vmatprep.subr.bf16.mxu0 %v4501
        %7043 = vmatpush1.bf16.msra.mxu0 %v4500
        %7044 = vmatprep.subr.bf16.mxu0 %v4509
        %7045 = vmatpush1.bf16.msra.mxu0 %v4508
        %7046 = vmatprep.subr.bf16.mxu0 %v4517
        %7047 = vmatpush1.bf16.msra.mxu0 %v4516
        %7048 = vmatprep.subr.bf16.mxu0 %v4525
        %7049 = vmatpush1.bf16.msra.mxu0 %v4524
        %7050 = vmatprep.subr.bf16.mxu0 %v4533
        %7051 = vmatpush1.bf16.msra.mxu0 %v4532
        %7052 = vmatprep.subr.bf16.mxu0 %v4541
        %7053 = vmatpush1.bf16.msra.mxu0 %v4540
        %7054 = vmatprep.subr.bf16.mxu0 %v4549
        %7055 = vmatpush1.bf16.msra.mxu0 %v4548
        %7056 = vmatprep.subr.bf16.mxu0 %v4557
        %7057 = vmatpush1.bf16.msra.mxu0 %v4556
        %7058 = vmatprep.subr.bf16.mxu0 %v4565
        %7059 = vmatpush1.bf16.msra.mxu0 %v4564
        %7060 = vmatprep.subr.bf16.mxu0 %v4573
        %7061 = vmatpush1.bf16.msra.mxu0 %v4572
        %7062 = vmatprep.subr.bf16.mxu0 %v4581
        %7063 = vmatpush1.bf16.msra.mxu0 %v4580
        %7064 = vmatprep.subr.bf16.mxu0 %v4589
        %7065 = vmatpush1.bf16.msra.mxu0 %v4588
        %7066 = vmatprep.subr.bf16.mxu0 %v4597
        %7067 = vmatpush1.bf16.msra.mxu0 %v4596
        %7068 = vmatprep.mubr.bf16.mxu0 %v1591
        %7069 = vmatmul.mubr.bf16.gmra.mrb[0].mxu0 %v1589
        %v7070 = vpop.f32.mrb[0].mxu0
        %v7071 = vadd.f32 %v7030, %v7070
        %v7072 = vpop.f32.mrb[0].mxu0
        %v7073 = vadd.f32 %v7032, %v7072
        %v7074 = vpop.f32.mrb[0].mxu0
        %v7075 = vpop.f32.mrb[0].mxu0
        %7076 = vdwg.mxu0
        %7077 = vmatprep.subr.bf16.mxu0 %v4605
        %7078 = vmatpush1.bf16.msra.mxu0 %v4604
        %7079 = vmatprep.subr.bf16.mxu0 %v4613
        %7080 = vmatpush1.bf16.msra.mxu0 %v4612
        %7081 = vmatprep.subr.bf16.mxu0 %v4621
        %7082 = vmatpush1.bf16.msra.mxu0 %v4620
        %7083 = vmatprep.subr.bf16.mxu0 %v4629
        %7084 = vmatpush1.bf16.msra.mxu0 %v4628
        %7085 = vmatprep.subr.bf16.mxu0 %v4637
        %7086 = vmatpush1.bf16.msra.mxu0 %v4636
        %7087 = vmatprep.subr.bf16.mxu0 %v4645
        %7088 = vmatpush1.bf16.msra.mxu0 %v4644
        %7089 = vmatprep.subr.bf16.mxu0 %v4653
        %7090 = vmatpush1.bf16.msra.mxu0 %v4652
        %7091 = vmatprep.subr.bf16.mxu0 %v4661
        %7092 = vmatpush1.bf16.msra.mxu0 %v4660
        %7093 = vmatprep.subr.bf16.mxu0 %v4669
        %7094 = vmatpush1.bf16.msra.mxu0 %v4668
        %7095 = vmatprep.subr.bf16.mxu0 %v4677
        %7096 = vmatpush1.bf16.msra.mxu0 %v4676
        %7097 = vmatprep.subr.bf16.mxu0 %v4685
        %7098 = vmatpush1.bf16.msra.mxu0 %v4684
        %7099 = vmatprep.subr.bf16.mxu0 %v4693
        %7100 = vmatpush1.bf16.msra.mxu0 %v4692
        %7101 = vmatprep.subr.bf16.mxu0 %v4701
        %7102 = vmatpush1.bf16.msra.mxu0 %v4700
        %7103 = vmatprep.subr.bf16.mxu0 %v4709
        %7104 = vmatpush1.bf16.msra.mxu0 %v4708
        %7105 = vmatprep.subr.bf16.mxu0 %v4717
        %7106 = vmatpush1.bf16.msra.mxu0 %v4716
        %7107 = vmatprep.subr.bf16.mxu0 %v4725
        %7108 = vmatpush1.bf16.msra.mxu0 %v4724
        %7109 = vmatprep.mubr.bf16.mxu0 %v1588
        %7110 = vmatmul.mubr.bf16.gmra.mrb[0].mxu0 %v1574
        %v7111 = vpop.f32.mrb[0].mxu0
        %v7112 = vadd.f32 %v7071, %v7111
        %v7113 = vpop.f32.mrb[0].mxu0
        %v7114 = vadd.f32 %v7073, %v7113
        %v7115 = vpop.f32.mrb[0].mxu0
        %v7116 = vpop.f32.mrb[0].mxu0
        %7117 = vdwg.mxu0
        %7118 = vmatprep.subr.bf16.mxu0 %v4733
        %7119 = vmatpush1.bf16.msra.mxu0 %v4732
        %7120 = vmatprep.subr.bf16.mxu0 %v4741
        %7121 = vmatpush1.bf16.msra.mxu0 %v4740
        %7122 = vmatprep.subr.bf16.mxu0 %v4749
        %7123 = vmatpush1.bf16.msra.mxu0 %v4748
        %7124 = vmatprep.subr.bf16.mxu0 %v4757
        %7125 = vmatpush1.bf16.msra.mxu0 %v4756
        %7126 = vmatprep.subr.bf16.mxu0 %v4765
        %7127 = vmatpush1.bf16.msra.mxu0 %v4764
        %7128 = vmatprep.subr.bf16.mxu0 %v4773
        %7129 = vmatpush1.bf16.msra.mxu0 %v4772
        %7130 = vmatprep.subr.bf16.mxu0 %v4781
        %7131 = vmatpush1.bf16.msra.mxu0 %v4780
        %7132 = vmatprep.subr.bf16.mxu0 %v4789
        %7133 = vmatpush1.bf16.msra.mxu0 %v4788
        %7134 = vmatprep.subr.bf16.mxu0 %v4797
        %7135 = vmatpush1.bf16.msra.mxu0 %v4796
        %7136 = vmatprep.subr.bf16.mxu0 %v4805
        %7137 = vmatpush1.bf16.msra.mxu0 %v4804
        %7138 = vmatprep.subr.bf16.mxu0 %v4813
        %7139 = vmatpush1.bf16.msra.mxu0 %v4812
        %7140 = vmatprep.subr.bf16.mxu0 %v4821
        %7141 = vmatpush1.bf16.msra.mxu0 %v4820
        %7142 = vmatprep.subr.bf16.mxu0 %v4829
        %7143 = vmatpush1.bf16.msra.mxu0 %v4828
        %7144 = vmatprep.subr.bf16.mxu0 %v4837
        %7145 = vmatpush1.bf16.msra.mxu0 %v4836
        %7146 = vmatprep.subr.bf16.mxu0 %v4845
        %7147 = vmatpush1.bf16.msra.mxu0 %v4844
        %7148 = vmatprep.subr.bf16.mxu0 %v4853
        %7149 = vmatpush1.bf16.msra.mxu0 %v4852
        %7150 = vmatprep.mubr.bf16.mxu0 %v1592
        %7151 = vmatmul.mubr.bf16.gmra.mrb[0].mxu0 %v1590
        %v7152 = vpop.f32.mrb[0].mxu0
        %v7153 = vadd.f32 %v7112, %v7152
        %v7154 = vpop.f32.mrb[0].mxu0
        %v7155 = vadd.f32 %v7114, %v7154
        %v7156 = vpop.f32.mrb[0].mxu0
        %v7157 = vpop.f32.mrb[0].mxu0
        %7158 = vdwg.mxu0
        %7159 = vmatprep.subr.bf16.mxu0 %v4861
        %7160 = vmatpush1.bf16.msra.mxu0 %v4860
        %7161 = vmatprep.subr.bf16.mxu0 %v4869
        %7162 = vmatpush1.bf16.msra.mxu0 %v4868
        %7163 = vmatprep.subr.bf16.mxu0 %v4877
        %7164 = vmatpush1.bf16.msra.mxu0 %v4876
        %7165 = vmatprep.subr.bf16.mxu0 %v4885
        %7166 = vmatpush1.bf16.msra.mxu0 %v4884
        %7167 = vmatprep.subr.bf16.mxu0 %v4893
        %7168 = vmatpush1.bf16.msra.mxu0 %v4892
        %7169 = vmatprep.subr.bf16.mxu0 %v4901
        %7170 = vmatpush1.bf16.msra.mxu0 %v4900
        %7171 = vmatprep.subr.bf16.mxu0 %v4909
        %7172 = vmatpush1.bf16.msra.mxu0 %v4908
        %7173 = vmatprep.subr.bf16.mxu0 %v4917
        %7174 = vmatpush1.bf16.msra.mxu0 %v4916
        %7175 = vmatprep.subr.bf16.mxu0 %v4925
        %7176 = vmatpush1.bf16.msra.mxu0 %v4924
        %7177 = vmatprep.subr.bf16.mxu0 %v4933
        %7178 = vmatpush1.bf16.msra.mxu0 %v4932
        %7179 = vmatprep.subr.bf16.mxu0 %v4941
        %7180 = vmatpush1.bf16.msra.mxu0 %v4940
        %7181 = vmatprep.subr.bf16.mxu0 %v4949
        %7182 = vmatpush1.bf16.msra.mxu0 %v4948
        %7183 = vmatprep.subr.bf16.mxu0 %v4957
        %7184 = vmatpush1.bf16.msra.mxu0 %v4956
        %7185 = vmatprep.subr.bf16.mxu0 %v4965
        %7186 = vmatpush1.bf16.msra.mxu0 %v4964
        %7187 = vmatprep.subr.bf16.mxu0 %v4973
        %7188 = vmatpush1.bf16.msra.mxu0 %v4972
        %7189 = vmatprep.subr.bf16.mxu0 %v4981
        %7190 = vmatpush1.bf16.msra.mxu0 %v4980
        %7191 = vmatprep.mubr.bf16.mxu0 %v1630
        %7192 = vmatmul.mubr.bf16.gmra.mrb[0].mxu0 %v1616
        %v7193 = vpop.f32.mrb[0].mxu0
        %v7194 = vadd.f32 %v7153, %v7193
        %v7195 = vpop.f32.mrb[0].mxu0
        %v7196 = vadd.f32 %v7155, %v7195
        %v7197 = vpop.f32.mrb[0].mxu0
        %v7198 = vpop.f32.mrb[0].mxu0
        %7199 = vdwg.mxu0
        %7200 = vmatprep.subr.bf16.mxu0 %v4989
        %7201 = vmatpush1.bf16.msra.mxu0 %v4988
        %7202 = vmatprep.subr.bf16.mxu0 %v4997
        %7203 = vmatpush1.bf16.msra.mxu0 %v4996
        %7204 = vmatprep.subr.bf16.mxu0 %v5005
        %7205 = vmatpush1.bf16.msra.mxu0 %v5004
        %7206 = vmatprep.subr.bf16.mxu0 %v5013
        %7207 = vmatpush1.bf16.msra.mxu0 %v5012
        %7208 = vmatprep.subr.bf16.mxu0 %v5021
        %7209 = vmatpush1.bf16.msra.mxu0 %v5020
        %7210 = vmatprep.subr.bf16.mxu0 %v5029
        %7211 = vmatpush1.bf16.msra.mxu0 %v5028
        %7212 = vmatprep.subr.bf16.mxu0 %v5037
        %7213 = vmatpush1.bf16.msra.mxu0 %v5036
        %7214 = vmatprep.subr.bf16.mxu0 %v5045
        %7215 = vmatpush1.bf16.msra.mxu0 %v5044
        %7216 = vmatprep.subr.bf16.mxu0 %v5053
        %7217 = vmatpush1.bf16.msra.mxu0 %v5052
        %7218 = vmatprep.subr.bf16.mxu0 %v5061
        %7219 = vmatpush1.bf16.msra.mxu0 %v5060
        %7220 = vmatprep.subr.bf16.mxu0 %v5069
        %7221 = vmatpush1.bf16.msra.mxu0 %v5068
        %7222 = vmatprep.subr.bf16.mxu0 %v5077
        %7223 = vmatpush1.bf16.msra.mxu0 %v5076
        %7224 = vmatprep.subr.bf16.mxu0 %v5085
        %7225 = vmatpush1.bf16.msra.mxu0 %v5084
        %7226 = vmatprep.subr.bf16.mxu0 %v5093
        %7227 = vmatpush1.bf16.msra.mxu0 %v5092
        %7228 = vmatprep.subr.bf16.mxu0 %v5101
        %7229 = vmatpush1.bf16.msra.mxu0 %v5100
        %7230 = vmatprep.subr.bf16.mxu0 %v5109
        %7231 = vmatpush1.bf16.msra.mxu0 %v5108
        %7232 = vmatprep.mubr.bf16.mxu0 %v1639
        %7233 = vmatmul.mubr.bf16.gmra.mrb[0].mxu0 %v1638
        %v7234 = vpop.f32.mrb[0].mxu0
        %v7235 = vadd.f32 %v7194, %v7234
        %v7236 = vpop.f32.mrb[0].mxu0
        %v7237 = vadd.f32 %v7196, %v7236
        %v7238 = vpop.f32.mrb[0].mxu0
        %v7239 = vpop.f32.mrb[0].mxu0
        %7240 = vdwg.mxu0
        %7241 = vmatprep.subr.bf16.mxu0 %v5117
        %7242 = vmatpush1.bf16.msra.mxu0 %v5116
        %7243 = vmatprep.subr.bf16.mxu0 %v5125
        %7244 = vmatpush1.bf16.msra.mxu0 %v5124
        %7245 = vmatprep.subr.bf16.mxu0 %v5133
        %7246 = vmatpush1.bf16.msra.mxu0 %v5132
        %7247 = vmatprep.subr.bf16.mxu0 %v5141
        %7248 = vmatpush1.bf16.msra.mxu0 %v5140
        %7249 = vmatprep.subr.bf16.mxu0 %v5149
        %7250 = vmatpush1.bf16.msra.mxu0 %v5148
        %7251 = vmatprep.subr.bf16.mxu0 %v5157
        %7252 = vmatpush1.bf16.msra.mxu0 %v5156
        %7253 = vmatprep.subr.bf16.mxu0 %v5165
        %7254 = vmatpush1.bf16.msra.mxu0 %v5164
        %7255 = vmatprep.subr.bf16.mxu0 %v5173
        %7256 = vmatpush1.bf16.msra.mxu0 %v5172
        %7257 = vmatprep.subr.bf16.mxu0 %v5181
        %7258 = vmatpush1.bf16.msra.mxu0 %v5180
        %7259 = vmatprep.subr.bf16.mxu0 %v5189
        %7260 = vmatpush1.bf16.msra.mxu0 %v5188
        %7261 = vmatprep.subr.bf16.mxu0 %v5197
        %7262 = vmatpush1.bf16.msra.mxu0 %v5196
        %7263 = vmatprep.subr.bf16.mxu0 %v5205
        %7264 = vmatpush1.bf16.msra.mxu0 %v5204
        %7265 = vmatprep.subr.bf16.mxu0 %v5213
        %7266 = vmatpush1.bf16.msra.mxu0 %v5212
        %7267 = vmatprep.subr.bf16.mxu0 %v5221
        %7268 = vmatpush1.bf16.msra.mxu0 %v5220
        %7269 = vmatprep.subr.bf16.mxu0 %v5229
        %7270 = vmatpush1.bf16.msra.mxu0 %v5228
        %7271 = vmatprep.subr.bf16.mxu0 %v5237
        %7272 = vmatpush1.bf16.msra.mxu0 %v5236
        %7273 = vmatprep.mubr.bf16.mxu0 %v1637
        %7274 = vmatmul.mubr.bf16.gmra.mrb[0].mxu0 %v1623
        %v7275 = vpop.f32.mrb[0].mxu0
        %v7276 = vadd.f32 %v7235, %v7275
        %v7277 = vpop.f32.mrb[0].mxu0
        %v7278 = vadd.f32 %v7237, %v7277
        %v7279 = vpop.f32.mrb[0].mxu0
        %v7280 = vpop.f32.mrb[0].mxu0
        %7281 = vdwg.mxu0
        %v7290 = vcombine.low %v6415, %v6417
        %v7291 = vcombine.low %v6702, %v6704
        %v7293 = vunpack.c.l.s4 1983009808
        %v7294 = vunpack.c.0.s8 %v7293
        %v7295 = vlaneseq
        %v7296 = vshrl.u32 %v7295, 7
        %v7297 = vsub.s32 %v7294, %v7296
        %v7298 = vrot.slane %v7290, %v7297
        %v7300 = vunpack.c.l.s4 1983009808
        %v7301 = vunpack.c.0.s8 %v7300
        %v7302 = vlaneseq
        %v7303 = vshrl.u32 %v7302, 7
        %v7304 = vsub.s32 %v7301, %v7303
        %v7305 = vrot.slane %v7291, %v7304
        %v7306 = vcombine.low %v7298, %v7305
        %v7307 = vcombine.low %v6989, %v6991
        %v7308 = vcombine.low %v7276, %v7278
        %v7310 = vunpack.c.l.s4 1983009808
        %v7311 = vunpack.c.0.s8 %v7310
        %v7312 = vlaneseq
        %v7313 = vshrl.u32 %v7312, 7
        %v7314 = vsub.s32 %v7311, %v7313
        %v7315 = vrot.slane %v7307, %v7314
        %v7317 = vunpack.c.l.s4 1983009808
        %v7318 = vunpack.c.0.s8 %v7317
        %v7319 = vlaneseq
        %v7320 = vshrl.u32 %v7319, 7
        %v7321 = vsub.s32 %v7318, %v7320
        %v7322 = vrot.slane %v7308, %v7321
        %v7323 = vcombine.low %v7315, %v7322
        %v7326 = vadd.f32 %v642, %v7306
        %v7327 = vadd.f32 %v643, %v7323
        %7328 = vst [vmem:[#allocation2] sm:$0xff] %v7326
        %7329 = vst [vmem:[#allocation2 + $0x8] sm:$0xff] %v7327
        %p7330 = scmp.eq.s32.totalorder %s36, 2
        // Predicated region
        $region125: #{mplnet_forward.1} parent=79 // pred_check
          %p7331 = pneg %p7330
        $region126: #{mplnet_forward.1} parent=79 // pred_check_branch
          %7333 = sbr.rel (%p7331) target = $region128
        $region127: #{mplnet_forward.1} parent=79 // pred_region
          %v7334 = vld [vmem:[#allocation2] sm:$0xff]
          %v7335 = vld [vmem:[#allocation2 + $0x8] sm:$0xff]
          %v7336 = vld [vmem:[#allocation6] sm:$0xff]
          %v7338 = vlaneseq
          %v7339 = vshrl.u32 %v7338, 7
          %v7340 = vsub.s32 0, %v7339
          %v7341 = vrot.slane %v7336, %v7340
          %v7342 = vlaneseq
          %v7343 = vshrl.u32 %v7342, 7
          %v7344 = vsub.s32 1, %v7343
          %v7345 = vrot.slane %v7336, %v7344
          %v7346 = vlaneseq
          %v7347 = vshrl.u32 %v7346, 7
          %v7348 = vsub.s32 2, %v7347
          %v7349 = vrot.slane %v7336, %v7348
          %v7350 = vlaneseq
          %v7351 = vshrl.u32 %v7350, 7
          %v7352 = vsub.s32 3, %v7351
          %v7353 = vrot.slane %v7336, %v7352
          %v7354 = vlaneseq
          %v7355 = vshrl.u32 %v7354, 7
          %v7356 = vsub.s32 4, %v7355
          %v7357 = vrot.slane %v7336, %v7356
          %v7358 = vlaneseq
          %v7359 = vshrl.u32 %v7358, 7
          %v7360 = vsub.s32 5, %v7359
          %v7361 = vrot.slane %v7336, %v7360
          %v7362 = vlaneseq
          %v7363 = vshrl.u32 %v7362, 7
          %v7364 = vsub.s32 6, %v7363
          %v7365 = vrot.slane %v7336, %v7364
          %v7366 = vlaneseq
          %v7367 = vshrl.u32 %v7366, 7
          %v7368 = vsub.s32 7, %v7367
          %v7369 = vrot.slane %v7336, %v7368
          %v7370 = vcombine.low %v7341, %v7345
          %v7371 = vcombine.low %v7349, %v7353
          %v7373 = vunpack.c.l.s4 1983009808
          %v7374 = vunpack.c.0.s8 %v7373
          %v7375 = vlaneseq
          %v7376 = vshrl.u32 %v7375, 7
          %v7377 = vsub.s32 %v7374, %v7376
          %v7378 = vrot.slane %v7370, %v7377
          %v7380 = vunpack.c.l.s4 1983009808
          %v7381 = vunpack.c.0.s8 %v7380
          %v7382 = vlaneseq
          %v7383 = vshrl.u32 %v7382, 7
          %v7384 = vsub.s32 %v7381, %v7383
          %v7385 = vrot.slane %v7371, %v7384
          %v7386 = vcombine.low %v7378, %v7385
          %v7387 = vcombine.low %v7357, %v7361
          %v7388 = vcombine.low %v7365, %v7369
          %v7390 = vunpack.c.l.s4 1983009808
          %v7391 = vunpack.c.0.s8 %v7390
          %v7392 = vlaneseq
          %v7393 = vshrl.u32 %v7392, 7
          %v7394 = vsub.s32 %v7391, %v7393
          %v7395 = vrot.slane %v7387, %v7394
          %v7397 = vunpack.c.l.s4 1983009808
          %v7398 = vunpack.c.0.s8 %v7397
          %v7399 = vlaneseq
          %v7400 = vshrl.u32 %v7399, 7
          %v7401 = vsub.s32 %v7398, %v7400
          %v7402 = vrot.slane %v7388, %v7401
          %v7403 = vcombine.low %v7395, %v7402
          %v7406 = vadd.f32 %v7334, %v7386
          %v7407 = vadd.f32 %v7335, %v7403
          %v7408 = vlaneseq
          %v7409 = vand.u32 %v7408, 127
          %v7410 = vadd.s32 %v7409, 128
          %v7411 = vadd.s32 %v7409, 256
          %v7412 = vadd.s32 %v7409, 384
          %v7413 = vadd.s32 %v7409, 512
          %v7414 = vadd.s32 %v7409, 640
          %v7415 = vadd.s32 %v7409, 768
          %v7416 = vadd.s32 %v7409, 896
          %vm7417 = vcmp.lt.s32.totalorder %v7409, 1000
          %vm7418 = vcmp.lt.s32.totalorder %v7410, 1000
          %vm7419 = vcmp.lt.s32.totalorder %v7411, 1000
          %vm7420 = vcmp.lt.s32.totalorder %v7412, 1000
          %vm7421 = vcmp.lt.s32.totalorder %v7413, 1000
          %vm7422 = vcmp.lt.s32.totalorder %v7414, 1000
          %vm7423 = vcmp.lt.s32.totalorder %v7415, 1000
          %vm7424 = vcmp.lt.s32.totalorder %v7416, 1000
          %v7425 = vsel %vm7417, 1, 0
          %v7426 = vsel %vm7418, 1, 0
          %v7427 = vsel %vm7419, 1, 0
          %v7428 = vsel %vm7420, 1, 0
          %v7429 = vsel %vm7421, 1, 0
          %v7430 = vsel %vm7422, 1, 0
          %v7431 = vsel %vm7423, 1, 0
          %v7432 = vsel %vm7424, 1, 0
          %v7433 = vcvt.s32.f32 %v7425
          %v7434 = vcvt.s32.f32 %v7426
          %v7435 = vcvt.s32.f32 %v7427
          %v7436 = vcvt.s32.f32 %v7428
          %v7437 = vcvt.s32.f32 %v7429
          %v7438 = vcvt.s32.f32 %v7430
          %v7439 = vcvt.s32.f32 %v7431
          %v7440 = vcvt.s32.f32 %v7432
          %v7443 = vcombine.high %v7406, %v7406
          %v7445 = vunpack.c.l.s4 1983009808
          %v7446 = vunpack.c.0.s8 %v7445
          %v7447 = vlaneseq
          %v7448 = vshrl.u32 %v7447, 7
          %v7449 = vsub.s32 %v7446, %v7448
          %v7450 = vrot.slane %v7406, %v7449
          %v7452 = vunpack.c.l.s4 1983009808
          %v7453 = vunpack.c.0.s8 %v7452
          %v7454 = vlaneseq
          %v7455 = vshrl.u32 %v7454, 7
          %v7456 = vsub.s32 %v7453, %v7455
          %v7457 = vrot.slane %v7443, %v7456
          %v7458 = vcombine.high %v7450, %v7450
          %v7459 = vcombine.high %v7457, %v7457
          %v7460 = vcombine.high %v7407, %v7407
          %v7462 = vunpack.c.l.s4 1983009808
          %v7463 = vunpack.c.0.s8 %v7462
          %v7464 = vlaneseq
          %v7465 = vshrl.u32 %v7464, 7
          %v7466 = vsub.s32 %v7463, %v7465
          %v7467 = vrot.slane %v7407, %v7466
          %v7469 = vunpack.c.l.s4 1983009808
          %v7470 = vunpack.c.0.s8 %v7469
          %v7471 = vlaneseq
          %v7472 = vshrl.u32 %v7471, 7
          %v7473 = vsub.s32 %v7470, %v7472
          %v7474 = vrot.slane %v7460, %v7473
          %v7475 = vcombine.high %v7467, %v7467
          %v7476 = vcombine.high %v7474, %v7474
          %vm7485 = vcmask 1041408
          %v7486 = vsel %vm7485, %v7450, 0.0
          %v7487 = vsel %vm7485, %v7458, 0.0
          %v7488 = vadd.f32 %v7486, %v7487
          %v7489 = vsel %vm7485, %v7457, 0.0
          %v7490 = vadd.f32 %v7488, %v7489
          %v7491 = vsel %vm7485, %v7459, 0.0
          %v7492 = vadd.f32 %v7490, %v7491
          %v7493 = vsel %vm7485, %v7467, 0.0
          %v7494 = vadd.f32 %v7492, %v7493
          %v7495 = vsel %vm7485, %v7475, 0.0
          %v7496 = vadd.f32 %v7494, %v7495
          %v7497 = vsel %vm7485, %v7474, 0.0
          %v7498 = vadd.f32 %v7496, %v7497
          %v7499 = vsel %vm7485, %v7476, 0.0
          %v7500 = vadd.f32 %v7498, %v7499
          %7501 = vadd.xlane.f32.xlu0 %v7500
          %v7502 = vpop.xlane.xlu0 %7501
          %v7503 = vmul.f32 %v7502, 0.001
          %v7506 = vunpack.c.l.s4 269488144
          %v7507 = vunpack.c.0.s8 %v7506
          %v7508 = vlaneseq
          %v7509 = vshrl.u32 %v7508, 7
          %v7510 = vsub.s32 %v7507, %v7509
          %v7511 = vrot.slane %v7503, %v7510
          %v7513 = vsub.f32 %v7406, %v7511
          %v7514 = vsub.f32 %v7407, %v7511
          %v7523 = vcombine.low %v7433, %v7434
          %v7524 = vcombine.low %v7435, %v7436
          %v7526 = vunpack.c.l.s4 1983009808
          %v7527 = vunpack.c.0.s8 %v7526
          %v7528 = vlaneseq
          %v7529 = vshrl.u32 %v7528, 7
          %v7530 = vsub.s32 %v7527, %v7529
          %v7531 = vrot.slane %v7523, %v7530
          %v7533 = vunpack.c.l.s4 1983009808
          %v7534 = vunpack.c.0.s8 %v7533
          %v7535 = vlaneseq
          %v7536 = vshrl.u32 %v7535, 7
          %v7537 = vsub.s32 %v7534, %v7536
          %v7538 = vrot.slane %v7524, %v7537
          %v7539 = vcombine.low %v7531, %v7538
          %v7540 = vcombine.low %v7437, %v7438
          %v7541 = vcombine.low %v7439, %v7440
          %v7543 = vunpack.c.l.s4 1983009808
          %v7544 = vunpack.c.0.s8 %v7543
          %v7545 = vlaneseq
          %v7546 = vshrl.u32 %v7545, 7
          %v7547 = vsub.s32 %v7544, %v7546
          %v7548 = vrot.slane %v7540, %v7547
          %v7550 = vunpack.c.l.s4 1983009808
          %v7551 = vunpack.c.0.s8 %v7550
          %v7552 = vlaneseq
          %v7553 = vshrl.u32 %v7552, 7
          %v7554 = vsub.s32 %v7551, %v7553
          %v7555 = vrot.slane %v7541, %v7554
          %v7556 = vcombine.low %v7548, %v7555
          %v7559 = vmul.f32 %v7513, %v7539
          %v7560 = vmul.f32 %v7514, %v7556
          %v7561 = vmul.f32 %v7559, %v7559
          %v7562 = vmul.f32 %v7560, %v7560
          %v7565 = vcombine.high %v7561, %v7561
          %v7567 = vunpack.c.l.s4 1983009808
          %v7568 = vunpack.c.0.s8 %v7567
          %v7569 = vlaneseq
          %v7570 = vshrl.u32 %v7569, 7
          %v7571 = vsub.s32 %v7568, %v7570
          %v7572 = vrot.slane %v7561, %v7571
          %v7574 = vunpack.c.l.s4 1983009808
          %v7575 = vunpack.c.0.s8 %v7574
          %v7576 = vlaneseq
          %v7577 = vshrl.u32 %v7576, 7
          %v7578 = vsub.s32 %v7575, %v7577
          %v7579 = vrot.slane %v7565, %v7578
          %v7580 = vcombine.high %v7572, %v7572
          %v7581 = vcombine.high %v7579, %v7579
          %v7582 = vcombine.high %v7562, %v7562
          %v7584 = vunpack.c.l.s4 1983009808
          %v7585 = vunpack.c.0.s8 %v7584
          %v7586 = vlaneseq
          %v7587 = vshrl.u32 %v7586, 7
          %v7588 = vsub.s32 %v7585, %v7587
          %v7589 = vrot.slane %v7562, %v7588
          %v7591 = vunpack.c.l.s4 1983009808
          %v7592 = vunpack.c.0.s8 %v7591
          %v7593 = vlaneseq
          %v7594 = vshrl.u32 %v7593, 7
          %v7595 = vsub.s32 %v7592, %v7594
          %v7596 = vrot.slane %v7582, %v7595
          %v7597 = vcombine.high %v7589, %v7589
          %v7598 = vcombine.high %v7596, %v7596
          %v7607 = vsel %vm7485, %v7572, 0.0
          %v7608 = vsel %vm7485, %v7580, 0.0
          %v7609 = vadd.f32 %v7607, %v7608
          %v7610 = vsel %vm7485, %v7579, 0.0
          %v7611 = vadd.f32 %v7609, %v7610
          %v7612 = vsel %vm7485, %v7581, 0.0
          %v7613 = vadd.f32 %v7611, %v7612
          %v7614 = vsel %vm7485, %v7589, 0.0
          %v7615 = vadd.f32 %v7613, %v7614
          %v7616 = vsel %vm7485, %v7597, 0.0
          %v7617 = vadd.f32 %v7615, %v7616
          %v7618 = vsel %vm7485, %v7596, 0.0
          %v7619 = vadd.f32 %v7617, %v7618
          %v7620 = vsel %vm7485, %v7598, 0.0
          %v7621 = vadd.f32 %v7619, %v7620
          %7622 = vadd.xlane.f32.xlu0 %v7621
          %v7623 = vpop.xlane.xlu0 %7622
          %v7624 = vmul.f32 %v7623, 0.001
          %v7625 = vadd.f32 %v7624, 1e-05
          %v7626 = vrsqrt.pop %v7625
          %v7629 = vunpack.c.l.s4 269488144
          %v7630 = vunpack.c.0.s8 %v7629
          %v7631 = vlaneseq
          %v7632 = vshrl.u32 %v7631, 7
          %v7633 = vsub.s32 %v7630, %v7632
          %v7634 = vrot.slane %v7626, %v7633
          %v7636 = vmul.f32 %v7559, %v7634
          %v7637 = vmul.f32 %v7560, %v7634
          %v7638 = vld [vmem:[#allocation8] sm:$0xff]
          %v7640 = vlaneseq
          %v7641 = vshrl.u32 %v7640, 7
          %v7642 = vsub.s32 0, %v7641
          %v7643 = vrot.slane %v7638, %v7642
          %v7644 = vlaneseq
          %v7645 = vshrl.u32 %v7644, 7
          %v7646 = vsub.s32 1, %v7645
          %v7647 = vrot.slane %v7638, %v7646
          %v7648 = vlaneseq
          %v7649 = vshrl.u32 %v7648, 7
          %v7650 = vsub.s32 2, %v7649
          %v7651 = vrot.slane %v7638, %v7650
          %v7652 = vlaneseq
          %v7653 = vshrl.u32 %v7652, 7
          %v7654 = vsub.s32 3, %v7653
          %v7655 = vrot.slane %v7638, %v7654
          %v7656 = vlaneseq
          %v7657 = vshrl.u32 %v7656, 7
          %v7658 = vsub.s32 4, %v7657
          %v7659 = vrot.slane %v7638, %v7658
          %v7660 = vlaneseq
          %v7661 = vshrl.u32 %v7660, 7
          %v7662 = vsub.s32 5, %v7661
          %v7663 = vrot.slane %v7638, %v7662
          %v7664 = vlaneseq
          %v7665 = vshrl.u32 %v7664, 7
          %v7666 = vsub.s32 6, %v7665
          %v7667 = vrot.slane %v7638, %v7666
          %v7668 = vlaneseq
          %v7669 = vshrl.u32 %v7668, 7
          %v7670 = vsub.s32 7, %v7669
          %v7671 = vrot.slane %v7638, %v7670
          %v7672 = vcombine.low %v7643, %v7647
          %v7673 = vcombine.low %v7651, %v7655
          %v7675 = vunpack.c.l.s4 1983009808
          %v7676 = vunpack.c.0.s8 %v7675
          %v7677 = vlaneseq
          %v7678 = vshrl.u32 %v7677, 7
          %v7679 = vsub.s32 %v7676, %v7678
          %v7680 = vrot.slane %v7672, %v7679
          %v7682 = vunpack.c.l.s4 1983009808
          %v7683 = vunpack.c.0.s8 %v7682
          %v7684 = vlaneseq
          %v7685 = vshrl.u32 %v7684, 7
          %v7686 = vsub.s32 %v7683, %v7685
          %v7687 = vrot.slane %v7673, %v7686
          %v7688 = vcombine.low %v7680, %v7687
          %v7689 = vcombine.low %v7659, %v7663
          %v7690 = vcombine.low %v7667, %v7671
          %v7692 = vunpack.c.l.s4 1983009808
          %v7693 = vunpack.c.0.s8 %v7692
          %v7694 = vlaneseq
          %v7695 = vshrl.u32 %v7694, 7
          %v7696 = vsub.s32 %v7693, %v7695
          %v7697 = vrot.slane %v7689, %v7696
          %v7699 = vunpack.c.l.s4 1983009808
          %v7700 = vunpack.c.0.s8 %v7699
          %v7701 = vlaneseq
          %v7702 = vshrl.u32 %v7701, 7
          %v7703 = vsub.s32 %v7700, %v7702
          %v7704 = vrot.slane %v7690, %v7703
          %v7705 = vcombine.low %v7697, %v7704
          %v7708 = vmul.f32 %v7636, %v7688
          %v7709 = vmul.f32 %v7637, %v7705
          %v7710 = vld [vmem:[#allocation9] sm:$0xff]
          %v7712 = vlaneseq
          %v7713 = vshrl.u32 %v7712, 7
          %v7714 = vsub.s32 0, %v7713
          %v7715 = vrot.slane %v7710, %v7714
          %v7716 = vlaneseq
          %v7717 = vshrl.u32 %v7716, 7
          %v7718 = vsub.s32 1, %v7717
          %v7719 = vrot.slane %v7710, %v7718
          %v7720 = vlaneseq
          %v7721 = vshrl.u32 %v7720, 7
          %v7722 = vsub.s32 2, %v7721
          %v7723 = vrot.slane %v7710, %v7722
          %v7724 = vlaneseq
          %v7725 = vshrl.u32 %v7724, 7
          %v7726 = vsub.s32 3, %v7725
          %v7727 = vrot.slane %v7710, %v7726
          %v7728 = vlaneseq
          %v7729 = vshrl.u32 %v7728, 7
          %v7730 = vsub.s32 4, %v7729
          %v7731 = vrot.slane %v7710, %v7730
          %v7732 = vlaneseq
          %v7733 = vshrl.u32 %v7732, 7
          %v7734 = vsub.s32 5, %v7733
          %v7735 = vrot.slane %v7710, %v7734
          %v7736 = vlaneseq
          %v7737 = vshrl.u32 %v7736, 7
          %v7738 = vsub.s32 6, %v7737
          %v7739 = vrot.slane %v7710, %v7738
          %v7740 = vlaneseq
          %v7741 = vshrl.u32 %v7740, 7
          %v7742 = vsub.s32 7, %v7741
          %v7743 = vrot.slane %v7710, %v7742
          %v7744 = vcombine.low %v7715, %v7719
          %v7745 = vcombine.low %v7723, %v7727
          %v7747 = vunpack.c.l.s4 1983009808
          %v7748 = vunpack.c.0.s8 %v7747
          %v7749 = vlaneseq
          %v7750 = vshrl.u32 %v7749, 7
          %v7751 = vsub.s32 %v7748, %v7750
          %v7752 = vrot.slane %v7744, %v7751
          %v7754 = vunpack.c.l.s4 1983009808
          %v7755 = vunpack.c.0.s8 %v7754
          %v7756 = vlaneseq
          %v7757 = vshrl.u32 %v7756, 7
          %v7758 = vsub.s32 %v7755, %v7757
          %v7759 = vrot.slane %v7745, %v7758
          %v7760 = vcombine.low %v7752, %v7759
          %v7761 = vcombine.low %v7731, %v7735
          %v7762 = vcombine.low %v7739, %v7743
          %v7764 = vunpack.c.l.s4 1983009808
          %v7765 = vunpack.c.0.s8 %v7764
          %v7766 = vlaneseq
          %v7767 = vshrl.u32 %v7766, 7
          %v7768 = vsub.s32 %v7765, %v7767
          %v7769 = vrot.slane %v7761, %v7768
          %v7771 = vunpack.c.l.s4 1983009808
          %v7772 = vunpack.c.0.s8 %v7771
          %v7773 = vlaneseq
          %v7774 = vshrl.u32 %v7773, 7
          %v7775 = vsub.s32 %v7772, %v7774
          %v7776 = vrot.slane %v7762, %v7775
          %v7777 = vcombine.low %v7769, %v7776
          %v7780 = vadd.f32 %v7708, %v7760
          %v7781 = vadd.f32 %v7709, %v7777
          %v7782 = vmax.f32 %v7780, 0.0
          %v7783 = vmax.f32 %v7781, 0.0
          %v7784 = vld [vmem:[%s5] sm:$0xff]
          %v7785 = vld [vmem:[%s5 + $0x8] sm:$0xff]
          %v7786 = vld [vmem:[%s5 + $0x10] sm:$0xff]
          %v7787 = vld [vmem:[%s5 + $0x18] sm:$0xff]
          %v7788 = vld [vmem:[%s5 + $0x20] sm:$0xff]
          %v7789 = vld [vmem:[%s5 + $0x28] sm:$0xff]
          %v7790 = vld [vmem:[%s5 + $0x30] sm:$0xff]
          %v7791 = vld [vmem:[%s5 + $0x38] sm:$0xff]
          %v7792 = vld [vmem:[%s5 + $0x40] sm:$0xff]
          %v7793 = vld [vmem:[%s5 + $0x48] sm:$0xff]
          %v7794 = vld [vmem:[%s5 + $0x50] sm:$0xff]
          %v7795 = vld [vmem:[%s5 + $0x58] sm:$0xff]
          %v7796 = vld [vmem:[%s5 + $0x60] sm:$0xff]
          %v7797 = vld [vmem:[%s5 + $0x68] sm:$0xff]
          %v7798 = vld [vmem:[%s5 + $0x70] sm:$0xff]
          %v7799 = vld [vmem:[%s5 + $0x78] sm:$0xff]
          %v7800 = vld [vmem:[%s5 + $0x80] sm:$0xff]
          %v7801 = vld [vmem:[%s5 + $0x88] sm:$0xff]
          %v7802 = vld [vmem:[%s5 + $0x90] sm:$0xff]
          %v7803 = vld [vmem:[%s5 + $0x98] sm:$0xff]
          %v7804 = vld [vmem:[%s5 + $0xa0] sm:$0xff]
          %v7805 = vld [vmem:[%s5 + $0xa8] sm:$0xff]
          %v7806 = vld [vmem:[%s5 + $0xb0] sm:$0xff]
          %v7807 = vld [vmem:[%s5 + $0xb8] sm:$0xff]
          %v7808 = vld [vmem:[%s5 + $0xc0] sm:$0xff]
          %v7809 = vld [vmem:[%s5 + $0xc8] sm:$0xff]
          %v7810 = vld [vmem:[%s5 + $0xd0] sm:$0xff]
          %v7811 = vld [vmem:[%s5 + $0xd8] sm:$0xff]
          %v7812 = vld [vmem:[%s5 + $0xe0] sm:$0xff]
          %v7813 = vld [vmem:[%s5 + $0xe8] sm:$0xff]
          %v7814 = vld [vmem:[%s5 + $0xf0] sm:$0xff]
          %v7815 = vld [vmem:[%s5 + $0xf8] sm:$0xff]
          %v7816 = vld [vmem:[%s5 + $0x100] sm:$0xff]
          %v7817 = vld [vmem:[%s5 + $0x108] sm:$0xff]
          %v7818 = vld [vmem:[%s5 + $0x110] sm:$0xff]
          %v7819 = vld [vmem:[%s5 + $0x118] sm:$0xff]
          %v7820 = vld [vmem:[%s5 + $0x120] sm:$0xff]
          %v7821 = vld [vmem:[%s5 + $0x128] sm:$0xff]
          %v7822 = vld [vmem:[%s5 + $0x130] sm:$0xff]
          %v7823 = vld [vmem:[%s5 + $0x138] sm:$0xff]
          %v7824 = vld [vmem:[%s5 + $0x140] sm:$0xff]
          %v7825 = vld [vmem:[%s5 + $0x148] sm:$0xff]
          %v7826 = vld [vmem:[%s5 + $0x150] sm:$0xff]
          %v7827 = vld [vmem:[%s5 + $0x158] sm:$0xff]
          %v7828 = vld [vmem:[%s5 + $0x160] sm:$0xff]
          %v7829 = vld [vmem:[%s5 + $0x168] sm:$0xff]
          %v7830 = vld [vmem:[%s5 + $0x170] sm:$0xff]
          %v7831 = vld [vmem:[%s5 + $0x178] sm:$0xff]
          %v7832 = vld [vmem:[%s5 + $0x180] sm:$0xff]
          %v7833 = vld [vmem:[%s5 + $0x188] sm:$0xff]
          %v7834 = vld [vmem:[%s5 + $0x190] sm:$0xff]
          %v7835 = vld [vmem:[%s5 + $0x198] sm:$0xff]
          %v7836 = vld [vmem:[%s5 + $0x1a0] sm:$0xff]
          %v7837 = vld [vmem:[%s5 + $0x1a8] sm:$0xff]
          %v7838 = vld [vmem:[%s5 + $0x1b0] sm:$0xff]
          %v7839 = vld [vmem:[%s5 + $0x1b8] sm:$0xff]
          %v7840 = vld [vmem:[%s5 + $0x1c0] sm:$0xff]
          %v7841 = vld [vmem:[%s5 + $0x1c8] sm:$0xff]
          %v7842 = vld [vmem:[%s5 + $0x1d0] sm:$0xff]
          %v7843 = vld [vmem:[%s5 + $0x1d8] sm:$0xff]
          %v7844 = vld [vmem:[%s5 + $0x1e0] sm:$0xff]
          %v7845 = vld [vmem:[%s5 + $0x1e8] sm:$0xff]
          %v7846 = vld [vmem:[%s5 + $0x1f0] sm:$0xff]
          %v7847 = vld [vmem:[%s5 + $0x1f8] sm:$0xff]
          %v7848 = vld [vmem:[%s5 + $0x200] sm:$0xff]
          %v7849 = vld [vmem:[%s5 + $0x208] sm:$0xff]
          %v7850 = vld [vmem:[%s5 + $0x210] sm:$0xff]
          %v7851 = vld [vmem:[%s5 + $0x218] sm:$0xff]
          %v7852 = vld [vmem:[%s5 + $0x220] sm:$0xff]
          %v7853 = vld [vmem:[%s5 + $0x228] sm:$0xff]
          %v7854 = vld [vmem:[%s5 + $0x230] sm:$0xff]
          %v7855 = vld [vmem:[%s5 + $0x238] sm:$0xff]
          %v7856 = vld [vmem:[%s5 + $0x240] sm:$0xff]
          %v7857 = vld [vmem:[%s5 + $0x248] sm:$0xff]
          %v7858 = vld [vmem:[%s5 + $0x250] sm:$0xff]
          %v7859 = vld [vmem:[%s5 + $0x258] sm:$0xff]
          %v7860 = vld [vmem:[%s5 + $0x260] sm:$0xff]
          %v7861 = vld [vmem:[%s5 + $0x268] sm:$0xff]
          %v7862 = vld [vmem:[%s5 + $0x270] sm:$0xff]
          %v7863 = vld [vmem:[%s5 + $0x278] sm:$0xff]
          %v7864 = vld [vmem:[%s5 + $0x280] sm:$0xff]
          %v7865 = vld [vmem:[%s5 + $0x288] sm:$0xff]
          %v7866 = vld [vmem:[%s5 + $0x290] sm:$0xff]
          %v7867 = vld [vmem:[%s5 + $0x298] sm:$0xff]
          %v7868 = vld [vmem:[%s5 + $0x2a0] sm:$0xff]
          %v7869 = vld [vmem:[%s5 + $0x2a8] sm:$0xff]
          %v7870 = vld [vmem:[%s5 + $0x2b0] sm:$0xff]
          %v7871 = vld [vmem:[%s5 + $0x2b8] sm:$0xff]
          %v7872 = vld [vmem:[%s5 + $0x2c0] sm:$0xff]
          %v7873 = vld [vmem:[%s5 + $0x2c8] sm:$0xff]
          %v7874 = vld [vmem:[%s5 + $0x2d0] sm:$0xff]
          %v7875 = vld [vmem:[%s5 + $0x2d8] sm:$0xff]
          %v7876 = vld [vmem:[%s5 + $0x2e0] sm:$0xff]
          %v7877 = vld [vmem:[%s5 + $0x2e8] sm:$0xff]
          %v7878 = vld [vmem:[%s5 + $0x2f0] sm:$0xff]
          %v7879 = vld [vmem:[%s5 + $0x2f8] sm:$0xff]
          %v7880 = vld [vmem:[%s5 + $0x300] sm:$0xff]
          %v7881 = vld [vmem:[%s5 + $0x308] sm:$0xff]
          %v7882 = vld [vmem:[%s5 + $0x310] sm:$0xff]
          %v7883 = vld [vmem:[%s5 + $0x318] sm:$0xff]
          %v7884 = vld [vmem:[%s5 + $0x320] sm:$0xff]
          %v7885 = vld [vmem:[%s5 + $0x328] sm:$0xff]
          %v7886 = vld [vmem:[%s5 + $0x330] sm:$0xff]
          %v7887 = vld [vmem:[%s5 + $0x338] sm:$0xff]
          %v7888 = vld [vmem:[%s5 + $0x340] sm:$0xff]
          %v7889 = vld [vmem:[%s5 + $0x348] sm:$0xff]
          %v7890 = vld [vmem:[%s5 + $0x350] sm:$0xff]
          %v7891 = vld [vmem:[%s5 + $0x358] sm:$0xff]
          %v7892 = vld [vmem:[%s5 + $0x360] sm:$0xff]
          %v7893 = vld [vmem:[%s5 + $0x368] sm:$0xff]
          %v7894 = vld [vmem:[%s5 + $0x370] sm:$0xff]
          %v7895 = vld [vmem:[%s5 + $0x378] sm:$0xff]
          %v7896 = vld [vmem:[%s5 + $0x380] sm:$0xff]
          %v7897 = vld [vmem:[%s5 + $0x388] sm:$0xff]
          %v7898 = vld [vmem:[%s5 + $0x390] sm:$0xff]
          %v7899 = vld [vmem:[%s5 + $0x398] sm:$0xff]
          %v7900 = vld [vmem:[%s5 + $0x3a0] sm:$0xff]
          %v7901 = vld [vmem:[%s5 + $0x3a8] sm:$0xff]
          %v7902 = vld [vmem:[%s5 + $0x3b0] sm:$0xff]
          %v7903 = vld [vmem:[%s5 + $0x3b8] sm:$0xff]
          %v7904 = vld [vmem:[%s5 + $0x3c0] sm:$0xff]
          %v7905 = vld [vmem:[%s5 + $0x3c8] sm:$0xff]
          %v7906 = vld [vmem:[%s5 + $0x3d0] sm:$0xff]
          %v7907 = vld [vmem:[%s5 + $0x3d8] sm:$0xff]
          %v7908 = vld [vmem:[%s5 + $0x3e0] sm:$0xff]
          %v7909 = vld [vmem:[%s5 + $0x3e8] sm:$0xff]
          %v7910 = vld [vmem:[%s5 + $0x3f0] sm:$0xff]
          %v7911 = vld [vmem:[%s5 + $0x3f8] sm:$0xff]
          %v7912 = vld [vmem:[#allocation11] sm:$0x1]
          %v7914 = vlaneseq
          %v7915 = vshrl.u32 %v7914, 7
          %v7916 = vsub.s32 0, %v7915
          %v7917 = vrot.slane %v7912, %v7916
          %v7921 = vcombine.high %v7782, %v7782
          %v7923 = vunpack.c.l.s4 1983009808
          %v7924 = vunpack.c.0.s8 %v7923
          %v7925 = vlaneseq
          %v7926 = vshrl.u32 %v7925, 7
          %v7927 = vsub.s32 %v7924, %v7926
          %v7928 = vrot.slane %v7782, %v7927
          %v7930 = vunpack.c.l.s4 1983009808
          %v7931 = vunpack.c.0.s8 %v7930
          %v7932 = vlaneseq
          %v7933 = vshrl.u32 %v7932, 7
          %v7934 = vsub.s32 %v7931, %v7933
          %v7935 = vrot.slane %v7921, %v7934
          %v7936 = vcombine.high %v7928, %v7928
          %v7937 = vcombine.high %v7935, %v7935
          %v7938 = vcombine.high %v7783, %v7783
          %v7940 = vunpack.c.l.s4 1983009808
          %v7941 = vunpack.c.0.s8 %v7940
          %v7942 = vlaneseq
          %v7943 = vshrl.u32 %v7942, 7
          %v7944 = vsub.s32 %v7941, %v7943
          %v7945 = vrot.slane %v7783, %v7944
          %v7947 = vunpack.c.l.s4 1983009808
          %v7948 = vunpack.c.0.s8 %v7947
          %v7949 = vlaneseq
          %v7950 = vshrl.u32 %v7949, 7
          %v7951 = vsub.s32 %v7948, %v7950
          %v7952 = vrot.slane %v7938, %v7951
          %v7953 = vcombine.high %v7945, %v7945
          %v7954 = vcombine.high %v7952, %v7952
          %7963 = vmatprep.subr.mxu0 0.0
          %7964 = vmatpush1.msra.mxu0 %v7784
          %7965 = vmatprep.subr.mxu0 0.0
          %7966 = vmatpush1.msra.mxu0 %v7785
          %7967 = vmatprep.subr.mxu0 0.0
          %7968 = vmatpush1.msra.mxu0 %v7786
          %7969 = vmatprep.subr.mxu0 0.0
          %7970 = vmatpush1.msra.mxu0 %v7787
          %7971 = vmatprep.subr.mxu0 0.0
          %7972 = vmatpush1.msra.mxu0 %v7788
          %7973 = vmatprep.subr.mxu0 0.0
          %7974 = vmatpush1.msra.mxu0 %v7789
          %7975 = vmatprep.subr.mxu0 0.0
          %7976 = vmatpush1.msra.mxu0 %v7790
          %7977 = vmatprep.subr.mxu0 0.0
          %7978 = vmatpush1.msra.mxu0 %v7791
          %7979 = vmatprep.subr.mxu0 0.0
          %7980 = vmatpush1.msra.mxu0 %v7792
          %7981 = vmatprep.subr.mxu0 0.0
          %7982 = vmatpush1.msra.mxu0 %v7793
          %7983 = vmatprep.subr.mxu0 0.0
          %7984 = vmatpush1.msra.mxu0 %v7794
          %7985 = vmatprep.subr.mxu0 0.0
          %7986 = vmatpush1.msra.mxu0 %v7795
          %7987 = vmatprep.subr.mxu0 0.0
          %7988 = vmatpush1.msra.mxu0 %v7796
          %7989 = vmatprep.subr.mxu0 0.0
          %7990 = vmatpush1.msra.mxu0 %v7797
          %7991 = vmatprep.subr.mxu0 0.0
          %7992 = vmatpush1.msra.mxu0 %v7798
          %7993 = vmatprep.subr.mxu0 0.0
          %7994 = vmatpush1.msra.mxu0 %v7799
          %7995 = vmatprep.subr.mxu0 0.0
          %7996 = vmatpush1.msra.mxu0 %v7800
          %7997 = vmatprep.subr.mxu0 0.0
          %7998 = vmatpush1.msra.mxu0 %v7801
          %7999 = vmatprep.subr.mxu0 0.0
          %8000 = vmatpush1.msra.mxu0 %v7802
          %8001 = vmatprep.subr.mxu0 0.0
          %8002 = vmatpush1.msra.mxu0 %v7803
          %8003 = vmatprep.subr.mxu0 0.0
          %8004 = vmatpush1.msra.mxu0 %v7804
          %8005 = vmatprep.subr.mxu0 0.0
          %8006 = vmatpush1.msra.mxu0 %v7805
          %8007 = vmatprep.subr.mxu0 0.0
          %8008 = vmatpush1.msra.mxu0 %v7806
          %8009 = vmatprep.subr.mxu0 0.0
          %8010 = vmatpush1.msra.mxu0 %v7807
          %8011 = vmatprep.subr.mxu0 0.0
          %8012 = vmatpush1.msra.mxu0 %v7808
          %8013 = vmatprep.subr.mxu0 0.0
          %8014 = vmatpush1.msra.mxu0 %v7809
          %8015 = vmatprep.subr.mxu0 0.0
          %8016 = vmatpush1.msra.mxu0 %v7810
          %8017 = vmatprep.subr.mxu0 0.0
          %8018 = vmatpush1.msra.mxu0 %v7811
          %8019 = vmatprep.subr.mxu0 0.0
          %8020 = vmatpush1.msra.mxu0 %v7812
          %8021 = vmatprep.subr.mxu0 0.0
          %8022 = vmatpush1.msra.mxu0 %v7813
          %8023 = vmatprep.subr.mxu0 0.0
          %8024 = vmatpush1.msra.mxu0 %v7814
          %8025 = vmatprep.subr.mxu0 0.0
          %8026 = vmatpush1.msra.mxu0 %v7815
          %8027 = vmatprep.mubr.f32.mxu0 %v7936
          %8028 = vmatmul.mubr.f32.gmra.mrb[0].mxu0 %v7928
          %v8029 = vpop.f32.mrb[0].mxu0
          %v8030 = vadd.f32 %v7917, %v8029
          %v8031 = vpop.f32.mrb[0].mxu0
          %8032 = vdwg.mxu0
          %8033 = vmatprep.subr.mxu0 0.0
          %8034 = vmatpush1.msra.mxu0 %v7816
          %8035 = vmatprep.subr.mxu0 0.0
          %8036 = vmatpush1.msra.mxu0 %v7817
          %8037 = vmatprep.subr.mxu0 0.0
          %8038 = vmatpush1.msra.mxu0 %v7818
          %8039 = vmatprep.subr.mxu0 0.0
          %8040 = vmatpush1.msra.mxu0 %v7819
          %8041 = vmatprep.subr.mxu0 0.0
          %8042 = vmatpush1.msra.mxu0 %v7820
          %8043 = vmatprep.subr.mxu0 0.0
          %8044 = vmatpush1.msra.mxu0 %v7821
          %8045 = vmatprep.subr.mxu0 0.0
          %8046 = vmatpush1.msra.mxu0 %v7822
          %8047 = vmatprep.subr.mxu0 0.0
          %8048 = vmatpush1.msra.mxu0 %v7823
          %8049 = vmatprep.subr.mxu0 0.0
          %8050 = vmatpush1.msra.mxu0 %v7824
          %8051 = vmatprep.subr.mxu0 0.0
          %8052 = vmatpush1.msra.mxu0 %v7825
          %8053 = vmatprep.subr.mxu0 0.0
          %8054 = vmatpush1.msra.mxu0 %v7826
          %8055 = vmatprep.subr.mxu0 0.0
          %8056 = vmatpush1.msra.mxu0 %v7827
          %8057 = vmatprep.subr.mxu0 0.0
          %8058 = vmatpush1.msra.mxu0 %v7828
          %8059 = vmatprep.subr.mxu0 0.0
          %8060 = vmatpush1.msra.mxu0 %v7829
          %8061 = vmatprep.subr.mxu0 0.0
          %8062 = vmatpush1.msra.mxu0 %v7830
          %8063 = vmatprep.subr.mxu0 0.0
          %8064 = vmatpush1.msra.mxu0 %v7831
          %8065 = vmatprep.subr.mxu0 0.0
          %8066 = vmatpush1.msra.mxu0 %v7832
          %8067 = vmatprep.subr.mxu0 0.0
          %8068 = vmatpush1.msra.mxu0 %v7833
          %8069 = vmatprep.subr.mxu0 0.0
          %8070 = vmatpush1.msra.mxu0 %v7834
          %8071 = vmatprep.subr.mxu0 0.0
          %8072 = vmatpush1.msra.mxu0 %v7835
          %8073 = vmatprep.subr.mxu0 0.0
          %8074 = vmatpush1.msra.mxu0 %v7836
          %8075 = vmatprep.subr.mxu0 0.0
          %8076 = vmatpush1.msra.mxu0 %v7837
          %8077 = vmatprep.subr.mxu0 0.0
          %8078 = vmatpush1.msra.mxu0 %v7838
          %8079 = vmatprep.subr.mxu0 0.0
          %8080 = vmatpush1.msra.mxu0 %v7839
          %8081 = vmatprep.subr.mxu0 0.0
          %8082 = vmatpush1.msra.mxu0 %v7840
          %8083 = vmatprep.subr.mxu0 0.0
          %8084 = vmatpush1.msra.mxu0 %v7841
          %8085 = vmatprep.subr.mxu0 0.0
          %8086 = vmatpush1.msra.mxu0 %v7842
          %8087 = vmatprep.subr.mxu0 0.0
          %8088 = vmatpush1.msra.mxu0 %v7843
          %8089 = vmatprep.subr.mxu0 0.0
          %8090 = vmatpush1.msra.mxu0 %v7844
          %8091 = vmatprep.subr.mxu0 0.0
          %8092 = vmatpush1.msra.mxu0 %v7845
          %8093 = vmatprep.subr.mxu0 0.0
          %8094 = vmatpush1.msra.mxu0 %v7846
          %8095 = vmatprep.subr.mxu0 0.0
          %8096 = vmatpush1.msra.mxu0 %v7847
          %8097 = vmatprep.mubr.f32.mxu0 %v7937
          %8098 = vmatmul.mubr.f32.gmra.mrb[0].mxu0 %v7935
          %v8099 = vpop.f32.mrb[0].mxu0
          %v8100 = vadd.f32 %v8030, %v8099
          %v8101 = vpop.f32.mrb[0].mxu0
          %8102 = vdwg.mxu0
          %8103 = vmatprep.subr.mxu0 0.0
          %8104 = vmatpush1.msra.mxu0 %v7848
          %8105 = vmatprep.subr.mxu0 0.0
          %8106 = vmatpush1.msra.mxu0 %v7849
          %8107 = vmatprep.subr.mxu0 0.0
          %8108 = vmatpush1.msra.mxu0 %v7850
          %8109 = vmatprep.subr.mxu0 0.0
          %8110 = vmatpush1.msra.mxu0 %v7851
          %8111 = vmatprep.subr.mxu0 0.0
          %8112 = vmatpush1.msra.mxu0 %v7852
          %8113 = vmatprep.subr.mxu0 0.0
          %8114 = vmatpush1.msra.mxu0 %v7853
          %8115 = vmatprep.subr.mxu0 0.0
          %8116 = vmatpush1.msra.mxu0 %v7854
          %8117 = vmatprep.subr.mxu0 0.0
          %8118 = vmatpush1.msra.mxu0 %v7855
          %8119 = vmatprep.subr.mxu0 0.0
          %8120 = vmatpush1.msra.mxu0 %v7856
          %8121 = vmatprep.subr.mxu0 0.0
          %8122 = vmatpush1.msra.mxu0 %v7857
          %8123 = vmatprep.subr.mxu0 0.0
          %8124 = vmatpush1.msra.mxu0 %v7858
          %8125 = vmatprep.subr.mxu0 0.0
          %8126 = vmatpush1.msra.mxu0 %v7859
          %8127 = vmatprep.subr.mxu0 0.0
          %8128 = vmatpush1.msra.mxu0 %v7860
          %8129 = vmatprep.subr.mxu0 0.0
          %8130 = vmatpush1.msra.mxu0 %v7861
          %8131 = vmatprep.subr.mxu0 0.0
          %8132 = vmatpush1.msra.mxu0 %v7862
          %8133 = vmatprep.subr.mxu0 0.0
          %8134 = vmatpush1.msra.mxu0 %v7863
          %8135 = vmatprep.subr.mxu0 0.0
          %8136 = vmatpush1.msra.mxu0 %v7864
          %8137 = vmatprep.subr.mxu0 0.0
          %8138 = vmatpush1.msra.mxu0 %v7865
          %8139 = vmatprep.subr.mxu0 0.0
          %8140 = vmatpush1.msra.mxu0 %v7866
          %8141 = vmatprep.subr.mxu0 0.0
          %8142 = vmatpush1.msra.mxu0 %v7867
          %8143 = vmatprep.subr.mxu0 0.0
          %8144 = vmatpush1.msra.mxu0 %v7868
          %8145 = vmatprep.subr.mxu0 0.0
          %8146 = vmatpush1.msra.mxu0 %v7869
          %8147 = vmatprep.subr.mxu0 0.0
          %8148 = vmatpush1.msra.mxu0 %v7870
          %8149 = vmatprep.subr.mxu0 0.0
          %8150 = vmatpush1.msra.mxu0 %v7871
          %8151 = vmatprep.subr.mxu0 0.0
          %8152 = vmatpush1.msra.mxu0 %v7872
          %8153 = vmatprep.subr.mxu0 0.0
          %8154 = vmatpush1.msra.mxu0 %v7873
          %8155 = vmatprep.subr.mxu0 0.0
          %8156 = vmatpush1.msra.mxu0 %v7874
          %8157 = vmatprep.subr.mxu0 0.0
          %8158 = vmatpush1.msra.mxu0 %v7875
          %8159 = vmatprep.subr.mxu0 0.0
          %8160 = vmatpush1.msra.mxu0 %v7876
          %8161 = vmatprep.subr.mxu0 0.0
          %8162 = vmatpush1.msra.mxu0 %v7877
          %8163 = vmatprep.subr.mxu0 0.0
          %8164 = vmatpush1.msra.mxu0 %v7878
          %8165 = vmatprep.subr.mxu0 0.0
          %8166 = vmatpush1.msra.mxu0 %v7879
          %8167 = vmatprep.mubr.f32.mxu0 %v7953
          %8168 = vmatmul.mubr.f32.gmra.mrb[0].mxu0 %v7945
          %v8169 = vpop.f32.mrb[0].mxu0
          %v8170 = vadd.f32 %v8100, %v8169
          %v8171 = vpop.f32.mrb[0].mxu0
          %8172 = vdwg.mxu0
          %8173 = vmatprep.subr.mxu0 0.0
          %8174 = vmatpush1.msra.mxu0 %v7880
          %8175 = vmatprep.subr.mxu0 0.0
          %8176 = vmatpush1.msra.mxu0 %v7881
          %8177 = vmatprep.subr.mxu0 0.0
          %8178 = vmatpush1.msra.mxu0 %v7882
          %8179 = vmatprep.subr.mxu0 0.0
          %8180 = vmatpush1.msra.mxu0 %v7883
          %8181 = vmatprep.subr.mxu0 0.0
          %8182 = vmatpush1.msra.mxu0 %v7884
          %8183 = vmatprep.subr.mxu0 0.0
          %8184 = vmatpush1.msra.mxu0 %v7885
          %8185 = vmatprep.subr.mxu0 0.0
          %8186 = vmatpush1.msra.mxu0 %v7886
          %8187 = vmatprep.subr.mxu0 0.0
          %8188 = vmatpush1.msra.mxu0 %v7887
          %8189 = vmatprep.subr.mxu0 0.0
          %8190 = vmatpush1.msra.mxu0 %v7888
          %8191 = vmatprep.subr.mxu0 0.0
          %8192 = vmatpush1.msra.mxu0 %v7889
          %8193 = vmatprep.subr.mxu0 0.0
          %8194 = vmatpush1.msra.mxu0 %v7890
          %8195 = vmatprep.subr.mxu0 0.0
          %8196 = vmatpush1.msra.mxu0 %v7891
          %8197 = vmatprep.subr.mxu0 0.0
          %8198 = vmatpush1.msra.mxu0 %v7892
          %8199 = vmatprep.subr.mxu0 0.0
          %8200 = vmatpush1.msra.mxu0 %v7893
          %8201 = vmatprep.subr.mxu0 0.0
          %8202 = vmatpush1.msra.mxu0 %v7894
          %8203 = vmatprep.subr.mxu0 0.0
          %8204 = vmatpush1.msra.mxu0 %v7895
          %8205 = vmatprep.subr.mxu0 0.0
          %8206 = vmatpush1.msra.mxu0 %v7896
          %8207 = vmatprep.subr.mxu0 0.0
          %8208 = vmatpush1.msra.mxu0 %v7897
          %8209 = vmatprep.subr.mxu0 0.0
          %8210 = vmatpush1.msra.mxu0 %v7898
          %8211 = vmatprep.subr.mxu0 0.0
          %8212 = vmatpush1.msra.mxu0 %v7899
          %8213 = vmatprep.subr.mxu0 0.0
          %8214 = vmatpush1.msra.mxu0 %v7900
          %8215 = vmatprep.subr.mxu0 0.0
          %8216 = vmatpush1.msra.mxu0 %v7901
          %8217 = vmatprep.subr.mxu0 0.0
          %8218 = vmatpush1.msra.mxu0 %v7902
          %8219 = vmatprep.subr.mxu0 0.0
          %8220 = vmatpush1.msra.mxu0 %v7903
          %8221 = vmatprep.subr.mxu0 0.0
          %8222 = vmatpush1.msra.mxu0 %v7904
          %8223 = vmatprep.subr.mxu0 0.0
          %8224 = vmatpush1.msra.mxu0 %v7905
          %8225 = vmatprep.subr.mxu0 0.0
          %8226 = vmatpush1.msra.mxu0 %v7906
          %8227 = vmatprep.subr.mxu0 0.0
          %8228 = vmatpush1.msra.mxu0 %v7907
          %8229 = vmatprep.subr.mxu0 0.0
          %8230 = vmatpush1.msra.mxu0 %v7908
          %8231 = vmatprep.subr.mxu0 0.0
          %8232 = vmatpush1.msra.mxu0 %v7909
          %8233 = vmatprep.subr.mxu0 0.0
          %8234 = vmatpush1.msra.mxu0 %v7910
          %8235 = vmatprep.subr.mxu0 0.0
          %8236 = vmatpush1.msra.mxu0 %v7911
          %8237 = vmatprep.mubr.f32.mxu0 %v7954
          %8238 = vmatmul.mubr.f32.gmra.mrb[0].mxu0 %v7952
          %v8239 = vpop.f32.mrb[0].mxu0
          %v8240 = vadd.f32 %v8170, %v8239
          %v8241 = vpop.f32.mrb[0].mxu0
          %8242 = vdwg.mxu0
          %v8243 = vld [vmem:[#allocation12] sm:$0x1]
          %v8244 = vld [vmem:[#allocation14] sm:$0x1]
          %vm8245 = vcmask 812032
          %v8246 = vsel %vm8245, %v8240, 0.0
          %8247 = vadd.xlane.f32.xlu0 %v8246
          %v8248 = vpop.xlane.xlu0 %8247
          %v8249 = vrcp.pop 100.0
          %v8250 = vmul.f32 %v8248, %v8249
          %v8251 = vsub.f32 %v8240, %v8250
          %v8252 = vmul.f32 %v8251, %v8251
          %v8253 = vsel %vm8245, %v8252, 0.0
          %8254 = vadd.xlane.f32.xlu0 %v8253
          %v8255 = vpop.xlane.xlu0 %8254
          %v8256 = vmul.f32 %v8255, %v8249
          %v8257 = vadd.f32 %v8256, 1e-05
          %v8258 = vrsqrt.pop %v8257
          %v8259 = vmul.f32 %v8251, %v8258
          %v8261 = vlaneseq
          %v8262 = vshrl.u32 %v8261, 7
          %v8263 = vsub.s32 0, %v8262
          %v8264 = vrot.slane %v8243, %v8263
          %v8266 = vmul.f32 %v8259, %v8264
          %v8268 = vlaneseq
          %v8269 = vshrl.u32 %v8268, 7
          %v8270 = vsub.s32 0, %v8269
          %v8271 = vrot.slane %v8244, %v8270
          %v8273 = vadd.f32 %v8266, %v8271
          %v8274 = vmax.f32 %v8273, 0.0
          %v8275 = vld [vmem:[%s9] sm:$0xff]
          %v8276 = vld [vmem:[%s9 + $0x8] sm:$0xff]
          %v8277 = vld [vmem:[%s9 + $0x10] sm:$0xff]
          %v8278 = vld [vmem:[%s9 + $0x18] sm:$0xff]
          %v8279 = vld [vmem:[%s9 + $0x20] sm:$0xff]
          %v8280 = vld [vmem:[%s9 + $0x28] sm:$0xff]
          %v8281 = vld [vmem:[%s9 + $0x30] sm:$0xff]
          %v8282 = vld [vmem:[%s9 + $0x38] sm:$0xff]
          %v8283 = vld [vmem:[%s9 + $0x40] sm:$0xff]
          %v8284 = vld [vmem:[%s9 + $0x48] sm:$0xff]
          %v8285 = vld [vmem:[%s9 + $0x50] sm:$0xff]
          %v8286 = vld [vmem:[%s9 + $0x58] sm:$0xff]
          %v8287 = vld [vmem:[%s9 + $0x60] sm:$0xf]
          %v8288 = vld [vmem:[#allocation15] sm:$0x1]
          %v8290 = vlaneseq
          %v8291 = vshrl.u32 %v8290, 7
          %v8292 = vsub.s32 0, %v8291
          %v8293 = vrot.slane %v8288, %v8292
          %vm8295 = vcmask 818176
          %v8297 = vsel %vm8295, %v8274, 0
          %vm8299 = vcmask 1043456
          %v8301 = vsel %vm8299, %v8287, 0
          %8303 = vmatprep.subr.mxu0 0.0
          %8304 = vmatpush1.msra.mxu0 %v8275
          %8305 = vmatprep.subr.mxu0 0.0
          %8306 = vmatpush1.msra.mxu0 %v8276
          %8307 = vmatprep.subr.mxu0 0.0
          %8308 = vmatpush1.msra.mxu0 %v8277
          %8309 = vmatprep.subr.mxu0 0.0
          %8310 = vmatpush1.msra.mxu0 %v8278
          %8311 = vmatprep.subr.mxu0 0.0
          %8312 = vmatpush1.msra.mxu0 %v8279
          %8313 = vmatprep.subr.mxu0 0.0
          %8314 = vmatpush1.msra.mxu0 %v8280
          %8315 = vmatprep.subr.mxu0 0.0
          %8316 = vmatpush1.msra.mxu0 %v8281
          %8317 = vmatprep.subr.mxu0 0.0
          %8318 = vmatpush1.msra.mxu0 %v8282
          %8319 = vmatprep.subr.mxu0 0.0
          %8320 = vmatpush1.msra.mxu0 %v8283
          %8321 = vmatprep.subr.mxu0 0.0
          %8322 = vmatpush1.msra.mxu0 %v8284
          %8323 = vmatprep.subr.mxu0 0.0
          %8324 = vmatpush1.msra.mxu0 %v8285
          %8325 = vmatprep.subr.mxu0 0.0
          %8326 = vmatpush1.msra.mxu0 %v8286
          %8327 = vmatprep.subr.mxu0 0.0
          %8328 = vmatpush1.msra.mxu0 %v8301
          %8329 = vmatprep.subr.mxu0 0.0
          %8330 = vmatpush1.msra.mxu0 0.0
          %8331 = vmatprep.subr.mxu0 0.0
          %8332 = vmatpush1.msra.mxu0 0.0
          %8333 = vmatprep.subr.mxu0 0.0
          %8334 = vmatpush1.msra.mxu0 0.0
          %8335 = vmatprep.subr.mxu0 0.0
          %8336 = vmatpush1.msra.mxu0 0.0
          %8337 = vmatprep.subr.mxu0 0.0
          %8338 = vmatpush1.msra.mxu0 0.0
          %8339 = vmatprep.subr.mxu0 0.0
          %8340 = vmatpush1.msra.mxu0 0.0
          %8341 = vmatprep.subr.mxu0 0.0
          %8342 = vmatpush1.msra.mxu0 0.0
          %8343 = vmatprep.subr.mxu0 0.0
          %8344 = vmatpush1.msra.mxu0 0.0
          %8345 = vmatprep.subr.mxu0 0.0
          %8346 = vmatpush1.msra.mxu0 0.0
          %8347 = vmatprep.subr.mxu0 0.0
          %8348 = vmatpush1.msra.mxu0 0.0
          %8349 = vmatprep.subr.mxu0 0.0
          %8350 = vmatpush1.msra.mxu0 0.0
          %8351 = vmatprep.subr.mxu0 0.0
          %8352 = vmatpush1.msra.mxu0 0.0
          %8353 = vmatprep.subr.mxu0 0.0
          %8354 = vmatpush1.msra.mxu0 0.0
          %8355 = vmatprep.subr.mxu0 0.0
          %8356 = vmatpush1.msra.mxu0 0.0
          %8357 = vmatprep.subr.mxu0 0.0
          %8358 = vmatpush1.msra.mxu0 0.0
          %8359 = vmatprep.subr.mxu0 0.0
          %8360 = vmatpush1.msra.mxu0 0.0
          %8361 = vmatprep.subr.mxu0 0.0
          %8362 = vmatpush1.msra.mxu0 0.0
          %8363 = vmatprep.subr.mxu0 0.0
          %8364 = vmatpush1.msra.mxu0 0.0
          %8365 = vmatprep.subr.mxu0 0.0
          %8366 = vmatpush1.msra.mxu0 0.0
          %8367 = vmatprep.mubr.f32.mxu0 0.0
          %8368 = vmatmul.mubr.f32.gmra.mrb[0].mxu0 %v8297
          %v8369 = vpop.f32.mrb[0].mxu0
          %v8370 = vadd.f32 %v8293, %v8369
          %v8371 = vpop.f32.mrb[0].mxu0
          %8372 = vdwg.mxu0
          %v8373 = vld [vmem:[#allocation17] sm:$0x1]
          %v8374 = vld [vmem:[#allocation18] sm:$0x1]
          %vm8375 = vcmask 74752
          %v8376 = vsel %vm8375, %v8370, 0.0
          %8377 = vadd.xlane.f32.xlu0 %v8376
          %v8378 = vpop.xlane.xlu0 %8377
          %v8379 = vrcp.pop 10.0
          %v8380 = vmul.f32 %v8378, %v8379
          %v8381 = vsub.f32 %v8370, %v8380
          %v8382 = vmul.f32 %v8381, %v8381
          %v8383 = vsel %vm8375, %v8382, 0.0
          %8384 = vadd.xlane.f32.xlu0 %v8383
          %v8385 = vpop.xlane.xlu0 %8384
          %v8386 = vmul.f32 %v8385, %v8379
          %v8387 = vadd.f32 %v8386, 1e-05
          %v8388 = vrsqrt.pop %v8387
          %v8389 = vmul.f32 %v8381, %v8388
          %v8391 = vlaneseq
          %v8392 = vshrl.u32 %v8391, 7
          %v8393 = vsub.s32 0, %v8392
          %v8394 = vrot.slane %v8373, %v8393
          %v8396 = vmul.f32 %v8389, %v8394
          %v8398 = vlaneseq
          %v8399 = vshrl.u32 %v8398, 7
          %v8400 = vsub.s32 0, %v8399
          %v8401 = vrot.slane %v8374, %v8400
          %v8403 = vadd.f32 %v8396, %v8401
          %v8404 = vmax.f32 %v8403, 0.0
          %v8405 = vld [vmem:[%s13] sm:$0xff]
          %v8406 = vld [vmem:[%s13 + $0x8] sm:$0x3]
          %v8407 = vld [vmem:[#allocation3] sm:$0x1]
          %v8409 = vlaneseq
          %v8410 = vshrl.u32 %v8409, 7
          %v8411 = vsub.s32 0, %v8410
          %v8412 = vrot.slane %v8407, %v8411
          %vm8414 = vcmask 80896
          %v8416 = vsel %vm8414, %v8404, 0
          %v8419 = vsel %vm7485, %v8406, 0
          %8421 = vmatprep.subr.mxu0 0.0
          %8422 = vmatpush1.msra.mxu0 %v8405
          %8423 = vmatprep.subr.mxu0 0.0
          %8424 = vmatpush1.msra.mxu0 %v8419
          %8425 = vmatprep.subr.mxu0 0.0
          %8426 = vmatpush1.msra.mxu0 0.0
          %8427 = vmatprep.subr.mxu0 0.0
          %8428 = vmatpush1.msra.mxu0 0.0
          %8429 = vmatprep.subr.mxu0 0.0
          %8430 = vmatpush1.msra.mxu0 0.0
          %8431 = vmatprep.subr.mxu0 0.0
          %8432 = vmatpush1.msra.mxu0 0.0
          %8433 = vmatprep.subr.mxu0 0.0
          %8434 = vmatpush1.msra.mxu0 0.0
          %8435 = vmatprep.subr.mxu0 0.0
          %8436 = vmatpush1.msra.mxu0 0.0
          %8437 = vmatprep.subr.mxu0 0.0
          %8438 = vmatpush1.msra.mxu0 0.0
          %8439 = vmatprep.subr.mxu0 0.0
          %8440 = vmatpush1.msra.mxu0 0.0
          %8441 = vmatprep.subr.mxu0 0.0
          %8442 = vmatpush1.msra.mxu0 0.0
          %8443 = vmatprep.subr.mxu0 0.0
          %8444 = vmatpush1.msra.mxu0 0.0
          %8445 = vmatprep.subr.mxu0 0.0
          %8446 = vmatpush1.msra.mxu0 0.0
          %8447 = vmatprep.subr.mxu0 0.0
          %8448 = vmatpush1.msra.mxu0 0.0
          %8449 = vmatprep.subr.mxu0 0.0
          %8450 = vmatpush1.msra.mxu0 0.0
          %8451 = vmatprep.subr.mxu0 0.0
          %8452 = vmatpush1.msra.mxu0 0.0
          %8453 = vmatprep.subr.mxu0 0.0
          %8454 = vmatpush1.msra.mxu0 0.0
          %8455 = vmatprep.subr.mxu0 0.0
          %8456 = vmatpush1.msra.mxu0 0.0
          %8457 = vmatprep.subr.mxu0 0.0
          %8458 = vmatpush1.msra.mxu0 0.0
          %8459 = vmatprep.subr.mxu0 0.0
          %8460 = vmatpush1.msra.mxu0 0.0
          %8461 = vmatprep.subr.mxu0 0.0
          %8462 = vmatpush1.msra.mxu0 0.0
          %8463 = vmatprep.subr.mxu0 0.0
          %8464 = vmatpush1.msra.mxu0 0.0
          %8465 = vmatprep.subr.mxu0 0.0
          %8466 = vmatpush1.msra.mxu0 0.0
          %8467 = vmatprep.subr.mxu0 0.0
          %8468 = vmatpush1.msra.mxu0 0.0
          %8469 = vmatprep.subr.mxu0 0.0
          %8470 = vmatpush1.msra.mxu0 0.0
          %8471 = vmatprep.subr.mxu0 0.0
          %8472 = vmatpush1.msra.mxu0 0.0
          %8473 = vmatprep.subr.mxu0 0.0
          %8474 = vmatpush1.msra.mxu0 0.0
          %8475 = vmatprep.subr.mxu0 0.0
          %8476 = vmatpush1.msra.mxu0 0.0
          %8477 = vmatprep.subr.mxu0 0.0
          %8478 = vmatpush1.msra.mxu0 0.0
          %8479 = vmatprep.subr.mxu0 0.0
          %8480 = vmatpush1.msra.mxu0 0.0
          %8481 = vmatprep.subr.mxu0 0.0
          %8482 = vmatpush1.msra.mxu0 0.0
          %8483 = vmatprep.subr.mxu0 0.0
          %8484 = vmatpush1.msra.mxu0 0.0
          %8485 = vmatprep.mubr.f32.mxu0 0.0
          %8486 = vmatmul.mubr.f32.gmra.mrb[0].mxu0 %v8416
          %v8487 = vpop.f32.mrb[0].mxu0
          %v8488 = vadd.f32 %v8412, %v8487
          %v8489 = vpop.f32.mrb[0].mxu0
          %8490 = vdwg.mxu0
          %vm8491 = vcmask 1024
          %8492 = vst.msk [vmem:[%s15] sm:$0x3] %vm8491, %v8488
        $region128: #{mplnet_forward.1} parent=79 // pred_fallthru
          _
        // Predicated region
        $region129: #{mplnet_forward.1} parent=79 // pred_check
          %p8493 = pneg %p374
        $region130: #{mplnet_forward.1} parent=79 // pred_check_branch
          %8495 = sbr.rel (%p8493) target = $region132
        $region131: #{mplnet_forward.1} parent=79 // pred_region
          _
        $region132: #{mplnet_forward.1} parent=79 // pred_fallthru
          _
        // Predicated region
        $region133: #{mplnet_forward.1} parent=79 // pred_check
          %p8496 = pneg %p374
        $region134: #{mplnet_forward.1} parent=79 // pred_check_branch
          %8498 = sbr.rel (%p8496) target = $region136
        $region135: #{mplnet_forward.1} parent=79 // pred_region
          _
        $region136: #{mplnet_forward.1} parent=79 // pred_fallthru
          _
      $region80: #{mplnet_forward.1} parent=5 // pred_fallthru
        _
      %p8499 = scmp.le.s32.totalorder 2, %s31
      // Predicated region
      $region137: #{mplnet_forward.1} parent=5 // pred_check
        %p8500 = pneg %p8499
      $region138: #{mplnet_forward.1} parent=5 // pred_check_branch
        %8502 = sbr.rel (%p8500) target = $region140
      $region139: #{mplnet_forward.1} parent=5 // pred_region
        %s8503 = ssub.s32 %s31, 2
      $region140: #{mplnet_forward.1} parent=5 // pred_fallthru
        _
    $region6: #{mplnet_forward.1} parent=1 // loop_footer
      %s35 = sadd.s32 1, %s31
    $region7: #{mplnet_forward.1} parent=1 // loop_footer_branch
      %30 = sbr.rel target = $region3
    $region8: #{mplnet_forward.1} parent=1 // loop_exit
      _
    %8504 = vsyncpa [#allocation5], 1
    %s8505 = scalar_lea.sflag [#allocation5], 1
    %8506 = vsyncpa %s8505, 1
    %8507 = vsyncpa [#allocation7], 1
    %8508 = vsyncpa [#allocation10], 1
    %8509 = vsyncpa [#allocation13], 1
    %8510 = vsyncpa [#allocation16], 1
    %8511 = vsyncpa [#allocation19], 1

</llo_original>
